<compile_context>
chip_gen: v7x
topology: tpu7x:2x2x1
jax: 0.10.0
libtpu: 0.0.40
codegen_flags: <defaults>
</compile_context>

<pallas_src>
import functools
import math

import numpy as np
import jax
import jax.numpy as jnp
from jax.experimental import pallas as pl
from jax.experimental.pallas import tpu as pltpu


# ----------------------------------------------------------------------------
# Static rel-shift permutation matrix (trace-time constant)
# ----------------------------------------------------------------------------
def _build_rel_shift_matrix(batch, seq):
    """(B*S, B*S) 0/1 matrix that reproduces RecurrenceAttention._rel_shift —
    including its batch-mixing zero-pad + flat .view reindex — as a row
    permutation (rows coming from the injected zero padding stay all-zero)."""
    g = np.zeros((batch * seq, batch * seq), dtype=np.float32)
    for b in range(batch):
        for i in range(seq):
            m = batch + b * seq + i              # row index in the padded slab
            b_p, i_p = divmod(m, seq + 1)
            if i_p > 0:                          # i_p == 0 -> zero row
                g[b * seq + i, b_p * seq + (i_p - 1)] = 1.0
    return g


# ----------------------------------------------------------------------------
# In-kernel exact-erf GELU (A&S 7.1.26, max abs err ~1.5e-7)
# ----------------------------------------------------------------------------
_ERF_A = (0.254829592, -0.284496736, 1.421413741, -1.453152027, 1.061405429)
_ERF_P = 0.3275911


def _erf(z):
    a1, a2, a3, a4, a5 = _ERF_A
    s = jnp.where(z >= 0.0, 1.0, -1.0)
    az = jnp.abs(z)
    t = 1.0 / (1.0 + _ERF_P * az)
    poly = ((((a5 * t + a4) * t + a3) * t + a2) * t + a1) * t
    return s * (1.0 - poly * jnp.exp(-az * az))


def _gelu_exact(z):
    return 0.5 * z * (1.0 + _erf(z * (1.0 / math.sqrt(2.0))))


# ----------------------------------------------------------------------------
# Fused decoder-layer kernel (whole layer, VMEM resident)
# ----------------------------------------------------------------------------
def _decoder_layer_kernel(
        x_ref, enc_ref, mem_ref, pe_ref, u_ref, vb_ref, shift_ref,
        ln1_g_ref, ln1_b_ref,
        rec_q_w_ref, rec_kv_w_ref, rec_fc_w_ref, rec_fc_b_ref,
        rec_ln_g_ref, rec_ln_b_ref,
        ln2_g_ref, ln2_b_ref,
        ca_q_w_ref, ca_kv_w_ref, ca_fc_w_ref, ca_fc_b_ref,
        ca_ln_g_ref, ca_ln_b_ref,
        ln3_g_ref, ln3_b_ref,
        fc1_w_ref, fc1_b_ref, fc2_w_ref, fc2_b_ref,
        out_ref,
        *, batch, seq, mem_len, enc_len, num_heads, d_head, d_model):
    f32 = jnp.float32
    d_inner = num_heads * d_head
    scale = 1.0 / math.sqrt(d_head)
    nt = (((1,), (1,)), ((), ()))                 # a @ b.T (contract last dims)

    def ln(z, g_r, b_r):                          # LayerNorm, eps = 1e-5
        mu = jnp.mean(z, axis=-1, keepdims=True)
        zc = z - mu
        var = jnp.mean(zc * zc, axis=-1, keepdims=True)
        return zc * jax.lax.rsqrt(var + 1e-5) * g_r[...] + b_r[...]

    def softmax_q(s):
        # softmax over the *query* axis (rows) — faithful to F.softmax(dim=1).
        e = jnp.exp(s - jnp.max(s, axis=0, keepdims=True))
        denom = jnp.sum(e, axis=0, keepdims=True)
        # TODO(synk): approx=True is a free EUP op; kept exact for the 2e-3 check.
        return e * pl.reciprocal(denom, approx=False)

    x_all = x_ref[...]                            # (B*S, D)
    mem_all = mem_ref[...]                        # (B*M, D)
    enc_all = enc_ref[...]                        # (B*E, D)
    pe = pe_ref[...]                              # (T,  H*dh), T = M + S

    rec_fc_w = rec_fc_w_ref[...]                  # (H*dh, D)
    ca_fc_w = ca_fc_w_ref[...]                    # (H*dh, D)

    # ---- LN1 + relative-attention projections, batched over all rows -------
    xln_all = ln(x_all, ln1_g_ref, ln1_b_ref)                        # (B*S, D)
    q_all = jnp.dot(xln_all, rec_q_w_ref[...], preferred_element_type=f32)
    qu_all = q_all + u_ref[...]                   # content-bias queries
    qv_all = q_all + vb_ref[...]                  # position-bias queries
    # Transformer-XL _rel_shift as a static row-permutation matmul (MXU):
    # rows originating from the zero padding of the slab become all-zero,
    # so the resulting position scores are exactly the shifted reference ones.
    qvs_all = jnp.dot(shift_ref[...], qv_all, preferred_element_type=f32)

    kvx_all = jnp.dot(xln_all, rec_kv_w_ref[...], preferred_element_type=f32)
    kvm_all = jnp.dot(mem_all, rec_kv_w_ref[...], preferred_element_type=f32)
    kv2_all = jnp.dot(enc_all, ca_kv_w_ref[...], preferred_element_type=f32)

    # TODO(synk): tgt_mask / pad_mask (None in this benchmark) are not applied;
    #             a masked fill would slot in right before softmax_q().
    for b in range(batch):
        rs = slice(b * seq, (b + 1) * seq)
        x_b, xln_b = x_all[rs], xln_all[rs]
        qu_b, qvs_b = qu_all[rs], qvs_all[rs]
        kx_b = kvx_all[rs]                                      # (S, 2*H*dh)
        km_b = kvm_all[b * mem_len:(b + 1) * mem_len]           # (M, 2*H*dh)

        # ------------------ relative self-attention --------------------------
        o1 = jnp.zeros((seq, d_model), f32)
        for h in range(num_heads):
            c0, c1 = h * d_head, (h + 1) * d_head
            v0, v1 = d_inner + c0, d_inner + c1
            qu_h, qvs_h = qu_b[:, c0:c1], qvs_b[:, c0:c1]
            # key axis kept split as [memory keys | current keys]; softmax is
            # over queries, so the two blocks normalize independently.
            s_mem = (jax.lax.dot_general(qu_h, km_b[:, c0:c1], nt,
                                         preferred_element_type=f32)
                     + jax.lax.dot_general(qvs_h, pe[:mem_len, c0:c1], nt,
                                           preferred_element_type=f32)) * scale
            s_cur = (jax.lax.dot_general(qu_h, kx_b[:, c0:c1], nt,
                                         preferred_element_type=f32)
                     + jax.lax.dot_general(qvs_h, pe[mem_len:, c0:c1], nt,
                                           preferred_element_type=f32)) * scale
            ctx_h = (jnp.dot(softmax_q(s_mem), km_b[:, v0:v1],
                             preferred_element_type=f32)
                     + jnp.dot(softmax_q(s_cur), kx_b[:, v0:v1],
                               preferred_element_type=f32))
            # fold the per-head slice of the output projection in directly —
            # no per-head narrow stores, the head sum accumulates in registers.
            o1 = o1 + jnp.dot(ctx_h, rec_fc_w[c0:c1, :],
                              preferred_element_type=f32)
        o1 = o1 + rec_fc_b_ref[...]
        out1 = x_b + ln(xln_b + o1, rec_ln_g_ref, rec_ln_b_ref)

        # ------------------ cross attention -----------------------------------
        dec_b = ln(out1, ln2_g_ref, ln2_b_ref)
        q2 = jnp.dot(dec_b, ca_q_w_ref[...], preferred_element_type=f32)
        kv2_b = kv2_all[b * enc_len:(b + 1) * enc_len]          # (E, 2*H*dh)
        o2 = jnp.zeros((seq, d_model), f32)
        for h in range(num_heads):
            c0, c1 = h * d_head, (h + 1) * d_head
            v0, v1 = d_inner + c0, d_inner + c1
            s_h = jax.lax.dot_general(q2[:, c0:c1], kv2_b[:, c0:c1], nt,
                                      preferred_element_type=f32) * scale
            ctx_h = jnp.dot(softmax_q(s_h), kv2_b[:, v0:v1],
                            preferred_element_type=f32)
            o2 = o2 + jnp.dot(ctx_h, ca_fc_w[c0:c1, :],
                              preferred_element_type=f32)
        o2 = o2 + ca_fc_b_ref[...]
        out2 = out1 + ln(dec_b + o2, ca_ln_g_ref, ca_ln_b_ref)

        # ------------------ feed-forward: fc1 -> exact-erf GELU -> fc2 --------
        h3 = ln(out2, ln3_g_ref, ln3_b_ref)
        h3 = jnp.dot(h3, fc1_w_ref[...], preferred_element_type=f32) + fc1_b_ref[...]
        h3 = _gelu_exact(h3)
        h3 = jnp.dot(h3, fc2_w_ref[...], preferred_element_type=f32) + fc2_b_ref[...]
        out_ref[rs, :] = (out2 + h3).astype(out_ref.dtype)


# ----------------------------------------------------------------------------
# Wrapper: one pallas_call for the whole layer
# ----------------------------------------------------------------------------
def transformer_decoder_layer_relative(x, enc_output, pos_emb, u, vb, mem, p,
                                       num_heads, d_head):
    B, S, D = x.shape
    E = enc_output.shape[1]
    M = mem.shape[1]
    d_inner = num_heads * d_head
    f32 = jnp.float32

    shift = jnp.asarray(_build_rel_shift_matrix(B, S))

    def r1(a):          # row-vector view of a 1-D parameter
        return a.reshape(1, -1).astype(f32)

    args = (
        x.reshape(B * S, D).astype(f32),
        enc_output.reshape(B * E, D).astype(f32),
        mem.reshape(B * M, D).astype(f32),
        pos_emb.astype(f32),
        u.reshape(1, d_inner).astype(f32),
        vb.reshape(1, d_inner).astype(f32),
        shift,
        r1(p["ln1_g"]), r1(p["ln1_b"]),
        p["rec_q_w"].astype(f32), p["rec_kv_w"].astype(f32),
        p["rec_fc_w"].astype(f32), r1(p["rec_fc_b"]),
        r1(p["rec_ln_g"]), r1(p["rec_ln_b"]),
        r1(p["ln2_g"]), r1(p["ln2_b"]),
        p["ca_q_w"].astype(f32), p["ca_kv_w"].astype(f32),
        p["ca_fc_w"].astype(f32), r1(p["ca_fc_b"]),
        r1(p["ca_ln_g"]), r1(p["ca_ln_b"]),
        r1(p["ln3_g"]), r1(p["ln3_b"]),
        p["fc1_w"].astype(f32), r1(p["fc1_b"]),
        p["fc2_w"].astype(f32), r1(p["fc2_b"]),
    )

    kernel = functools.partial(
        _decoder_layer_kernel,
        batch=B, seq=S, mem_len=M, enc_len=E,
        num_heads=num_heads, d_head=d_head, d_model=D)

    out = pl.pallas_call(
        kernel,
        out_shape=jax.ShapeDtypeStruct((B * S, D), f32),
        in_specs=[pl.BlockSpec(memory_space=pltpu.MemorySpace.VMEM)
                  for _ in args],
        out_specs=pl.BlockSpec(memory_space=pltpu.MemorySpace.VMEM),
    )(*args)

    return out.reshape(B, S, D).astype(x.dtype)


# ----------------------------------------------------------------------------
# Pure-JAX reference (mirrors the PyTorch module, eval mode)
# ----------------------------------------------------------------------------
def _rel_shift(x):
    """Exact replica of RecurrenceAttention._rel_shift on a (B, I, J, H) tensor
    (including its batch-mixing view trick)."""
    b, i, j, h = x.shape
    zero_pad = jnp.zeros((b, 1, j, h), x.dtype)
    x_padded = jnp.concatenate([zero_pad, x], axis=1)
    x_padded = x_padded.reshape(i + 1, b, j, h)
    return x_padded[1:].reshape(b, i, j, h)


def reference_forward(x, enc_output, pos_emb, u, vb, mem, p, num_heads, d_head):
    P = jax.lax.Precision.HIGHEST

    def ln(z, g, b):
        mu = jnp.mean(z, axis=-1, keepdims=True)
        var = jnp.mean((z - mu) ** 2, axis=-1, keepdims=True)
        return (z - mu) / jnp.sqrt(var + 1e-5) * g + b

    def rec_attn(xin):
        B, S, _ = xin.shape
        h_telda = jnp.concatenate([mem, xin], axis=1)
        T = h_telda.shape[1]
        q = jnp.matmul(xin, p["rec_q_w"], precision=P)
        kv = jnp.matmul(h_telda, p["rec_kv_w"], precision=P)
        k, v = jnp.split(kv, 2, axis=-1)
        q4 = q.reshape(B, S, num_heads, d_head)
        k4 = k.reshape(B, T, num_heads, d_head)
        v4 = v.reshape(B, T, num_heads, d_head)
        pe = pos_emb.reshape(T, num_heads, d_head)
        cont = jnp.einsum("bihd,bjhd->bijh", q4 + u, k4, precision=P)
        pos = jnp.einsum("bihd,jhd->bijh", q4 + vb, pe, precision=P)
        attn = (cont + _rel_shift(pos)) / d_head ** 0.5
        attn = jax.nn.softmax(attn, axis=1)
        w = jnp.einsum("bijh,bjhd->bihd", attn, v4,
                       precision=P).reshape(B, S, -1)
        o = jnp.matmul(w, p["rec_fc_w"], precision=P) + p["rec_fc_b"]
        return ln(xin + o, p["rec_ln_g"], p["rec_ln_b"])

    def cross_attn(dec, enc):
        B, S, _ = dec.shape
        E = enc.shape[1]
        q = jnp.matmul(dec, p["ca_q_w"], precision=P)
        kv = jnp.matmul(enc, p["ca_kv_w"], precision=P)
        k, v = jnp.split(kv, 2, axis=-1)
        q4 = q.reshape(B, S, num_heads, d_head)
        k4 = k.reshape(B, E, num_heads, d_head)
        v4 = v.reshape(B, E, num_heads, d_head)
        attn = jnp.einsum("bihd,bjhd->bijh", q4, k4,
                          precision=P) / d_head ** 0.5
        attn = jax.nn.softmax(attn, axis=1)
        w = jnp.einsum("bijh,bjhd->bihd", attn, v4,
                       precision=P).reshape(B, S, -1)
        o = jnp.matmul(w, p["ca_fc_w"], precision=P) + p["ca_fc_b"]
        return ln(dec + o, p["ca_ln_g"], p["ca_ln_b"])

    out = x + rec_attn(ln(x, p["ln1_g"], p["ln1_b"]))
    out2 = out + cross_attn(ln(out, p["ln2_g"], p["ln2_b"]), enc_output)
    h = ln(out2, p["ln3_g"], p["ln3_b"])
    h = jax.nn.gelu(jnp.matmul(h, p["fc1_w"], precision=P) + p["fc1_b"],
                    approximate=False)
    h = jnp.matmul(h, p["fc2_w"], precision=P) + p["fc2_b"]
    return out2 + h


if __name__ == "__main__":
    D_MODEL, NUM_HEADS, D_INNER, DFF = 32, 4, 32, 64
    D_HEAD = D_INNER // NUM_HEADS
    B, S, MEM_LEN, ENC_LEN = 2, 8, 8, 8
    T = S + MEM_LEN

    key = jax.random.PRNGKey(0)
    ks = iter(jax.random.split(key, 40))

    def rnd(shape, scale=1.0):
        return jax.random.normal(next(ks), shape, dtype=jnp.float32) * scale

    p = dict(
        ln1_g=1.0 + rnd((D_MODEL,), 0.1), ln1_b=rnd((D_MODEL,), 0.1),
        ln2_g=1.0 + rnd((D_MODEL,), 0.1), ln2_b=rnd((D_MODEL,), 0.1),
        ln3_g=1.0 + rnd((D_MODEL,), 0.1), ln3_b=rnd((D_MODEL,), 0.1),
        rec_q_w=rnd((D_MODEL, D_INNER), 0.2),
        rec_kv_w=rnd((D_MODEL, 2 * D_INNER), 0.2),
        rec_fc_w=rnd((D_INNER, D_MODEL), 0.2),
        rec_fc_b=rnd((D_MODEL,), 0.1),
        rec_ln_g=1.0 + rnd((D_MODEL,), 0.1), rec_ln_b=rnd((D_MODEL,), 0.1),
        ca_q_w=rnd((D_MODEL, D_INNER), 0.2),
        ca_kv_w=rnd((D_MODEL, 2 * D_INNER), 0.2),
        ca_fc_w=rnd((D_INNER, D_MODEL), 0.2),
        ca_fc_b=rnd((D_MODEL,), 0.1),
        ca_ln_g=1.0 + rnd((D_MODEL,), 0.1), ca_ln_b=rnd((D_MODEL,), 0.1),
        fc1_w=rnd((D_MODEL, DFF), 0.2), fc1_b=rnd((DFF,), 0.1),
        fc2_w=rnd((DFF, D_MODEL), 0.2), fc2_b=rnd((D_MODEL,), 0.1),
    )

    x = rnd((B, S, D_MODEL))
    enc_output = rnd((B, ENC_LEN, D_MODEL))
    mem = rnd((B, MEM_LEN, D_MODEL))
    pos_emb = rnd((T, D_INNER))
    u = rnd((NUM_HEADS, D_HEAD), 0.1)
    vb = rnd((NUM_HEADS, D_HEAD), 0.1)

    fwd = jax.jit(functools.partial(transformer_decoder_layer_relative,
                                    num_heads=NUM_HEADS, d_head=D_HEAD))
    out = jax.block_until_ready(fwd(x, enc_output, pos_emb, u, vb, mem, p))

    ref = jax.block_until_ready(
        reference_forward(x, enc_output, pos_emb, u, vb, mem, p,
                          NUM_HEADS, D_HEAD))

    assert out.shape == (B, S, D_MODEL)
    max_err = float(jnp.max(jnp.abs(out - ref)))
    assert max_err < 2e-3, f"max abs error {max_err}"

    print("KERNEL_OK")
</pallas_src>

<mosaic_0001>
module attributes {stable_mosaic.version = 11 : i64} {
  func.func @_decoder_layer_kernel(%arg0: memref<16x32xf32, #tpu.memory_space<vmem>>, %arg1: memref<16x32xf32, #tpu.memory_space<vmem>>, %arg2: memref<16x32xf32, #tpu.memory_space<vmem>>, %arg3: memref<16x32xf32, #tpu.memory_space<vmem>>, %arg4: memref<1x32xf32, #tpu.memory_space<vmem>>, %arg5: memref<1x32xf32, #tpu.memory_space<vmem>>, %arg6: memref<16x16xf32, #tpu.memory_space<vmem>>, %arg7: memref<1x32xf32, #tpu.memory_space<vmem>>, %arg8: memref<1x32xf32, #tpu.memory_space<vmem>>, %arg9: memref<32x32xf32, #tpu.memory_space<vmem>>, %arg10: memref<32x64xf32, #tpu.memory_space<vmem>>, %arg11: memref<32x32xf32, #tpu.memory_space<vmem>>, %arg12: memref<1x32xf32, #tpu.memory_space<vmem>>, %arg13: memref<1x32xf32, #tpu.memory_space<vmem>>, %arg14: memref<1x32xf32, #tpu.memory_space<vmem>>, %arg15: memref<1x32xf32, #tpu.memory_space<vmem>>, %arg16: memref<1x32xf32, #tpu.memory_space<vmem>>, %arg17: memref<32x32xf32, #tpu.memory_space<vmem>>, %arg18: memref<32x64xf32, #tpu.memory_space<vmem>>, %arg19: memref<32x32xf32, #tpu.memory_space<vmem>>, %arg20: memref<1x32xf32, #tpu.memory_space<vmem>>, %arg21: memref<1x32xf32, #tpu.memory_space<vmem>>, %arg22: memref<1x32xf32, #tpu.memory_space<vmem>>, %arg23: memref<1x32xf32, #tpu.memory_space<vmem>>, %arg24: memref<1x32xf32, #tpu.memory_space<vmem>>, %arg25: memref<32x64xf32, #tpu.memory_space<vmem>>, %arg26: memref<1x64xf32, #tpu.memory_space<vmem>>, %arg27: memref<64x32xf32, #tpu.memory_space<vmem>>, %arg28: memref<1x32xf32, #tpu.memory_space<vmem>>, %arg29: memref<16x32xf32, #tpu.memory_space<vmem>>) attributes {dimension_semantics = [], scalar_prefetch = 0 : i64, scratch_operands = 0 : i64, tpu.core_type = #tpu.core_type<tc>} {
    %c0 = arith.constant 0 : index
    %c0_0 = arith.constant 0 : index
    %0 = vector.load %arg0[%c0, %c0_0] : memref<16x32xf32, #tpu.memory_space<vmem>>, vector<16x32xf32>
    %c0_1 = arith.constant 0 : index
    %c0_2 = arith.constant 0 : index
    %1 = vector.load %arg2[%c0_1, %c0_2] : memref<16x32xf32, #tpu.memory_space<vmem>>, vector<16x32xf32>
    %c0_3 = arith.constant 0 : index
    %c0_4 = arith.constant 0 : index
    %2 = vector.load %arg1[%c0_3, %c0_4] : memref<16x32xf32, #tpu.memory_space<vmem>>, vector<16x32xf32>
    %c0_5 = arith.constant 0 : index
    %c0_6 = arith.constant 0 : index
    %3 = vector.load %arg3[%c0_5, %c0_6] : memref<16x32xf32, #tpu.memory_space<vmem>>, vector<16x32xf32>
    %c0_7 = arith.constant 0 : index
    %c0_8 = arith.constant 0 : index
    %4 = vector.load %arg11[%c0_7, %c0_8] : memref<32x32xf32, #tpu.memory_space<vmem>>, vector<32x32xf32>
    %c0_9 = arith.constant 0 : index
    %c0_10 = arith.constant 0 : index
    %5 = vector.load %arg19[%c0_9, %c0_10] : memref<32x32xf32, #tpu.memory_space<vmem>>, vector<32x32xf32>
    %cst = arith.constant dense<0.000000e+00> : vector<16xf32>
    %6 = vector.multi_reduction <add>, %0, %cst [1] : vector<16x32xf32> to vector<16xf32>
    %7 = vector.shape_cast %6 : vector<16xf32> to vector<16x1xf32>
    %cst_11 = arith.constant 3.200000e+01 : f32
    %8 = vector.broadcast %cst_11 : f32 to vector<16x1xf32>
    %9 = arith.divf %7, %8 : vector<16x1xf32>
    %10 = vector.broadcast %9 : vector<16x1xf32> to vector<16x32xf32>
    %11 = arith.subf %0, %10 : vector<16x32xf32>
    %12 = arith.mulf %11, %11 : vector<16x32xf32>
    %cst_12 = arith.constant dense<0.000000e+00> : vector<16xf32>
    %13 = vector.multi_reduction <add>, %12, %cst_12 [1] : vector<16x32xf32> to vector<16xf32>
    %14 = vector.shape_cast %13 : vector<16xf32> to vector<16x1xf32>
    %cst_13 = arith.constant 3.200000e+01 : f32
    %15 = vector.broadcast %cst_13 : f32 to vector<16x1xf32>
    %16 = arith.divf %14, %15 : vector<16x1xf32>
    %cst_14 = arith.constant 9.99999974E-6 : f32
    %17 = vector.broadcast %cst_14 : f32 to vector<16x1xf32>
    %18 = arith.addf %16, %17 : vector<16x1xf32>
    %19 = math.rsqrt %18 : vector<16x1xf32>
    %20 = vector.broadcast %19 : vector<16x1xf32> to vector<16x32xf32>
    %21 = arith.mulf %11, %20 : vector<16x32xf32>
    %c0_15 = arith.constant 0 : index
    %c0_16 = arith.constant 0 : index
    %22 = vector.load %arg7[%c0_15, %c0_16] : memref<1x32xf32, #tpu.memory_space<vmem>>, vector<1x32xf32>
    %23 = vector.broadcast %22 : vector<1x32xf32> to vector<16x32xf32>
    %24 = arith.mulf %21, %23 : vector<16x32xf32>
    %c0_17 = arith.constant 0 : index
    %c0_18 = arith.constant 0 : index
    %25 = vector.load %arg8[%c0_17, %c0_18] : memref<1x32xf32, #tpu.memory_space<vmem>>, vector<1x32xf32>
    %26 = vector.broadcast %25 : vector<1x32xf32> to vector<16x32xf32>
    %27 = arith.addf %24, %26 : vector<16x32xf32>
    %c0_19 = arith.constant 0 : index
    %c0_20 = arith.constant 0 : index
    %28 = vector.load %arg9[%c0_19, %c0_20] : memref<32x32xf32, #tpu.memory_space<vmem>>, vector<32x32xf32>
    %cst_21 = arith.constant dense<0.000000e+00> : vector<16x32xf32>
    %29 = tpu.matmul %27, %28, %cst_21 {dimension_numbers = #tpu.dot_dimension_numbers<[1], [0], [0], [1], [0, 0, 1, 1], [], []>} : vector<16x32xf32>, vector<32x32xf32>, vector<16x32xf32> -> vector<16x32xf32>
    %c0_22 = arith.constant 0 : index
    %c0_23 = arith.constant 0 : index
    %30 = vector.load %arg4[%c0_22, %c0_23] : memref<1x32xf32, #tpu.memory_space<vmem>>, vector<1x32xf32>
    %31 = vector.broadcast %30 : vector<1x32xf32> to vector<16x32xf32>
    %32 = arith.addf %29, %31 : vector<16x32xf32>
    %c0_24 = arith.constant 0 : index
    %c0_25 = arith.constant 0 : index
    %33 = vector.load %arg5[%c0_24, %c0_25] : memref<1x32xf32, #tpu.memory_space<vmem>>, vector<1x32xf32>
    %34 = vector.broadcast %33 : vector<1x32xf32> to vector<16x32xf32>
    %35 = arith.addf %29, %34 : vector<16x32xf32>
    %c0_26 = arith.constant 0 : index
    %c0_27 = arith.constant 0 : index
    %36 = vector.load %arg6[%c0_26, %c0_27] : memref<16x16xf32, #tpu.memory_space<vmem>>, vector<16x16xf32>
    %cst_28 = arith.constant dense<0.000000e+00> : vector<16x32xf32>
    %37 = tpu.matmul %36, %35, %cst_28 {dimension_numbers = #tpu.dot_dimension_numbers<[1], [0], [0], [1], [0, 0, 1, 1], [], []>} : vector<16x16xf32>, vector<16x32xf32>, vector<16x32xf32> -> vector<16x32xf32>
    %c0_29 = arith.constant 0 : index
    %c0_30 = arith.constant 0 : index
    %38 = vector.load %arg10[%c0_29, %c0_30] : memref<32x64xf32, #tpu.memory_space<vmem>>, vector<32x64xf32>
    %cst_31 = arith.constant dense<0.000000e+00> : vector<16x64xf32>
    %39 = tpu.matmul %27, %38, %cst_31 {dimension_numbers = #tpu.dot_dimension_numbers<[1], [0], [0], [1], [0, 0, 1, 1], [], []>} : vector<16x32xf32>, vector<32x64xf32>, vector<16x64xf32> -> vector<16x64xf32>
    %c0_32 = arith.constant 0 : index
    %c0_33 = arith.constant 0 : index
    %40 = vector.load %arg10[%c0_32, %c0_33] : memref<32x64xf32, #tpu.memory_space<vmem>>, vector<32x64xf32>
    %cst_34 = arith.constant dense<0.000000e+00> : vector<16x64xf32>
    %41 = tpu.matmul %1, %40, %cst_34 {dimension_numbers = #tpu.dot_dimension_numbers<[1], [0], [0], [1], [0, 0, 1, 1], [], []>} : vector<16x32xf32>, vector<32x64xf32>, vector<16x64xf32> -> vector<16x64xf32>
    %c0_35 = arith.constant 0 : index
    %c0_36 = arith.constant 0 : index
    %42 = vector.load %arg18[%c0_35, %c0_36] : memref<32x64xf32, #tpu.memory_space<vmem>>, vector<32x64xf32>
    %cst_37 = arith.constant dense<0.000000e+00> : vector<16x64xf32>
    %43 = tpu.matmul %2, %42, %cst_37 {dimension_numbers = #tpu.dot_dimension_numbers<[1], [0], [0], [1], [0, 0, 1, 1], [], []>} : vector<16x32xf32>, vector<32x64xf32>, vector<16x64xf32> -> vector<16x64xf32>
    %44 = vector.extract_strided_slice %0 {offsets = [0, 0], sizes = [8, 32], strides = [1, 1]} : vector<16x32xf32> to vector<8x32xf32>
    %45 = vector.extract_strided_slice %27 {offsets = [0, 0], sizes = [8, 32], strides = [1, 1]} : vector<16x32xf32> to vector<8x32xf32>
    %46 = vector.extract_strided_slice %32 {offsets = [0, 0], sizes = [8, 32], strides = [1, 1]} : vector<16x32xf32> to vector<8x32xf32>
    %47 = vector.extract_strided_slice %37 {offsets = [0, 0], sizes = [8, 32], strides = [1, 1]} : vector<16x32xf32> to vector<8x32xf32>
    %48 = vector.extract_strided_slice %39 {offsets = [0, 0], sizes = [8, 64], strides = [1, 1]} : vector<16x64xf32> to vector<8x64xf32>
    %49 = vector.extract_strided_slice %41 {offsets = [0, 0], sizes = [8, 64], strides = [1, 1]} : vector<16x64xf32> to vector<8x64xf32>
    %cst_38 = arith.constant 0.000000e+00 : f32
    %50 = vector.broadcast %cst_38 : f32 to vector<8x32xf32>
    %51 = vector.extract_strided_slice %46 {offsets = [0, 0], sizes = [8, 8], strides = [1, 1]} : vector<8x32xf32> to vector<8x8xf32>
    %52 = vector.extract_strided_slice %47 {offsets = [0, 0], sizes = [8, 8], strides = [1, 1]} : vector<8x32xf32> to vector<8x8xf32>
    %53 = vector.extract_strided_slice %49 {offsets = [0, 0], sizes = [8, 8], strides = [1, 1]} : vector<8x64xf32> to vector<8x8xf32>
    %cst_39 = arith.constant dense<0.000000e+00> : vector<8x8xf32>
    %54 = tpu.matmul %51, %53, %cst_39 {dimension_numbers = #tpu.dot_dimension_numbers<[1], [1], [0], [0], [0, 0, 1, 0], [], []>} : vector<8x8xf32>, vector<8x8xf32>, vector<8x8xf32> -> vector<8x8xf32>
    %55 = vector.extract_strided_slice %3 {offsets = [0, 0], sizes = [8, 8], strides = [1, 1]} : vector<16x32xf32> to vector<8x8xf32>
    %cst_40 = arith.constant dense<0.000000e+00> : vector<8x8xf32>
    %56 = tpu.matmul %52, %55, %cst_40 {dimension_numbers = #tpu.dot_dimension_numbers<[1], [1], [0], [0], [0, 0, 1, 0], [], []>} : vector<8x8xf32>, vector<8x8xf32>, vector<8x8xf32> -> vector<8x8xf32>
    %57 = arith.addf %54, %56 : vector<8x8xf32>
    %cst_41 = arith.constant 0.353553385 : f32
    %58 = vector.broadcast %cst_41 : f32 to vector<8x8xf32>
    %59 = arith.mulf %57, %58 : vector<8x8xf32>
    %60 = vector.extract_strided_slice %48 {offsets = [0, 0], sizes = [8, 8], strides = [1, 1]} : vector<8x64xf32> to vector<8x8xf32>
    %cst_42 = arith.constant dense<0.000000e+00> : vector<8x8xf32>
    %61 = tpu.matmul %51, %60, %cst_42 {dimension_numbers = #tpu.dot_dimension_numbers<[1], [1], [0], [0], [0, 0, 1, 0], [], []>} : vector<8x8xf32>, vector<8x8xf32>, vector<8x8xf32> -> vector<8x8xf32>
    %62 = vector.extract_strided_slice %3 {offsets = [8, 0], sizes = [8, 8], strides = [1, 1]} : vector<16x32xf32> to vector<8x8xf32>
    %cst_43 = arith.constant dense<0.000000e+00> : vector<8x8xf32>
    %63 = tpu.matmul %52, %62, %cst_43 {dimension_numbers = #tpu.dot_dimension_numbers<[1], [1], [0], [0], [0, 0, 1, 0], [], []>} : vector<8x8xf32>, vector<8x8xf32>, vector<8x8xf32> -> vector<8x8xf32>
    %64 = arith.addf %61, %63 : vector<8x8xf32>
    %cst_44 = arith.constant 0.353553385 : f32
    %65 = vector.broadcast %cst_44 : f32 to vector<8x8xf32>
    %66 = arith.mulf %64, %65 : vector<8x8xf32>
    %cst_45 = arith.constant dense<0xFF800000> : vector<8xf32>
    %67 = vector.multi_reduction <maximumf>, %59, %cst_45 [0] : vector<8x8xf32> to vector<8xf32>
    %68 = vector.shape_cast %67 : vector<8xf32> to vector<1x8xf32>
    %69 = vector.broadcast %68 : vector<1x8xf32> to vector<8x8xf32>
    %70 = arith.subf %59, %69 : vector<8x8xf32>
    %71 = math.exp %70 : vector<8x8xf32>
    %cst_46 = arith.constant dense<0.000000e+00> : vector<8xf32>
    %72 = vector.multi_reduction <add>, %71, %cst_46 [0] : vector<8x8xf32> to vector<8xf32>
    %73 = vector.shape_cast %72 : vector<8xf32> to vector<1x8xf32>
    %74 = tpu.reciprocal %73 : vector<1x8xf32> -> vector<1x8xf32>
    %75 = vector.broadcast %74 : vector<1x8xf32> to vector<8x8xf32>
    %76 = arith.mulf %71, %75 : vector<8x8xf32>
    %77 = vector.extract_strided_slice %49 {offsets = [0, 32], sizes = [8, 8], strides = [1, 1]} : vector<8x64xf32> to vector<8x8xf32>
    %cst_47 = arith.constant dense<0.000000e+00> : vector<8x8xf32>
    %78 = tpu.matmul %76, %77, %cst_47 {dimension_numbers = #tpu.dot_dimension_numbers<[1], [0], [0], [1], [0, 0, 1, 1], [], []>} : vector<8x8xf32>, vector<8x8xf32>, vector<8x8xf32> -> vector<8x8xf32>
    %cst_48 = arith.constant dense<0xFF800000> : vector<8xf32>
    %79 = vector.multi_reduction <maximumf>, %66, %cst_48 [0] : vector<8x8xf32> to vector<8xf32>
    %80 = vector.shape_cast %79 : vector<8xf32> to vector<1x8xf32>
    %81 = vector.broadcast %80 : vector<1x8xf32> to vector<8x8xf32>
    %82 = arith.subf %66, %81 : vector<8x8xf32>
    %83 = math.exp %82 : vector<8x8xf32>
    %cst_49 = arith.constant dense<0.000000e+00> : vector<8xf32>
    %84 = vector.multi_reduction <add>, %83, %cst_49 [0] : vector<8x8xf32> to vector<8xf32>
    %85 = vector.shape_cast %84 : vector<8xf32> to vector<1x8xf32>
    %86 = tpu.reciprocal %85 : vector<1x8xf32> -> vector<1x8xf32>
    %87 = vector.broadcast %86 : vector<1x8xf32> to vector<8x8xf32>
    %88 = arith.mulf %83, %87 : vector<8x8xf32>
    %89 = vector.extract_strided_slice %48 {offsets = [0, 32], sizes = [8, 8], strides = [1, 1]} : vector<8x64xf32> to vector<8x8xf32>
    %cst_50 = arith.constant dense<0.000000e+00> : vector<8x8xf32>
    %90 = tpu.matmul %88, %89, %cst_50 {dimension_numbers = #tpu.dot_dimension_numbers<[1], [0], [0], [1], [0, 0, 1, 1], [], []>} : vector<8x8xf32>, vector<8x8xf32>, vector<8x8xf32> -> vector<8x8xf32>
    %91 = arith.addf %78, %90 : vector<8x8xf32>
    %92 = vector.extract_strided_slice %4 {offsets = [0, 0], sizes = [8, 32], strides = [1, 1]} : vector<32x32xf32> to vector<8x32xf32>
    %cst_51 = arith.constant dense<0.000000e+00> : vector<8x32xf32>
    %93 = tpu.matmul %91, %92, %cst_51 {dimension_numbers = #tpu.dot_dimension_numbers<[1], [0], [0], [1], [0, 0, 1, 1], [], []>} : vector<8x8xf32>, vector<8x32xf32>, vector<8x32xf32> -> vector<8x32xf32>
    %94 = arith.addf %50, %93 : vector<8x32xf32>
    %95 = vector.extract_strided_slice %46 {offsets = [0, 8], sizes = [8, 8], strides = [1, 1]} : vector<8x32xf32> to vector<8x8xf32>
    %96 = vector.extract_strided_slice %47 {offsets = [0, 8], sizes = [8, 8], strides = [1, 1]} : vector<8x32xf32> to vector<8x8xf32>
    %97 = vector.extract_strided_slice %49 {offsets = [0, 8], sizes = [8, 8], strides = [1, 1]} : vector<8x64xf32> to vector<8x8xf32>
    %cst_52 = arith.constant dense<0.000000e+00> : vector<8x8xf32>
    %98 = tpu.matmul %95, %97, %cst_52 {dimension_numbers = #tpu.dot_dimension_numbers<[1], [1], [0], [0], [0, 0, 1, 0], [], []>} : vector<8x8xf32>, vector<8x8xf32>, vector<8x8xf32> -> vector<8x8xf32>
    %99 = vector.extract_strided_slice %3 {offsets = [0, 8], sizes = [8, 8], strides = [1, 1]} : vector<16x32xf32> to vector<8x8xf32>
    %cst_53 = arith.constant dense<0.000000e+00> : vector<8x8xf32>
    %100 = tpu.matmul %96, %99, %cst_53 {dimension_numbers = #tpu.dot_dimension_numbers<[1], [1], [0], [0], [0, 0, 1, 0], [], []>} : vector<8x8xf32>, vector<8x8xf32>, vector<8x8xf32> -> vector<8x8xf32>
    %101 = arith.addf %98, %100 : vector<8x8xf32>
    %cst_54 = arith.constant 0.353553385 : f32
    %102 = vector.broadcast %cst_54 : f32 to vector<8x8xf32>
    %103 = arith.mulf %101, %102 : vector<8x8xf32>
    %104 = vector.extract_strided_slice %48 {offsets = [0, 8], sizes = [8, 8], strides = [1, 1]} : vector<8x64xf32> to vector<8x8xf32>
    %cst_55 = arith.constant dense<0.000000e+00> : vector<8x8xf32>
    %105 = tpu.matmul %95, %104, %cst_55 {dimension_numbers = #tpu.dot_dimension_numbers<[1], [1], [0], [0], [0, 0, 1, 0], [], []>} : vector<8x8xf32>, vector<8x8xf32>, vector<8x8xf32> -> vector<8x8xf32>
    %106 = vector.extract_strided_slice %3 {offsets = [8, 8], sizes = [8, 8], strides = [1, 1]} : vector<16x32xf32> to vector<8x8xf32>
    %cst_56 = arith.constant dense<0.000000e+00> : vector<8x8xf32>
    %107 = tpu.matmul %96, %106, %cst_56 {dimension_numbers = #tpu.dot_dimension_numbers<[1], [1], [0], [0], [0, 0, 1, 0], [], []>} : vector<8x8xf32>, vector<8x8xf32>, vector<8x8xf32> -> vector<8x8xf32>
    %108 = arith.addf %105, %107 : vector<8x8xf32>
    %cst_57 = arith.constant 0.353553385 : f32
    %109 = vector.broadcast %cst_57 : f32 to vector<8x8xf32>
    %110 = arith.mulf %108, %109 : vector<8x8xf32>
    %cst_58 = arith.constant dense<0xFF800000> : vector<8xf32>
    %111 = vector.multi_reduction <maximumf>, %103, %cst_58 [0] : vector<8x8xf32> to vector<8xf32>
    %112 = vector.shape_cast %111 : vector<8xf32> to vector<1x8xf32>
    %113 = vector.broadcast %112 : vector<1x8xf32> to vector<8x8xf32>
    %114 = arith.subf %103, %113 : vector<8x8xf32>
    %115 = math.exp %114 : vector<8x8xf32>
    %cst_59 = arith.constant dense<0.000000e+00> : vector<8xf32>
    %116 = vector.multi_reduction <add>, %115, %cst_59 [0] : vector<8x8xf32> to vector<8xf32>
    %117 = vector.shape_cast %116 : vector<8xf32> to vector<1x8xf32>
    %118 = tpu.reciprocal %117 : vector<1x8xf32> -> vector<1x8xf32>
    %119 = vector.broadcast %118 : vector<1x8xf32> to vector<8x8xf32>
    %120 = arith.mulf %115, %119 : vector<8x8xf32>
    %121 = vector.extract_strided_slice %49 {offsets = [0, 40], sizes = [8, 8], strides = [1, 1]} : vector<8x64xf32> to vector<8x8xf32>
    %cst_60 = arith.constant dense<0.000000e+00> : vector<8x8xf32>
    %122 = tpu.matmul %120, %121, %cst_60 {dimension_numbers = #tpu.dot_dimension_numbers<[1], [0], [0], [1], [0, 0, 1, 1], [], []>} : vector<8x8xf32>, vector<8x8xf32>, vector<8x8xf32> -> vector<8x8xf32>
    %cst_61 = arith.constant dense<0xFF800000> : vector<8xf32>
    %123 = vector.multi_reduction <maximumf>, %110, %cst_61 [0] : vector<8x8xf32> to vector<8xf32>
    %124 = vector.shape_cast %123 : vector<8xf32> to vector<1x8xf32>
    %125 = vector.broadcast %124 : vector<1x8xf32> to vector<8x8xf32>
    %126 = arith.subf %110, %125 : vector<8x8xf32>
    %127 = math.exp %126 : vector<8x8xf32>
    %cst_62 = arith.constant dense<0.000000e+00> : vector<8xf32>
    %128 = vector.multi_reduction <add>, %127, %cst_62 [0] : vector<8x8xf32> to vector<8xf32>
    %129 = vector.shape_cast %128 : vector<8xf32> to vector<1x8xf32>
    %130 = tpu.reciprocal %129 : vector<1x8xf32> -> vector<1x8xf32>
    %131 = vector.broadcast %130 : vector<1x8xf32> to vector<8x8xf32>
    %132 = arith.mulf %127, %131 : vector<8x8xf32>
    %133 = vector.extract_strided_slice %48 {offsets = [0, 40], sizes = [8, 8], strides = [1, 1]} : vector<8x64xf32> to vector<8x8xf32>
    %cst_63 = arith.constant dense<0.000000e+00> : vector<8x8xf32>
    %134 = tpu.matmul %132, %133, %cst_63 {dimension_numbers = #tpu.dot_dimension_numbers<[1], [0], [0], [1], [0, 0, 1, 1], [], []>} : vector<8x8xf32>, vector<8x8xf32>, vector<8x8xf32> -> vector<8x8xf32>
    %135 = arith.addf %122, %134 : vector<8x8xf32>
    %136 = vector.extract_strided_slice %4 {offsets = [8, 0], sizes = [8, 32], strides = [1, 1]} : vector<32x32xf32> to vector<8x32xf32>
    %cst_64 = arith.constant dense<0.000000e+00> : vector<8x32xf32>
    %137 = tpu.matmul %135, %136, %cst_64 {dimension_numbers = #tpu.dot_dimension_numbers<[1], [0], [0], [1], [0, 0, 1, 1], [], []>} : vector<8x8xf32>, vector<8x32xf32>, vector<8x32xf32> -> vector<8x32xf32>
    %138 = arith.addf %94, %137 : vector<8x32xf32>
    %139 = vector.extract_strided_slice %46 {offsets = [0, 16], sizes = [8, 8], strides = [1, 1]} : vector<8x32xf32> to vector<8x8xf32>
    %140 = vector.extract_strided_slice %47 {offsets = [0, 16], sizes = [8, 8], strides = [1, 1]} : vector<8x32xf32> to vector<8x8xf32>
    %141 = vector.extract_strided_slice %49 {offsets = [0, 16], sizes = [8, 8], strides = [1, 1]} : vector<8x64xf32> to vector<8x8xf32>
    %cst_65 = arith.constant dense<0.000000e+00> : vector<8x8xf32>
    %142 = tpu.matmul %139, %141, %cst_65 {dimension_numbers = #tpu.dot_dimension_numbers<[1], [1], [0], [0], [0, 0, 1, 0], [], []>} : vector<8x8xf32>, vector<8x8xf32>, vector<8x8xf32> -> vector<8x8xf32>
    %143 = vector.extract_strided_slice %3 {offsets = [0, 16], sizes = [8, 8], strides = [1, 1]} : vector<16x32xf32> to vector<8x8xf32>
    %cst_66 = arith.constant dense<0.000000e+00> : vector<8x8xf32>
    %144 = tpu.matmul %140, %143, %cst_66 {dimension_numbers = #tpu.dot_dimension_numbers<[1], [1], [0], [0], [0, 0, 1, 0], [], []>} : vector<8x8xf32>, vector<8x8xf32>, vector<8x8xf32> -> vector<8x8xf32>
    %145 = arith.addf %142, %144 : vector<8x8xf32>
    %cst_67 = arith.constant 0.353553385 : f32
    %146 = vector.broadcast %cst_67 : f32 to vector<8x8xf32>
    %147 = arith.mulf %145, %146 : vector<8x8xf32>
    %148 = vector.extract_strided_slice %48 {offsets = [0, 16], sizes = [8, 8], strides = [1, 1]} : vector<8x64xf32> to vector<8x8xf32>
    %cst_68 = arith.constant dense<0.000000e+00> : vector<8x8xf32>
    %149 = tpu.matmul %139, %148, %cst_68 {dimension_numbers = #tpu.dot_dimension_numbers<[1], [1], [0], [0], [0, 0, 1, 0], [], []>} : vector<8x8xf32>, vector<8x8xf32>, vector<8x8xf32> -> vector<8x8xf32>
    %150 = vector.extract_strided_slice %3 {offsets = [8, 16], sizes = [8, 8], strides = [1, 1]} : vector<16x32xf32> to vector<8x8xf32>
    %cst_69 = arith.constant dense<0.000000e+00> : vector<8x8xf32>
    %151 = tpu.matmul %140, %150, %cst_69 {dimension_numbers = #tpu.dot_dimension_numbers<[1], [1], [0], [0], [0, 0, 1, 0], [], []>} : vector<8x8xf32>, vector<8x8xf32>, vector<8x8xf32> -> vector<8x8xf32>
    %152 = arith.addf %149, %151 : vector<8x8xf32>
    %cst_70 = arith.constant 0.353553385 : f32
    %153 = vector.broadcast %cst_70 : f32 to vector<8x8xf32>
    %154 = arith.mulf %152, %153 : vector<8x8xf32>
    %cst_71 = arith.constant dense<0xFF800000> : vector<8xf32>
    %155 = vector.multi_reduction <maximumf>, %147, %cst_71 [0] : vector<8x8xf32> to vector<8xf32>
    %156 = vector.shape_cast %155 : vector<8xf32> to vector<1x8xf32>
    %157 = vector.broadcast %156 : vector<1x8xf32> to vector<8x8xf32>
    %158 = arith.subf %147, %157 : vector<8x8xf32>
    %159 = math.exp %158 : vector<8x8xf32>
    %cst_72 = arith.constant dense<0.000000e+00> : vector<8xf32>
    %160 = vector.multi_reduction <add>, %159, %cst_72 [0] : vector<8x8xf32> to vector<8xf32>
    %161 = vector.shape_cast %160 : vector<8xf32> to vector<1x8xf32>
    %162 = tpu.reciprocal %161 : vector<1x8xf32> -> vector<1x8xf32>
    %163 = vector.broadcast %162 : vector<1x8xf32> to vector<8x8xf32>
    %164 = arith.mulf %159, %163 : vector<8x8xf32>
    %165 = vector.extract_strided_slice %49 {offsets = [0, 48], sizes = [8, 8], strides = [1, 1]} : vector<8x64xf32> to vector<8x8xf32>
    %cst_73 = arith.constant dense<0.000000e+00> : vector<8x8xf32>
    %166 = tpu.matmul %164, %165, %cst_73 {dimension_numbers = #tpu.dot_dimension_numbers<[1], [0], [0], [1], [0, 0, 1, 1], [], []>} : vector<8x8xf32>, vector<8x8xf32>, vector<8x8xf32> -> vector<8x8xf32>
    %cst_74 = arith.constant dense<0xFF800000> : vector<8xf32>
    %167 = vector.multi_reduction <maximumf>, %154, %cst_74 [0] : vector<8x8xf32> to vector<8xf32>
    %168 = vector.shape_cast %167 : vector<8xf32> to vector<1x8xf32>
    %169 = vector.broadcast %168 : vector<1x8xf32> to vector<8x8xf32>
    %170 = arith.subf %154, %169 : vector<8x8xf32>
    %171 = math.exp %170 : vector<8x8xf32>
    %cst_75 = arith.constant dense<0.000000e+00> : vector<8xf32>
    %172 = vector.multi_reduction <add>, %171, %cst_75 [0] : vector<8x8xf32> to vector<8xf32>
    %173 = vector.shape_cast %172 : vector<8xf32> to vector<1x8xf32>
    %174 = tpu.reciprocal %173 : vector<1x8xf32> -> vector<1x8xf32>
    %175 = vector.broadcast %174 : vector<1x8xf32> to vector<8x8xf32>
    %176 = arith.mulf %171, %175 : vector<8x8xf32>
    %177 = vector.extract_strided_slice %48 {offsets = [0, 48], sizes = [8, 8], strides = [1, 1]} : vector<8x64xf32> to vector<8x8xf32>
    %cst_76 = arith.constant dense<0.000000e+00> : vector<8x8xf32>
    %178 = tpu.matmul %176, %177, %cst_76 {dimension_numbers = #tpu.dot_dimension_numbers<[1], [0], [0], [1], [0, 0, 1, 1], [], []>} : vector<8x8xf32>, vector<8x8xf32>, vector<8x8xf32> -> vector<8x8xf32>
    %179 = arith.addf %166, %178 : vector<8x8xf32>
    %180 = vector.extract_strided_slice %4 {offsets = [16, 0], sizes = [8, 32], strides = [1, 1]} : vector<32x32xf32> to vector<8x32xf32>
    %cst_77 = arith.constant dense<0.000000e+00> : vector<8x32xf32>
    %181 = tpu.matmul %179, %180, %cst_77 {dimension_numbers = #tpu.dot_dimension_numbers<[1], [0], [0], [1], [0, 0, 1, 1], [], []>} : vector<8x8xf32>, vector<8x32xf32>, vector<8x32xf32> -> vector<8x32xf32>
    %182 = arith.addf %138, %181 : vector<8x32xf32>
    %183 = vector.extract_strided_slice %46 {offsets = [0, 24], sizes = [8, 8], strides = [1, 1]} : vector<8x32xf32> to vector<8x8xf32>
    %184 = vector.extract_strided_slice %47 {offsets = [0, 24], sizes = [8, 8], strides = [1, 1]} : vector<8x32xf32> to vector<8x8xf32>
    %185 = vector.extract_strided_slice %49 {offsets = [0, 24], sizes = [8, 8], strides = [1, 1]} : vector<8x64xf32> to vector<8x8xf32>
    %cst_78 = arith.constant dense<0.000000e+00> : vector<8x8xf32>
    %186 = tpu.matmul %183, %185, %cst_78 {dimension_numbers = #tpu.dot_dimension_numbers<[1], [1], [0], [0], [0, 0, 1, 0], [], []>} : vector<8x8xf32>, vector<8x8xf32>, vector<8x8xf32> -> vector<8x8xf32>
    %187 = vector.extract_strided_slice %3 {offsets = [0, 24], sizes = [8, 8], strides = [1, 1]} : vector<16x32xf32> to vector<8x8xf32>
    %cst_79 = arith.constant dense<0.000000e+00> : vector<8x8xf32>
    %188 = tpu.matmul %184, %187, %cst_79 {dimension_numbers = #tpu.dot_dimension_numbers<[1], [1], [0], [0], [0, 0, 1, 0], [], []>} : vector<8x8xf32>, vector<8x8xf32>, vector<8x8xf32> -> vector<8x8xf32>
    %189 = arith.addf %186, %188 : vector<8x8xf32>
    %cst_80 = arith.constant 0.353553385 : f32
    %190 = vector.broadcast %cst_80 : f32 to vector<8x8xf32>
    %191 = arith.mulf %189, %190 : vector<8x8xf32>
    %192 = vector.extract_strided_slice %48 {offsets = [0, 24], sizes = [8, 8], strides = [1, 1]} : vector<8x64xf32> to vector<8x8xf32>
    %cst_81 = arith.constant dense<0.000000e+00> : vector<8x8xf32>
    %193 = tpu.matmul %183, %192, %cst_81 {dimension_numbers = #tpu.dot_dimension_numbers<[1], [1], [0], [0], [0, 0, 1, 0], [], []>} : vector<8x8xf32>, vector<8x8xf32>, vector<8x8xf32> -> vector<8x8xf32>
    %194 = vector.extract_strided_slice %3 {offsets = [8, 24], sizes = [8, 8], strides = [1, 1]} : vector<16x32xf32> to vector<8x8xf32>
    %cst_82 = arith.constant dense<0.000000e+00> : vector<8x8xf32>
    %195 = tpu.matmul %184, %194, %cst_82 {dimension_numbers = #tpu.dot_dimension_numbers<[1], [1], [0], [0], [0, 0, 1, 0], [], []>} : vector<8x8xf32>, vector<8x8xf32>, vector<8x8xf32> -> vector<8x8xf32>
    %196 = arith.addf %193, %195 : vector<8x8xf32>
    %cst_83 = arith.constant 0.353553385 : f32
    %197 = vector.broadcast %cst_83 : f32 to vector<8x8xf32>
    %198 = arith.mulf %196, %197 : vector<8x8xf32>
    %cst_84 = arith.constant dense<0xFF800000> : vector<8xf32>
    %199 = vector.multi_reduction <maximumf>, %191, %cst_84 [0] : vector<8x8xf32> to vector<8xf32>
    %200 = vector.shape_cast %199 : vector<8xf32> to vector<1x8xf32>
    %201 = vector.broadcast %200 : vector<1x8xf32> to vector<8x8xf32>
    %202 = arith.subf %191, %201 : vector<8x8xf32>
    %203 = math.exp %202 : vector<8x8xf32>
    %cst_85 = arith.constant dense<0.000000e+00> : vector<8xf32>
    %204 = vector.multi_reduction <add>, %203, %cst_85 [0] : vector<8x8xf32> to vector<8xf32>
    %205 = vector.shape_cast %204 : vector<8xf32> to vector<1x8xf32>
    %206 = tpu.reciprocal %205 : vector<1x8xf32> -> vector<1x8xf32>
    %207 = vector.broadcast %206 : vector<1x8xf32> to vector<8x8xf32>
    %208 = arith.mulf %203, %207 : vector<8x8xf32>
    %209 = vector.extract_strided_slice %49 {offsets = [0, 56], sizes = [8, 8], strides = [1, 1]} : vector<8x64xf32> to vector<8x8xf32>
    %cst_86 = arith.constant dense<0.000000e+00> : vector<8x8xf32>
    %210 = tpu.matmul %208, %209, %cst_86 {dimension_numbers = #tpu.dot_dimension_numbers<[1], [0], [0], [1], [0, 0, 1, 1], [], []>} : vector<8x8xf32>, vector<8x8xf32>, vector<8x8xf32> -> vector<8x8xf32>
    %cst_87 = arith.constant dense<0xFF800000> : vector<8xf32>
    %211 = vector.multi_reduction <maximumf>, %198, %cst_87 [0] : vector<8x8xf32> to vector<8xf32>
    %212 = vector.shape_cast %211 : vector<8xf32> to vector<1x8xf32>
    %213 = vector.broadcast %212 : vector<1x8xf32> to vector<8x8xf32>
    %214 = arith.subf %198, %213 : vector<8x8xf32>
    %215 = math.exp %214 : vector<8x8xf32>
    %cst_88 = arith.constant dense<0.000000e+00> : vector<8xf32>
    %216 = vector.multi_reduction <add>, %215, %cst_88 [0] : vector<8x8xf32> to vector<8xf32>
    %217 = vector.shape_cast %216 : vector<8xf32> to vector<1x8xf32>
    %218 = tpu.reciprocal %217 : vector<1x8xf32> -> vector<1x8xf32>
    %219 = vector.broadcast %218 : vector<1x8xf32> to vector<8x8xf32>
    %220 = arith.mulf %215, %219 : vector<8x8xf32>
    %221 = vector.extract_strided_slice %48 {offsets = [0, 56], sizes = [8, 8], strides = [1, 1]} : vector<8x64xf32> to vector<8x8xf32>
    %cst_89 = arith.constant dense<0.000000e+00> : vector<8x8xf32>
    %222 = tpu.matmul %220, %221, %cst_89 {dimension_numbers = #tpu.dot_dimension_numbers<[1], [0], [0], [1], [0, 0, 1, 1], [], []>} : vector<8x8xf32>, vector<8x8xf32>, vector<8x8xf32> -> vector<8x8xf32>
    %223 = arith.addf %210, %222 : vector<8x8xf32>
    %224 = vector.extract_strided_slice %4 {offsets = [24, 0], sizes = [8, 32], strides = [1, 1]} : vector<32x32xf32> to vector<8x32xf32>
    %cst_90 = arith.constant dense<0.000000e+00> : vector<8x32xf32>
    %225 = tpu.matmul %223, %224, %cst_90 {dimension_numbers = #tpu.dot_dimension_numbers<[1], [0], [0], [1], [0, 0, 1, 1], [], []>} : vector<8x8xf32>, vector<8x32xf32>, vector<8x32xf32> -> vector<8x32xf32>
    %226 = arith.addf %182, %225 : vector<8x32xf32>
    %c0_91 = arith.constant 0 : index
    %c0_92 = arith.constant 0 : index
    %227 = vector.load %arg12[%c0_91, %c0_92] : memref<1x32xf32, #tpu.memory_space<vmem>>, vector<1x32xf32>
    %228 = vector.broadcast %227 : vector<1x32xf32> to vector<8x32xf32>
    %229 = arith.addf %226, %228 : vector<8x32xf32>
    %230 = arith.addf %45, %229 : vector<8x32xf32>
    %cst_93 = arith.constant dense<0.000000e+00> : vector<8xf32>
    %231 = vector.multi_reduction <add>, %230, %cst_93 [1] : vector<8x32xf32> to vector<8xf32>
    %232 = vector.shape_cast %231 : vector<8xf32> to vector<8x1xf32>
    %cst_94 = arith.constant 3.200000e+01 : f32
    %233 = vector.broadcast %cst_94 : f32 to vector<8x1xf32>
    %234 = arith.divf %232, %233 : vector<8x1xf32>
    %235 = vector.broadcast %234 : vector<8x1xf32> to vector<8x32xf32>
    %236 = arith.subf %230, %235 : vector<8x32xf32>
    %237 = arith.mulf %236, %236 : vector<8x32xf32>
    %cst_95 = arith.constant dense<0.000000e+00> : vector<8xf32>
    %238 = vector.multi_reduction <add>, %237, %cst_95 [1] : vector<8x32xf32> to vector<8xf32>
    %239 = vector.shape_cast %238 : vector<8xf32> to vector<8x1xf32>
    %cst_96 = arith.constant 3.200000e+01 : f32
    %240 = vector.broadcast %cst_96 : f32 to vector<8x1xf32>
    %241 = arith.divf %239, %240 : vector<8x1xf32>
    %cst_97 = arith.constant 9.99999974E-6 : f32
    %242 = vector.broadcast %cst_97 : f32 to vector<8x1xf32>
    %243 = arith.addf %241, %242 : vector<8x1xf32>
    %244 = math.rsqrt %243 : vector<8x1xf32>
    %245 = vector.broadcast %244 : vector<8x1xf32> to vector<8x32xf32>
    %246 = arith.mulf %236, %245 : vector<8x32xf32>
    %c0_98 = arith.constant 0 : index
    %c0_99 = arith.constant 0 : index
    %247 = vector.load %arg13[%c0_98, %c0_99] : memref<1x32xf32, #tpu.memory_space<vmem>>, vector<1x32xf32>
    %248 = vector.broadcast %247 : vector<1x32xf32> to vector<8x32xf32>
    %249 = arith.mulf %246, %248 : vector<8x32xf32>
    %c0_100 = arith.constant 0 : index
    %c0_101 = arith.constant 0 : index
    %250 = vector.load %arg14[%c0_100, %c0_101] : memref<1x32xf32, #tpu.memory_space<vmem>>, vector<1x32xf32>
    %251 = vector.broadcast %250 : vector<1x32xf32> to vector<8x32xf32>
    %252 = arith.addf %249, %251 : vector<8x32xf32>
    %253 = arith.addf %44, %252 : vector<8x32xf32>
    %cst_102 = arith.constant dense<0.000000e+00> : vector<8xf32>
    %254 = vector.multi_reduction <add>, %253, %cst_102 [1] : vector<8x32xf32> to vector<8xf32>
    %255 = vector.shape_cast %254 : vector<8xf32> to vector<8x1xf32>
    %cst_103 = arith.constant 3.200000e+01 : f32
    %256 = vector.broadcast %cst_103 : f32 to vector<8x1xf32>
    %257 = arith.divf %255, %256 : vector<8x1xf32>
    %258 = vector.broadcast %257 : vector<8x1xf32> to vector<8x32xf32>
    %259 = arith.subf %253, %258 : vector<8x32xf32>
    %260 = arith.mulf %259, %259 : vector<8x32xf32>
    %cst_104 = arith.constant dense<0.000000e+00> : vector<8xf32>
    %261 = vector.multi_reduction <add>, %260, %cst_104 [1] : vector<8x32xf32> to vector<8xf32>
    %262 = vector.shape_cast %261 : vector<8xf32> to vector<8x1xf32>
    %cst_105 = arith.constant 3.200000e+01 : f32
    %263 = vector.broadcast %cst_105 : f32 to vector<8x1xf32>
    %264 = arith.divf %262, %263 : vector<8x1xf32>
    %cst_106 = arith.constant 9.99999974E-6 : f32
    %265 = vector.broadcast %cst_106 : f32 to vector<8x1xf32>
    %266 = arith.addf %264, %265 : vector<8x1xf32>
    %267 = math.rsqrt %266 : vector<8x1xf32>
    %268 = vector.broadcast %267 : vector<8x1xf32> to vector<8x32xf32>
    %269 = arith.mulf %259, %268 : vector<8x32xf32>
    %c0_107 = arith.constant 0 : index
    %c0_108 = arith.constant 0 : index
    %270 = vector.load %arg15[%c0_107, %c0_108] : memref<1x32xf32, #tpu.memory_space<vmem>>, vector<1x32xf32>
    %271 = vector.broadcast %270 : vector<1x32xf32> to vector<8x32xf32>
    %272 = arith.mulf %269, %271 : vector<8x32xf32>
    %c0_109 = arith.constant 0 : index
    %c0_110 = arith.constant 0 : index
    %273 = vector.load %arg16[%c0_109, %c0_110] : memref<1x32xf32, #tpu.memory_space<vmem>>, vector<1x32xf32>
    %274 = vector.broadcast %273 : vector<1x32xf32> to vector<8x32xf32>
    %275 = arith.addf %272, %274 : vector<8x32xf32>
    %c0_111 = arith.constant 0 : index
    %c0_112 = arith.constant 0 : index
    %276 = vector.load %arg17[%c0_111, %c0_112] : memref<32x32xf32, #tpu.memory_space<vmem>>, vector<32x32xf32>
    %cst_113 = arith.constant dense<0.000000e+00> : vector<8x32xf32>
    %277 = tpu.matmul %275, %276, %cst_113 {dimension_numbers = #tpu.dot_dimension_numbers<[1], [0], [0], [1], [0, 0, 1, 1], [], []>} : vector<8x32xf32>, vector<32x32xf32>, vector<8x32xf32> -> vector<8x32xf32>
    %278 = vector.extract_strided_slice %43 {offsets = [0, 0], sizes = [8, 64], strides = [1, 1]} : vector<16x64xf32> to vector<8x64xf32>
    %cst_114 = arith.constant 0.000000e+00 : f32
    %279 = vector.broadcast %cst_114 : f32 to vector<8x32xf32>
    %280 = vector.extract_strided_slice %277 {offsets = [0, 0], sizes = [8, 8], strides = [1, 1]} : vector<8x32xf32> to vector<8x8xf32>
    %281 = vector.extract_strided_slice %278 {offsets = [0, 0], sizes = [8, 8], strides = [1, 1]} : vector<8x64xf32> to vector<8x8xf32>
    %cst_115 = arith.constant dense<0.000000e+00> : vector<8x8xf32>
    %282 = tpu.matmul %280, %281, %cst_115 {dimension_numbers = #tpu.dot_dimension_numbers<[1], [1], [0], [0], [0, 0, 1, 0], [], []>} : vector<8x8xf32>, vector<8x8xf32>, vector<8x8xf32> -> vector<8x8xf32>
    %cst_116 = arith.constant 0.353553385 : f32
    %283 = vector.broadcast %cst_116 : f32 to vector<8x8xf32>
    %284 = arith.mulf %282, %283 : vector<8x8xf32>
    %cst_117 = arith.constant dense<0xFF800000> : vector<8xf32>
    %285 = vector.multi_reduction <maximumf>, %284, %cst_117 [0] : vector<8x8xf32> to vector<8xf32>
    %286 = vector.shape_cast %285 : vector<8xf32> to vector<1x8xf32>
    %287 = vector.broadcast %286 : vector<1x8xf32> to vector<8x8xf32>
    %288 = arith.subf %284, %287 : vector<8x8xf32>
    %289 = math.exp %288 : vector<8x8xf32>
    %cst_118 = arith.constant dense<0.000000e+00> : vector<8xf32>
    %290 = vector.multi_reduction <add>, %289, %cst_118 [0] : vector<8x8xf32> to vector<8xf32>
    %291 = vector.shape_cast %290 : vector<8xf32> to vector<1x8xf32>
    %292 = tpu.reciprocal %291 : vector<1x8xf32> -> vector<1x8xf32>
    %293 = vector.broadcast %292 : vector<1x8xf32> to vector<8x8xf32>
    %294 = arith.mulf %289, %293 : vector<8x8xf32>
    %295 = vector.extract_strided_slice %278 {offsets = [0, 32], sizes = [8, 8], strides = [1, 1]} : vector<8x64xf32> to vector<8x8xf32>
    %cst_119 = arith.constant dense<0.000000e+00> : vector<8x8xf32>
    %296 = tpu.matmul %294, %295, %cst_119 {dimension_numbers = #tpu.dot_dimension_numbers<[1], [0], [0], [1], [0, 0, 1, 1], [], []>} : vector<8x8xf32>, vector<8x8xf32>, vector<8x8xf32> -> vector<8x8xf32>
    %297 = vector.extract_strided_slice %5 {offsets = [0, 0], sizes = [8, 32], strides = [1, 1]} : vector<32x32xf32> to vector<8x32xf32>
    %cst_120 = arith.constant dense<0.000000e+00> : vector<8x32xf32>
    %298 = tpu.matmul %296, %297, %cst_120 {dimension_numbers = #tpu.dot_dimension_numbers<[1], [0], [0], [1], [0, 0, 1, 1], [], []>} : vector<8x8xf32>, vector<8x32xf32>, vector<8x32xf32> -> vector<8x32xf32>
    %299 = arith.addf %279, %298 : vector<8x32xf32>
    %300 = vector.extract_strided_slice %277 {offsets = [0, 8], sizes = [8, 8], strides = [1, 1]} : vector<8x32xf32> to vector<8x8xf32>
    %301 = vector.extract_strided_slice %278 {offsets = [0, 8], sizes = [8, 8], strides = [1, 1]} : vector<8x64xf32> to vector<8x8xf32>
    %cst_121 = arith.constant dense<0.000000e+00> : vector<8x8xf32>
    %302 = tpu.matmul %300, %301, %cst_121 {dimension_numbers = #tpu.dot_dimension_numbers<[1], [1], [0], [0], [0, 0, 1, 0], [], []>} : vector<8x8xf32>, vector<8x8xf32>, vector<8x8xf32> -> vector<8x8xf32>
    %cst_122 = arith.constant 0.353553385 : f32
    %303 = vector.broadcast %cst_122 : f32 to vector<8x8xf32>
    %304 = arith.mulf %302, %303 : vector<8x8xf32>
    %cst_123 = arith.constant dense<0xFF800000> : vector<8xf32>
    %305 = vector.multi_reduction <maximumf>, %304, %cst_123 [0] : vector<8x8xf32> to vector<8xf32>
    %306 = vector.shape_cast %305 : vector<8xf32> to vector<1x8xf32>
    %307 = vector.broadcast %306 : vector<1x8xf32> to vector<8x8xf32>
    %308 = arith.subf %304, %307 : vector<8x8xf32>
    %309 = math.exp %308 : vector<8x8xf32>
    %cst_124 = arith.constant dense<0.000000e+00> : vector<8xf32>
    %310 = vector.multi_reduction <add>, %309, %cst_124 [0] : vector<8x8xf32> to vector<8xf32>
    %311 = vector.shape_cast %310 : vector<8xf32> to vector<1x8xf32>
    %312 = tpu.reciprocal %311 : vector<1x8xf32> -> vector<1x8xf32>
    %313 = vector.broadcast %312 : vector<1x8xf32> to vector<8x8xf32>
    %314 = arith.mulf %309, %313 : vector<8x8xf32>
    %315 = vector.extract_strided_slice %278 {offsets = [0, 40], sizes = [8, 8], strides = [1, 1]} : vector<8x64xf32> to vector<8x8xf32>
    %cst_125 = arith.constant dense<0.000000e+00> : vector<8x8xf32>
    %316 = tpu.matmul %314, %315, %cst_125 {dimension_numbers = #tpu.dot_dimension_numbers<[1], [0], [0], [1], [0, 0, 1, 1], [], []>} : vector<8x8xf32>, vector<8x8xf32>, vector<8x8xf32> -> vector<8x8xf32>
    %317 = vector.extract_strided_slice %5 {offsets = [8, 0], sizes = [8, 32], strides = [1, 1]} : vector<32x32xf32> to vector<8x32xf32>
    %cst_126 = arith.constant dense<0.000000e+00> : vector<8x32xf32>
    %318 = tpu.matmul %316, %317, %cst_126 {dimension_numbers = #tpu.dot_dimension_numbers<[1], [0], [0], [1], [0, 0, 1, 1], [], []>} : vector<8x8xf32>, vector<8x32xf32>, vector<8x32xf32> -> vector<8x32xf32>
    %319 = arith.addf %299, %318 : vector<8x32xf32>
    %320 = vector.extract_strided_slice %277 {offsets = [0, 16], sizes = [8, 8], strides = [1, 1]} : vector<8x32xf32> to vector<8x8xf32>
    %321 = vector.extract_strided_slice %278 {offsets = [0, 16], sizes = [8, 8], strides = [1, 1]} : vector<8x64xf32> to vector<8x8xf32>
    %cst_127 = arith.constant dense<0.000000e+00> : vector<8x8xf32>
    %322 = tpu.matmul %320, %321, %cst_127 {dimension_numbers = #tpu.dot_dimension_numbers<[1], [1], [0], [0], [0, 0, 1, 0], [], []>} : vector<8x8xf32>, vector<8x8xf32>, vector<8x8xf32> -> vector<8x8xf32>
    %cst_128 = arith.constant 0.353553385 : f32
    %323 = vector.broadcast %cst_128 : f32 to vector<8x8xf32>
    %324 = arith.mulf %322, %323 : vector<8x8xf32>
    %cst_129 = arith.constant dense<0xFF800000> : vector<8xf32>
    %325 = vector.multi_reduction <maximumf>, %324, %cst_129 [0] : vector<8x8xf32> to vector<8xf32>
    %326 = vector.shape_cast %325 : vector<8xf32> to vector<1x8xf32>
    %327 = vector.broadcast %326 : vector<1x8xf32> to vector<8x8xf32>
    %328 = arith.subf %324, %327 : vector<8x8xf32>
    %329 = math.exp %328 : vector<8x8xf32>
    %cst_130 = arith.constant dense<0.000000e+00> : vector<8xf32>
    %330 = vector.multi_reduction <add>, %329, %cst_130 [0] : vector<8x8xf32> to vector<8xf32>
    %331 = vector.shape_cast %330 : vector<8xf32> to vector<1x8xf32>
    %332 = tpu.reciprocal %331 : vector<1x8xf32> -> vector<1x8xf32>
    %333 = vector.broadcast %332 : vector<1x8xf32> to vector<8x8xf32>
    %334 = arith.mulf %329, %333 : vector<8x8xf32>
    %335 = vector.extract_strided_slice %278 {offsets = [0, 48], sizes = [8, 8], strides = [1, 1]} : vector<8x64xf32> to vector<8x8xf32>
    %cst_131 = arith.constant dense<0.000000e+00> : vector<8x8xf32>
    %336 = tpu.matmul %334, %335, %cst_131 {dimension_numbers = #tpu.dot_dimension_numbers<[1], [0], [0], [1], [0, 0, 1, 1], [], []>} : vector<8x8xf32>, vector<8x8xf32>, vector<8x8xf32> -> vector<8x8xf32>
    %337 = vector.extract_strided_slice %5 {offsets = [16, 0], sizes = [8, 32], strides = [1, 1]} : vector<32x32xf32> to vector<8x32xf32>
    %cst_132 = arith.constant dense<0.000000e+00> : vector<8x32xf32>
    %338 = tpu.matmul %336, %337, %cst_132 {dimension_numbers = #tpu.dot_dimension_numbers<[1], [0], [0], [1], [0, 0, 1, 1], [], []>} : vector<8x8xf32>, vector<8x32xf32>, vector<8x32xf32> -> vector<8x32xf32>
    %339 = arith.addf %319, %338 : vector<8x32xf32>
    %340 = vector.extract_strided_slice %277 {offsets = [0, 24], sizes = [8, 8], strides = [1, 1]} : vector<8x32xf32> to vector<8x8xf32>
    %341 = vector.extract_strided_slice %278 {offsets = [0, 24], sizes = [8, 8], strides = [1, 1]} : vector<8x64xf32> to vector<8x8xf32>
    %cst_133 = arith.constant dense<0.000000e+00> : vector<8x8xf32>
    %342 = tpu.matmul %340, %341, %cst_133 {dimension_numbers = #tpu.dot_dimension_numbers<[1], [1], [0], [0], [0, 0, 1, 0], [], []>} : vector<8x8xf32>, vector<8x8xf32>, vector<8x8xf32> -> vector<8x8xf32>
    %cst_134 = arith.constant 0.353553385 : f32
    %343 = vector.broadcast %cst_134 : f32 to vector<8x8xf32>
    %344 = arith.mulf %342, %343 : vector<8x8xf32>
    %cst_135 = arith.constant dense<0xFF800000> : vector<8xf32>
    %345 = vector.multi_reduction <maximumf>, %344, %cst_135 [0] : vector<8x8xf32> to vector<8xf32>
    %346 = vector.shape_cast %345 : vector<8xf32> to vector<1x8xf32>
    %347 = vector.broadcast %346 : vector<1x8xf32> to vector<8x8xf32>
    %348 = arith.subf %344, %347 : vector<8x8xf32>
    %349 = math.exp %348 : vector<8x8xf32>
    %cst_136 = arith.constant dense<0.000000e+00> : vector<8xf32>
    %350 = vector.multi_reduction <add>, %349, %cst_136 [0] : vector<8x8xf32> to vector<8xf32>
    %351 = vector.shape_cast %350 : vector<8xf32> to vector<1x8xf32>
    %352 = tpu.reciprocal %351 : vector<1x8xf32> -> vector<1x8xf32>
    %353 = vector.broadcast %352 : vector<1x8xf32> to vector<8x8xf32>
    %354 = arith.mulf %349, %353 : vector<8x8xf32>
    %355 = vector.extract_strided_slice %278 {offsets = [0, 56], sizes = [8, 8], strides = [1, 1]} : vector<8x64xf32> to vector<8x8xf32>
    %cst_137 = arith.constant dense<0.000000e+00> : vector<8x8xf32>
    %356 = tpu.matmul %354, %355, %cst_137 {dimension_numbers = #tpu.dot_dimension_numbers<[1], [0], [0], [1], [0, 0, 1, 1], [], []>} : vector<8x8xf32>, vector<8x8xf32>, vector<8x8xf32> -> vector<8x8xf32>
    %357 = vector.extract_strided_slice %5 {offsets = [24, 0], sizes = [8, 32], strides = [1, 1]} : vector<32x32xf32> to vector<8x32xf32>
    %cst_138 = arith.constant dense<0.000000e+00> : vector<8x32xf32>
    %358 = tpu.matmul %356, %357, %cst_138 {dimension_numbers = #tpu.dot_dimension_numbers<[1], [0], [0], [1], [0, 0, 1, 1], [], []>} : vector<8x8xf32>, vector<8x32xf32>, vector<8x32xf32> -> vector<8x32xf32>
    %359 = arith.addf %339, %358 : vector<8x32xf32>
    %c0_139 = arith.constant 0 : index
    %c0_140 = arith.constant 0 : index
    %360 = vector.load %arg20[%c0_139, %c0_140] : memref<1x32xf32, #tpu.memory_space<vmem>>, vector<1x32xf32>
    %361 = vector.broadcast %360 : vector<1x32xf32> to vector<8x32xf32>
    %362 = arith.addf %359, %361 : vector<8x32xf32>
    %363 = arith.addf %275, %362 : vector<8x32xf32>
    %cst_141 = arith.constant dense<0.000000e+00> : vector<8xf32>
    %364 = vector.multi_reduction <add>, %363, %cst_141 [1] : vector<8x32xf32> to vector<8xf32>
    %365 = vector.shape_cast %364 : vector<8xf32> to vector<8x1xf32>
    %cst_142 = arith.constant 3.200000e+01 : f32
    %366 = vector.broadcast %cst_142 : f32 to vector<8x1xf32>
    %367 = arith.divf %365, %366 : vector<8x1xf32>
    %368 = vector.broadcast %367 : vector<8x1xf32> to vector<8x32xf32>
    %369 = arith.subf %363, %368 : vector<8x32xf32>
    %370 = arith.mulf %369, %369 : vector<8x32xf32>
    %cst_143 = arith.constant dense<0.000000e+00> : vector<8xf32>
    %371 = vector.multi_reduction <add>, %370, %cst_143 [1] : vector<8x32xf32> to vector<8xf32>
    %372 = vector.shape_cast %371 : vector<8xf32> to vector<8x1xf32>
    %cst_144 = arith.constant 3.200000e+01 : f32
    %373 = vector.broadcast %cst_144 : f32 to vector<8x1xf32>
    %374 = arith.divf %372, %373 : vector<8x1xf32>
    %cst_145 = arith.constant 9.99999974E-6 : f32
    %375 = vector.broadcast %cst_145 : f32 to vector<8x1xf32>
    %376 = arith.addf %374, %375 : vector<8x1xf32>
    %377 = math.rsqrt %376 : vector<8x1xf32>
    %378 = vector.broadcast %377 : vector<8x1xf32> to vector<8x32xf32>
    %379 = arith.mulf %369, %378 : vector<8x32xf32>
    %c0_146 = arith.constant 0 : index
    %c0_147 = arith.constant 0 : index
    %380 = vector.load %arg21[%c0_146, %c0_147] : memref<1x32xf32, #tpu.memory_space<vmem>>, vector<1x32xf32>
    %381 = vector.broadcast %380 : vector<1x32xf32> to vector<8x32xf32>
    %382 = arith.mulf %379, %381 : vector<8x32xf32>
    %c0_148 = arith.constant 0 : index
    %c0_149 = arith.constant 0 : index
    %383 = vector.load %arg22[%c0_148, %c0_149] : memref<1x32xf32, #tpu.memory_space<vmem>>, vector<1x32xf32>
    %384 = vector.broadcast %383 : vector<1x32xf32> to vector<8x32xf32>
    %385 = arith.addf %382, %384 : vector<8x32xf32>
    %386 = arith.addf %253, %385 : vector<8x32xf32>
    %cst_150 = arith.constant dense<0.000000e+00> : vector<8xf32>
    %387 = vector.multi_reduction <add>, %386, %cst_150 [1] : vector<8x32xf32> to vector<8xf32>
    %388 = vector.shape_cast %387 : vector<8xf32> to vector<8x1xf32>
    %cst_151 = arith.constant 3.200000e+01 : f32
    %389 = vector.broadcast %cst_151 : f32 to vector<8x1xf32>
    %390 = arith.divf %388, %389 : vector<8x1xf32>
    %391 = vector.broadcast %390 : vector<8x1xf32> to vector<8x32xf32>
    %392 = arith.subf %386, %391 : vector<8x32xf32>
    %393 = arith.mulf %392, %392 : vector<8x32xf32>
    %cst_152 = arith.constant dense<0.000000e+00> : vector<8xf32>
    %394 = vector.multi_reduction <add>, %393, %cst_152 [1] : vector<8x32xf32> to vector<8xf32>
    %395 = vector.shape_cast %394 : vector<8xf32> to vector<8x1xf32>
    %cst_153 = arith.constant 3.200000e+01 : f32
    %396 = vector.broadcast %cst_153 : f32 to vector<8x1xf32>
    %397 = arith.divf %395, %396 : vector<8x1xf32>
    %cst_154 = arith.constant 9.99999974E-6 : f32
    %398 = vector.broadcast %cst_154 : f32 to vector<8x1xf32>
    %399 = arith.addf %397, %398 : vector<8x1xf32>
    %400 = math.rsqrt %399 : vector<8x1xf32>
    %401 = vector.broadcast %400 : vector<8x1xf32> to vector<8x32xf32>
    %402 = arith.mulf %392, %401 : vector<8x32xf32>
    %c0_155 = arith.constant 0 : index
    %c0_156 = arith.constant 0 : index
    %403 = vector.load %arg23[%c0_155, %c0_156] : memref<1x32xf32, #tpu.memory_space<vmem>>, vector<1x32xf32>
    %404 = vector.broadcast %403 : vector<1x32xf32> to vector<8x32xf32>
    %405 = arith.mulf %402, %404 : vector<8x32xf32>
    %c0_157 = arith.constant 0 : index
    %c0_158 = arith.constant 0 : index
    %406 = vector.load %arg24[%c0_157, %c0_158] : memref<1x32xf32, #tpu.memory_space<vmem>>, vector<1x32xf32>
    %407 = vector.broadcast %406 : vector<1x32xf32> to vector<8x32xf32>
    %408 = arith.addf %405, %407 : vector<8x32xf32>
    %c0_159 = arith.constant 0 : index
    %c0_160 = arith.constant 0 : index
    %409 = vector.load %arg25[%c0_159, %c0_160] : memref<32x64xf32, #tpu.memory_space<vmem>>, vector<32x64xf32>
    %cst_161 = arith.constant dense<0.000000e+00> : vector<8x64xf32>
    %410 = tpu.matmul %408, %409, %cst_161 {dimension_numbers = #tpu.dot_dimension_numbers<[1], [0], [0], [1], [0, 0, 1, 1], [], []>} : vector<8x32xf32>, vector<32x64xf32>, vector<8x64xf32> -> vector<8x64xf32>
    %c0_162 = arith.constant 0 : index
    %c0_163 = arith.constant 0 : index
    %411 = vector.load %arg26[%c0_162, %c0_163] : memref<1x64xf32, #tpu.memory_space<vmem>>, vector<1x64xf32>
    %412 = vector.broadcast %411 : vector<1x64xf32> to vector<8x64xf32>
    %413 = arith.addf %410, %412 : vector<8x64xf32>
    %cst_164 = arith.constant 5.000000e-01 : f32
    %414 = vector.broadcast %cst_164 : f32 to vector<8x64xf32>
    %415 = arith.mulf %414, %413 : vector<8x64xf32>
    %cst_165 = arith.constant 0.707106769 : f32
    %416 = vector.broadcast %cst_165 : f32 to vector<8x64xf32>
    %417 = arith.mulf %413, %416 : vector<8x64xf32>
    %cst_166 = arith.constant 0.000000e+00 : f32
    %418 = vector.broadcast %cst_166 : f32 to vector<8x64xf32>
    %419 = arith.cmpf oge, %417, %418 : vector<8x64xf32>
    %cst_167 = arith.constant 1.000000e+00 : f32
    %cst_168 = arith.constant -1.000000e+00 : f32
    %420 = vector.broadcast %cst_167 : f32 to vector<8x64xf32>
    %421 = vector.broadcast %cst_168 : f32 to vector<8x64xf32>
    %422 = arith.select %419, %420, %421 : vector<8x64xi1>, vector<8x64xf32>
    %423 = math.absf %417 : vector<8x64xf32>
    %cst_169 = arith.constant 0.327591091 : f32
    %424 = vector.broadcast %cst_169 : f32 to vector<8x64xf32>
    %425 = arith.mulf %424, %423 : vector<8x64xf32>
    %cst_170 = arith.constant 1.000000e+00 : f32
    %426 = vector.broadcast %cst_170 : f32 to vector<8x64xf32>
    %427 = arith.addf %426, %425 : vector<8x64xf32>
    %cst_171 = arith.constant 1.000000e+00 : f32
    %428 = vector.broadcast %cst_171 : f32 to vector<8x64xf32>
    %429 = arith.divf %428, %427 : vector<8x64xf32>
    %cst_172 = arith.constant 1.06140542 : f32
    %430 = vector.broadcast %cst_172 : f32 to vector<8x64xf32>
    %431 = arith.mulf %430, %429 : vector<8x64xf32>
    %cst_173 = arith.constant -1.45315206 : f32
    %432 = vector.broadcast %cst_173 : f32 to vector<8x64xf32>
    %433 = arith.addf %431, %432 : vector<8x64xf32>
    %434 = arith.mulf %433, %429 : vector<8x64xf32>
    %cst_174 = arith.constant 1.42141378 : f32
    %435 = vector.broadcast %cst_174 : f32 to vector<8x64xf32>
    %436 = arith.addf %434, %435 : vector<8x64xf32>
    %437 = arith.mulf %436, %429 : vector<8x64xf32>
    %cst_175 = arith.constant -0.284496725 : f32
    %438 = vector.broadcast %cst_175 : f32 to vector<8x64xf32>
    %439 = arith.addf %437, %438 : vector<8x64xf32>
    %440 = arith.mulf %439, %429 : vector<8x64xf32>
    %cst_176 = arith.constant 0.254829586 : f32
    %441 = vector.broadcast %cst_176 : f32 to vector<8x64xf32>
    %442 = arith.addf %440, %441 : vector<8x64xf32>
    %443 = arith.mulf %442, %429 : vector<8x64xf32>
    %cst_177 = arith.constant 0.000000e+00 : f32
    %444 = vector.broadcast %cst_177 : f32 to vector<8x64xf32>
    %445 = arith.subf %444, %423 : vector<8x64xf32>
    %446 = arith.mulf %445, %423 : vector<8x64xf32>
    %447 = math.exp %446 : vector<8x64xf32>
    %448 = arith.mulf %443, %447 : vector<8x64xf32>
    %cst_178 = arith.constant 1.000000e+00 : f32
    %449 = vector.broadcast %cst_178 : f32 to vector<8x64xf32>
    %450 = arith.subf %449, %448 : vector<8x64xf32>
    %451 = arith.mulf %422, %450 : vector<8x64xf32>
    %cst_179 = arith.constant 1.000000e+00 : f32
    %452 = vector.broadcast %cst_179 : f32 to vector<8x64xf32>
    %453 = arith.addf %452, %451 : vector<8x64xf32>
    %454 = arith.mulf %415, %453 : vector<8x64xf32>
    %c0_180 = arith.constant 0 : index
    %c0_181 = arith.constant 0 : index
    %455 = vector.load %arg27[%c0_180, %c0_181] : memref<64x32xf32, #tpu.memory_space<vmem>>, vector<64x32xf32>
    %cst_182 = arith.constant dense<0.000000e+00> : vector<8x32xf32>
    %456 = tpu.matmul %454, %455, %cst_182 {dimension_numbers = #tpu.dot_dimension_numbers<[1], [0], [0], [1], [0, 0, 1, 1], [], []>} : vector<8x64xf32>, vector<64x32xf32>, vector<8x32xf32> -> vector<8x32xf32>
    %c0_183 = arith.constant 0 : index
    %c0_184 = arith.constant 0 : index
    %457 = vector.load %arg28[%c0_183, %c0_184] : memref<1x32xf32, #tpu.memory_space<vmem>>, vector<1x32xf32>
    %458 = vector.broadcast %457 : vector<1x32xf32> to vector<8x32xf32>
    %459 = arith.addf %456, %458 : vector<8x32xf32>
    %460 = arith.addf %386, %459 : vector<8x32xf32>
    %c0_185 = arith.constant 0 : index
    %c0_186 = arith.constant 0 : index
    %461 = vector.load %arg29[%c0_185, %c0_186] : memref<16x32xf32, #tpu.memory_space<vmem>>, vector<8x32xf32>
    tpu.vector_store %arg29[%c0_185, %c0_186], %460 {strides = array<i32>} : memref<16x32xf32, #tpu.memory_space<vmem>>, vector<8x32xf32>,
    %462 = vector.extract_strided_slice %0 {offsets = [8, 0], sizes = [8, 32], strides = [1, 1]} : vector<16x32xf32> to vector<8x32xf32>
    %463 = vector.extract_strided_slice %27 {offsets = [8, 0], sizes = [8, 32], strides = [1, 1]} : vector<16x32xf32> to vector<8x32xf32>
    %464 = vector.extract_strided_slice %32 {offsets = [8, 0], sizes = [8, 32], strides = [1, 1]} : vector<16x32xf32> to vector<8x32xf32>
    %465 = vector.extract_strided_slice %37 {offsets = [8, 0], sizes = [8, 32], strides = [1, 1]} : vector<16x32xf32> to vector<8x32xf32>
    %466 = vector.extract_strided_slice %39 {offsets = [8, 0], sizes = [8, 64], strides = [1, 1]} : vector<16x64xf32> to vector<8x64xf32>
    %467 = vector.extract_strided_slice %41 {offsets = [8, 0], sizes = [8, 64], strides = [1, 1]} : vector<16x64xf32> to vector<8x64xf32>
    %cst_187 = arith.constant 0.000000e+00 : f32
    %468 = vector.broadcast %cst_187 : f32 to vector<8x32xf32>
    %469 = vector.extract_strided_slice %464 {offsets = [0, 0], sizes = [8, 8], strides = [1, 1]} : vector<8x32xf32> to vector<8x8xf32>
    %470 = vector.extract_strided_slice %465 {offsets = [0, 0], sizes = [8, 8], strides = [1, 1]} : vector<8x32xf32> to vector<8x8xf32>
    %471 = vector.extract_strided_slice %467 {offsets = [0, 0], sizes = [8, 8], strides = [1, 1]} : vector<8x64xf32> to vector<8x8xf32>
    %cst_188 = arith.constant dense<0.000000e+00> : vector<8x8xf32>
    %472 = tpu.matmul %469, %471, %cst_188 {dimension_numbers = #tpu.dot_dimension_numbers<[1], [1], [0], [0], [0, 0, 1, 0], [], []>} : vector<8x8xf32>, vector<8x8xf32>, vector<8x8xf32> -> vector<8x8xf32>
    %473 = vector.extract_strided_slice %3 {offsets = [0, 0], sizes = [8, 8], strides = [1, 1]} : vector<16x32xf32> to vector<8x8xf32>
    %cst_189 = arith.constant dense<0.000000e+00> : vector<8x8xf32>
    %474 = tpu.matmul %470, %473, %cst_189 {dimension_numbers = #tpu.dot_dimension_numbers<[1], [1], [0], [0], [0, 0, 1, 0], [], []>} : vector<8x8xf32>, vector<8x8xf32>, vector<8x8xf32> -> vector<8x8xf32>
    %475 = arith.addf %472, %474 : vector<8x8xf32>
    %cst_190 = arith.constant 0.353553385 : f32
    %476 = vector.broadcast %cst_190 : f32 to vector<8x8xf32>
    %477 = arith.mulf %475, %476 : vector<8x8xf32>
    %478 = vector.extract_strided_slice %466 {offsets = [0, 0], sizes = [8, 8], strides = [1, 1]} : vector<8x64xf32> to vector<8x8xf32>
    %cst_191 = arith.constant dense<0.000000e+00> : vector<8x8xf32>
    %479 = tpu.matmul %469, %478, %cst_191 {dimension_numbers = #tpu.dot_dimension_numbers<[1], [1], [0], [0], [0, 0, 1, 0], [], []>} : vector<8x8xf32>, vector<8x8xf32>, vector<8x8xf32> -> vector<8x8xf32>
    %480 = vector.extract_strided_slice %3 {offsets = [8, 0], sizes = [8, 8], strides = [1, 1]} : vector<16x32xf32> to vector<8x8xf32>
    %cst_192 = arith.constant dense<0.000000e+00> : vector<8x8xf32>
    %481 = tpu.matmul %470, %480, %cst_192 {dimension_numbers = #tpu.dot_dimension_numbers<[1], [1], [0], [0], [0, 0, 1, 0], [], []>} : vector<8x8xf32>, vector<8x8xf32>, vector<8x8xf32> -> vector<8x8xf32>
    %482 = arith.addf %479, %481 : vector<8x8xf32>
    %cst_193 = arith.constant 0.353553385 : f32
    %483 = vector.broadcast %cst_193 : f32 to vector<8x8xf32>
    %484 = arith.mulf %482, %483 : vector<8x8xf32>
    %cst_194 = arith.constant dense<0xFF800000> : vector<8xf32>
    %485 = vector.multi_reduction <maximumf>, %477, %cst_194 [0] : vector<8x8xf32> to vector<8xf32>
    %486 = vector.shape_cast %485 : vector<8xf32> to vector<1x8xf32>
    %487 = vector.broadcast %486 : vector<1x8xf32> to vector<8x8xf32>
    %488 = arith.subf %477, %487 : vector<8x8xf32>
    %489 = math.exp %488 : vector<8x8xf32>
    %cst_195 = arith.constant dense<0.000000e+00> : vector<8xf32>
    %490 = vector.multi_reduction <add>, %489, %cst_195 [0] : vector<8x8xf32> to vector<8xf32>
    %491 = vector.shape_cast %490 : vector<8xf32> to vector<1x8xf32>
    %492 = tpu.reciprocal %491 : vector<1x8xf32> -> vector<1x8xf32>
    %493 = vector.broadcast %492 : vector<1x8xf32> to vector<8x8xf32>
    %494 = arith.mulf %489, %493 : vector<8x8xf32>
    %495 = vector.extract_strided_slice %467 {offsets = [0, 32], sizes = [8, 8], strides = [1, 1]} : vector<8x64xf32> to vector<8x8xf32>
    %cst_196 = arith.constant dense<0.000000e+00> : vector<8x8xf32>
    %496 = tpu.matmul %494, %495, %cst_196 {dimension_numbers = #tpu.dot_dimension_numbers<[1], [0], [0], [1], [0, 0, 1, 1], [], []>} : vector<8x8xf32>, vector<8x8xf32>, vector<8x8xf32> -> vector<8x8xf32>
    %cst_197 = arith.constant dense<0xFF800000> : vector<8xf32>
    %497 = vector.multi_reduction <maximumf>, %484, %cst_197 [0] : vector<8x8xf32> to vector<8xf32>
    %498 = vector.shape_cast %497 : vector<8xf32> to vector<1x8xf32>
    %499 = vector.broadcast %498 : vector<1x8xf32> to vector<8x8xf32>
    %500 = arith.subf %484, %499 : vector<8x8xf32>
    %501 = math.exp %500 : vector<8x8xf32>
    %cst_198 = arith.constant dense<0.000000e+00> : vector<8xf32>
    %502 = vector.multi_reduction <add>, %501, %cst_198 [0] : vector<8x8xf32> to vector<8xf32>
    %503 = vector.shape_cast %502 : vector<8xf32> to vector<1x8xf32>
    %504 = tpu.reciprocal %503 : vector<1x8xf32> -> vector<1x8xf32>
    %505 = vector.broadcast %504 : vector<1x8xf32> to vector<8x8xf32>
    %506 = arith.mulf %501, %505 : vector<8x8xf32>
    %507 = vector.extract_strided_slice %466 {offsets = [0, 32], sizes = [8, 8], strides = [1, 1]} : vector<8x64xf32> to vector<8x8xf32>
    %cst_199 = arith.constant dense<0.000000e+00> : vector<8x8xf32>
    %508 = tpu.matmul %506, %507, %cst_199 {dimension_numbers = #tpu.dot_dimension_numbers<[1], [0], [0], [1], [0, 0, 1, 1], [], []>} : vector<8x8xf32>, vector<8x8xf32>, vector<8x8xf32> -> vector<8x8xf32>
    %509 = arith.addf %496, %508 : vector<8x8xf32>
    %510 = vector.extract_strided_slice %4 {offsets = [0, 0], sizes = [8, 32], strides = [1, 1]} : vector<32x32xf32> to vector<8x32xf32>
    %cst_200 = arith.constant dense<0.000000e+00> : vector<8x32xf32>
    %511 = tpu.matmul %509, %510, %cst_200 {dimension_numbers = #tpu.dot_dimension_numbers<[1], [0], [0], [1], [0, 0, 1, 1], [], []>} : vector<8x8xf32>, vector<8x32xf32>, vector<8x32xf32> -> vector<8x32xf32>
    %512 = arith.addf %468, %511 : vector<8x32xf32>
    %513 = vector.extract_strided_slice %464 {offsets = [0, 8], sizes = [8, 8], strides = [1, 1]} : vector<8x32xf32> to vector<8x8xf32>
    %514 = vector.extract_strided_slice %465 {offsets = [0, 8], sizes = [8, 8], strides = [1, 1]} : vector<8x32xf32> to vector<8x8xf32>
    %515 = vector.extract_strided_slice %467 {offsets = [0, 8], sizes = [8, 8], strides = [1, 1]} : vector<8x64xf32> to vector<8x8xf32>
    %cst_201 = arith.constant dense<0.000000e+00> : vector<8x8xf32>
    %516 = tpu.matmul %513, %515, %cst_201 {dimension_numbers = #tpu.dot_dimension_numbers<[1], [1], [0], [0], [0, 0, 1, 0], [], []>} : vector<8x8xf32>, vector<8x8xf32>, vector<8x8xf32> -> vector<8x8xf32>
    %517 = vector.extract_strided_slice %3 {offsets = [0, 8], sizes = [8, 8], strides = [1, 1]} : vector<16x32xf32> to vector<8x8xf32>
    %cst_202 = arith.constant dense<0.000000e+00> : vector<8x8xf32>
    %518 = tpu.matmul %514, %517, %cst_202 {dimension_numbers = #tpu.dot_dimension_numbers<[1], [1], [0], [0], [0, 0, 1, 0], [], []>} : vector<8x8xf32>, vector<8x8xf32>, vector<8x8xf32> -> vector<8x8xf32>
    %519 = arith.addf %516, %518 : vector<8x8xf32>
    %cst_203 = arith.constant 0.353553385 : f32
    %520 = vector.broadcast %cst_203 : f32 to vector<8x8xf32>
    %521 = arith.mulf %519, %520 : vector<8x8xf32>
    %522 = vector.extract_strided_slice %466 {offsets = [0, 8], sizes = [8, 8], strides = [1, 1]} : vector<8x64xf32> to vector<8x8xf32>
    %cst_204 = arith.constant dense<0.000000e+00> : vector<8x8xf32>
    %523 = tpu.matmul %513, %522, %cst_204 {dimension_numbers = #tpu.dot_dimension_numbers<[1], [1], [0], [0], [0, 0, 1, 0], [], []>} : vector<8x8xf32>, vector<8x8xf32>, vector<8x8xf32> -> vector<8x8xf32>
    %524 = vector.extract_strided_slice %3 {offsets = [8, 8], sizes = [8, 8], strides = [1, 1]} : vector<16x32xf32> to vector<8x8xf32>
    %cst_205 = arith.constant dense<0.000000e+00> : vector<8x8xf32>
    %525 = tpu.matmul %514, %524, %cst_205 {dimension_numbers = #tpu.dot_dimension_numbers<[1], [1], [0], [0], [0, 0, 1, 0], [], []>} : vector<8x8xf32>, vector<8x8xf32>, vector<8x8xf32> -> vector<8x8xf32>
    %526 = arith.addf %523, %525 : vector<8x8xf32>
    %cst_206 = arith.constant 0.353553385 : f32
    %527 = vector.broadcast %cst_206 : f32 to vector<8x8xf32>
    %528 = arith.mulf %526, %527 : vector<8x8xf32>
    %cst_207 = arith.constant dense<0xFF800000> : vector<8xf32>
    %529 = vector.multi_reduction <maximumf>, %521, %cst_207 [0] : vector<8x8xf32> to vector<8xf32>
    %530 = vector.shape_cast %529 : vector<8xf32> to vector<1x8xf32>
    %531 = vector.broadcast %530 : vector<1x8xf32> to vector<8x8xf32>
    %532 = arith.subf %521, %531 : vector<8x8xf32>
    %533 = math.exp %532 : vector<8x8xf32>
    %cst_208 = arith.constant dense<0.000000e+00> : vector<8xf32>
    %534 = vector.multi_reduction <add>, %533, %cst_208 [0] : vector<8x8xf32> to vector<8xf32>
    %535 = vector.shape_cast %534 : vector<8xf32> to vector<1x8xf32>
    %536 = tpu.reciprocal %535 : vector<1x8xf32> -> vector<1x8xf32>
    %537 = vector.broadcast %536 : vector<1x8xf32> to vector<8x8xf32>
    %538 = arith.mulf %533, %537 : vector<8x8xf32>
    %539 = vector.extract_strided_slice %467 {offsets = [0, 40], sizes = [8, 8], strides = [1, 1]} : vector<8x64xf32> to vector<8x8xf32>
    %cst_209 = arith.constant dense<0.000000e+00> : vector<8x8xf32>
    %540 = tpu.matmul %538, %539, %cst_209 {dimension_numbers = #tpu.dot_dimension_numbers<[1], [0], [0], [1], [0, 0, 1, 1], [], []>} : vector<8x8xf32>, vector<8x8xf32>, vector<8x8xf32> -> vector<8x8xf32>
    %cst_210 = arith.constant dense<0xFF800000> : vector<8xf32>
    %541 = vector.multi_reduction <maximumf>, %528, %cst_210 [0] : vector<8x8xf32> to vector<8xf32>
    %542 = vector.shape_cast %541 : vector<8xf32> to vector<1x8xf32>
    %543 = vector.broadcast %542 : vector<1x8xf32> to vector<8x8xf32>
    %544 = arith.subf %528, %543 : vector<8x8xf32>
    %545 = math.exp %544 : vector<8x8xf32>
    %cst_211 = arith.constant dense<0.000000e+00> : vector<8xf32>
    %546 = vector.multi_reduction <add>, %545, %cst_211 [0] : vector<8x8xf32> to vector<8xf32>
    %547 = vector.shape_cast %546 : vector<8xf32> to vector<1x8xf32>
    %548 = tpu.reciprocal %547 : vector<1x8xf32> -> vector<1x8xf32>
    %549 = vector.broadcast %548 : vector<1x8xf32> to vector<8x8xf32>
    %550 = arith.mulf %545, %549 : vector<8x8xf32>
    %551 = vector.extract_strided_slice %466 {offsets = [0, 40], sizes = [8, 8], strides = [1, 1]} : vector<8x64xf32> to vector<8x8xf32>
    %cst_212 = arith.constant dense<0.000000e+00> : vector<8x8xf32>
    %552 = tpu.matmul %550, %551, %cst_212 {dimension_numbers = #tpu.dot_dimension_numbers<[1], [0], [0], [1], [0, 0, 1, 1], [], []>} : vector<8x8xf32>, vector<8x8xf32>, vector<8x8xf32> -> vector<8x8xf32>
    %553 = arith.addf %540, %552 : vector<8x8xf32>
    %554 = vector.extract_strided_slice %4 {offsets = [8, 0], sizes = [8, 32], strides = [1, 1]} : vector<32x32xf32> to vector<8x32xf32>
    %cst_213 = arith.constant dense<0.000000e+00> : vector<8x32xf32>
    %555 = tpu.matmul %553, %554, %cst_213 {dimension_numbers = #tpu.dot_dimension_numbers<[1], [0], [0], [1], [0, 0, 1, 1], [], []>} : vector<8x8xf32>, vector<8x32xf32>, vector<8x32xf32> -> vector<8x32xf32>
    %556 = arith.addf %512, %555 : vector<8x32xf32>
    %557 = vector.extract_strided_slice %464 {offsets = [0, 16], sizes = [8, 8], strides = [1, 1]} : vector<8x32xf32> to vector<8x8xf32>
    %558 = vector.extract_strided_slice %465 {offsets = [0, 16], sizes = [8, 8], strides = [1, 1]} : vector<8x32xf32> to vector<8x8xf32>
    %559 = vector.extract_strided_slice %467 {offsets = [0, 16], sizes = [8, 8], strides = [1, 1]} : vector<8x64xf32> to vector<8x8xf32>
    %cst_214 = arith.constant dense<0.000000e+00> : vector<8x8xf32>
    %560 = tpu.matmul %557, %559, %cst_214 {dimension_numbers = #tpu.dot_dimension_numbers<[1], [1], [0], [0], [0, 0, 1, 0], [], []>} : vector<8x8xf32>, vector<8x8xf32>, vector<8x8xf32> -> vector<8x8xf32>
    %561 = vector.extract_strided_slice %3 {offsets = [0, 16], sizes = [8, 8], strides = [1, 1]} : vector<16x32xf32> to vector<8x8xf32>
    %cst_215 = arith.constant dense<0.000000e+00> : vector<8x8xf32>
    %562 = tpu.matmul %558, %561, %cst_215 {dimension_numbers = #tpu.dot_dimension_numbers<[1], [1], [0], [0], [0, 0, 1, 0], [], []>} : vector<8x8xf32>, vector<8x8xf32>, vector<8x8xf32> -> vector<8x8xf32>
    %563 = arith.addf %560, %562 : vector<8x8xf32>
    %cst_216 = arith.constant 0.353553385 : f32
    %564 = vector.broadcast %cst_216 : f32 to vector<8x8xf32>
    %565 = arith.mulf %563, %564 : vector<8x8xf32>
    %566 = vector.extract_strided_slice %466 {offsets = [0, 16], sizes = [8, 8], strides = [1, 1]} : vector<8x64xf32> to vector<8x8xf32>
    %cst_217 = arith.constant dense<0.000000e+00> : vector<8x8xf32>
    %567 = tpu.matmul %557, %566, %cst_217 {dimension_numbers = #tpu.dot_dimension_numbers<[1], [1], [0], [0], [0, 0, 1, 0], [], []>} : vector<8x8xf32>, vector<8x8xf32>, vector<8x8xf32> -> vector<8x8xf32>
    %568 = vector.extract_strided_slice %3 {offsets = [8, 16], sizes = [8, 8], strides = [1, 1]} : vector<16x32xf32> to vector<8x8xf32>
    %cst_218 = arith.constant dense<0.000000e+00> : vector<8x8xf32>
    %569 = tpu.matmul %558, %568, %cst_218 {dimension_numbers = #tpu.dot_dimension_numbers<[1], [1], [0], [0], [0, 0, 1, 0], [], []>} : vector<8x8xf32>, vector<8x8xf32>, vector<8x8xf32> -> vector<8x8xf32>
    %570 = arith.addf %567, %569 : vector<8x8xf32>
    %cst_219 = arith.constant 0.353553385 : f32
    %571 = vector.broadcast %cst_219 : f32 to vector<8x8xf32>
    %572 = arith.mulf %570, %571 : vector<8x8xf32>
    %cst_220 = arith.constant dense<0xFF800000> : vector<8xf32>
    %573 = vector.multi_reduction <maximumf>, %565, %cst_220 [0] : vector<8x8xf32> to vector<8xf32>
    %574 = vector.shape_cast %573 : vector<8xf32> to vector<1x8xf32>
    %575 = vector.broadcast %574 : vector<1x8xf32> to vector<8x8xf32>
    %576 = arith.subf %565, %575 : vector<8x8xf32>
    %577 = math.exp %576 : vector<8x8xf32>
    %cst_221 = arith.constant dense<0.000000e+00> : vector<8xf32>
    %578 = vector.multi_reduction <add>, %577, %cst_221 [0] : vector<8x8xf32> to vector<8xf32>
    %579 = vector.shape_cast %578 : vector<8xf32> to vector<1x8xf32>
    %580 = tpu.reciprocal %579 : vector<1x8xf32> -> vector<1x8xf32>
    %581 = vector.broadcast %580 : vector<1x8xf32> to vector<8x8xf32>
    %582 = arith.mulf %577, %581 : vector<8x8xf32>
    %583 = vector.extract_strided_slice %467 {offsets = [0, 48], sizes = [8, 8], strides = [1, 1]} : vector<8x64xf32> to vector<8x8xf32>
    %cst_222 = arith.constant dense<0.000000e+00> : vector<8x8xf32>
    %584 = tpu.matmul %582, %583, %cst_222 {dimension_numbers = #tpu.dot_dimension_numbers<[1], [0], [0], [1], [0, 0, 1, 1], [], []>} : vector<8x8xf32>, vector<8x8xf32>, vector<8x8xf32> -> vector<8x8xf32>
    %cst_223 = arith.constant dense<0xFF800000> : vector<8xf32>
    %585 = vector.multi_reduction <maximumf>, %572, %cst_223 [0] : vector<8x8xf32> to vector<8xf32>
    %586 = vector.shape_cast %585 : vector<8xf32> to vector<1x8xf32>
    %587 = vector.broadcast %586 : vector<1x8xf32> to vector<8x8xf32>
    %588 = arith.subf %572, %587 : vector<8x8xf32>
    %589 = math.exp %588 : vector<8x8xf32>
    %cst_224 = arith.constant dense<0.000000e+00> : vector<8xf32>
    %590 = vector.multi_reduction <add>, %589, %cst_224 [0] : vector<8x8xf32> to vector<8xf32>
    %591 = vector.shape_cast %590 : vector<8xf32> to vector<1x8xf32>
    %592 = tpu.reciprocal %591 : vector<1x8xf32> -> vector<1x8xf32>
    %593 = vector.broadcast %592 : vector<1x8xf32> to vector<8x8xf32>
    %594 = arith.mulf %589, %593 : vector<8x8xf32>
    %595 = vector.extract_strided_slice %466 {offsets = [0, 48], sizes = [8, 8], strides = [1, 1]} : vector<8x64xf32> to vector<8x8xf32>
    %cst_225 = arith.constant dense<0.000000e+00> : vector<8x8xf32>
    %596 = tpu.matmul %594, %595, %cst_225 {dimension_numbers = #tpu.dot_dimension_numbers<[1], [0], [0], [1], [0, 0, 1, 1], [], []>} : vector<8x8xf32>, vector<8x8xf32>, vector<8x8xf32> -> vector<8x8xf32>
    %597 = arith.addf %584, %596 : vector<8x8xf32>
    %598 = vector.extract_strided_slice %4 {offsets = [16, 0], sizes = [8, 32], strides = [1, 1]} : vector<32x32xf32> to vector<8x32xf32>
    %cst_226 = arith.constant dense<0.000000e+00> : vector<8x32xf32>
    %599 = tpu.matmul %597, %598, %cst_226 {dimension_numbers = #tpu.dot_dimension_numbers<[1], [0], [0], [1], [0, 0, 1, 1], [], []>} : vector<8x8xf32>, vector<8x32xf32>, vector<8x32xf32> -> vector<8x32xf32>
    %600 = arith.addf %556, %599 : vector<8x32xf32>
    %601 = vector.extract_strided_slice %464 {offsets = [0, 24], sizes = [8, 8], strides = [1, 1]} : vector<8x32xf32> to vector<8x8xf32>
    %602 = vector.extract_strided_slice %465 {offsets = [0, 24], sizes = [8, 8], strides = [1, 1]} : vector<8x32xf32> to vector<8x8xf32>
    %603 = vector.extract_strided_slice %467 {offsets = [0, 24], sizes = [8, 8], strides = [1, 1]} : vector<8x64xf32> to vector<8x8xf32>
    %cst_227 = arith.constant dense<0.000000e+00> : vector<8x8xf32>
    %604 = tpu.matmul %601, %603, %cst_227 {dimension_numbers = #tpu.dot_dimension_numbers<[1], [1], [0], [0], [0, 0, 1, 0], [], []>} : vector<8x8xf32>, vector<8x8xf32>, vector<8x8xf32> -> vector<8x8xf32>
    %605 = vector.extract_strided_slice %3 {offsets = [0, 24], sizes = [8, 8], strides = [1, 1]} : vector<16x32xf32> to vector<8x8xf32>
    %cst_228 = arith.constant dense<0.000000e+00> : vector<8x8xf32>
    %606 = tpu.matmul %602, %605, %cst_228 {dimension_numbers = #tpu.dot_dimension_numbers<[1], [1], [0], [0], [0, 0, 1, 0], [], []>} : vector<8x8xf32>, vector<8x8xf32>, vector<8x8xf32> -> vector<8x8xf32>
    %607 = arith.addf %604, %606 : vector<8x8xf32>
    %cst_229 = arith.constant 0.353553385 : f32
    %608 = vector.broadcast %cst_229 : f32 to vector<8x8xf32>
    %609 = arith.mulf %607, %608 : vector<8x8xf32>
    %610 = vector.extract_strided_slice %466 {offsets = [0, 24], sizes = [8, 8], strides = [1, 1]} : vector<8x64xf32> to vector<8x8xf32>
    %cst_230 = arith.constant dense<0.000000e+00> : vector<8x8xf32>
    %611 = tpu.matmul %601, %610, %cst_230 {dimension_numbers = #tpu.dot_dimension_numbers<[1], [1], [0], [0], [0, 0, 1, 0], [], []>} : vector<8x8xf32>, vector<8x8xf32>, vector<8x8xf32> -> vector<8x8xf32>
    %612 = vector.extract_strided_slice %3 {offsets = [8, 24], sizes = [8, 8], strides = [1, 1]} : vector<16x32xf32> to vector<8x8xf32>
    %cst_231 = arith.constant dense<0.000000e+00> : vector<8x8xf32>
    %613 = tpu.matmul %602, %612, %cst_231 {dimension_numbers = #tpu.dot_dimension_numbers<[1], [1], [0], [0], [0, 0, 1, 0], [], []>} : vector<8x8xf32>, vector<8x8xf32>, vector<8x8xf32> -> vector<8x8xf32>
    %614 = arith.addf %611, %613 : vector<8x8xf32>
    %cst_232 = arith.constant 0.353553385 : f32
    %615 = vector.broadcast %cst_232 : f32 to vector<8x8xf32>
    %616 = arith.mulf %614, %615 : vector<8x8xf32>
    %cst_233 = arith.constant dense<0xFF800000> : vector<8xf32>
    %617 = vector.multi_reduction <maximumf>, %609, %cst_233 [0] : vector<8x8xf32> to vector<8xf32>
    %618 = vector.shape_cast %617 : vector<8xf32> to vector<1x8xf32>
    %619 = vector.broadcast %618 : vector<1x8xf32> to vector<8x8xf32>
    %620 = arith.subf %609, %619 : vector<8x8xf32>
    %621 = math.exp %620 : vector<8x8xf32>
    %cst_234 = arith.constant dense<0.000000e+00> : vector<8xf32>
    %622 = vector.multi_reduction <add>, %621, %cst_234 [0] : vector<8x8xf32> to vector<8xf32>
    %623 = vector.shape_cast %622 : vector<8xf32> to vector<1x8xf32>
    %624 = tpu.reciprocal %623 : vector<1x8xf32> -> vector<1x8xf32>
    %625 = vector.broadcast %624 : vector<1x8xf32> to vector<8x8xf32>
    %626 = arith.mulf %621, %625 : vector<8x8xf32>
    %627 = vector.extract_strided_slice %467 {offsets = [0, 56], sizes = [8, 8], strides = [1, 1]} : vector<8x64xf32> to vector<8x8xf32>
    %cst_235 = arith.constant dense<0.000000e+00> : vector<8x8xf32>
    %628 = tpu.matmul %626, %627, %cst_235 {dimension_numbers = #tpu.dot_dimension_numbers<[1], [0], [0], [1], [0, 0, 1, 1], [], []>} : vector<8x8xf32>, vector<8x8xf32>, vector<8x8xf32> -> vector<8x8xf32>
    %cst_236 = arith.constant dense<0xFF800000> : vector<8xf32>
    %629 = vector.multi_reduction <maximumf>, %616, %cst_236 [0] : vector<8x8xf32> to vector<8xf32>
    %630 = vector.shape_cast %629 : vector<8xf32> to vector<1x8xf32>
    %631 = vector.broadcast %630 : vector<1x8xf32> to vector<8x8xf32>
    %632 = arith.subf %616, %631 : vector<8x8xf32>
    %633 = math.exp %632 : vector<8x8xf32>
    %cst_237 = arith.constant dense<0.000000e+00> : vector<8xf32>
    %634 = vector.multi_reduction <add>, %633, %cst_237 [0] : vector<8x8xf32> to vector<8xf32>
    %635 = vector.shape_cast %634 : vector<8xf32> to vector<1x8xf32>
    %636 = tpu.reciprocal %635 : vector<1x8xf32> -> vector<1x8xf32>
    %637 = vector.broadcast %636 : vector<1x8xf32> to vector<8x8xf32>
    %638 = arith.mulf %633, %637 : vector<8x8xf32>
    %639 = vector.extract_strided_slice %466 {offsets = [0, 56], sizes = [8, 8], strides = [1, 1]} : vector<8x64xf32> to vector<8x8xf32>
    %cst_238 = arith.constant dense<0.000000e+00> : vector<8x8xf32>
    %640 = tpu.matmul %638, %639, %cst_238 {dimension_numbers = #tpu.dot_dimension_numbers<[1], [0], [0], [1], [0, 0, 1, 1], [], []>} : vector<8x8xf32>, vector<8x8xf32>, vector<8x8xf32> -> vector<8x8xf32>
    %641 = arith.addf %628, %640 : vector<8x8xf32>
    %642 = vector.extract_strided_slice %4 {offsets = [24, 0], sizes = [8, 32], strides = [1, 1]} : vector<32x32xf32> to vector<8x32xf32>
    %cst_239 = arith.constant dense<0.000000e+00> : vector<8x32xf32>
    %643 = tpu.matmul %641, %642, %cst_239 {dimension_numbers = #tpu.dot_dimension_numbers<[1], [0], [0], [1], [0, 0, 1, 1], [], []>} : vector<8x8xf32>, vector<8x32xf32>, vector<8x32xf32> -> vector<8x32xf32>
    %644 = arith.addf %600, %643 : vector<8x32xf32>
    %c0_240 = arith.constant 0 : index
    %c0_241 = arith.constant 0 : index
    %645 = vector.load %arg12[%c0_240, %c0_241] : memref<1x32xf32, #tpu.memory_space<vmem>>, vector<1x32xf32>
    %646 = vector.broadcast %645 : vector<1x32xf32> to vector<8x32xf32>
    %647 = arith.addf %644, %646 : vector<8x32xf32>
    %648 = arith.addf %463, %647 : vector<8x32xf32>
    %cst_242 = arith.constant dense<0.000000e+00> : vector<8xf32>
    %649 = vector.multi_reduction <add>, %648, %cst_242 [1] : vector<8x32xf32> to vector<8xf32>
    %650 = vector.shape_cast %649 : vector<8xf32> to vector<8x1xf32>
    %cst_243 = arith.constant 3.200000e+01 : f32
    %651 = vector.broadcast %cst_243 : f32 to vector<8x1xf32>
    %652 = arith.divf %650, %651 : vector<8x1xf32>
    %653 = vector.broadcast %652 : vector<8x1xf32> to vector<8x32xf32>
    %654 = arith.subf %648, %653 : vector<8x32xf32>
    %655 = arith.mulf %654, %654 : vector<8x32xf32>
    %cst_244 = arith.constant dense<0.000000e+00> : vector<8xf32>
    %656 = vector.multi_reduction <add>, %655, %cst_244 [1] : vector<8x32xf32> to vector<8xf32>
    %657 = vector.shape_cast %656 : vector<8xf32> to vector<8x1xf32>
    %cst_245 = arith.constant 3.200000e+01 : f32
    %658 = vector.broadcast %cst_245 : f32 to vector<8x1xf32>
    %659 = arith.divf %657, %658 : vector<8x1xf32>
    %cst_246 = arith.constant 9.99999974E-6 : f32
    %660 = vector.broadcast %cst_246 : f32 to vector<8x1xf32>
    %661 = arith.addf %659, %660 : vector<8x1xf32>
    %662 = math.rsqrt %661 : vector<8x1xf32>
    %663 = vector.broadcast %662 : vector<8x1xf32> to vector<8x32xf32>
    %664 = arith.mulf %654, %663 : vector<8x32xf32>
    %c0_247 = arith.constant 0 : index
    %c0_248 = arith.constant 0 : index
    %665 = vector.load %arg13[%c0_247, %c0_248] : memref<1x32xf32, #tpu.memory_space<vmem>>, vector<1x32xf32>
    %666 = vector.broadcast %665 : vector<1x32xf32> to vector<8x32xf32>
    %667 = arith.mulf %664, %666 : vector<8x32xf32>
    %c0_249 = arith.constant 0 : index
    %c0_250 = arith.constant 0 : index
    %668 = vector.load %arg14[%c0_249, %c0_250] : memref<1x32xf32, #tpu.memory_space<vmem>>, vector<1x32xf32>
    %669 = vector.broadcast %668 : vector<1x32xf32> to vector<8x32xf32>
    %670 = arith.addf %667, %669 : vector<8x32xf32>
    %671 = arith.addf %462, %670 : vector<8x32xf32>
    %cst_251 = arith.constant dense<0.000000e+00> : vector<8xf32>
    %672 = vector.multi_reduction <add>, %671, %cst_251 [1] : vector<8x32xf32> to vector<8xf32>
    %673 = vector.shape_cast %672 : vector<8xf32> to vector<8x1xf32>
    %cst_252 = arith.constant 3.200000e+01 : f32
    %674 = vector.broadcast %cst_252 : f32 to vector<8x1xf32>
    %675 = arith.divf %673, %674 : vector<8x1xf32>
    %676 = vector.broadcast %675 : vector<8x1xf32> to vector<8x32xf32>
    %677 = arith.subf %671, %676 : vector<8x32xf32>
    %678 = arith.mulf %677, %677 : vector<8x32xf32>
    %cst_253 = arith.constant dense<0.000000e+00> : vector<8xf32>
    %679 = vector.multi_reduction <add>, %678, %cst_253 [1] : vector<8x32xf32> to vector<8xf32>
    %680 = vector.shape_cast %679 : vector<8xf32> to vector<8x1xf32>
    %cst_254 = arith.constant 3.200000e+01 : f32
    %681 = vector.broadcast %cst_254 : f32 to vector<8x1xf32>
    %682 = arith.divf %680, %681 : vector<8x1xf32>
    %cst_255 = arith.constant 9.99999974E-6 : f32
    %683 = vector.broadcast %cst_255 : f32 to vector<8x1xf32>
    %684 = arith.addf %682, %683 : vector<8x1xf32>
    %685 = math.rsqrt %684 : vector<8x1xf32>
    %686 = vector.broadcast %685 : vector<8x1xf32> to vector<8x32xf32>
    %687 = arith.mulf %677, %686 : vector<8x32xf32>
    %c0_256 = arith.constant 0 : index
    %c0_257 = arith.constant 0 : index
    %688 = vector.load %arg15[%c0_256, %c0_257] : memref<1x32xf32, #tpu.memory_space<vmem>>, vector<1x32xf32>
    %689 = vector.broadcast %688 : vector<1x32xf32> to vector<8x32xf32>
    %690 = arith.mulf %687, %689 : vector<8x32xf32>
    %c0_258 = arith.constant 0 : index
    %c0_259 = arith.constant 0 : index
    %691 = vector.load %arg16[%c0_258, %c0_259] : memref<1x32xf32, #tpu.memory_space<vmem>>, vector<1x32xf32>
    %692 = vector.broadcast %691 : vector<1x32xf32> to vector<8x32xf32>
    %693 = arith.addf %690, %692 : vector<8x32xf32>
    %c0_260 = arith.constant 0 : index
    %c0_261 = arith.constant 0 : index
    %694 = vector.load %arg17[%c0_260, %c0_261] : memref<32x32xf32, #tpu.memory_space<vmem>>, vector<32x32xf32>
    %cst_262 = arith.constant dense<0.000000e+00> : vector<8x32xf32>
    %695 = tpu.matmul %693, %694, %cst_262 {dimension_numbers = #tpu.dot_dimension_numbers<[1], [0], [0], [1], [0, 0, 1, 1], [], []>} : vector<8x32xf32>, vector<32x32xf32>, vector<8x32xf32> -> vector<8x32xf32>
    %696 = vector.extract_strided_slice %43 {offsets = [8, 0], sizes = [8, 64], strides = [1, 1]} : vector<16x64xf32> to vector<8x64xf32>
    %cst_263 = arith.constant 0.000000e+00 : f32
    %697 = vector.broadcast %cst_263 : f32 to vector<8x32xf32>
    %698 = vector.extract_strided_slice %695 {offsets = [0, 0], sizes = [8, 8], strides = [1, 1]} : vector<8x32xf32> to vector<8x8xf32>
    %699 = vector.extract_strided_slice %696 {offsets = [0, 0], sizes = [8, 8], strides = [1, 1]} : vector<8x64xf32> to vector<8x8xf32>
    %cst_264 = arith.constant dense<0.000000e+00> : vector<8x8xf32>
    %700 = tpu.matmul %698, %699, %cst_264 {dimension_numbers = #tpu.dot_dimension_numbers<[1], [1], [0], [0], [0, 0, 1, 0], [], []>} : vector<8x8xf32>, vector<8x8xf32>, vector<8x8xf32> -> vector<8x8xf32>
    %cst_265 = arith.constant 0.353553385 : f32
    %701 = vector.broadcast %cst_265 : f32 to vector<8x8xf32>
    %702 = arith.mulf %700, %701 : vector<8x8xf32>
    %cst_266 = arith.constant dense<0xFF800000> : vector<8xf32>
    %703 = vector.multi_reduction <maximumf>, %702, %cst_266 [0] : vector<8x8xf32> to vector<8xf32>
    %704 = vector.shape_cast %703 : vector<8xf32> to vector<1x8xf32>
    %705 = vector.broadcast %704 : vector<1x8xf32> to vector<8x8xf32>
    %706 = arith.subf %702, %705 : vector<8x8xf32>
    %707 = math.exp %706 : vector<8x8xf32>
    %cst_267 = arith.constant dense<0.000000e+00> : vector<8xf32>
    %708 = vector.multi_reduction <add>, %707, %cst_267 [0] : vector<8x8xf32> to vector<8xf32>
    %709 = vector.shape_cast %708 : vector<8xf32> to vector<1x8xf32>
    %710 = tpu.reciprocal %709 : vector<1x8xf32> -> vector<1x8xf32>
    %711 = vector.broadcast %710 : vector<1x8xf32> to vector<8x8xf32>
    %712 = arith.mulf %707, %711 : vector<8x8xf32>
    %713 = vector.extract_strided_slice %696 {offsets = [0, 32], sizes = [8, 8], strides = [1, 1]} : vector<8x64xf32> to vector<8x8xf32>
    %cst_268 = arith.constant dense<0.000000e+00> : vector<8x8xf32>
    %714 = tpu.matmul %712, %713, %cst_268 {dimension_numbers = #tpu.dot_dimension_numbers<[1], [0], [0], [1], [0, 0, 1, 1], [], []>} : vector<8x8xf32>, vector<8x8xf32>, vector<8x8xf32> -> vector<8x8xf32>
    %715 = vector.extract_strided_slice %5 {offsets = [0, 0], sizes = [8, 32], strides = [1, 1]} : vector<32x32xf32> to vector<8x32xf32>
    %cst_269 = arith.constant dense<0.000000e+00> : vector<8x32xf32>
    %716 = tpu.matmul %714, %715, %cst_269 {dimension_numbers = #tpu.dot_dimension_numbers<[1], [0], [0], [1], [0, 0, 1, 1], [], []>} : vector<8x8xf32>, vector<8x32xf32>, vector<8x32xf32> -> vector<8x32xf32>
    %717 = arith.addf %697, %716 : vector<8x32xf32>
    %718 = vector.extract_strided_slice %695 {offsets = [0, 8], sizes = [8, 8], strides = [1, 1]} : vector<8x32xf32> to vector<8x8xf32>
    %719 = vector.extract_strided_slice %696 {offsets = [0, 8], sizes = [8, 8], strides = [1, 1]} : vector<8x64xf32> to vector<8x8xf32>
    %cst_270 = arith.constant dense<0.000000e+00> : vector<8x8xf32>
    %720 = tpu.matmul %718, %719, %cst_270 {dimension_numbers = #tpu.dot_dimension_numbers<[1], [1], [0], [0], [0, 0, 1, 0], [], []>} : vector<8x8xf32>, vector<8x8xf32>, vector<8x8xf32> -> vector<8x8xf32>
    %cst_271 = arith.constant 0.353553385 : f32
    %721 = vector.broadcast %cst_271 : f32 to vector<8x8xf32>
    %722 = arith.mulf %720, %721 : vector<8x8xf32>
    %cst_272 = arith.constant dense<0xFF800000> : vector<8xf32>
    %723 = vector.multi_reduction <maximumf>, %722, %cst_272 [0] : vector<8x8xf32> to vector<8xf32>
    %724 = vector.shape_cast %723 : vector<8xf32> to vector<1x8xf32>
    %725 = vector.broadcast %724 : vector<1x8xf32> to vector<8x8xf32>
    %726 = arith.subf %722, %725 : vector<8x8xf32>
    %727 = math.exp %726 : vector<8x8xf32>
    %cst_273 = arith.constant dense<0.000000e+00> : vector<8xf32>
    %728 = vector.multi_reduction <add>, %727, %cst_273 [0] : vector<8x8xf32> to vector<8xf32>
    %729 = vector.shape_cast %728 : vector<8xf32> to vector<1x8xf32>
    %730 = tpu.reciprocal %729 : vector<1x8xf32> -> vector<1x8xf32>
    %731 = vector.broadcast %730 : vector<1x8xf32> to vector<8x8xf32>
    %732 = arith.mulf %727, %731 : vector<8x8xf32>
    %733 = vector.extract_strided_slice %696 {offsets = [0, 40], sizes = [8, 8], strides = [1, 1]} : vector<8x64xf32> to vector<8x8xf32>
    %cst_274 = arith.constant dense<0.000000e+00> : vector<8x8xf32>
    %734 = tpu.matmul %732, %733, %cst_274 {dimension_numbers = #tpu.dot_dimension_numbers<[1], [0], [0], [1], [0, 0, 1, 1], [], []>} : vector<8x8xf32>, vector<8x8xf32>, vector<8x8xf32> -> vector<8x8xf32>
    %735 = vector.extract_strided_slice %5 {offsets = [8, 0], sizes = [8, 32], strides = [1, 1]} : vector<32x32xf32> to vector<8x32xf32>
    %cst_275 = arith.constant dense<0.000000e+00> : vector<8x32xf32>
    %736 = tpu.matmul %734, %735, %cst_275 {dimension_numbers = #tpu.dot_dimension_numbers<[1], [0], [0], [1], [0, 0, 1, 1], [], []>} : vector<8x8xf32>, vector<8x32xf32>, vector<8x32xf32> -> vector<8x32xf32>
    %737 = arith.addf %717, %736 : vector<8x32xf32>
    %738 = vector.extract_strided_slice %695 {offsets = [0, 16], sizes = [8, 8], strides = [1, 1]} : vector<8x32xf32> to vector<8x8xf32>
    %739 = vector.extract_strided_slice %696 {offsets = [0, 16], sizes = [8, 8], strides = [1, 1]} : vector<8x64xf32> to vector<8x8xf32>
    %cst_276 = arith.constant dense<0.000000e+00> : vector<8x8xf32>
    %740 = tpu.matmul %738, %739, %cst_276 {dimension_numbers = #tpu.dot_dimension_numbers<[1], [1], [0], [0], [0, 0, 1, 0], [], []>} : vector<8x8xf32>, vector<8x8xf32>, vector<8x8xf32> -> vector<8x8xf32>
    %cst_277 = arith.constant 0.353553385 : f32
    %741 = vector.broadcast %cst_277 : f32 to vector<8x8xf32>
    %742 = arith.mulf %740, %741 : vector<8x8xf32>
    %cst_278 = arith.constant dense<0xFF800000> : vector<8xf32>
    %743 = vector.multi_reduction <maximumf>, %742, %cst_278 [0] : vector<8x8xf32> to vector<8xf32>
    %744 = vector.shape_cast %743 : vector<8xf32> to vector<1x8xf32>
    %745 = vector.broadcast %744 : vector<1x8xf32> to vector<8x8xf32>
    %746 = arith.subf %742, %745 : vector<8x8xf32>
    %747 = math.exp %746 : vector<8x8xf32>
    %cst_279 = arith.constant dense<0.000000e+00> : vector<8xf32>
    %748 = vector.multi_reduction <add>, %747, %cst_279 [0] : vector<8x8xf32> to vector<8xf32>
    %749 = vector.shape_cast %748 : vector<8xf32> to vector<1x8xf32>
    %750 = tpu.reciprocal %749 : vector<1x8xf32> -> vector<1x8xf32>
    %751 = vector.broadcast %750 : vector<1x8xf32> to vector<8x8xf32>
    %752 = arith.mulf %747, %751 : vector<8x8xf32>
    %753 = vector.extract_strided_slice %696 {offsets = [0, 48], sizes = [8, 8], strides = [1, 1]} : vector<8x64xf32> to vector<8x8xf32>
    %cst_280 = arith.constant dense<0.000000e+00> : vector<8x8xf32>
    %754 = tpu.matmul %752, %753, %cst_280 {dimension_numbers = #tpu.dot_dimension_numbers<[1], [0], [0], [1], [0, 0, 1, 1], [], []>} : vector<8x8xf32>, vector<8x8xf32>, vector<8x8xf32> -> vector<8x8xf32>
    %755 = vector.extract_strided_slice %5 {offsets = [16, 0], sizes = [8, 32], strides = [1, 1]} : vector<32x32xf32> to vector<8x32xf32>
    %cst_281 = arith.constant dense<0.000000e+00> : vector<8x32xf32>
    %756 = tpu.matmul %754, %755, %cst_281 {dimension_numbers = #tpu.dot_dimension_numbers<[1], [0], [0], [1], [0, 0, 1, 1], [], []>} : vector<8x8xf32>, vector<8x32xf32>, vector<8x32xf32> -> vector<8x32xf32>
    %757 = arith.addf %737, %756 : vector<8x32xf32>
    %758 = vector.extract_strided_slice %695 {offsets = [0, 24], sizes = [8, 8], strides = [1, 1]} : vector<8x32xf32> to vector<8x8xf32>
    %759 = vector.extract_strided_slice %696 {offsets = [0, 24], sizes = [8, 8], strides = [1, 1]} : vector<8x64xf32> to vector<8x8xf32>
    %cst_282 = arith.constant dense<0.000000e+00> : vector<8x8xf32>
    %760 = tpu.matmul %758, %759, %cst_282 {dimension_numbers = #tpu.dot_dimension_numbers<[1], [1], [0], [0], [0, 0, 1, 0], [], []>} : vector<8x8xf32>, vector<8x8xf32>, vector<8x8xf32> -> vector<8x8xf32>
    %cst_283 = arith.constant 0.353553385 : f32
    %761 = vector.broadcast %cst_283 : f32 to vector<8x8xf32>
    %762 = arith.mulf %760, %761 : vector<8x8xf32>
    %cst_284 = arith.constant dense<0xFF800000> : vector<8xf32>
    %763 = vector.multi_reduction <maximumf>, %762, %cst_284 [0] : vector<8x8xf32> to vector<8xf32>
    %764 = vector.shape_cast %763 : vector<8xf32> to vector<1x8xf32>
    %765 = vector.broadcast %764 : vector<1x8xf32> to vector<8x8xf32>
    %766 = arith.subf %762, %765 : vector<8x8xf32>
    %767 = math.exp %766 : vector<8x8xf32>
    %cst_285 = arith.constant dense<0.000000e+00> : vector<8xf32>
    %768 = vector.multi_reduction <add>, %767, %cst_285 [0] : vector<8x8xf32> to vector<8xf32>
    %769 = vector.shape_cast %768 : vector<8xf32> to vector<1x8xf32>
    %770 = tpu.reciprocal %769 : vector<1x8xf32> -> vector<1x8xf32>
    %771 = vector.broadcast %770 : vector<1x8xf32> to vector<8x8xf32>
    %772 = arith.mulf %767, %771 : vector<8x8xf32>
    %773 = vector.extract_strided_slice %696 {offsets = [0, 56], sizes = [8, 8], strides = [1, 1]} : vector<8x64xf32> to vector<8x8xf32>
    %cst_286 = arith.constant dense<0.000000e+00> : vector<8x8xf32>
    %774 = tpu.matmul %772, %773, %cst_286 {dimension_numbers = #tpu.dot_dimension_numbers<[1], [0], [0], [1], [0, 0, 1, 1], [], []>} : vector<8x8xf32>, vector<8x8xf32>, vector<8x8xf32> -> vector<8x8xf32>
    %775 = vector.extract_strided_slice %5 {offsets = [24, 0], sizes = [8, 32], strides = [1, 1]} : vector<32x32xf32> to vector<8x32xf32>
    %cst_287 = arith.constant dense<0.000000e+00> : vector<8x32xf32>
    %776 = tpu.matmul %774, %775, %cst_287 {dimension_numbers = #tpu.dot_dimension_numbers<[1], [0], [0], [1], [0, 0, 1, 1], [], []>} : vector<8x8xf32>, vector<8x32xf32>, vector<8x32xf32> -> vector<8x32xf32>
    %777 = arith.addf %757, %776 : vector<8x32xf32>
    %c0_288 = arith.constant 0 : index
    %c0_289 = arith.constant 0 : index
    %778 = vector.load %arg20[%c0_288, %c0_289] : memref<1x32xf32, #tpu.memory_space<vmem>>, vector<1x32xf32>
    %779 = vector.broadcast %778 : vector<1x32xf32> to vector<8x32xf32>
    %780 = arith.addf %777, %779 : vector<8x32xf32>
    %781 = arith.addf %693, %780 : vector<8x32xf32>
    %cst_290 = arith.constant dense<0.000000e+00> : vector<8xf32>
    %782 = vector.multi_reduction <add>, %781, %cst_290 [1] : vector<8x32xf32> to vector<8xf32>
    %783 = vector.shape_cast %782 : vector<8xf32> to vector<8x1xf32>
    %cst_291 = arith.constant 3.200000e+01 : f32
    %784 = vector.broadcast %cst_291 : f32 to vector<8x1xf32>
    %785 = arith.divf %783, %784 : vector<8x1xf32>
    %786 = vector.broadcast %785 : vector<8x1xf32> to vector<8x32xf32>
    %787 = arith.subf %781, %786 : vector<8x32xf32>
    %788 = arith.mulf %787, %787 : vector<8x32xf32>
    %cst_292 = arith.constant dense<0.000000e+00> : vector<8xf32>
    %789 = vector.multi_reduction <add>, %788, %cst_292 [1] : vector<8x32xf32> to vector<8xf32>
    %790 = vector.shape_cast %789 : vector<8xf32> to vector<8x1xf32>
    %cst_293 = arith.constant 3.200000e+01 : f32
    %791 = vector.broadcast %cst_293 : f32 to vector<8x1xf32>
    %792 = arith.divf %790, %791 : vector<8x1xf32>
    %cst_294 = arith.constant 9.99999974E-6 : f32
    %793 = vector.broadcast %cst_294 : f32 to vector<8x1xf32>
    %794 = arith.addf %792, %793 : vector<8x1xf32>
    %795 = math.rsqrt %794 : vector<8x1xf32>
    %796 = vector.broadcast %795 : vector<8x1xf32> to vector<8x32xf32>
    %797 = arith.mulf %787, %796 : vector<8x32xf32>
    %c0_295 = arith.constant 0 : index
    %c0_296 = arith.constant 0 : index
    %798 = vector.load %arg21[%c0_295, %c0_296] : memref<1x32xf32, #tpu.memory_space<vmem>>, vector<1x32xf32>
    %799 = vector.broadcast %798 : vector<1x32xf32> to vector<8x32xf32>
    %800 = arith.mulf %797, %799 : vector<8x32xf32>
    %c0_297 = arith.constant 0 : index
    %c0_298 = arith.constant 0 : index
    %801 = vector.load %arg22[%c0_297, %c0_298] : memref<1x32xf32, #tpu.memory_space<vmem>>, vector<1x32xf32>
    %802 = vector.broadcast %801 : vector<1x32xf32> to vector<8x32xf32>
    %803 = arith.addf %800, %802 : vector<8x32xf32>
    %804 = arith.addf %671, %803 : vector<8x32xf32>
    %cst_299 = arith.constant dense<0.000000e+00> : vector<8xf32>
    %805 = vector.multi_reduction <add>, %804, %cst_299 [1] : vector<8x32xf32> to vector<8xf32>
    %806 = vector.shape_cast %805 : vector<8xf32> to vector<8x1xf32>
    %cst_300 = arith.constant 3.200000e+01 : f32
    %807 = vector.broadcast %cst_300 : f32 to vector<8x1xf32>
    %808 = arith.divf %806, %807 : vector<8x1xf32>
    %809 = vector.broadcast %808 : vector<8x1xf32> to vector<8x32xf32>
    %810 = arith.subf %804, %809 : vector<8x32xf32>
    %811 = arith.mulf %810, %810 : vector<8x32xf32>
    %cst_301 = arith.constant dense<0.000000e+00> : vector<8xf32>
    %812 = vector.multi_reduction <add>, %811, %cst_301 [1] : vector<8x32xf32> to vector<8xf32>
    %813 = vector.shape_cast %812 : vector<8xf32> to vector<8x1xf32>
    %cst_302 = arith.constant 3.200000e+01 : f32
    %814 = vector.broadcast %cst_302 : f32 to vector<8x1xf32>
    %815 = arith.divf %813, %814 : vector<8x1xf32>
    %cst_303 = arith.constant 9.99999974E-6 : f32
    %816 = vector.broadcast %cst_303 : f32 to vector<8x1xf32>
    %817 = arith.addf %815, %816 : vector<8x1xf32>
    %818 = math.rsqrt %817 : vector<8x1xf32>
    %819 = vector.broadcast %818 : vector<8x1xf32> to vector<8x32xf32>
    %820 = arith.mulf %810, %819 : vector<8x32xf32>
    %c0_304 = arith.constant 0 : index
    %c0_305 = arith.constant 0 : index
    %821 = vector.load %arg23[%c0_304, %c0_305] : memref<1x32xf32, #tpu.memory_space<vmem>>, vector<1x32xf32>
    %822 = vector.broadcast %821 : vector<1x32xf32> to vector<8x32xf32>
    %823 = arith.mulf %820, %822 : vector<8x32xf32>
    %c0_306 = arith.constant 0 : index
    %c0_307 = arith.constant 0 : index
    %824 = vector.load %arg24[%c0_306, %c0_307] : memref<1x32xf32, #tpu.memory_space<vmem>>, vector<1x32xf32>
    %825 = vector.broadcast %824 : vector<1x32xf32> to vector<8x32xf32>
    %826 = arith.addf %823, %825 : vector<8x32xf32>
    %c0_308 = arith.constant 0 : index
    %c0_309 = arith.constant 0 : index
    %827 = vector.load %arg25[%c0_308, %c0_309] : memref<32x64xf32, #tpu.memory_space<vmem>>, vector<32x64xf32>
    %cst_310 = arith.constant dense<0.000000e+00> : vector<8x64xf32>
    %828 = tpu.matmul %826, %827, %cst_310 {dimension_numbers = #tpu.dot_dimension_numbers<[1], [0], [0], [1], [0, 0, 1, 1], [], []>} : vector<8x32xf32>, vector<32x64xf32>, vector<8x64xf32> -> vector<8x64xf32>
    %c0_311 = arith.constant 0 : index
    %c0_312 = arith.constant 0 : index
    %829 = vector.load %arg26[%c0_311, %c0_312] : memref<1x64xf32, #tpu.memory_space<vmem>>, vector<1x64xf32>
    %830 = vector.broadcast %829 : vector<1x64xf32> to vector<8x64xf32>
    %831 = arith.addf %828, %830 : vector<8x64xf32>
    %cst_313 = arith.constant 5.000000e-01 : f32
    %832 = vector.broadcast %cst_313 : f32 to vector<8x64xf32>
    %833 = arith.mulf %832, %831 : vector<8x64xf32>
    %cst_314 = arith.constant 0.707106769 : f32
    %834 = vector.broadcast %cst_314 : f32 to vector<8x64xf32>
    %835 = arith.mulf %831, %834 : vector<8x64xf32>
    %cst_315 = arith.constant 0.000000e+00 : f32
    %836 = vector.broadcast %cst_315 : f32 to vector<8x64xf32>
    %837 = arith.cmpf oge, %835, %836 : vector<8x64xf32>
    %cst_316 = arith.constant 1.000000e+00 : f32
    %cst_317 = arith.constant -1.000000e+00 : f32
    %838 = vector.broadcast %cst_316 : f32 to vector<8x64xf32>
    %839 = vector.broadcast %cst_317 : f32 to vector<8x64xf32>
    %840 = arith.select %837, %838, %839 : vector<8x64xi1>, vector<8x64xf32>
    %841 = math.absf %835 : vector<8x64xf32>
    %cst_318 = arith.constant 0.327591091 : f32
    %842 = vector.broadcast %cst_318 : f32 to vector<8x64xf32>
    %843 = arith.mulf %842, %841 : vector<8x64xf32>
    %cst_319 = arith.constant 1.000000e+00 : f32
    %844 = vector.broadcast %cst_319 : f32 to vector<8x64xf32>
    %845 = arith.addf %844, %843 : vector<8x64xf32>
    %cst_320 = arith.constant 1.000000e+00 : f32
    %846 = vector.broadcast %cst_320 : f32 to vector<8x64xf32>
    %847 = arith.divf %846, %845 : vector<8x64xf32>
    %cst_321 = arith.constant 1.06140542 : f32
    %848 = vector.broadcast %cst_321 : f32 to vector<8x64xf32>
    %849 = arith.mulf %848, %847 : vector<8x64xf32>
    %cst_322 = arith.constant -1.45315206 : f32
    %850 = vector.broadcast %cst_322 : f32 to vector<8x64xf32>
    %851 = arith.addf %849, %850 : vector<8x64xf32>
    %852 = arith.mulf %851, %847 : vector<8x64xf32>
    %cst_323 = arith.constant 1.42141378 : f32
    %853 = vector.broadcast %cst_323 : f32 to vector<8x64xf32>
    %854 = arith.addf %852, %853 : vector<8x64xf32>
    %855 = arith.mulf %854, %847 : vector<8x64xf32>
    %cst_324 = arith.constant -0.284496725 : f32
    %856 = vector.broadcast %cst_324 : f32 to vector<8x64xf32>
    %857 = arith.addf %855, %856 : vector<8x64xf32>
    %858 = arith.mulf %857, %847 : vector<8x64xf32>
    %cst_325 = arith.constant 0.254829586 : f32
    %859 = vector.broadcast %cst_325 : f32 to vector<8x64xf32>
    %860 = arith.addf %858, %859 : vector<8x64xf32>
    %861 = arith.mulf %860, %847 : vector<8x64xf32>
    %cst_326 = arith.constant 0.000000e+00 : f32
    %862 = vector.broadcast %cst_326 : f32 to vector<8x64xf32>
    %863 = arith.subf %862, %841 : vector<8x64xf32>
    %864 = arith.mulf %863, %841 : vector<8x64xf32>
    %865 = math.exp %864 : vector<8x64xf32>
    %866 = arith.mulf %861, %865 : vector<8x64xf32>
    %cst_327 = arith.constant 1.000000e+00 : f32
    %867 = vector.broadcast %cst_327 : f32 to vector<8x64xf32>
    %868 = arith.subf %867, %866 : vector<8x64xf32>
    %869 = arith.mulf %840, %868 : vector<8x64xf32>
    %cst_328 = arith.constant 1.000000e+00 : f32
    %870 = vector.broadcast %cst_328 : f32 to vector<8x64xf32>
    %871 = arith.addf %870, %869 : vector<8x64xf32>
    %872 = arith.mulf %833, %871 : vector<8x64xf32>
    %c0_329 = arith.constant 0 : index
    %c0_330 = arith.constant 0 : index
    %873 = vector.load %arg27[%c0_329, %c0_330] : memref<64x32xf32, #tpu.memory_space<vmem>>, vector<64x32xf32>
    %cst_331 = arith.constant dense<0.000000e+00> : vector<8x32xf32>
    %874 = tpu.matmul %872, %873, %cst_331 {dimension_numbers = #tpu.dot_dimension_numbers<[1], [0], [0], [1], [0, 0, 1, 1], [], []>} : vector<8x64xf32>, vector<64x32xf32>, vector<8x32xf32> -> vector<8x32xf32>
    %c0_332 = arith.constant 0 : index
    %c0_333 = arith.constant 0 : index
    %875 = vector.load %arg28[%c0_332, %c0_333] : memref<1x32xf32, #tpu.memory_space<vmem>>, vector<1x32xf32>
    %876 = vector.broadcast %875 : vector<1x32xf32> to vector<8x32xf32>
    %877 = arith.addf %874, %876 : vector<8x32xf32>
    %878 = arith.addf %804, %877 : vector<8x32xf32>
    %c8 = arith.constant 8 : index
    %c0_334 = arith.constant 0 : index
    %879 = vector.load %arg29[%c8, %c0_334] : memref<16x32xf32, #tpu.memory_space<vmem>>, vector<8x32xf32>
    tpu.vector_store %arg29[%c8, %c0_334], %878 {strides = array<i32>} : memref<16x32xf32, #tpu.memory_space<vmem>>, vector<8x32xf32>,
    return
  }
}

</mosaic_0001>

<llo_original>
// kernel: transformer_decoder_layer_relative.1
$region0: #{transformer_decoder_layer_relative.1}
  #allocation0 [shape = 'u32[]', space=smem, size = 0x4, offset = 0x4, fixed_abs, tag = 'smem constant byte address 0x4 - core index']
  #allocation1 [shape = 'u32[144,128]{1,0:T(1,128)}', space=vmem, size = 0x12000, scoped, tag = 'internal scratch']
  %s0 = inlined_call_operand.smem [shape: u32[30], index: -1, kind: input, shape index: {}]
  %s1 = sld [smem:[%s0]]
  %s2 = scalar_lea.smem %s0, 1
  %s3 = sld [smem:[%s2]]
  %s4 = scalar_lea.smem %s0, 2
  %s5 = sld [smem:[%s4]]
  %s6 = scalar_lea.smem %s0, 3
  %s7 = sld [smem:[%s6]]
  %s8 = scalar_lea.smem %s0, 4
  %s9 = sld [smem:[%s8]]
  %s10 = scalar_lea.smem %s0, 5
  %s11 = sld [smem:[%s10]]
  %s12 = scalar_lea.smem %s0, 6
  %s13 = sld [smem:[%s12]]
  %s14 = scalar_lea.smem %s0, 7
  %s15 = sld [smem:[%s14]]
  %s16 = scalar_lea.smem %s0, 8
  %s17 = sld [smem:[%s16]]
  %s18 = scalar_lea.smem %s0, 9
  %s19 = sld [smem:[%s18]]
  %s20 = scalar_lea.smem %s0, 10
  %s21 = sld [smem:[%s20]]
  %s22 = scalar_lea.smem %s0, 11
  %s23 = sld [smem:[%s22]]
  %s24 = scalar_lea.smem %s0, 12
  %s25 = sld [smem:[%s24]]
  %s26 = scalar_lea.smem %s0, 13
  %s27 = sld [smem:[%s26]]
  %s28 = scalar_lea.smem %s0, 14
  %s29 = sld [smem:[%s28]]
  %s30 = scalar_lea.smem %s0, 15
  %s31 = sld [smem:[%s30]]
  %s32 = scalar_lea.smem %s0, 16
  %s33 = sld [smem:[%s32]]
  %s34 = scalar_lea.smem %s0, 17
  %s35 = sld [smem:[%s34]]
  %s36 = scalar_lea.smem %s0, 18
  %s37 = sld [smem:[%s36]]
  %s38 = scalar_lea.smem %s0, 19
  %s39 = sld [smem:[%s38]]
  %s40 = scalar_lea.smem %s0, 20
  %s41 = sld [smem:[%s40]]
  %s42 = scalar_lea.smem %s0, 21
  %s43 = sld [smem:[%s42]]
  %s44 = scalar_lea.smem %s0, 22
  %s45 = sld [smem:[%s44]]
  %s46 = scalar_lea.smem %s0, 23
  %s47 = sld [smem:[%s46]]
  %s48 = scalar_lea.smem %s0, 24
  %s49 = sld [smem:[%s48]]
  %s50 = scalar_lea.smem %s0, 25
  %s51 = sld [smem:[%s50]]
  %s52 = scalar_lea.smem %s0, 26
  %s53 = sld [smem:[%s52]]
  %s54 = scalar_lea.smem %s0, 27
  %s55 = sld [smem:[%s54]]
  %s56 = scalar_lea.smem %s0, 28
  %s57 = sld [smem:[%s56]]
  %s58 = scalar_lea.smem %s0, 29
  %s59 = sld [smem:[%s58]]
  %s60 = sld [smem:[#allocation0]]
  $region166: #{transformer_decoder_layer_relative.1} parent=0
    _
  %s62 = ssub.s32 1, %s60
  %s63 = scalar_select 0, %s62, %s60
  $region1: #{transformer_decoder_layer_relative.1} parent=0
    #allocation2 [shape = 'u8[8192]{0}', space=vmem, size = 0x2000, scoped, tag = 'input window, operand 0, single buffered']
    #allocation3 [shape = 's32[1]{0}', space=sflag, size = 0x4, scoped, tag = 'scoped memory for transformer_decoder_layer_relative.1']
    #allocation4 [shape = 's32[1]{0}', space=sflag, size = 0x4, scoped, tag = 'scoped memory for transformer_decoder_layer_relative.1']
    #allocation5 [shape = 'u8[8192]{0}', space=vmem, size = 0x2000, scoped, tag = 'input window, operand 1, single buffered']
    #allocation6 [shape = 's32[1]{0}', space=sflag, size = 0x4, scoped, tag = 'scoped memory for transformer_decoder_layer_relative.1']
    #allocation7 [shape = 'u8[8192]{0}', space=vmem, size = 0x2000, scoped, tag = 'input window, operand 2, single buffered']
    #allocation8 [shape = 'u8[8192]{0}', space=vmem, size = 0x2000, scoped, tag = 'input window, operand 3, single buffered']
    #allocation9 [shape = 's32[1]{0}', space=sflag, size = 0x4, scoped, tag = 'scoped memory for transformer_decoder_layer_relative.1']
    #allocation10 [shape = 'u8[16384]{0}', space=vmem, size = 0x4000, scoped, tag = 'input window, operand 19, single buffered']
    #allocation11 [shape = 'u8[512]{0}', space=vmem, size = 0x400, scoped, tag = 'input window, operand 20, single buffered']
    #allocation12 [shape = 's32[1]{0}', space=sflag, size = 0x4, scoped, tag = 'scoped memory for transformer_decoder_layer_relative.1']
    #allocation13 [shape = 'u8[512]{0}', space=vmem, size = 0x400, scoped, tag = 'input window, operand 21, single buffered']
    #allocation14 [shape = 'u8[512]{0}', space=vmem, size = 0x400, scoped, tag = 'input window, operand 22, single buffered']
    #allocation15 [shape = 's32[1]{0}', space=sflag, size = 0x4, scoped, tag = 'scoped memory for transformer_decoder_layer_relative.1']
    #allocation16 [shape = 'u8[16384]{0}', space=vmem, size = 0x4000, scoped, tag = 'input window, operand 25, single buffered']
    #allocation17 [shape = 'u8[512]{0}', space=vmem, size = 0x400, scoped, tag = 'input window, operand 26, single buffered']
    #allocation18 [shape = 's32[1]{0}', space=sflag, size = 0x4, scoped, tag = 'scoped memory for transformer_decoder_layer_relative.1']
    #allocation19 [shape = 'u8[8192]{0}', space=vmem, size = 0x2000, scoped, tag = 'output window, operand 0, single buffered']
    %64 = vsyncpa [#allocation3], 0
    %65 = vsyncpa [#allocation6], 0
    %66 = vsyncpa [#allocation9], 0
    %67 = vsyncpa [#allocation12], 0
    %68 = vsyncpa [#allocation15], 0
    %69 = vsyncpa [#allocation18], 0
    %70 = vsyncpa [#allocation4], 0
    // Predicated region
    $region2: #{transformer_decoder_layer_relative.1} parent=1 // pred_check
      _
    $region3: #{transformer_decoder_layer_relative.1} parent=1 // pred_check_branch
      %72 = sbr.rel (0) target = $region5
    $region4: #{transformer_decoder_layer_relative.1} parent=1 // pred_region
      %s74 = ssub.s32 256, 256
      %75 = vsyncadd [#allocation3], %s74
      %s76 = sshll.u32 [#allocation2], 4
      %s77 = int_to_ptr.vmem [resolvable:$true] %s76
      %82 = dma.hbm_to_vmem [thread:$0]  %s1, 256, %s77, [#allocation3], 128, 128, 8
    $region5: #{transformer_decoder_layer_relative.1} parent=1 // pred_fallthru
      _
    // Predicated region
    $region6: #{transformer_decoder_layer_relative.1} parent=1 // pred_check
      _
    $region7: #{transformer_decoder_layer_relative.1} parent=1 // pred_check_branch
      %84 = sbr.rel (0) target = $region9
    $region8: #{transformer_decoder_layer_relative.1} parent=1 // pred_region
      %s86 = ssub.s32 256, 256
      %87 = vsyncadd [#allocation6], %s86
      %s88 = sshll.u32 [#allocation5], 4
      %s89 = int_to_ptr.vmem [resolvable:$true] %s88
      %94 = dma.hbm_to_vmem [thread:$0]  %s3, 256, %s89, [#allocation6], 128, 128, 8
    $region9: #{transformer_decoder_layer_relative.1} parent=1 // pred_fallthru
      _
    // Predicated region
    $region10: #{transformer_decoder_layer_relative.1} parent=1 // pred_check
      _
    $region11: #{transformer_decoder_layer_relative.1} parent=1 // pred_check_branch
      %96 = sbr.rel (0) target = $region13
    $region12: #{transformer_decoder_layer_relative.1} parent=1 // pred_region
      %s98 = ssub.s32 256, 256
      %99 = vsyncadd [#allocation6], %s98
      %s100 = sshll.u32 [#allocation7], 4
      %s101 = int_to_ptr.vmem [resolvable:$true] %s100
      %106 = dma.hbm_to_vmem [thread:$0]  %s5, 256, %s101, [#allocation6], 128, 128, 8
    $region13: #{transformer_decoder_layer_relative.1} parent=1 // pred_fallthru
      _
    // Predicated region
    $region14: #{transformer_decoder_layer_relative.1} parent=1 // pred_check
      _
    $region15: #{transformer_decoder_layer_relative.1} parent=1 // pred_check_branch
      %108 = sbr.rel (0) target = $region17
    $region16: #{transformer_decoder_layer_relative.1} parent=1 // pred_region
      %s110 = ssub.s32 256, 256
      %111 = vsyncadd [#allocation9], %s110
      %s112 = sshll.u32 [#allocation8], 4
      %s113 = int_to_ptr.vmem [resolvable:$true] %s112
      %118 = dma.hbm_to_vmem [thread:$0]  %s7, 256, %s113, [#allocation9], 128, 128, 8
    $region17: #{transformer_decoder_layer_relative.1} parent=1 // pred_fallthru
      _
    // Predicated region
    $region18: #{transformer_decoder_layer_relative.1} parent=1 // pred_check
      _
    $region19: #{transformer_decoder_layer_relative.1} parent=1 // pred_check_branch
      %120 = sbr.rel (0) target = $region21
    $region20: #{transformer_decoder_layer_relative.1} parent=1 // pred_region
      _
    $region21: #{transformer_decoder_layer_relative.1} parent=1 // pred_fallthru
      _
    // Predicated region
    $region22: #{transformer_decoder_layer_relative.1} parent=1 // pred_check
      _
    $region23: #{transformer_decoder_layer_relative.1} parent=1 // pred_check_branch
      %122 = sbr.rel (0) target = $region25
    $region24: #{transformer_decoder_layer_relative.1} parent=1 // pred_region
      _
    $region25: #{transformer_decoder_layer_relative.1} parent=1 // pred_fallthru
      _
    // Predicated region
    $region26: #{transformer_decoder_layer_relative.1} parent=1 // pred_check
      _
    $region27: #{transformer_decoder_layer_relative.1} parent=1 // pred_check_branch
      %124 = sbr.rel (0) target = $region29
    $region28: #{transformer_decoder_layer_relative.1} parent=1 // pred_region
      _
    $region29: #{transformer_decoder_layer_relative.1} parent=1 // pred_fallthru
      _
    // Predicated region
    $region30: #{transformer_decoder_layer_relative.1} parent=1 // pred_check
      _
    $region31: #{transformer_decoder_layer_relative.1} parent=1 // pred_check_branch
      %126 = sbr.rel (0) target = $region33
    $region32: #{transformer_decoder_layer_relative.1} parent=1 // pred_region
      _
    $region33: #{transformer_decoder_layer_relative.1} parent=1 // pred_fallthru
      _
    // Predicated region
    $region34: #{transformer_decoder_layer_relative.1} parent=1 // pred_check
      _
    $region35: #{transformer_decoder_layer_relative.1} parent=1 // pred_check_branch
      %128 = sbr.rel (0) target = $region37
    $region36: #{transformer_decoder_layer_relative.1} parent=1 // pred_region
      _
    $region37: #{transformer_decoder_layer_relative.1} parent=1 // pred_fallthru
      _
    // Predicated region
    $region38: #{transformer_decoder_layer_relative.1} parent=1 // pred_check
      _
    $region39: #{transformer_decoder_layer_relative.1} parent=1 // pred_check_branch
      %130 = sbr.rel (0) target = $region41
    $region40: #{transformer_decoder_layer_relative.1} parent=1 // pred_region
      _
    $region41: #{transformer_decoder_layer_relative.1} parent=1 // pred_fallthru
      _
    // Predicated region
    $region42: #{transformer_decoder_layer_relative.1} parent=1 // pred_check
      _
    $region43: #{transformer_decoder_layer_relative.1} parent=1 // pred_check_branch
      %132 = sbr.rel (0) target = $region45
    $region44: #{transformer_decoder_layer_relative.1} parent=1 // pred_region
      _
    $region45: #{transformer_decoder_layer_relative.1} parent=1 // pred_fallthru
      _
    // Predicated region
    $region46: #{transformer_decoder_layer_relative.1} parent=1 // pred_check
      _
    $region47: #{transformer_decoder_layer_relative.1} parent=1 // pred_check_branch
      %134 = sbr.rel (0) target = $region49
    $region48: #{transformer_decoder_layer_relative.1} parent=1 // pred_region
      _
    $region49: #{transformer_decoder_layer_relative.1} parent=1 // pred_fallthru
      _
    // Predicated region
    $region50: #{transformer_decoder_layer_relative.1} parent=1 // pred_check
      _
    $region51: #{transformer_decoder_layer_relative.1} parent=1 // pred_check_branch
      %136 = sbr.rel (0) target = $region53
    $region52: #{transformer_decoder_layer_relative.1} parent=1 // pred_region
      _
    $region53: #{transformer_decoder_layer_relative.1} parent=1 // pred_fallthru
      _
    // Predicated region
    $region54: #{transformer_decoder_layer_relative.1} parent=1 // pred_check
      _
    $region55: #{transformer_decoder_layer_relative.1} parent=1 // pred_check_branch
      %138 = sbr.rel (0) target = $region57
    $region56: #{transformer_decoder_layer_relative.1} parent=1 // pred_region
      _
    $region57: #{transformer_decoder_layer_relative.1} parent=1 // pred_fallthru
      _
    // Predicated region
    $region58: #{transformer_decoder_layer_relative.1} parent=1 // pred_check
      _
    $region59: #{transformer_decoder_layer_relative.1} parent=1 // pred_check_branch
      %140 = sbr.rel (0) target = $region61
    $region60: #{transformer_decoder_layer_relative.1} parent=1 // pred_region
      _
    $region61: #{transformer_decoder_layer_relative.1} parent=1 // pred_fallthru
      _
    // Predicated region
    $region62: #{transformer_decoder_layer_relative.1} parent=1 // pred_check
      _
    $region63: #{transformer_decoder_layer_relative.1} parent=1 // pred_check_branch
      %142 = sbr.rel (0) target = $region65
    $region64: #{transformer_decoder_layer_relative.1} parent=1 // pred_region
      _
    $region65: #{transformer_decoder_layer_relative.1} parent=1 // pred_fallthru
      _
    // Predicated region
    $region66: #{transformer_decoder_layer_relative.1} parent=1 // pred_check
      _
    $region67: #{transformer_decoder_layer_relative.1} parent=1 // pred_check_branch
      %144 = sbr.rel (0) target = $region69
    $region68: #{transformer_decoder_layer_relative.1} parent=1 // pred_region
      _
    $region69: #{transformer_decoder_layer_relative.1} parent=1 // pred_fallthru
      _
    // Predicated region
    $region70: #{transformer_decoder_layer_relative.1} parent=1 // pred_check
      _
    $region71: #{transformer_decoder_layer_relative.1} parent=1 // pred_check_branch
      %146 = sbr.rel (0) target = $region73
    $region72: #{transformer_decoder_layer_relative.1} parent=1 // pred_region
      _
    $region73: #{transformer_decoder_layer_relative.1} parent=1 // pred_fallthru
      _
    // Predicated region
    $region74: #{transformer_decoder_layer_relative.1} parent=1 // pred_check
      _
    $region75: #{transformer_decoder_layer_relative.1} parent=1 // pred_check_branch
      %148 = sbr.rel (0) target = $region77
    $region76: #{transformer_decoder_layer_relative.1} parent=1 // pred_region
      _
    $region77: #{transformer_decoder_layer_relative.1} parent=1 // pred_fallthru
      _
    // Predicated region
    $region78: #{transformer_decoder_layer_relative.1} parent=1 // pred_check
      _
    $region79: #{transformer_decoder_layer_relative.1} parent=1 // pred_check_branch
      %150 = sbr.rel (0) target = $region81
    $region80: #{transformer_decoder_layer_relative.1} parent=1 // pred_region
      %s152 = ssub.s32 512, 512
      %153 = vsyncadd [#allocation9], %s152
      %s154 = sshll.u32 [#allocation10], 4
      %s155 = int_to_ptr.vmem [resolvable:$true] %s154
      %160 = dma.hbm_to_vmem [thread:$0]  %s39, 512, %s155, [#allocation9], 128, 128, 8
    $region81: #{transformer_decoder_layer_relative.1} parent=1 // pred_fallthru
      _
    // Predicated region
    $region82: #{transformer_decoder_layer_relative.1} parent=1 // pred_check
      _
    $region83: #{transformer_decoder_layer_relative.1} parent=1 // pred_check_branch
      %162 = sbr.rel (0) target = $region85
    $region84: #{transformer_decoder_layer_relative.1} parent=1 // pred_region
      %s164 = ssub.s32 16, 16
      %165 = vsyncadd [#allocation12], %s164
      %s167 = sshll.u32 [#allocation11], 4
      %s168 = int_to_ptr.vmem [resolvable:$true] %s167
      %170 = dma.hbm_to_vmem [thread:$0]  %s41, 16, %s168, [#allocation12]
    $region85: #{transformer_decoder_layer_relative.1} parent=1 // pred_fallthru
      _
    // Predicated region
    $region86: #{transformer_decoder_layer_relative.1} parent=1 // pred_check
      _
    $region87: #{transformer_decoder_layer_relative.1} parent=1 // pred_check_branch
      %172 = sbr.rel (0) target = $region89
    $region88: #{transformer_decoder_layer_relative.1} parent=1 // pred_region
      %s174 = ssub.s32 16, 16
      %175 = vsyncadd [#allocation12], %s174
      %s177 = sshll.u32 [#allocation13], 4
      %s178 = int_to_ptr.vmem [resolvable:$true] %s177
      %180 = dma.hbm_to_vmem [thread:$0]  %s43, 16, %s178, [#allocation12]
    $region89: #{transformer_decoder_layer_relative.1} parent=1 // pred_fallthru
      _
    // Predicated region
    $region90: #{transformer_decoder_layer_relative.1} parent=1 // pred_check
      _
    $region91: #{transformer_decoder_layer_relative.1} parent=1 // pred_check_branch
      %182 = sbr.rel (0) target = $region93
    $region92: #{transformer_decoder_layer_relative.1} parent=1 // pred_region
      %s184 = ssub.s32 16, 16
      %185 = vsyncadd [#allocation15], %s184
      %s187 = sshll.u32 [#allocation14], 4
      %s188 = int_to_ptr.vmem [resolvable:$true] %s187
      %190 = dma.hbm_to_vmem [thread:$0]  %s45, 16, %s188, [#allocation15]
    $region93: #{transformer_decoder_layer_relative.1} parent=1 // pred_fallthru
      _
    // Predicated region
    $region94: #{transformer_decoder_layer_relative.1} parent=1 // pred_check
      _
    $region95: #{transformer_decoder_layer_relative.1} parent=1 // pred_check_branch
      %192 = sbr.rel (0) target = $region97
    $region96: #{transformer_decoder_layer_relative.1} parent=1 // pred_region
      _
    $region97: #{transformer_decoder_layer_relative.1} parent=1 // pred_fallthru
      _
    // Predicated region
    $region98: #{transformer_decoder_layer_relative.1} parent=1 // pred_check
      _
    $region99: #{transformer_decoder_layer_relative.1} parent=1 // pred_check_branch
      %194 = sbr.rel (0) target = $region101
    $region100: #{transformer_decoder_layer_relative.1} parent=1 // pred_region
      _
    $region101: #{transformer_decoder_layer_relative.1} parent=1 // pred_fallthru
      _
    // Predicated region
    $region102: #{transformer_decoder_layer_relative.1} parent=1 // pred_check
      _
    $region103: #{transformer_decoder_layer_relative.1} parent=1 // pred_check_branch
      %196 = sbr.rel (0) target = $region105
    $region104: #{transformer_decoder_layer_relative.1} parent=1 // pred_region
      %s198 = ssub.s32 512, 512
      %199 = vsyncadd [#allocation15], %s198
      %s200 = sshll.u32 [#allocation16], 4
      %s201 = int_to_ptr.vmem [resolvable:$true] %s200
      %206 = dma.hbm_to_vmem [thread:$0]  %s51, 512, %s201, [#allocation15], 128, 128, 8
    $region105: #{transformer_decoder_layer_relative.1} parent=1 // pred_fallthru
      _
    // Predicated region
    $region106: #{transformer_decoder_layer_relative.1} parent=1 // pred_check
      _
    $region107: #{transformer_decoder_layer_relative.1} parent=1 // pred_check_branch
      %208 = sbr.rel (0) target = $region109
    $region108: #{transformer_decoder_layer_relative.1} parent=1 // pred_region
      %s210 = ssub.s32 16, 16
      %211 = vsyncadd [#allocation18], %s210
      %s213 = sshll.u32 [#allocation17], 4
      %s214 = int_to_ptr.vmem [resolvable:$true] %s213
      %216 = dma.hbm_to_vmem [thread:$0]  %s53, 16, %s214, [#allocation18]
    $region109: #{transformer_decoder_layer_relative.1} parent=1 // pred_fallthru
      _
    // Predicated region
    $region110: #{transformer_decoder_layer_relative.1} parent=1 // pred_check
      _
    $region111: #{transformer_decoder_layer_relative.1} parent=1 // pred_check_branch
      %218 = sbr.rel (0) target = $region113
    $region112: #{transformer_decoder_layer_relative.1} parent=1 // pred_region
      _
    $region113: #{transformer_decoder_layer_relative.1} parent=1 // pred_fallthru
      _
    // Predicated region
    $region114: #{transformer_decoder_layer_relative.1} parent=1 // pred_check
      _
    $region115: #{transformer_decoder_layer_relative.1} parent=1 // pred_check_branch
      %220 = sbr.rel (0) target = $region117
    $region116: #{transformer_decoder_layer_relative.1} parent=1 // pred_region
      _
    $region117: #{transformer_decoder_layer_relative.1} parent=1 // pred_fallthru
      _
    // Predicated region
    $region118: #{transformer_decoder_layer_relative.1} parent=1 // pred_check
      _
    $region119: #{transformer_decoder_layer_relative.1} parent=1 // pred_check_branch
      %222 = sbr.rel (0) target = $region121
    $region120: #{transformer_decoder_layer_relative.1} parent=1 // pred_region
      %223 = dma.done [#allocation3], 256
    $region121: #{transformer_decoder_layer_relative.1} parent=1 // pred_fallthru
      _
    // Predicated region
    $region122: #{transformer_decoder_layer_relative.1} parent=1 // pred_check
      _
    $region123: #{transformer_decoder_layer_relative.1} parent=1 // pred_check_branch
      %225 = sbr.rel (0) target = $region125
    $region124: #{transformer_decoder_layer_relative.1} parent=1 // pred_region
      %226 = dma.done [#allocation6], 256
    $region125: #{transformer_decoder_layer_relative.1} parent=1 // pred_fallthru
      _
    // Predicated region
    $region126: #{transformer_decoder_layer_relative.1} parent=1 // pred_check
      _
    $region127: #{transformer_decoder_layer_relative.1} parent=1 // pred_check_branch
      %228 = sbr.rel (0) target = $region129
    $region128: #{transformer_decoder_layer_relative.1} parent=1 // pred_region
      %229 = dma.done [#allocation6], 256
    $region129: #{transformer_decoder_layer_relative.1} parent=1 // pred_fallthru
      _
    // Predicated region
    $region130: #{transformer_decoder_layer_relative.1} parent=1 // pred_check
      _
    $region131: #{transformer_decoder_layer_relative.1} parent=1 // pred_check_branch
      %231 = sbr.rel (0) target = $region133
    $region132: #{transformer_decoder_layer_relative.1} parent=1 // pred_region
      %232 = dma.done [#allocation9], 256
    $region133: #{transformer_decoder_layer_relative.1} parent=1 // pred_fallthru
      _
    // Predicated region
    $region134: #{transformer_decoder_layer_relative.1} parent=1 // pred_check
      _
    $region135: #{transformer_decoder_layer_relative.1} parent=1 // pred_check_branch
      %234 = sbr.rel (0) target = $region137
    $region136: #{transformer_decoder_layer_relative.1} parent=1 // pred_region
      %235 = dma.done [#allocation9], 512
    $region137: #{transformer_decoder_layer_relative.1} parent=1 // pred_fallthru
      _
    // Predicated region
    $region138: #{transformer_decoder_layer_relative.1} parent=1 // pred_check
      _
    $region139: #{transformer_decoder_layer_relative.1} parent=1 // pred_check_branch
      %237 = sbr.rel (0) target = $region141
    $region140: #{transformer_decoder_layer_relative.1} parent=1 // pred_region
      %238 = dma.done [#allocation12], 16
    $region141: #{transformer_decoder_layer_relative.1} parent=1 // pred_fallthru
      _
    // Predicated region
    $region142: #{transformer_decoder_layer_relative.1} parent=1 // pred_check
      _
    $region143: #{transformer_decoder_layer_relative.1} parent=1 // pred_check_branch
      %240 = sbr.rel (0) target = $region145
    $region144: #{transformer_decoder_layer_relative.1} parent=1 // pred_region
      %241 = dma.done [#allocation12], 16
    $region145: #{transformer_decoder_layer_relative.1} parent=1 // pred_fallthru
      _
    // Predicated region
    $region146: #{transformer_decoder_layer_relative.1} parent=1 // pred_check
      _
    $region147: #{transformer_decoder_layer_relative.1} parent=1 // pred_check_branch
      %243 = sbr.rel (0) target = $region149
    $region148: #{transformer_decoder_layer_relative.1} parent=1 // pred_region
      %244 = dma.done [#allocation15], 16
    $region149: #{transformer_decoder_layer_relative.1} parent=1 // pred_fallthru
      _
    // Predicated region
    $region150: #{transformer_decoder_layer_relative.1} parent=1 // pred_check
      _
    $region151: #{transformer_decoder_layer_relative.1} parent=1 // pred_check_branch
      %246 = sbr.rel (0) target = $region153
    $region152: #{transformer_decoder_layer_relative.1} parent=1 // pred_region
      %247 = dma.done [#allocation15], 512
    $region153: #{transformer_decoder_layer_relative.1} parent=1 // pred_fallthru
      _
    // Predicated region
    $region154: #{transformer_decoder_layer_relative.1} parent=1 // pred_check
      _
    $region155: #{transformer_decoder_layer_relative.1} parent=1 // pred_check_branch
      %249 = sbr.rel (0) target = $region157
    $region156: #{transformer_decoder_layer_relative.1} parent=1 // pred_region
      %250 = dma.done [#allocation18], 16
    $region157: #{transformer_decoder_layer_relative.1} parent=1 // pred_fallthru
      _
    %v251 = vld [vmem:[#allocation2] sm:$0xff]
    %v252 = vld [vmem:[#allocation2 + $0x8] sm:$0xff]
    %v253 = vld [vmem:[#allocation7] sm:$0xff]
    %v254 = vld [vmem:[#allocation7 + $0x8] sm:$0xff]
    %v255 = vld [vmem:[#allocation5] sm:$0xff]
    %v256 = vld [vmem:[#allocation5 + $0x8] sm:$0xff]
    %v257 = vld [vmem:[#allocation8] sm:$0xff]
    %v258 = vld [vmem:[#allocation8 + $0x8] sm:$0xff]
    %v259 = vld [vmem:[%s23] sm:$0xff]
    %v260 = vld [vmem:[%s23 + $0x8] sm:$0xff]
    %v261 = vld [vmem:[%s23 + $0x10] sm:$0xff]
    %v262 = vld [vmem:[%s23 + $0x18] sm:$0xff]
    %v263 = vld [vmem:[#allocation10] sm:$0xff]
    %v264 = vld [vmem:[#allocation10 + $0x8] sm:$0xff]
    %v265 = vld [vmem:[#allocation10 + $0x10] sm:$0xff]
    %v266 = vld [vmem:[#allocation10 + $0x18] sm:$0xff]
    %vm267 = vcmask 261120
    %v268 = vsel %vm267, %v251, 0.0
    %269 = vadd.xlane.f32.xlu0 %v268
    %v270 = vpop.xlane.xlu0 %269
    %v271 = vsel %vm267, %v252, 0.0
    %272 = vadd.xlane.f32.xlu0 %v271
    %v273 = vpop.xlane.xlu0 %272
    %v274 = vrcp.pop 32.0
    %v275 = vmul.f32 %v270, %v274
    %v276 = vmul.f32 %v273, %v274
    %v277 = vsub.f32 %v251, %v275
    %v278 = vsub.f32 %v252, %v276
    %v279 = vmul.f32 %v277, %v277
    %v280 = vmul.f32 %v278, %v278
    %v281 = vsel %vm267, %v279, 0.0
    %282 = vadd.xlane.f32.xlu0 %v281
    %v283 = vpop.xlane.xlu0 %282
    %v284 = vsel %vm267, %v280, 0.0
    %285 = vadd.xlane.f32.xlu0 %v284
    %v286 = vpop.xlane.xlu0 %285
    %v287 = vmul.f32 %v283, %v274
    %v288 = vmul.f32 %v286, %v274
    %v289 = vadd.f32 %v287, 1e-05
    %v290 = vadd.f32 %v288, 1e-05
    %v291 = vrsqrt.pop %v289
    %v292 = vrsqrt.pop %v290
    %v293 = vmul.f32 %v277, %v291
    %v294 = vmul.f32 %v278, %v292
    %v295 = vld [vmem:[%s15] sm:$0x1]
    %v297 = vlaneseq
    %v298 = vshrl.u32 %v297, 7
    %v299 = vsub.s32 0, %v298
    %v300 = vrot.slane %v295, %v299
    %v302 = vmul.f32 %v293, %v300
    %v303 = vmul.f32 %v294, %v300
    %v304 = vld [vmem:[%s17] sm:$0x1]
    %v306 = vlaneseq
    %v307 = vshrl.u32 %v306, 7
    %v308 = vsub.s32 0, %v307
    %v309 = vrot.slane %v304, %v308
    %v311 = vadd.f32 %v302, %v309
    %v312 = vadd.f32 %v303, %v309
    %v313 = vld [vmem:[%s19] sm:$0xff]
    %v314 = vld [vmem:[%s19 + $0x8] sm:$0xff]
    %v315 = vld [vmem:[%s19 + $0x10] sm:$0xff]
    %v316 = vld [vmem:[%s19 + $0x18] sm:$0xff]
    %v318 = vsel %vm267, %v311, 0
    %v321 = vsel %vm267, %v312, 0
    %323 = vmatprep.subr.mxu0 0.0
    %324 = vmatpush1.msra.mxu0 %v313
    %325 = vmatprep.subr.mxu0 0.0
    %326 = vmatpush1.msra.mxu0 %v314
    %327 = vmatprep.subr.mxu0 0.0
    %328 = vmatpush1.msra.mxu0 %v315
    %329 = vmatprep.subr.mxu0 0.0
    %330 = vmatpush1.msra.mxu0 %v316
    %331 = vmatprep.subr.mxu0 0.0
    %332 = vmatpush1.msra.mxu0 0.0
    %333 = vmatprep.subr.mxu0 0.0
    %334 = vmatpush1.msra.mxu0 0.0
    %335 = vmatprep.subr.mxu0 0.0
    %336 = vmatpush1.msra.mxu0 0.0
    %337 = vmatprep.subr.mxu0 0.0
    %338 = vmatpush1.msra.mxu0 0.0
    %339 = vmatprep.subr.mxu0 0.0
    %340 = vmatpush1.msra.mxu0 0.0
    %341 = vmatprep.subr.mxu0 0.0
    %342 = vmatpush1.msra.mxu0 0.0
    %343 = vmatprep.subr.mxu0 0.0
    %344 = vmatpush1.msra.mxu0 0.0
    %345 = vmatprep.subr.mxu0 0.0
    %346 = vmatpush1.msra.mxu0 0.0
    %347 = vmatprep.subr.mxu0 0.0
    %348 = vmatpush1.msra.mxu0 0.0
    %349 = vmatprep.subr.mxu0 0.0
    %350 = vmatpush1.msra.mxu0 0.0
    %351 = vmatprep.subr.mxu0 0.0
    %352 = vmatpush1.msra.mxu0 0.0
    %353 = vmatprep.subr.mxu0 0.0
    %354 = vmatpush1.msra.mxu0 0.0
    %355 = vmatprep.subr.mxu0 0.0
    %356 = vmatpush1.msra.mxu0 0.0
    %357 = vmatprep.subr.mxu0 0.0
    %358 = vmatpush1.msra.mxu0 0.0
    %359 = vmatprep.subr.mxu0 0.0
    %360 = vmatpush1.msra.mxu0 0.0
    %361 = vmatprep.subr.mxu0 0.0
    %362 = vmatpush1.msra.mxu0 0.0
    %363 = vmatprep.subr.mxu0 0.0
    %364 = vmatpush1.msra.mxu0 0.0
    %365 = vmatprep.subr.mxu0 0.0
    %366 = vmatpush1.msra.mxu0 0.0
    %367 = vmatprep.subr.mxu0 0.0
    %368 = vmatpush1.msra.mxu0 0.0
    %369 = vmatprep.subr.mxu0 0.0
    %370 = vmatpush1.msra.mxu0 0.0
    %371 = vmatprep.subr.mxu0 0.0
    %372 = vmatpush1.msra.mxu0 0.0
    %373 = vmatprep.subr.mxu0 0.0
    %374 = vmatpush1.msra.mxu0 0.0
    %375 = vmatprep.subr.mxu0 0.0
    %376 = vmatpush1.msra.mxu0 0.0
    %377 = vmatprep.subr.mxu0 0.0
    %378 = vmatpush1.msra.mxu0 0.0
    %379 = vmatprep.subr.mxu0 0.0
    %380 = vmatpush1.msra.mxu0 0.0
    %381 = vmatprep.subr.mxu0 0.0
    %382 = vmatpush1.msra.mxu0 0.0
    %383 = vmatprep.subr.mxu0 0.0
    %384 = vmatpush1.msra.mxu0 0.0
    %385 = vmatprep.subr.mxu0 0.0
    %386 = vmatpush1.msra.mxu0 0.0
    %387 = vmatprep.mubr.f32.mxu0 0.0
    %388 = vmatmul.mubr.f32.gmra.mrb[0].mxu0 %v318
    %v389 = vpop.f32.mrb[0].mxu0
    %v390 = vadd.f32 0.0, %v389
    %v391 = vpop.f32.mrb[0].mxu0
    %392 = vmatprep.mubr.f32.mxu0 0.0
    %393 = vmatmul.mubr.f32.gmra.mrb[0].mxu0 %v321
    %v394 = vpop.f32.mrb[0].mxu0
    %v395 = vadd.f32 0.0, %v394
    %v396 = vpop.f32.mrb[0].mxu0
    %397 = vdwg.mxu0
    %v398 = vld [vmem:[%s9] sm:$0x1]
    %v400 = vlaneseq
    %v401 = vshrl.u32 %v400, 7
    %v402 = vsub.s32 0, %v401
    %v403 = vrot.slane %v398, %v402
    %v405 = vadd.f32 %v390, %v403
    %v406 = vadd.f32 %v395, %v403
    %v407 = vld [vmem:[%s11] sm:$0x1]
    %v409 = vlaneseq
    %v410 = vshrl.u32 %v409, 7
    %v411 = vsub.s32 0, %v410
    %v412 = vrot.slane %v407, %v411
    %v414 = vadd.f32 %v390, %v412
    %v415 = vadd.f32 %v395, %v412
    %v416 = vld [vmem:[%s13] sm:$0xff]
    %v417 = vld [vmem:[%s13 + $0x8] sm:$0xff]
    %vm418 = vcmask 130048
    %v420 = vsel %vm418, %v416, 0
    %v423 = vsel %vm418, %v417, 0
    %425 = vmatprep.subr.mxu0 0.0
    %426 = vmatpush1.msra.mxu0 %v414
    %427 = vmatprep.subr.mxu0 0.0
    %428 = vmatpush1.msra.mxu0 %v415
    %429 = vmatprep.subr.mxu0 0.0
    %430 = vmatpush1.msra.mxu0 0.0
    %431 = vmatprep.subr.mxu0 0.0
    %432 = vmatpush1.msra.mxu0 0.0
    %433 = vmatprep.subr.mxu0 0.0
    %434 = vmatpush1.msra.mxu0 0.0
    %435 = vmatprep.subr.mxu0 0.0
    %436 = vmatpush1.msra.mxu0 0.0
    %437 = vmatprep.subr.mxu0 0.0
    %438 = vmatpush1.msra.mxu0 0.0
    %439 = vmatprep.subr.mxu0 0.0
    %440 = vmatpush1.msra.mxu0 0.0
    %441 = vmatprep.subr.mxu0 0.0
    %442 = vmatpush1.msra.mxu0 0.0
    %443 = vmatprep.subr.mxu0 0.0
    %444 = vmatpush1.msra.mxu0 0.0
    %445 = vmatprep.subr.mxu0 0.0
    %446 = vmatpush1.msra.mxu0 0.0
    %447 = vmatprep.subr.mxu0 0.0
    %448 = vmatpush1.msra.mxu0 0.0
    %449 = vmatprep.subr.mxu0 0.0
    %450 = vmatpush1.msra.mxu0 0.0
    %451 = vmatprep.subr.mxu0 0.0
    %452 = vmatpush1.msra.mxu0 0.0
    %453 = vmatprep.subr.mxu0 0.0
    %454 = vmatpush1.msra.mxu0 0.0
    %455 = vmatprep.subr.mxu0 0.0
    %456 = vmatpush1.msra.mxu0 0.0
    %457 = vmatprep.subr.mxu0 0.0
    %458 = vmatpush1.msra.mxu0 0.0
    %459 = vmatprep.subr.mxu0 0.0
    %460 = vmatpush1.msra.mxu0 0.0
    %461 = vmatprep.subr.mxu0 0.0
    %462 = vmatpush1.msra.mxu0 0.0
    %463 = vmatprep.subr.mxu0 0.0
    %464 = vmatpush1.msra.mxu0 0.0
    %465 = vmatprep.subr.mxu0 0.0
    %466 = vmatpush1.msra.mxu0 0.0
    %467 = vmatprep.subr.mxu0 0.0
    %468 = vmatpush1.msra.mxu0 0.0
    %469 = vmatprep.subr.mxu0 0.0
    %470 = vmatpush1.msra.mxu0 0.0
    %471 = vmatprep.subr.mxu0 0.0
    %472 = vmatpush1.msra.mxu0 0.0
    %473 = vmatprep.subr.mxu0 0.0
    %474 = vmatpush1.msra.mxu0 0.0
    %475 = vmatprep.subr.mxu0 0.0
    %476 = vmatpush1.msra.mxu0 0.0
    %477 = vmatprep.subr.mxu0 0.0
    %478 = vmatpush1.msra.mxu0 0.0
    %479 = vmatprep.subr.mxu0 0.0
    %480 = vmatpush1.msra.mxu0 0.0
    %481 = vmatprep.subr.mxu0 0.0
    %482 = vmatpush1.msra.mxu0 0.0
    %483 = vmatprep.subr.mxu0 0.0
    %484 = vmatpush1.msra.mxu0 0.0
    %485 = vmatprep.subr.mxu0 0.0
    %486 = vmatpush1.msra.mxu0 0.0
    %487 = vmatprep.subr.mxu0 0.0
    %488 = vmatpush1.msra.mxu0 0.0
    %489 = vmatprep.mubr.f32.mxu0 0.0
    %490 = vmatmul.mubr.f32.gmra.mrb[0].mxu0 %v420
    %v491 = vpop.f32.mrb[0].mxu0
    %v492 = vadd.f32 0.0, %v491
    %v493 = vpop.f32.mrb[0].mxu0
    %494 = vmatprep.mubr.f32.mxu0 0.0
    %495 = vmatmul.mubr.f32.gmra.mrb[0].mxu0 %v423
    %v496 = vpop.f32.mrb[0].mxu0
    %v497 = vadd.f32 0.0, %v496
    %v498 = vpop.f32.mrb[0].mxu0
    %499 = vdwg.mxu0
    %v500 = vld [vmem:[%s21] sm:$0xff]
    %v501 = vld [vmem:[%s21 + $0x8] sm:$0xff]
    %v502 = vld [vmem:[%s21 + $0x10] sm:$0xff]
    %v503 = vld [vmem:[%s21 + $0x18] sm:$0xff]
    %504 = vmatprep.subr.mxu0 0.0
    %505 = vmatpush1.msra.mxu0 %v500
    %506 = vmatprep.subr.mxu0 0.0
    %507 = vmatpush1.msra.mxu0 %v501
    %508 = vmatprep.subr.mxu0 0.0
    %509 = vmatpush1.msra.mxu0 %v502
    %510 = vmatprep.subr.mxu0 0.0
    %511 = vmatpush1.msra.mxu0 %v503
    %512 = vmatprep.subr.mxu0 0.0
    %513 = vmatpush1.msra.mxu0 0.0
    %514 = vmatprep.subr.mxu0 0.0
    %515 = vmatpush1.msra.mxu0 0.0
    %516 = vmatprep.subr.mxu0 0.0
    %517 = vmatpush1.msra.mxu0 0.0
    %518 = vmatprep.subr.mxu0 0.0
    %519 = vmatpush1.msra.mxu0 0.0
    %520 = vmatprep.subr.mxu0 0.0
    %521 = vmatpush1.msra.mxu0 0.0
    %522 = vmatprep.subr.mxu0 0.0
    %523 = vmatpush1.msra.mxu0 0.0
    %524 = vmatprep.subr.mxu0 0.0
    %525 = vmatpush1.msra.mxu0 0.0
    %526 = vmatprep.subr.mxu0 0.0
    %527 = vmatpush1.msra.mxu0 0.0
    %528 = vmatprep.subr.mxu0 0.0
    %529 = vmatpush1.msra.mxu0 0.0
    %530 = vmatprep.subr.mxu0 0.0
    %531 = vmatpush1.msra.mxu0 0.0
    %532 = vmatprep.subr.mxu0 0.0
    %533 = vmatpush1.msra.mxu0 0.0
    %534 = vmatprep.subr.mxu0 0.0
    %535 = vmatpush1.msra.mxu0 0.0
    %536 = vmatprep.subr.mxu0 0.0
    %537 = vmatpush1.msra.mxu0 0.0
    %538 = vmatprep.subr.mxu0 0.0
    %539 = vmatpush1.msra.mxu0 0.0
    %540 = vmatprep.subr.mxu0 0.0
    %541 = vmatpush1.msra.mxu0 0.0
    %542 = vmatprep.subr.mxu0 0.0
    %543 = vmatpush1.msra.mxu0 0.0
    %544 = vmatprep.subr.mxu0 0.0
    %545 = vmatpush1.msra.mxu0 0.0
    %546 = vmatprep.subr.mxu0 0.0
    %547 = vmatpush1.msra.mxu0 0.0
    %548 = vmatprep.subr.mxu0 0.0
    %549 = vmatpush1.msra.mxu0 0.0
    %550 = vmatprep.subr.mxu0 0.0
    %551 = vmatpush1.msra.mxu0 0.0
    %552 = vmatprep.subr.mxu0 0.0
    %553 = vmatpush1.msra.mxu0 0.0
    %554 = vmatprep.subr.mxu0 0.0
    %555 = vmatpush1.msra.mxu0 0.0
    %556 = vmatprep.subr.mxu0 0.0
    %557 = vmatpush1.msra.mxu0 0.0
    %558 = vmatprep.subr.mxu0 0.0
    %559 = vmatpush1.msra.mxu0 0.0
    %560 = vmatprep.subr.mxu0 0.0
    %561 = vmatpush1.msra.mxu0 0.0
    %562 = vmatprep.subr.mxu0 0.0
    %563 = vmatpush1.msra.mxu0 0.0
    %564 = vmatprep.subr.mxu0 0.0
    %565 = vmatpush1.msra.mxu0 0.0
    %566 = vmatprep.subr.mxu0 0.0
    %567 = vmatpush1.msra.mxu0 0.0
    %568 = vmatprep.mubr.f32.mxu0 0.0
    %569 = vmatmul.mubr.f32.gmra.mrb[0].mxu0 %v318
    %v570 = vpop.f32.mrb[0].mxu0
    %v571 = vadd.f32 0.0, %v570
    %v572 = vpop.f32.mrb[0].mxu0
    %573 = vmatprep.mubr.f32.mxu0 0.0
    %574 = vmatmul.mubr.f32.gmra.mrb[0].mxu0 %v321
    %v575 = vpop.f32.mrb[0].mxu0
    %v576 = vadd.f32 0.0, %v575
    %v577 = vpop.f32.mrb[0].mxu0
    %578 = vdwg.mxu0
    %v580 = vsel %vm267, %v253, 0
    %v583 = vsel %vm267, %v254, 0
    %585 = vmatprep.subr.mxu0 0.0
    %586 = vmatpush1.msra.mxu0 %v500
    %587 = vmatprep.subr.mxu0 0.0
    %588 = vmatpush1.msra.mxu0 %v501
    %589 = vmatprep.subr.mxu0 0.0
    %590 = vmatpush1.msra.mxu0 %v502
    %591 = vmatprep.subr.mxu0 0.0
    %592 = vmatpush1.msra.mxu0 %v503
    %593 = vmatprep.subr.mxu0 0.0
    %594 = vmatpush1.msra.mxu0 0.0
    %595 = vmatprep.subr.mxu0 0.0
    %596 = vmatpush1.msra.mxu0 0.0
    %597 = vmatprep.subr.mxu0 0.0
    %598 = vmatpush1.msra.mxu0 0.0
    %599 = vmatprep.subr.mxu0 0.0
    %600 = vmatpush1.msra.mxu0 0.0
    %601 = vmatprep.subr.mxu0 0.0
    %602 = vmatpush1.msra.mxu0 0.0
    %603 = vmatprep.subr.mxu0 0.0
    %604 = vmatpush1.msra.mxu0 0.0
    %605 = vmatprep.subr.mxu0 0.0
    %606 = vmatpush1.msra.mxu0 0.0
    %607 = vmatprep.subr.mxu0 0.0
    %608 = vmatpush1.msra.mxu0 0.0
    %609 = vmatprep.subr.mxu0 0.0
    %610 = vmatpush1.msra.mxu0 0.0
    %611 = vmatprep.subr.mxu0 0.0
    %612 = vmatpush1.msra.mxu0 0.0
    %613 = vmatprep.subr.mxu0 0.0
    %614 = vmatpush1.msra.mxu0 0.0
    %615 = vmatprep.subr.mxu0 0.0
    %616 = vmatpush1.msra.mxu0 0.0
    %617 = vmatprep.subr.mxu0 0.0
    %618 = vmatpush1.msra.mxu0 0.0
    %619 = vmatprep.subr.mxu0 0.0
    %620 = vmatpush1.msra.mxu0 0.0
    %621 = vmatprep.subr.mxu0 0.0
    %622 = vmatpush1.msra.mxu0 0.0
    %623 = vmatprep.subr.mxu0 0.0
    %624 = vmatpush1.msra.mxu0 0.0
    %625 = vmatprep.subr.mxu0 0.0
    %626 = vmatpush1.msra.mxu0 0.0
    %627 = vmatprep.subr.mxu0 0.0
    %628 = vmatpush1.msra.mxu0 0.0
    %629 = vmatprep.subr.mxu0 0.0
    %630 = vmatpush1.msra.mxu0 0.0
    %631 = vmatprep.subr.mxu0 0.0
    %632 = vmatpush1.msra.mxu0 0.0
    %633 = vmatprep.subr.mxu0 0.0
    %634 = vmatpush1.msra.mxu0 0.0
    %635 = vmatprep.subr.mxu0 0.0
    %636 = vmatpush1.msra.mxu0 0.0
    %637 = vmatprep.subr.mxu0 0.0
    %638 = vmatpush1.msra.mxu0 0.0
    %639 = vmatprep.subr.mxu0 0.0
    %640 = vmatpush1.msra.mxu0 0.0
    %641 = vmatprep.subr.mxu0 0.0
    %642 = vmatpush1.msra.mxu0 0.0
    %643 = vmatprep.subr.mxu0 0.0
    %644 = vmatpush1.msra.mxu0 0.0
    %645 = vmatprep.subr.mxu0 0.0
    %646 = vmatpush1.msra.mxu0 0.0
    %647 = vmatprep.subr.mxu0 0.0
    %648 = vmatpush1.msra.mxu0 0.0
    %649 = vmatprep.mubr.f32.mxu0 0.0
    %650 = vmatmul.mubr.f32.gmra.mrb[0].mxu0 %v580
    %v651 = vpop.f32.mrb[0].mxu0
    %v652 = vadd.f32 0.0, %v651
    %v653 = vpop.f32.mrb[0].mxu0
    %654 = vmatprep.mubr.f32.mxu0 0.0
    %655 = vmatmul.mubr.f32.gmra.mrb[0].mxu0 %v583
    %v656 = vpop.f32.mrb[0].mxu0
    %v657 = vadd.f32 0.0, %v656
    %v658 = vpop.f32.mrb[0].mxu0
    %659 = vdwg.mxu0
    %v660 = vld [vmem:[%s37] sm:$0xff]
    %v661 = vld [vmem:[%s37 + $0x8] sm:$0xff]
    %v662 = vld [vmem:[%s37 + $0x10] sm:$0xff]
    %v663 = vld [vmem:[%s37 + $0x18] sm:$0xff]
    %v665 = vsel %vm267, %v255, 0
    %v668 = vsel %vm267, %v256, 0
    %670 = vmatprep.subr.mxu0 0.0
    %671 = vmatpush1.msra.mxu0 %v660
    %672 = vmatprep.subr.mxu0 0.0
    %673 = vmatpush1.msra.mxu0 %v661
    %674 = vmatprep.subr.mxu0 0.0
    %675 = vmatpush1.msra.mxu0 %v662
    %676 = vmatprep.subr.mxu0 0.0
    %677 = vmatpush1.msra.mxu0 %v663
    %678 = vmatprep.subr.mxu0 0.0
    %679 = vmatpush1.msra.mxu0 0.0
    %680 = vmatprep.subr.mxu0 0.0
    %681 = vmatpush1.msra.mxu0 0.0
    %682 = vmatprep.subr.mxu0 0.0
    %683 = vmatpush1.msra.mxu0 0.0
    %684 = vmatprep.subr.mxu0 0.0
    %685 = vmatpush1.msra.mxu0 0.0
    %686 = vmatprep.subr.mxu0 0.0
    %687 = vmatpush1.msra.mxu0 0.0
    %688 = vmatprep.subr.mxu0 0.0
    %689 = vmatpush1.msra.mxu0 0.0
    %690 = vmatprep.subr.mxu0 0.0
    %691 = vmatpush1.msra.mxu0 0.0
    %692 = vmatprep.subr.mxu0 0.0
    %693 = vmatpush1.msra.mxu0 0.0
    %694 = vmatprep.subr.mxu0 0.0
    %695 = vmatpush1.msra.mxu0 0.0
    %696 = vmatprep.subr.mxu0 0.0
    %697 = vmatpush1.msra.mxu0 0.0
    %698 = vmatprep.subr.mxu0 0.0
    %699 = vmatpush1.msra.mxu0 0.0
    %700 = vmatprep.subr.mxu0 0.0
    %701 = vmatpush1.msra.mxu0 0.0
    %702 = vmatprep.subr.mxu0 0.0
    %703 = vmatpush1.msra.mxu0 0.0
    %704 = vmatprep.subr.mxu0 0.0
    %705 = vmatpush1.msra.mxu0 0.0
    %706 = vmatprep.subr.mxu0 0.0
    %707 = vmatpush1.msra.mxu0 0.0
    %708 = vmatprep.subr.mxu0 0.0
    %709 = vmatpush1.msra.mxu0 0.0
    %710 = vmatprep.subr.mxu0 0.0
    %711 = vmatpush1.msra.mxu0 0.0
    %712 = vmatprep.subr.mxu0 0.0
    %713 = vmatpush1.msra.mxu0 0.0
    %714 = vmatprep.subr.mxu0 0.0
    %715 = vmatpush1.msra.mxu0 0.0
    %716 = vmatprep.subr.mxu0 0.0
    %717 = vmatpush1.msra.mxu0 0.0
    %718 = vmatprep.subr.mxu0 0.0
    %719 = vmatpush1.msra.mxu0 0.0
    %720 = vmatprep.subr.mxu0 0.0
    %721 = vmatpush1.msra.mxu0 0.0
    %722 = vmatprep.subr.mxu0 0.0
    %723 = vmatpush1.msra.mxu0 0.0
    %724 = vmatprep.subr.mxu0 0.0
    %725 = vmatpush1.msra.mxu0 0.0
    %726 = vmatprep.subr.mxu0 0.0
    %727 = vmatpush1.msra.mxu0 0.0
    %728 = vmatprep.subr.mxu0 0.0
    %729 = vmatpush1.msra.mxu0 0.0
    %730 = vmatprep.subr.mxu0 0.0
    %731 = vmatpush1.msra.mxu0 0.0
    %732 = vmatprep.subr.mxu0 0.0
    %733 = vmatpush1.msra.mxu0 0.0
    %734 = vmatprep.mubr.f32.mxu0 0.0
    %735 = vmatmul.mubr.f32.gmra.mrb[0].mxu0 %v665
    %v736 = vpop.f32.mrb[0].mxu0
    %v737 = vadd.f32 0.0, %v736
    %v738 = vpop.f32.mrb[0].mxu0
    %739 = vmatprep.mubr.f32.mxu0 0.0
    %740 = vmatmul.mubr.f32.gmra.mrb[0].mxu0 %v668
    %v741 = vpop.f32.mrb[0].mxu0
    %v742 = vadd.f32 0.0, %v741
    %v743 = vpop.f32.mrb[0].mxu0
    %744 = vdwg.mxu0
    %vm745 = vcmask 64512
    %v747 = vsel %vm745, %v492, 0
    %v750 = vsel %vm745, %v257, 0
    %752 = vmatprep.subr.mxu0 0.0
    %753 = vmatpush1.xpose.msra.mxu0 %v750
    %754 = vmatprep.subr.mxu0 0.0
    %755 = vmatpush1.xpose.msra.mxu0 0.0
    %756 = vmatprep.subr.mxu0 0.0
    %757 = vmatpush1.xpose.msra.mxu0 0.0
    %758 = vmatprep.subr.mxu0 0.0
    %759 = vmatpush1.xpose.msra.mxu0 0.0
    %760 = vmatprep.subr.mxu0 0.0
    %761 = vmatpush1.xpose.msra.mxu0 0.0
    %762 = vmatprep.subr.mxu0 0.0
    %763 = vmatpush1.xpose.msra.mxu0 0.0
    %764 = vmatprep.subr.mxu0 0.0
    %765 = vmatpush1.xpose.msra.mxu0 0.0
    %766 = vmatprep.subr.mxu0 0.0
    %767 = vmatpush1.xpose.msra.mxu0 0.0
    %768 = vmatprep.subr.mxu0 0.0
    %769 = vmatpush1.xpose.msra.mxu0 0.0
    %770 = vmatprep.subr.mxu0 0.0
    %771 = vmatpush1.xpose.msra.mxu0 0.0
    %772 = vmatprep.subr.mxu0 0.0
    %773 = vmatpush1.xpose.msra.mxu0 0.0
    %774 = vmatprep.subr.mxu0 0.0
    %775 = vmatpush1.xpose.msra.mxu0 0.0
    %776 = vmatprep.subr.mxu0 0.0
    %777 = vmatpush1.xpose.msra.mxu0 0.0
    %778 = vmatprep.subr.mxu0 0.0
    %779 = vmatpush1.xpose.msra.mxu0 0.0
    %780 = vmatprep.subr.mxu0 0.0
    %781 = vmatpush1.xpose.msra.mxu0 0.0
    %782 = vmatprep.subr.mxu0 0.0
    %783 = vmatpush1.xpose.msra.mxu0 0.0
    %784 = vmatprep.subr.mxu0 0.0
    %785 = vmatpush1.xpose.msra.mxu0 0.0
    %786 = vmatprep.subr.mxu0 0.0
    %787 = vmatpush1.xpose.msra.mxu0 0.0
    %788 = vmatprep.subr.mxu0 0.0
    %789 = vmatpush1.xpose.msra.mxu0 0.0
    %790 = vmatprep.subr.mxu0 0.0
    %791 = vmatpush1.xpose.msra.mxu0 0.0
    %792 = vmatprep.subr.mxu0 0.0
    %793 = vmatpush1.xpose.msra.mxu0 0.0
    %794 = vmatprep.subr.mxu0 0.0
    %795 = vmatpush1.xpose.msra.mxu0 0.0
    %796 = vmatprep.subr.mxu0 0.0
    %797 = vmatpush1.xpose.msra.mxu0 0.0
    %798 = vmatprep.subr.mxu0 0.0
    %799 = vmatpush1.xpose.msra.mxu0 0.0
    %800 = vmatprep.subr.mxu0 0.0
    %801 = vmatpush1.xpose.msra.mxu0 0.0
    %802 = vmatprep.subr.mxu0 0.0
    %803 = vmatpush1.xpose.msra.mxu0 0.0
    %804 = vmatprep.subr.mxu0 0.0
    %805 = vmatpush1.xpose.msra.mxu0 0.0
    %806 = vmatprep.subr.mxu0 0.0
    %807 = vmatpush1.xpose.msra.mxu0 0.0
    %808 = vmatprep.subr.mxu0 0.0
    %809 = vmatpush1.xpose.msra.mxu0 0.0
    %810 = vmatprep.subr.mxu0 0.0
    %811 = vmatpush1.xpose.msra.mxu0 0.0
    %812 = vmatprep.subr.mxu0 0.0
    %813 = vmatpush1.xpose.msra.mxu0 0.0
    %814 = vmatprep.subr.mxu0 0.0
    %815 = vmatpush1.xpose.msra.mxu0 0.0
    %816 = vmatprep.mubr.f32.mxu0 0.0
    %817 = vmatmul.mubr.f32.gmra.mrb[0].mxu0 %v747
    %v818 = vpop.f32.mrb[0].mxu0
    %v819 = vadd.f32 0.0, %v818
    %v820 = vpop.f32.mrb[0].mxu0
    %821 = vdwg.mxu0
    %v823 = vsel %vm745, %v405, 0
    %v826 = vsel %vm745, %v652, 0
    %828 = vmatprep.subr.mxu0 0.0
    %829 = vmatpush1.xpose.msra.mxu0 %v826
    %830 = vmatprep.subr.mxu0 0.0
    %831 = vmatpush1.xpose.msra.mxu0 0.0
    %832 = vmatprep.subr.mxu0 0.0
    %833 = vmatpush1.xpose.msra.mxu0 0.0
    %834 = vmatprep.subr.mxu0 0.0
    %835 = vmatpush1.xpose.msra.mxu0 0.0
    %836 = vmatprep.subr.mxu0 0.0
    %837 = vmatpush1.xpose.msra.mxu0 0.0
    %838 = vmatprep.subr.mxu0 0.0
    %839 = vmatpush1.xpose.msra.mxu0 0.0
    %840 = vmatprep.subr.mxu0 0.0
    %841 = vmatpush1.xpose.msra.mxu0 0.0
    %842 = vmatprep.subr.mxu0 0.0
    %843 = vmatpush1.xpose.msra.mxu0 0.0
    %844 = vmatprep.subr.mxu0 0.0
    %845 = vmatpush1.xpose.msra.mxu0 0.0
    %846 = vmatprep.subr.mxu0 0.0
    %847 = vmatpush1.xpose.msra.mxu0 0.0
    %848 = vmatprep.subr.mxu0 0.0
    %849 = vmatpush1.xpose.msra.mxu0 0.0
    %850 = vmatprep.subr.mxu0 0.0
    %851 = vmatpush1.xpose.msra.mxu0 0.0
    %852 = vmatprep.subr.mxu0 0.0
    %853 = vmatpush1.xpose.msra.mxu0 0.0
    %854 = vmatprep.subr.mxu0 0.0
    %855 = vmatpush1.xpose.msra.mxu0 0.0
    %856 = vmatprep.subr.mxu0 0.0
    %857 = vmatpush1.xpose.msra.mxu0 0.0
    %858 = vmatprep.subr.mxu0 0.0
    %859 = vmatpush1.xpose.msra.mxu0 0.0
    %860 = vmatprep.subr.mxu0 0.0
    %861 = vmatpush1.xpose.msra.mxu0 0.0
    %862 = vmatprep.subr.mxu0 0.0
    %863 = vmatpush1.xpose.msra.mxu0 0.0
    %864 = vmatprep.subr.mxu0 0.0
    %865 = vmatpush1.xpose.msra.mxu0 0.0
    %866 = vmatprep.subr.mxu0 0.0
    %867 = vmatpush1.xpose.msra.mxu0 0.0
    %868 = vmatprep.subr.mxu0 0.0
    %869 = vmatpush1.xpose.msra.mxu0 0.0
    %870 = vmatprep.subr.mxu0 0.0
    %871 = vmatpush1.xpose.msra.mxu0 0.0
    %872 = vmatprep.subr.mxu0 0.0
    %873 = vmatpush1.xpose.msra.mxu0 0.0
    %874 = vmatprep.subr.mxu0 0.0
    %875 = vmatpush1.xpose.msra.mxu0 0.0
    %876 = vmatprep.subr.mxu0 0.0
    %877 = vmatpush1.xpose.msra.mxu0 0.0
    %878 = vmatprep.subr.mxu0 0.0
    %879 = vmatpush1.xpose.msra.mxu0 0.0
    %880 = vmatprep.subr.mxu0 0.0
    %881 = vmatpush1.xpose.msra.mxu0 0.0
    %882 = vmatprep.subr.mxu0 0.0
    %883 = vmatpush1.xpose.msra.mxu0 0.0
    %884 = vmatprep.subr.mxu0 0.0
    %885 = vmatpush1.xpose.msra.mxu0 0.0
    %886 = vmatprep.subr.mxu0 0.0
    %887 = vmatpush1.xpose.msra.mxu0 0.0
    %888 = vmatprep.subr.mxu0 0.0
    %889 = vmatpush1.xpose.msra.mxu0 0.0
    %890 = vmatprep.subr.mxu0 0.0
    %891 = vmatpush1.xpose.msra.mxu0 0.0
    %892 = vmatprep.mubr.f32.mxu0 0.0
    %893 = vmatmul.mubr.f32.gmra.mrb[0].mxu0 %v823
    %v894 = vpop.f32.mrb[0].mxu0
    %v895 = vadd.f32 %v819, %v894
    %v896 = vpop.f32.mrb[0].mxu0
    %897 = vdwg.mxu0
    %v898 = vmul.f32 %v895, 0.35355338
    %v900 = vsel %vm745, %v258, 0
    %902 = vmatprep.subr.mxu0 0.0
    %903 = vmatpush1.xpose.msra.mxu0 %v900
    %904 = vmatprep.subr.mxu0 0.0
    %905 = vmatpush1.xpose.msra.mxu0 0.0
    %906 = vmatprep.subr.mxu0 0.0
    %907 = vmatpush1.xpose.msra.mxu0 0.0
    %908 = vmatprep.subr.mxu0 0.0
    %909 = vmatpush1.xpose.msra.mxu0 0.0
    %910 = vmatprep.subr.mxu0 0.0
    %911 = vmatpush1.xpose.msra.mxu0 0.0
    %912 = vmatprep.subr.mxu0 0.0
    %913 = vmatpush1.xpose.msra.mxu0 0.0
    %914 = vmatprep.subr.mxu0 0.0
    %915 = vmatpush1.xpose.msra.mxu0 0.0
    %916 = vmatprep.subr.mxu0 0.0
    %917 = vmatpush1.xpose.msra.mxu0 0.0
    %918 = vmatprep.subr.mxu0 0.0
    %919 = vmatpush1.xpose.msra.mxu0 0.0
    %920 = vmatprep.subr.mxu0 0.0
    %921 = vmatpush1.xpose.msra.mxu0 0.0
    %922 = vmatprep.subr.mxu0 0.0
    %923 = vmatpush1.xpose.msra.mxu0 0.0
    %924 = vmatprep.subr.mxu0 0.0
    %925 = vmatpush1.xpose.msra.mxu0 0.0
    %926 = vmatprep.subr.mxu0 0.0
    %927 = vmatpush1.xpose.msra.mxu0 0.0
    %928 = vmatprep.subr.mxu0 0.0
    %929 = vmatpush1.xpose.msra.mxu0 0.0
    %930 = vmatprep.subr.mxu0 0.0
    %931 = vmatpush1.xpose.msra.mxu0 0.0
    %932 = vmatprep.subr.mxu0 0.0
    %933 = vmatpush1.xpose.msra.mxu0 0.0
    %934 = vmatprep.subr.mxu0 0.0
    %935 = vmatpush1.xpose.msra.mxu0 0.0
    %936 = vmatprep.subr.mxu0 0.0
    %937 = vmatpush1.xpose.msra.mxu0 0.0
    %938 = vmatprep.subr.mxu0 0.0
    %939 = vmatpush1.xpose.msra.mxu0 0.0
    %940 = vmatprep.subr.mxu0 0.0
    %941 = vmatpush1.xpose.msra.mxu0 0.0
    %942 = vmatprep.subr.mxu0 0.0
    %943 = vmatpush1.xpose.msra.mxu0 0.0
    %944 = vmatprep.subr.mxu0 0.0
    %945 = vmatpush1.xpose.msra.mxu0 0.0
    %946 = vmatprep.subr.mxu0 0.0
    %947 = vmatpush1.xpose.msra.mxu0 0.0
    %948 = vmatprep.subr.mxu0 0.0
    %949 = vmatpush1.xpose.msra.mxu0 0.0
    %950 = vmatprep.subr.mxu0 0.0
    %951 = vmatpush1.xpose.msra.mxu0 0.0
    %952 = vmatprep.subr.mxu0 0.0
    %953 = vmatpush1.xpose.msra.mxu0 0.0
    %954 = vmatprep.subr.mxu0 0.0
    %955 = vmatpush1.xpose.msra.mxu0 0.0
    %956 = vmatprep.subr.mxu0 0.0
    %957 = vmatpush1.xpose.msra.mxu0 0.0
    %958 = vmatprep.subr.mxu0 0.0
    %959 = vmatpush1.xpose.msra.mxu0 0.0
    %960 = vmatprep.subr.mxu0 0.0
    %961 = vmatpush1.xpose.msra.mxu0 0.0
    %962 = vmatprep.subr.mxu0 0.0
    %963 = vmatpush1.xpose.msra.mxu0 0.0
    %964 = vmatprep.subr.mxu0 0.0
    %965 = vmatpush1.xpose.msra.mxu0 0.0
    %966 = vmatprep.mubr.f32.mxu0 0.0
    %967 = vmatmul.mubr.f32.gmra.mrb[0].mxu0 %v747
    %v968 = vpop.f32.mrb[0].mxu0
    %v969 = vadd.f32 0.0, %v968
    %v970 = vpop.f32.mrb[0].mxu0
    %971 = vdwg.mxu0
    %v973 = vsel %vm745, %v571, 0
    %975 = vmatprep.subr.mxu0 0.0
    %976 = vmatpush1.xpose.msra.mxu0 %v973
    %977 = vmatprep.subr.mxu0 0.0
    %978 = vmatpush1.xpose.msra.mxu0 0.0
    %979 = vmatprep.subr.mxu0 0.0
    %980 = vmatpush1.xpose.msra.mxu0 0.0
    %981 = vmatprep.subr.mxu0 0.0
    %982 = vmatpush1.xpose.msra.mxu0 0.0
    %983 = vmatprep.subr.mxu0 0.0
    %984 = vmatpush1.xpose.msra.mxu0 0.0
    %985 = vmatprep.subr.mxu0 0.0
    %986 = vmatpush1.xpose.msra.mxu0 0.0
    %987 = vmatprep.subr.mxu0 0.0
    %988 = vmatpush1.xpose.msra.mxu0 0.0
    %989 = vmatprep.subr.mxu0 0.0
    %990 = vmatpush1.xpose.msra.mxu0 0.0
    %991 = vmatprep.subr.mxu0 0.0
    %992 = vmatpush1.xpose.msra.mxu0 0.0
    %993 = vmatprep.subr.mxu0 0.0
    %994 = vmatpush1.xpose.msra.mxu0 0.0
    %995 = vmatprep.subr.mxu0 0.0
    %996 = vmatpush1.xpose.msra.mxu0 0.0
    %997 = vmatprep.subr.mxu0 0.0
    %998 = vmatpush1.xpose.msra.mxu0 0.0
    %999 = vmatprep.subr.mxu0 0.0
    %1000 = vmatpush1.xpose.msra.mxu0 0.0
    %1001 = vmatprep.subr.mxu0 0.0
    %1002 = vmatpush1.xpose.msra.mxu0 0.0
    %1003 = vmatprep.subr.mxu0 0.0
    %1004 = vmatpush1.xpose.msra.mxu0 0.0
    %1005 = vmatprep.subr.mxu0 0.0
    %1006 = vmatpush1.xpose.msra.mxu0 0.0
    %1007 = vmatprep.subr.mxu0 0.0
    %1008 = vmatpush1.xpose.msra.mxu0 0.0
    %1009 = vmatprep.subr.mxu0 0.0
    %1010 = vmatpush1.xpose.msra.mxu0 0.0
    %1011 = vmatprep.subr.mxu0 0.0
    %1012 = vmatpush1.xpose.msra.mxu0 0.0
    %1013 = vmatprep.subr.mxu0 0.0
    %1014 = vmatpush1.xpose.msra.mxu0 0.0
    %1015 = vmatprep.subr.mxu0 0.0
    %1016 = vmatpush1.xpose.msra.mxu0 0.0
    %1017 = vmatprep.subr.mxu0 0.0
    %1018 = vmatpush1.xpose.msra.mxu0 0.0
    %1019 = vmatprep.subr.mxu0 0.0
    %1020 = vmatpush1.xpose.msra.mxu0 0.0
    %1021 = vmatprep.subr.mxu0 0.0
    %1022 = vmatpush1.xpose.msra.mxu0 0.0
    %1023 = vmatprep.subr.mxu0 0.0
    %1024 = vmatpush1.xpose.msra.mxu0 0.0
    %1025 = vmatprep.subr.mxu0 0.0
    %1026 = vmatpush1.xpose.msra.mxu0 0.0
    %1027 = vmatprep.subr.mxu0 0.0
    %1028 = vmatpush1.xpose.msra.mxu0 0.0
    %1029 = vmatprep.subr.mxu0 0.0
    %1030 = vmatpush1.xpose.msra.mxu0 0.0
    %1031 = vmatprep.subr.mxu0 0.0
    %1032 = vmatpush1.xpose.msra.mxu0 0.0
    %1033 = vmatprep.subr.mxu0 0.0
    %1034 = vmatpush1.xpose.msra.mxu0 0.0
    %1035 = vmatprep.subr.mxu0 0.0
    %1036 = vmatpush1.xpose.msra.mxu0 0.0
    %1037 = vmatprep.subr.mxu0 0.0
    %1038 = vmatpush1.xpose.msra.mxu0 0.0
    %1039 = vmatprep.mubr.f32.mxu0 0.0
    %1040 = vmatmul.mubr.f32.gmra.mrb[0].mxu0 %v823
    %v1041 = vpop.f32.mrb[0].mxu0
    %v1042 = vadd.f32 %v969, %v1041
    %v1043 = vpop.f32.mrb[0].mxu0
    %1044 = vdwg.mxu0
    %v1045 = vmul.f32 %v1042, 0.35355338
    %v1046 = vsel %vm745, %v898, -inf
    %v1047 = vrot.slane %v1046, 4
    %v1048 = vmax.f32 %v1046, %v1047
    %v1049 = vrot.slane %v1048, 2
    %v1050 = vmax.f32 %v1048, %v1049
    %v1051 = vrot.slane %v1050, 1
    %v1052 = vmax.f32 %v1050, %v1051
    %v1053 = vsub.f32 %v898, %v1052
    %v1054 = vmul.f32 %v1053, 1.442695
    %v1055 = vpow.pop %v1054
    %v1056 = vsel %vm745, %v1055, 0.0
    %v1057 = vrot.slane %v1056, 4
    %v1058 = vadd.f32 %v1056, %v1057
    %v1059 = vrot.slane %v1058, 2
    %v1060 = vadd.f32 %v1058, %v1059
    %v1061 = vrot.slane %v1060, 1
    %v1062 = vadd.f32 %v1060, %v1061
    %v1063 = vrcp.pop %v1062
    %v1064 = vmul.f32 %v1055, %v1063
    %v1065 = vsel %vm745, %v1045, -inf
    %v1066 = vrot.slane %v1065, 4
    %v1067 = vmax.f32 %v1065, %v1066
    %v1068 = vrot.slane %v1067, 2
    %v1069 = vmax.f32 %v1067, %v1068
    %v1070 = vrot.slane %v1069, 1
    %v1071 = vmax.f32 %v1069, %v1070
    %v1072 = vsub.f32 %v1045, %v1071
    %v1073 = vmul.f32 %v1072, 1.442695
    %v1074 = vpow.pop %v1073
    %v1075 = vsel %vm745, %v1074, 0.0
    %v1076 = vrot.slane %v1075, 4
    %v1077 = vadd.f32 %v1075, %v1076
    %v1078 = vrot.slane %v1077, 2
    %v1079 = vadd.f32 %v1077, %v1078
    %v1080 = vrot.slane %v1079, 1
    %v1081 = vadd.f32 %v1079, %v1080
    %v1082 = vrcp.pop %v1081
    %v1083 = vmul.f32 %v1074, %v1082
    %1084 = vrot.lane.b32.xlu0 %v571, 96
    %v1085 = vpop.permute.xlu0 %1084
    %v1088 = vsel %vm745, %v1083, 0
    %1090 = vmatprep.subr.mxu0 0.0
    %1091 = vmatpush1.msra.mxu0 %v1085
    %1092 = vmatprep.subr.mxu0 0.0
    %1093 = vmatpush1.msra.mxu0 0.0
    %1094 = vmatprep.subr.mxu0 0.0
    %1095 = vmatpush1.msra.mxu0 0.0
    %1096 = vmatprep.subr.mxu0 0.0
    %1097 = vmatpush1.msra.mxu0 0.0
    %1098 = vmatprep.subr.mxu0 0.0
    %1099 = vmatpush1.msra.mxu0 0.0
    %1100 = vmatprep.subr.mxu0 0.0
    %1101 = vmatpush1.msra.mxu0 0.0
    %1102 = vmatprep.subr.mxu0 0.0
    %1103 = vmatpush1.msra.mxu0 0.0
    %1104 = vmatprep.subr.mxu0 0.0
    %1105 = vmatpush1.msra.mxu0 0.0
    %1106 = vmatprep.subr.mxu0 0.0
    %1107 = vmatpush1.msra.mxu0 0.0
    %1108 = vmatprep.subr.mxu0 0.0
    %1109 = vmatpush1.msra.mxu0 0.0
    %1110 = vmatprep.subr.mxu0 0.0
    %1111 = vmatpush1.msra.mxu0 0.0
    %1112 = vmatprep.subr.mxu0 0.0
    %1113 = vmatpush1.msra.mxu0 0.0
    %1114 = vmatprep.subr.mxu0 0.0
    %1115 = vmatpush1.msra.mxu0 0.0
    %1116 = vmatprep.subr.mxu0 0.0
    %1117 = vmatpush1.msra.mxu0 0.0
    %1118 = vmatprep.subr.mxu0 0.0
    %1119 = vmatpush1.msra.mxu0 0.0
    %1120 = vmatprep.subr.mxu0 0.0
    %1121 = vmatpush1.msra.mxu0 0.0
    %1122 = vmatprep.subr.mxu0 0.0
    %1123 = vmatpush1.msra.mxu0 0.0
    %1124 = vmatprep.subr.mxu0 0.0
    %1125 = vmatpush1.msra.mxu0 0.0
    %1126 = vmatprep.subr.mxu0 0.0
    %1127 = vmatpush1.msra.mxu0 0.0
    %1128 = vmatprep.subr.mxu0 0.0
    %1129 = vmatpush1.msra.mxu0 0.0
    %1130 = vmatprep.subr.mxu0 0.0
    %1131 = vmatpush1.msra.mxu0 0.0
    %1132 = vmatprep.subr.mxu0 0.0
    %1133 = vmatpush1.msra.mxu0 0.0
    %1134 = vmatprep.subr.mxu0 0.0
    %1135 = vmatpush1.msra.mxu0 0.0
    %1136 = vmatprep.subr.mxu0 0.0
    %1137 = vmatpush1.msra.mxu0 0.0
    %1138 = vmatprep.subr.mxu0 0.0
    %1139 = vmatpush1.msra.mxu0 0.0
    %1140 = vmatprep.subr.mxu0 0.0
    %1141 = vmatpush1.msra.mxu0 0.0
    %1142 = vmatprep.subr.mxu0 0.0
    %1143 = vmatpush1.msra.mxu0 0.0
    %1144 = vmatprep.subr.mxu0 0.0
    %1145 = vmatpush1.msra.mxu0 0.0
    %1146 = vmatprep.subr.mxu0 0.0
    %1147 = vmatpush1.msra.mxu0 0.0
    %1148 = vmatprep.subr.mxu0 0.0
    %1149 = vmatpush1.msra.mxu0 0.0
    %1150 = vmatprep.subr.mxu0 0.0
    %1151 = vmatpush1.msra.mxu0 0.0
    %1152 = vmatprep.subr.mxu0 0.0
    %1153 = vmatpush1.msra.mxu0 0.0
    %1154 = vmatprep.mubr.f32.mxu0 0.0
    %1155 = vmatmul.mubr.f32.gmra.mrb[0].mxu0 %v1088
    %v1156 = vpop.f32.mrb[0].mxu0
    %v1157 = vadd.f32 0.0, %v1156
    %v1158 = vpop.f32.mrb[0].mxu0
    %1159 = vdwg.mxu0
    %1160 = vrot.lane.b32.xlu0 %v652, 96
    %v1161 = vpop.permute.xlu0 %1160
    %v1164 = vsel %vm745, %v1064, 0
    %1166 = vmatprep.subr.mxu0 0.0
    %1167 = vmatpush1.msra.mxu0 %v1161
    %1168 = vmatprep.subr.mxu0 0.0
    %1169 = vmatpush1.msra.mxu0 0.0
    %1170 = vmatprep.subr.mxu0 0.0
    %1171 = vmatpush1.msra.mxu0 0.0
    %1172 = vmatprep.subr.mxu0 0.0
    %1173 = vmatpush1.msra.mxu0 0.0
    %1174 = vmatprep.subr.mxu0 0.0
    %1175 = vmatpush1.msra.mxu0 0.0
    %1176 = vmatprep.subr.mxu0 0.0
    %1177 = vmatpush1.msra.mxu0 0.0
    %1178 = vmatprep.subr.mxu0 0.0
    %1179 = vmatpush1.msra.mxu0 0.0
    %1180 = vmatprep.subr.mxu0 0.0
    %1181 = vmatpush1.msra.mxu0 0.0
    %1182 = vmatprep.subr.mxu0 0.0
    %1183 = vmatpush1.msra.mxu0 0.0
    %1184 = vmatprep.subr.mxu0 0.0
    %1185 = vmatpush1.msra.mxu0 0.0
    %1186 = vmatprep.subr.mxu0 0.0
    %1187 = vmatpush1.msra.mxu0 0.0
    %1188 = vmatprep.subr.mxu0 0.0
    %1189 = vmatpush1.msra.mxu0 0.0
    %1190 = vmatprep.subr.mxu0 0.0
    %1191 = vmatpush1.msra.mxu0 0.0
    %1192 = vmatprep.subr.mxu0 0.0
    %1193 = vmatpush1.msra.mxu0 0.0
    %1194 = vmatprep.subr.mxu0 0.0
    %1195 = vmatpush1.msra.mxu0 0.0
    %1196 = vmatprep.subr.mxu0 0.0
    %1197 = vmatpush1.msra.mxu0 0.0
    %1198 = vmatprep.subr.mxu0 0.0
    %1199 = vmatpush1.msra.mxu0 0.0
    %1200 = vmatprep.subr.mxu0 0.0
    %1201 = vmatpush1.msra.mxu0 0.0
    %1202 = vmatprep.subr.mxu0 0.0
    %1203 = vmatpush1.msra.mxu0 0.0
    %1204 = vmatprep.subr.mxu0 0.0
    %1205 = vmatpush1.msra.mxu0 0.0
    %1206 = vmatprep.subr.mxu0 0.0
    %1207 = vmatpush1.msra.mxu0 0.0
    %1208 = vmatprep.subr.mxu0 0.0
    %1209 = vmatpush1.msra.mxu0 0.0
    %1210 = vmatprep.subr.mxu0 0.0
    %1211 = vmatpush1.msra.mxu0 0.0
    %1212 = vmatprep.subr.mxu0 0.0
    %1213 = vmatpush1.msra.mxu0 0.0
    %1214 = vmatprep.subr.mxu0 0.0
    %1215 = vmatpush1.msra.mxu0 0.0
    %1216 = vmatprep.subr.mxu0 0.0
    %1217 = vmatpush1.msra.mxu0 0.0
    %1218 = vmatprep.subr.mxu0 0.0
    %1219 = vmatpush1.msra.mxu0 0.0
    %1220 = vmatprep.subr.mxu0 0.0
    %1221 = vmatpush1.msra.mxu0 0.0
    %1222 = vmatprep.subr.mxu0 0.0
    %1223 = vmatpush1.msra.mxu0 0.0
    %1224 = vmatprep.subr.mxu0 0.0
    %1225 = vmatpush1.msra.mxu0 0.0
    %1226 = vmatprep.subr.mxu0 0.0
    %1227 = vmatpush1.msra.mxu0 0.0
    %1228 = vmatprep.subr.mxu0 0.0
    %1229 = vmatpush1.msra.mxu0 0.0
    %1230 = vmatprep.mubr.f32.mxu0 0.0
    %1231 = vmatmul.mubr.f32.gmra.mrb[0].mxu0 %v1164
    %v1232 = vpop.f32.mrb[0].mxu0
    %v1233 = vadd.f32 %v1157, %v1232
    %v1234 = vpop.f32.mrb[0].mxu0
    %1235 = vdwg.mxu0
    %1236 = vrot.lane.b32.xlu0 %v492, 120
    %v1237 = vpop.permute.xlu0 %1236
    %1238 = vrot.lane.b32.xlu0 %v257, 120
    %v1239 = vpop.permute.xlu0 %1238
    %v1240 = vsel %vm745, %v1237, 0
    %v1242 = vsel %vm745, %v1239, 0
    %1244 = vmatprep.subr.mxu0 0.0
    %1245 = vmatpush1.xpose.msra.mxu0 %v1242
    %1246 = vmatprep.subr.mxu0 0.0
    %1247 = vmatpush1.xpose.msra.mxu0 0.0
    %1248 = vmatprep.subr.mxu0 0.0
    %1249 = vmatpush1.xpose.msra.mxu0 0.0
    %1250 = vmatprep.subr.mxu0 0.0
    %1251 = vmatpush1.xpose.msra.mxu0 0.0
    %1252 = vmatprep.subr.mxu0 0.0
    %1253 = vmatpush1.xpose.msra.mxu0 0.0
    %1254 = vmatprep.subr.mxu0 0.0
    %1255 = vmatpush1.xpose.msra.mxu0 0.0
    %1256 = vmatprep.subr.mxu0 0.0
    %1257 = vmatpush1.xpose.msra.mxu0 0.0
    %1258 = vmatprep.subr.mxu0 0.0
    %1259 = vmatpush1.xpose.msra.mxu0 0.0
    %1260 = vmatprep.subr.mxu0 0.0
    %1261 = vmatpush1.xpose.msra.mxu0 0.0
    %1262 = vmatprep.subr.mxu0 0.0
    %1263 = vmatpush1.xpose.msra.mxu0 0.0
    %1264 = vmatprep.subr.mxu0 0.0
    %1265 = vmatpush1.xpose.msra.mxu0 0.0
    %1266 = vmatprep.subr.mxu0 0.0
    %1267 = vmatpush1.xpose.msra.mxu0 0.0
    %1268 = vmatprep.subr.mxu0 0.0
    %1269 = vmatpush1.xpose.msra.mxu0 0.0
    %1270 = vmatprep.subr.mxu0 0.0
    %1271 = vmatpush1.xpose.msra.mxu0 0.0
    %1272 = vmatprep.subr.mxu0 0.0
    %1273 = vmatpush1.xpose.msra.mxu0 0.0
    %1274 = vmatprep.subr.mxu0 0.0
    %1275 = vmatpush1.xpose.msra.mxu0 0.0
    %1276 = vmatprep.subr.mxu0 0.0
    %1277 = vmatpush1.xpose.msra.mxu0 0.0
    %1278 = vmatprep.subr.mxu0 0.0
    %1279 = vmatpush1.xpose.msra.mxu0 0.0
    %1280 = vmatprep.subr.mxu0 0.0
    %1281 = vmatpush1.xpose.msra.mxu0 0.0
    %1282 = vmatprep.subr.mxu0 0.0
    %1283 = vmatpush1.xpose.msra.mxu0 0.0
    %1284 = vmatprep.subr.mxu0 0.0
    %1285 = vmatpush1.xpose.msra.mxu0 0.0
    %1286 = vmatprep.subr.mxu0 0.0
    %1287 = vmatpush1.xpose.msra.mxu0 0.0
    %1288 = vmatprep.subr.mxu0 0.0
    %1289 = vmatpush1.xpose.msra.mxu0 0.0
    %1290 = vmatprep.subr.mxu0 0.0
    %1291 = vmatpush1.xpose.msra.mxu0 0.0
    %1292 = vmatprep.subr.mxu0 0.0
    %1293 = vmatpush1.xpose.msra.mxu0 0.0
    %1294 = vmatprep.subr.mxu0 0.0
    %1295 = vmatpush1.xpose.msra.mxu0 0.0
    %1296 = vmatprep.subr.mxu0 0.0
    %1297 = vmatpush1.xpose.msra.mxu0 0.0
    %1298 = vmatprep.subr.mxu0 0.0
    %1299 = vmatpush1.xpose.msra.mxu0 0.0
    %1300 = vmatprep.subr.mxu0 0.0
    %1301 = vmatpush1.xpose.msra.mxu0 0.0
    %1302 = vmatprep.subr.mxu0 0.0
    %1303 = vmatpush1.xpose.msra.mxu0 0.0
    %1304 = vmatprep.subr.mxu0 0.0
    %1305 = vmatpush1.xpose.msra.mxu0 0.0
    %1306 = vmatprep.subr.mxu0 0.0
    %1307 = vmatpush1.xpose.msra.mxu0 0.0
    %1308 = vmatprep.mubr.f32.mxu0 0.0
    %1309 = vmatmul.mubr.f32.gmra.mrb[0].mxu0 %v1240
    %v1310 = vpop.f32.mrb[0].mxu0
    %v1311 = vadd.f32 0.0, %v1310
    %v1312 = vpop.f32.mrb[0].mxu0
    %1313 = vdwg.mxu0
    %1314 = vrot.lane.b32.xlu0 %v405, 120
    %v1315 = vpop.permute.xlu0 %1314
    %1316 = vrot.lane.b32.xlu0 %v652, 120
    %v1317 = vpop.permute.xlu0 %1316
    %v1318 = vsel %vm745, %v1315, 0
    %v1320 = vsel %vm745, %v1317, 0
    %1322 = vmatprep.subr.mxu0 0.0
    %1323 = vmatpush1.xpose.msra.mxu0 %v1320
    %1324 = vmatprep.subr.mxu0 0.0
    %1325 = vmatpush1.xpose.msra.mxu0 0.0
    %1326 = vmatprep.subr.mxu0 0.0
    %1327 = vmatpush1.xpose.msra.mxu0 0.0
    %1328 = vmatprep.subr.mxu0 0.0
    %1329 = vmatpush1.xpose.msra.mxu0 0.0
    %1330 = vmatprep.subr.mxu0 0.0
    %1331 = vmatpush1.xpose.msra.mxu0 0.0
    %1332 = vmatprep.subr.mxu0 0.0
    %1333 = vmatpush1.xpose.msra.mxu0 0.0
    %1334 = vmatprep.subr.mxu0 0.0
    %1335 = vmatpush1.xpose.msra.mxu0 0.0
    %1336 = vmatprep.subr.mxu0 0.0
    %1337 = vmatpush1.xpose.msra.mxu0 0.0
    %1338 = vmatprep.subr.mxu0 0.0
    %1339 = vmatpush1.xpose.msra.mxu0 0.0
    %1340 = vmatprep.subr.mxu0 0.0
    %1341 = vmatpush1.xpose.msra.mxu0 0.0
    %1342 = vmatprep.subr.mxu0 0.0
    %1343 = vmatpush1.xpose.msra.mxu0 0.0
    %1344 = vmatprep.subr.mxu0 0.0
    %1345 = vmatpush1.xpose.msra.mxu0 0.0
    %1346 = vmatprep.subr.mxu0 0.0
    %1347 = vmatpush1.xpose.msra.mxu0 0.0
    %1348 = vmatprep.subr.mxu0 0.0
    %1349 = vmatpush1.xpose.msra.mxu0 0.0
    %1350 = vmatprep.subr.mxu0 0.0
    %1351 = vmatpush1.xpose.msra.mxu0 0.0
    %1352 = vmatprep.subr.mxu0 0.0
    %1353 = vmatpush1.xpose.msra.mxu0 0.0
    %1354 = vmatprep.subr.mxu0 0.0
    %1355 = vmatpush1.xpose.msra.mxu0 0.0
    %1356 = vmatprep.subr.mxu0 0.0
    %1357 = vmatpush1.xpose.msra.mxu0 0.0
    %1358 = vmatprep.subr.mxu0 0.0
    %1359 = vmatpush1.xpose.msra.mxu0 0.0
    %1360 = vmatprep.subr.mxu0 0.0
    %1361 = vmatpush1.xpose.msra.mxu0 0.0
    %1362 = vmatprep.subr.mxu0 0.0
    %1363 = vmatpush1.xpose.msra.mxu0 0.0
    %1364 = vmatprep.subr.mxu0 0.0
    %1365 = vmatpush1.xpose.msra.mxu0 0.0
    %1366 = vmatprep.subr.mxu0 0.0
    %1367 = vmatpush1.xpose.msra.mxu0 0.0
    %1368 = vmatprep.subr.mxu0 0.0
    %1369 = vmatpush1.xpose.msra.mxu0 0.0
    %1370 = vmatprep.subr.mxu0 0.0
    %1371 = vmatpush1.xpose.msra.mxu0 0.0
    %1372 = vmatprep.subr.mxu0 0.0
    %1373 = vmatpush1.xpose.msra.mxu0 0.0
    %1374 = vmatprep.subr.mxu0 0.0
    %1375 = vmatpush1.xpose.msra.mxu0 0.0
    %1376 = vmatprep.subr.mxu0 0.0
    %1377 = vmatpush1.xpose.msra.mxu0 0.0
    %1378 = vmatprep.subr.mxu0 0.0
    %1379 = vmatpush1.xpose.msra.mxu0 0.0
    %1380 = vmatprep.subr.mxu0 0.0
    %1381 = vmatpush1.xpose.msra.mxu0 0.0
    %1382 = vmatprep.subr.mxu0 0.0
    %1383 = vmatpush1.xpose.msra.mxu0 0.0
    %1384 = vmatprep.subr.mxu0 0.0
    %1385 = vmatpush1.xpose.msra.mxu0 0.0
    %1386 = vmatprep.mubr.f32.mxu0 0.0
    %1387 = vmatmul.mubr.f32.gmra.mrb[0].mxu0 %v1318
    %v1388 = vpop.f32.mrb[0].mxu0
    %v1389 = vadd.f32 %v1311, %v1388
    %v1390 = vpop.f32.mrb[0].mxu0
    %1391 = vdwg.mxu0
    %v1392 = vmul.f32 %v1389, 0.35355338
    %1393 = vrot.lane.b32.xlu0 %v258, 120
    %v1394 = vpop.permute.xlu0 %1393
    %v1395 = vsel %vm745, %v1394, 0
    %1397 = vmatprep.subr.mxu0 0.0
    %1398 = vmatpush1.xpose.msra.mxu0 %v1395
    %1399 = vmatprep.subr.mxu0 0.0
    %1400 = vmatpush1.xpose.msra.mxu0 0.0
    %1401 = vmatprep.subr.mxu0 0.0
    %1402 = vmatpush1.xpose.msra.mxu0 0.0
    %1403 = vmatprep.subr.mxu0 0.0
    %1404 = vmatpush1.xpose.msra.mxu0 0.0
    %1405 = vmatprep.subr.mxu0 0.0
    %1406 = vmatpush1.xpose.msra.mxu0 0.0
    %1407 = vmatprep.subr.mxu0 0.0
    %1408 = vmatpush1.xpose.msra.mxu0 0.0
    %1409 = vmatprep.subr.mxu0 0.0
    %1410 = vmatpush1.xpose.msra.mxu0 0.0
    %1411 = vmatprep.subr.mxu0 0.0
    %1412 = vmatpush1.xpose.msra.mxu0 0.0
    %1413 = vmatprep.subr.mxu0 0.0
    %1414 = vmatpush1.xpose.msra.mxu0 0.0
    %1415 = vmatprep.subr.mxu0 0.0
    %1416 = vmatpush1.xpose.msra.mxu0 0.0
    %1417 = vmatprep.subr.mxu0 0.0
    %1418 = vmatpush1.xpose.msra.mxu0 0.0
    %1419 = vmatprep.subr.mxu0 0.0
    %1420 = vmatpush1.xpose.msra.mxu0 0.0
    %1421 = vmatprep.subr.mxu0 0.0
    %1422 = vmatpush1.xpose.msra.mxu0 0.0
    %1423 = vmatprep.subr.mxu0 0.0
    %1424 = vmatpush1.xpose.msra.mxu0 0.0
    %1425 = vmatprep.subr.mxu0 0.0
    %1426 = vmatpush1.xpose.msra.mxu0 0.0
    %1427 = vmatprep.subr.mxu0 0.0
    %1428 = vmatpush1.xpose.msra.mxu0 0.0
    %1429 = vmatprep.subr.mxu0 0.0
    %1430 = vmatpush1.xpose.msra.mxu0 0.0
    %1431 = vmatprep.subr.mxu0 0.0
    %1432 = vmatpush1.xpose.msra.mxu0 0.0
    %1433 = vmatprep.subr.mxu0 0.0
    %1434 = vmatpush1.xpose.msra.mxu0 0.0
    %1435 = vmatprep.subr.mxu0 0.0
    %1436 = vmatpush1.xpose.msra.mxu0 0.0
    %1437 = vmatprep.subr.mxu0 0.0
    %1438 = vmatpush1.xpose.msra.mxu0 0.0
    %1439 = vmatprep.subr.mxu0 0.0
    %1440 = vmatpush1.xpose.msra.mxu0 0.0
    %1441 = vmatprep.subr.mxu0 0.0
    %1442 = vmatpush1.xpose.msra.mxu0 0.0
    %1443 = vmatprep.subr.mxu0 0.0
    %1444 = vmatpush1.xpose.msra.mxu0 0.0
    %1445 = vmatprep.subr.mxu0 0.0
    %1446 = vmatpush1.xpose.msra.mxu0 0.0
    %1447 = vmatprep.subr.mxu0 0.0
    %1448 = vmatpush1.xpose.msra.mxu0 0.0
    %1449 = vmatprep.subr.mxu0 0.0
    %1450 = vmatpush1.xpose.msra.mxu0 0.0
    %1451 = vmatprep.subr.mxu0 0.0
    %1452 = vmatpush1.xpose.msra.mxu0 0.0
    %1453 = vmatprep.subr.mxu0 0.0
    %1454 = vmatpush1.xpose.msra.mxu0 0.0
    %1455 = vmatprep.subr.mxu0 0.0
    %1456 = vmatpush1.xpose.msra.mxu0 0.0
    %1457 = vmatprep.subr.mxu0 0.0
    %1458 = vmatpush1.xpose.msra.mxu0 0.0
    %1459 = vmatprep.subr.mxu0 0.0
    %1460 = vmatpush1.xpose.msra.mxu0 0.0
    %1461 = vmatprep.mubr.f32.mxu0 0.0
    %1462 = vmatmul.mubr.f32.gmra.mrb[0].mxu0 %v1240
    %v1463 = vpop.f32.mrb[0].mxu0
    %v1464 = vadd.f32 0.0, %v1463
    %v1465 = vpop.f32.mrb[0].mxu0
    %1466 = vdwg.mxu0
    %1467 = vrot.lane.b32.xlu0 %v571, 120
    %v1468 = vpop.permute.xlu0 %1467
    %v1469 = vsel %vm745, %v1468, 0
    %1471 = vmatprep.subr.mxu0 0.0
    %1472 = vmatpush1.xpose.msra.mxu0 %v1469
    %1473 = vmatprep.subr.mxu0 0.0
    %1474 = vmatpush1.xpose.msra.mxu0 0.0
    %1475 = vmatprep.subr.mxu0 0.0
    %1476 = vmatpush1.xpose.msra.mxu0 0.0
    %1477 = vmatprep.subr.mxu0 0.0
    %1478 = vmatpush1.xpose.msra.mxu0 0.0
    %1479 = vmatprep.subr.mxu0 0.0
    %1480 = vmatpush1.xpose.msra.mxu0 0.0
    %1481 = vmatprep.subr.mxu0 0.0
    %1482 = vmatpush1.xpose.msra.mxu0 0.0
    %1483 = vmatprep.subr.mxu0 0.0
    %1484 = vmatpush1.xpose.msra.mxu0 0.0
    %1485 = vmatprep.subr.mxu0 0.0
    %1486 = vmatpush1.xpose.msra.mxu0 0.0
    %1487 = vmatprep.subr.mxu0 0.0
    %1488 = vmatpush1.xpose.msra.mxu0 0.0
    %1489 = vmatprep.subr.mxu0 0.0
    %1490 = vmatpush1.xpose.msra.mxu0 0.0
    %1491 = vmatprep.subr.mxu0 0.0
    %1492 = vmatpush1.xpose.msra.mxu0 0.0
    %1493 = vmatprep.subr.mxu0 0.0
    %1494 = vmatpush1.xpose.msra.mxu0 0.0
    %1495 = vmatprep.subr.mxu0 0.0
    %1496 = vmatpush1.xpose.msra.mxu0 0.0
    %1497 = vmatprep.subr.mxu0 0.0
    %1498 = vmatpush1.xpose.msra.mxu0 0.0
    %1499 = vmatprep.subr.mxu0 0.0
    %1500 = vmatpush1.xpose.msra.mxu0 0.0
    %1501 = vmatprep.subr.mxu0 0.0
    %1502 = vmatpush1.xpose.msra.mxu0 0.0
    %1503 = vmatprep.subr.mxu0 0.0
    %1504 = vmatpush1.xpose.msra.mxu0 0.0
    %1505 = vmatprep.subr.mxu0 0.0
    %1506 = vmatpush1.xpose.msra.mxu0 0.0
    %1507 = vmatprep.subr.mxu0 0.0
    %1508 = vmatpush1.xpose.msra.mxu0 0.0
    %1509 = vmatprep.subr.mxu0 0.0
    %1510 = vmatpush1.xpose.msra.mxu0 0.0
    %1511 = vmatprep.subr.mxu0 0.0
    %1512 = vmatpush1.xpose.msra.mxu0 0.0
    %1513 = vmatprep.subr.mxu0 0.0
    %1514 = vmatpush1.xpose.msra.mxu0 0.0
    %1515 = vmatprep.subr.mxu0 0.0
    %1516 = vmatpush1.xpose.msra.mxu0 0.0
    %1517 = vmatprep.subr.mxu0 0.0
    %1518 = vmatpush1.xpose.msra.mxu0 0.0
    %1519 = vmatprep.subr.mxu0 0.0
    %1520 = vmatpush1.xpose.msra.mxu0 0.0
    %1521 = vmatprep.subr.mxu0 0.0
    %1522 = vmatpush1.xpose.msra.mxu0 0.0
    %1523 = vmatprep.subr.mxu0 0.0
    %1524 = vmatpush1.xpose.msra.mxu0 0.0
    %1525 = vmatprep.subr.mxu0 0.0
    %1526 = vmatpush1.xpose.msra.mxu0 0.0
    %1527 = vmatprep.subr.mxu0 0.0
    %1528 = vmatpush1.xpose.msra.mxu0 0.0
    %1529 = vmatprep.subr.mxu0 0.0
    %1530 = vmatpush1.xpose.msra.mxu0 0.0
    %1531 = vmatprep.subr.mxu0 0.0
    %1532 = vmatpush1.xpose.msra.mxu0 0.0
    %1533 = vmatprep.subr.mxu0 0.0
    %1534 = vmatpush1.xpose.msra.mxu0 0.0
    %1535 = vmatprep.mubr.f32.mxu0 0.0
    %1536 = vmatmul.mubr.f32.gmra.mrb[0].mxu0 %v1318
    %v1537 = vpop.f32.mrb[0].mxu0
    %v1538 = vadd.f32 %v1464, %v1537
    %v1539 = vpop.f32.mrb[0].mxu0
    %1540 = vdwg.mxu0
    %v1541 = vmul.f32 %v1538, 0.35355338
    %v1542 = vsel %vm745, %v1392, -inf
    %v1543 = vrot.slane %v1542, 4
    %v1544 = vmax.f32 %v1542, %v1543
    %v1545 = vrot.slane %v1544, 2
    %v1546 = vmax.f32 %v1544, %v1545
    %v1547 = vrot.slane %v1546, 1
    %v1548 = vmax.f32 %v1546, %v1547
    %v1549 = vsub.f32 %v1392, %v1548
    %v1550 = vmul.f32 %v1549, 1.442695
    %v1551 = vpow.pop %v1550
    %v1552 = vsel %vm745, %v1551, 0.0
    %v1553 = vrot.slane %v1552, 4
    %v1554 = vadd.f32 %v1552, %v1553
    %v1555 = vrot.slane %v1554, 2
    %v1556 = vadd.f32 %v1554, %v1555
    %v1557 = vrot.slane %v1556, 1
    %v1558 = vadd.f32 %v1556, %v1557
    %v1559 = vrcp.pop %v1558
    %v1560 = vmul.f32 %v1551, %v1559
    %v1561 = vsel %vm745, %v1541, -inf
    %v1562 = vrot.slane %v1561, 4
    %v1563 = vmax.f32 %v1561, %v1562
    %v1564 = vrot.slane %v1563, 2
    %v1565 = vmax.f32 %v1563, %v1564
    %v1566 = vrot.slane %v1565, 1
    %v1567 = vmax.f32 %v1565, %v1566
    %v1568 = vsub.f32 %v1541, %v1567
    %v1569 = vmul.f32 %v1568, 1.442695
    %v1570 = vpow.pop %v1569
    %v1571 = vsel %vm745, %v1570, 0.0
    %v1572 = vrot.slane %v1571, 4
    %v1573 = vadd.f32 %v1571, %v1572
    %v1574 = vrot.slane %v1573, 2
    %v1575 = vadd.f32 %v1573, %v1574
    %v1576 = vrot.slane %v1575, 1
    %v1577 = vadd.f32 %v1575, %v1576
    %v1578 = vrcp.pop %v1577
    %v1579 = vmul.f32 %v1570, %v1578
    %1580 = vrot.lane.b32.xlu0 %v571, 88
    %v1581 = vpop.permute.xlu0 %1580
    %v1584 = vsel %vm745, %v1579, 0
    %1586 = vmatprep.subr.mxu0 0.0
    %1587 = vmatpush1.msra.mxu0 %v1581
    %1588 = vmatprep.subr.mxu0 0.0
    %1589 = vmatpush1.msra.mxu0 0.0
    %1590 = vmatprep.subr.mxu0 0.0
    %1591 = vmatpush1.msra.mxu0 0.0
    %1592 = vmatprep.subr.mxu0 0.0
    %1593 = vmatpush1.msra.mxu0 0.0
    %1594 = vmatprep.subr.mxu0 0.0
    %1595 = vmatpush1.msra.mxu0 0.0
    %1596 = vmatprep.subr.mxu0 0.0
    %1597 = vmatpush1.msra.mxu0 0.0
    %1598 = vmatprep.subr.mxu0 0.0
    %1599 = vmatpush1.msra.mxu0 0.0
    %1600 = vmatprep.subr.mxu0 0.0
    %1601 = vmatpush1.msra.mxu0 0.0
    %1602 = vmatprep.subr.mxu0 0.0
    %1603 = vmatpush1.msra.mxu0 0.0
    %1604 = vmatprep.subr.mxu0 0.0
    %1605 = vmatpush1.msra.mxu0 0.0
    %1606 = vmatprep.subr.mxu0 0.0
    %1607 = vmatpush1.msra.mxu0 0.0
    %1608 = vmatprep.subr.mxu0 0.0
    %1609 = vmatpush1.msra.mxu0 0.0
    %1610 = vmatprep.subr.mxu0 0.0
    %1611 = vmatpush1.msra.mxu0 0.0
    %1612 = vmatprep.subr.mxu0 0.0
    %1613 = vmatpush1.msra.mxu0 0.0
    %1614 = vmatprep.subr.mxu0 0.0
    %1615 = vmatpush1.msra.mxu0 0.0
    %1616 = vmatprep.subr.mxu0 0.0
    %1617 = vmatpush1.msra.mxu0 0.0
    %1618 = vmatprep.subr.mxu0 0.0
    %1619 = vmatpush1.msra.mxu0 0.0
    %1620 = vmatprep.subr.mxu0 0.0
    %1621 = vmatpush1.msra.mxu0 0.0
    %1622 = vmatprep.subr.mxu0 0.0
    %1623 = vmatpush1.msra.mxu0 0.0
    %1624 = vmatprep.subr.mxu0 0.0
    %1625 = vmatpush1.msra.mxu0 0.0
    %1626 = vmatprep.subr.mxu0 0.0
    %1627 = vmatpush1.msra.mxu0 0.0
    %1628 = vmatprep.subr.mxu0 0.0
    %1629 = vmatpush1.msra.mxu0 0.0
    %1630 = vmatprep.subr.mxu0 0.0
    %1631 = vmatpush1.msra.mxu0 0.0
    %1632 = vmatprep.subr.mxu0 0.0
    %1633 = vmatpush1.msra.mxu0 0.0
    %1634 = vmatprep.subr.mxu0 0.0
    %1635 = vmatpush1.msra.mxu0 0.0
    %1636 = vmatprep.subr.mxu0 0.0
    %1637 = vmatpush1.msra.mxu0 0.0
    %1638 = vmatprep.subr.mxu0 0.0
    %1639 = vmatpush1.msra.mxu0 0.0
    %1640 = vmatprep.subr.mxu0 0.0
    %1641 = vmatpush1.msra.mxu0 0.0
    %1642 = vmatprep.subr.mxu0 0.0
    %1643 = vmatpush1.msra.mxu0 0.0
    %1644 = vmatprep.subr.mxu0 0.0
    %1645 = vmatpush1.msra.mxu0 0.0
    %1646 = vmatprep.subr.mxu0 0.0
    %1647 = vmatpush1.msra.mxu0 0.0
    %1648 = vmatprep.subr.mxu0 0.0
    %1649 = vmatpush1.msra.mxu0 0.0
    %1650 = vmatprep.mubr.f32.mxu0 0.0
    %1651 = vmatmul.mubr.f32.gmra.mrb[0].mxu0 %v1584
    %v1652 = vpop.f32.mrb[0].mxu0
    %v1653 = vadd.f32 0.0, %v1652
    %v1654 = vpop.f32.mrb[0].mxu0
    %1655 = vdwg.mxu0
    %1656 = vrot.lane.b32.xlu0 %v652, 88
    %v1657 = vpop.permute.xlu0 %1656
    %v1660 = vsel %vm745, %v1560, 0
    %1662 = vmatprep.subr.mxu0 0.0
    %1663 = vmatpush1.msra.mxu0 %v1657
    %1664 = vmatprep.subr.mxu0 0.0
    %1665 = vmatpush1.msra.mxu0 0.0
    %1666 = vmatprep.subr.mxu0 0.0
    %1667 = vmatpush1.msra.mxu0 0.0
    %1668 = vmatprep.subr.mxu0 0.0
    %1669 = vmatpush1.msra.mxu0 0.0
    %1670 = vmatprep.subr.mxu0 0.0
    %1671 = vmatpush1.msra.mxu0 0.0
    %1672 = vmatprep.subr.mxu0 0.0
    %1673 = vmatpush1.msra.mxu0 0.0
    %1674 = vmatprep.subr.mxu0 0.0
    %1675 = vmatpush1.msra.mxu0 0.0
    %1676 = vmatprep.subr.mxu0 0.0
    %1677 = vmatpush1.msra.mxu0 0.0
    %1678 = vmatprep.subr.mxu0 0.0
    %1679 = vmatpush1.msra.mxu0 0.0
    %1680 = vmatprep.subr.mxu0 0.0
    %1681 = vmatpush1.msra.mxu0 0.0
    %1682 = vmatprep.subr.mxu0 0.0
    %1683 = vmatpush1.msra.mxu0 0.0
    %1684 = vmatprep.subr.mxu0 0.0
    %1685 = vmatpush1.msra.mxu0 0.0
    %1686 = vmatprep.subr.mxu0 0.0
    %1687 = vmatpush1.msra.mxu0 0.0
    %1688 = vmatprep.subr.mxu0 0.0
    %1689 = vmatpush1.msra.mxu0 0.0
    %1690 = vmatprep.subr.mxu0 0.0
    %1691 = vmatpush1.msra.mxu0 0.0
    %1692 = vmatprep.subr.mxu0 0.0
    %1693 = vmatpush1.msra.mxu0 0.0
    %1694 = vmatprep.subr.mxu0 0.0
    %1695 = vmatpush1.msra.mxu0 0.0
    %1696 = vmatprep.subr.mxu0 0.0
    %1697 = vmatpush1.msra.mxu0 0.0
    %1698 = vmatprep.subr.mxu0 0.0
    %1699 = vmatpush1.msra.mxu0 0.0
    %1700 = vmatprep.subr.mxu0 0.0
    %1701 = vmatpush1.msra.mxu0 0.0
    %1702 = vmatprep.subr.mxu0 0.0
    %1703 = vmatpush1.msra.mxu0 0.0
    %1704 = vmatprep.subr.mxu0 0.0
    %1705 = vmatpush1.msra.mxu0 0.0
    %1706 = vmatprep.subr.mxu0 0.0
    %1707 = vmatpush1.msra.mxu0 0.0
    %1708 = vmatprep.subr.mxu0 0.0
    %1709 = vmatpush1.msra.mxu0 0.0
    %1710 = vmatprep.subr.mxu0 0.0
    %1711 = vmatpush1.msra.mxu0 0.0
    %1712 = vmatprep.subr.mxu0 0.0
    %1713 = vmatpush1.msra.mxu0 0.0
    %1714 = vmatprep.subr.mxu0 0.0
    %1715 = vmatpush1.msra.mxu0 0.0
    %1716 = vmatprep.subr.mxu0 0.0
    %1717 = vmatpush1.msra.mxu0 0.0
    %1718 = vmatprep.subr.mxu0 0.0
    %1719 = vmatpush1.msra.mxu0 0.0
    %1720 = vmatprep.subr.mxu0 0.0
    %1721 = vmatpush1.msra.mxu0 0.0
    %1722 = vmatprep.subr.mxu0 0.0
    %1723 = vmatpush1.msra.mxu0 0.0
    %1724 = vmatprep.subr.mxu0 0.0
    %1725 = vmatpush1.msra.mxu0 0.0
    %1726 = vmatprep.mubr.f32.mxu0 0.0
    %1727 = vmatmul.mubr.f32.gmra.mrb[0].mxu0 %v1660
    %v1728 = vpop.f32.mrb[0].mxu0
    %v1729 = vadd.f32 %v1653, %v1728
    %v1730 = vpop.f32.mrb[0].mxu0
    %1731 = vdwg.mxu0
    %v1733 = vsel %vm745, %v1729, 0
    %1735 = vmatprep.subr.mxu0 0.0
    %1736 = vmatpush1.msra.mxu0 %v260
    %1737 = vmatprep.subr.mxu0 0.0
    %1738 = vmatpush1.msra.mxu0 0.0
    %1739 = vmatprep.subr.mxu0 0.0
    %1740 = vmatpush1.msra.mxu0 0.0
    %1741 = vmatprep.subr.mxu0 0.0
    %1742 = vmatpush1.msra.mxu0 0.0
    %1743 = vmatprep.subr.mxu0 0.0
    %1744 = vmatpush1.msra.mxu0 0.0
    %1745 = vmatprep.subr.mxu0 0.0
    %1746 = vmatpush1.msra.mxu0 0.0
    %1747 = vmatprep.subr.mxu0 0.0
    %1748 = vmatpush1.msra.mxu0 0.0
    %1749 = vmatprep.subr.mxu0 0.0
    %1750 = vmatpush1.msra.mxu0 0.0
    %1751 = vmatprep.subr.mxu0 0.0
    %1752 = vmatpush1.msra.mxu0 0.0
    %1753 = vmatprep.subr.mxu0 0.0
    %1754 = vmatpush1.msra.mxu0 0.0
    %1755 = vmatprep.subr.mxu0 0.0
    %1756 = vmatpush1.msra.mxu0 0.0
    %1757 = vmatprep.subr.mxu0 0.0
    %1758 = vmatpush1.msra.mxu0 0.0
    %1759 = vmatprep.subr.mxu0 0.0
    %1760 = vmatpush1.msra.mxu0 0.0
    %1761 = vmatprep.subr.mxu0 0.0
    %1762 = vmatpush1.msra.mxu0 0.0
    %1763 = vmatprep.subr.mxu0 0.0
    %1764 = vmatpush1.msra.mxu0 0.0
    %1765 = vmatprep.subr.mxu0 0.0
    %1766 = vmatpush1.msra.mxu0 0.0
    %1767 = vmatprep.subr.mxu0 0.0
    %1768 = vmatpush1.msra.mxu0 0.0
    %1769 = vmatprep.subr.mxu0 0.0
    %1770 = vmatpush1.msra.mxu0 0.0
    %1771 = vmatprep.subr.mxu0 0.0
    %1772 = vmatpush1.msra.mxu0 0.0
    %1773 = vmatprep.subr.mxu0 0.0
    %1774 = vmatpush1.msra.mxu0 0.0
    %1775 = vmatprep.subr.mxu0 0.0
    %1776 = vmatpush1.msra.mxu0 0.0
    %1777 = vmatprep.subr.mxu0 0.0
    %1778 = vmatpush1.msra.mxu0 0.0
    %1779 = vmatprep.subr.mxu0 0.0
    %1780 = vmatpush1.msra.mxu0 0.0
    %1781 = vmatprep.subr.mxu0 0.0
    %1782 = vmatpush1.msra.mxu0 0.0
    %1783 = vmatprep.subr.mxu0 0.0
    %1784 = vmatpush1.msra.mxu0 0.0
    %1785 = vmatprep.subr.mxu0 0.0
    %1786 = vmatpush1.msra.mxu0 0.0
    %1787 = vmatprep.subr.mxu0 0.0
    %1788 = vmatpush1.msra.mxu0 0.0
    %1789 = vmatprep.subr.mxu0 0.0
    %1790 = vmatpush1.msra.mxu0 0.0
    %1791 = vmatprep.subr.mxu0 0.0
    %1792 = vmatpush1.msra.mxu0 0.0
    %1793 = vmatprep.subr.mxu0 0.0
    %1794 = vmatpush1.msra.mxu0 0.0
    %1795 = vmatprep.subr.mxu0 0.0
    %1796 = vmatpush1.msra.mxu0 0.0
    %1797 = vmatprep.subr.mxu0 0.0
    %1798 = vmatpush1.msra.mxu0 0.0
    %1799 = vmatprep.mubr.f32.mxu0 0.0
    %1800 = vmatmul.mubr.f32.gmra.mrb[0].mxu0 %v1733
    %v1801 = vpop.f32.mrb[0].mxu0
    %v1802 = vadd.f32 0.0, %v1801
    %v1803 = vpop.f32.mrb[0].mxu0
    %1804 = vdwg.mxu0
    %v1806 = vsel %vm745, %v1233, 0
    %1808 = vmatprep.subr.mxu0 0.0
    %1809 = vmatpush1.msra.mxu0 %v259
    %1810 = vmatprep.subr.mxu0 0.0
    %1811 = vmatpush1.msra.mxu0 0.0
    %1812 = vmatprep.subr.mxu0 0.0
    %1813 = vmatpush1.msra.mxu0 0.0
    %1814 = vmatprep.subr.mxu0 0.0
    %1815 = vmatpush1.msra.mxu0 0.0
    %1816 = vmatprep.subr.mxu0 0.0
    %1817 = vmatpush1.msra.mxu0 0.0
    %1818 = vmatprep.subr.mxu0 0.0
    %1819 = vmatpush1.msra.mxu0 0.0
    %1820 = vmatprep.subr.mxu0 0.0
    %1821 = vmatpush1.msra.mxu0 0.0
    %1822 = vmatprep.subr.mxu0 0.0
    %1823 = vmatpush1.msra.mxu0 0.0
    %1824 = vmatprep.subr.mxu0 0.0
    %1825 = vmatpush1.msra.mxu0 0.0
    %1826 = vmatprep.subr.mxu0 0.0
    %1827 = vmatpush1.msra.mxu0 0.0
    %1828 = vmatprep.subr.mxu0 0.0
    %1829 = vmatpush1.msra.mxu0 0.0
    %1830 = vmatprep.subr.mxu0 0.0
    %1831 = vmatpush1.msra.mxu0 0.0
    %1832 = vmatprep.subr.mxu0 0.0
    %1833 = vmatpush1.msra.mxu0 0.0
    %1834 = vmatprep.subr.mxu0 0.0
    %1835 = vmatpush1.msra.mxu0 0.0
    %1836 = vmatprep.subr.mxu0 0.0
    %1837 = vmatpush1.msra.mxu0 0.0
    %1838 = vmatprep.subr.mxu0 0.0
    %1839 = vmatpush1.msra.mxu0 0.0
    %1840 = vmatprep.subr.mxu0 0.0
    %1841 = vmatpush1.msra.mxu0 0.0
    %1842 = vmatprep.subr.mxu0 0.0
    %1843 = vmatpush1.msra.mxu0 0.0
    %1844 = vmatprep.subr.mxu0 0.0
    %1845 = vmatpush1.msra.mxu0 0.0
    %1846 = vmatprep.subr.mxu0 0.0
    %1847 = vmatpush1.msra.mxu0 0.0
    %1848 = vmatprep.subr.mxu0 0.0
    %1849 = vmatpush1.msra.mxu0 0.0
    %1850 = vmatprep.subr.mxu0 0.0
    %1851 = vmatpush1.msra.mxu0 0.0
    %1852 = vmatprep.subr.mxu0 0.0
    %1853 = vmatpush1.msra.mxu0 0.0
    %1854 = vmatprep.subr.mxu0 0.0
    %1855 = vmatpush1.msra.mxu0 0.0
    %1856 = vmatprep.subr.mxu0 0.0
    %1857 = vmatpush1.msra.mxu0 0.0
    %1858 = vmatprep.subr.mxu0 0.0
    %1859 = vmatpush1.msra.mxu0 0.0
    %1860 = vmatprep.subr.mxu0 0.0
    %1861 = vmatpush1.msra.mxu0 0.0
    %1862 = vmatprep.subr.mxu0 0.0
    %1863 = vmatpush1.msra.mxu0 0.0
    %1864 = vmatprep.subr.mxu0 0.0
    %1865 = vmatpush1.msra.mxu0 0.0
    %1866 = vmatprep.subr.mxu0 0.0
    %1867 = vmatpush1.msra.mxu0 0.0
    %1868 = vmatprep.subr.mxu0 0.0
    %1869 = vmatpush1.msra.mxu0 0.0
    %1870 = vmatprep.subr.mxu0 0.0
    %1871 = vmatpush1.msra.mxu0 0.0
    %1872 = vmatprep.mubr.f32.mxu0 0.0
    %1873 = vmatmul.mubr.f32.gmra.mrb[0].mxu0 %v1806
    %v1874 = vpop.f32.mrb[0].mxu0
    %v1875 = vadd.f32 %v1802, %v1874
    %v1876 = vpop.f32.mrb[0].mxu0
    %1877 = vdwg.mxu0
    %1878 = vrot.lane.b32.xlu0 %v492, 112
    %v1879 = vpop.permute.xlu0 %1878
    %1880 = vrot.lane.b32.xlu0 %v257, 112
    %v1881 = vpop.permute.xlu0 %1880
    %v1882 = vsel %vm745, %v1879, 0
    %v1884 = vsel %vm745, %v1881, 0
    %1886 = vmatprep.subr.mxu0 0.0
    %1887 = vmatpush1.xpose.msra.mxu0 %v1884
    %1888 = vmatprep.subr.mxu0 0.0
    %1889 = vmatpush1.xpose.msra.mxu0 0.0
    %1890 = vmatprep.subr.mxu0 0.0
    %1891 = vmatpush1.xpose.msra.mxu0 0.0
    %1892 = vmatprep.subr.mxu0 0.0
    %1893 = vmatpush1.xpose.msra.mxu0 0.0
    %1894 = vmatprep.subr.mxu0 0.0
    %1895 = vmatpush1.xpose.msra.mxu0 0.0
    %1896 = vmatprep.subr.mxu0 0.0
    %1897 = vmatpush1.xpose.msra.mxu0 0.0
    %1898 = vmatprep.subr.mxu0 0.0
    %1899 = vmatpush1.xpose.msra.mxu0 0.0
    %1900 = vmatprep.subr.mxu0 0.0
    %1901 = vmatpush1.xpose.msra.mxu0 0.0
    %1902 = vmatprep.subr.mxu0 0.0
    %1903 = vmatpush1.xpose.msra.mxu0 0.0
    %1904 = vmatprep.subr.mxu0 0.0
    %1905 = vmatpush1.xpose.msra.mxu0 0.0
    %1906 = vmatprep.subr.mxu0 0.0
    %1907 = vmatpush1.xpose.msra.mxu0 0.0
    %1908 = vmatprep.subr.mxu0 0.0
    %1909 = vmatpush1.xpose.msra.mxu0 0.0
    %1910 = vmatprep.subr.mxu0 0.0
    %1911 = vmatpush1.xpose.msra.mxu0 0.0
    %1912 = vmatprep.subr.mxu0 0.0
    %1913 = vmatpush1.xpose.msra.mxu0 0.0
    %1914 = vmatprep.subr.mxu0 0.0
    %1915 = vmatpush1.xpose.msra.mxu0 0.0
    %1916 = vmatprep.subr.mxu0 0.0
    %1917 = vmatpush1.xpose.msra.mxu0 0.0
    %1918 = vmatprep.subr.mxu0 0.0
    %1919 = vmatpush1.xpose.msra.mxu0 0.0
    %1920 = vmatprep.subr.mxu0 0.0
    %1921 = vmatpush1.xpose.msra.mxu0 0.0
    %1922 = vmatprep.subr.mxu0 0.0
    %1923 = vmatpush1.xpose.msra.mxu0 0.0
    %1924 = vmatprep.subr.mxu0 0.0
    %1925 = vmatpush1.xpose.msra.mxu0 0.0
    %1926 = vmatprep.subr.mxu0 0.0
    %1927 = vmatpush1.xpose.msra.mxu0 0.0
    %1928 = vmatprep.subr.mxu0 0.0
    %1929 = vmatpush1.xpose.msra.mxu0 0.0
    %1930 = vmatprep.subr.mxu0 0.0
    %1931 = vmatpush1.xpose.msra.mxu0 0.0
    %1932 = vmatprep.subr.mxu0 0.0
    %1933 = vmatpush1.xpose.msra.mxu0 0.0
    %1934 = vmatprep.subr.mxu0 0.0
    %1935 = vmatpush1.xpose.msra.mxu0 0.0
    %1936 = vmatprep.subr.mxu0 0.0
    %1937 = vmatpush1.xpose.msra.mxu0 0.0
    %1938 = vmatprep.subr.mxu0 0.0
    %1939 = vmatpush1.xpose.msra.mxu0 0.0
    %1940 = vmatprep.subr.mxu0 0.0
    %1941 = vmatpush1.xpose.msra.mxu0 0.0
    %1942 = vmatprep.subr.mxu0 0.0
    %1943 = vmatpush1.xpose.msra.mxu0 0.0
    %1944 = vmatprep.subr.mxu0 0.0
    %1945 = vmatpush1.xpose.msra.mxu0 0.0
    %1946 = vmatprep.subr.mxu0 0.0
    %1947 = vmatpush1.xpose.msra.mxu0 0.0
    %1948 = vmatprep.subr.mxu0 0.0
    %1949 = vmatpush1.xpose.msra.mxu0 0.0
    %1950 = vmatprep.mubr.f32.mxu0 0.0
    %1951 = vmatmul.mubr.f32.gmra.mrb[0].mxu0 %v1882
    %v1952 = vpop.f32.mrb[0].mxu0
    %v1953 = vadd.f32 0.0, %v1952
    %v1954 = vpop.f32.mrb[0].mxu0
    %1955 = vdwg.mxu0
    %1956 = vrot.lane.b32.xlu0 %v405, 112
    %v1957 = vpop.permute.xlu0 %1956
    %1958 = vrot.lane.b32.xlu0 %v652, 112
    %v1959 = vpop.permute.xlu0 %1958
    %v1960 = vsel %vm745, %v1957, 0
    %v1962 = vsel %vm745, %v1959, 0
    %1964 = vmatprep.subr.mxu0 0.0
    %1965 = vmatpush1.xpose.msra.mxu0 %v1962
    %1966 = vmatprep.subr.mxu0 0.0
    %1967 = vmatpush1.xpose.msra.mxu0 0.0
    %1968 = vmatprep.subr.mxu0 0.0
    %1969 = vmatpush1.xpose.msra.mxu0 0.0
    %1970 = vmatprep.subr.mxu0 0.0
    %1971 = vmatpush1.xpose.msra.mxu0 0.0
    %1972 = vmatprep.subr.mxu0 0.0
    %1973 = vmatpush1.xpose.msra.mxu0 0.0
    %1974 = vmatprep.subr.mxu0 0.0
    %1975 = vmatpush1.xpose.msra.mxu0 0.0
    %1976 = vmatprep.subr.mxu0 0.0
    %1977 = vmatpush1.xpose.msra.mxu0 0.0
    %1978 = vmatprep.subr.mxu0 0.0
    %1979 = vmatpush1.xpose.msra.mxu0 0.0
    %1980 = vmatprep.subr.mxu0 0.0
    %1981 = vmatpush1.xpose.msra.mxu0 0.0
    %1982 = vmatprep.subr.mxu0 0.0
    %1983 = vmatpush1.xpose.msra.mxu0 0.0
    %1984 = vmatprep.subr.mxu0 0.0
    %1985 = vmatpush1.xpose.msra.mxu0 0.0
    %1986 = vmatprep.subr.mxu0 0.0
    %1987 = vmatpush1.xpose.msra.mxu0 0.0
    %1988 = vmatprep.subr.mxu0 0.0
    %1989 = vmatpush1.xpose.msra.mxu0 0.0
    %1990 = vmatprep.subr.mxu0 0.0
    %1991 = vmatpush1.xpose.msra.mxu0 0.0
    %1992 = vmatprep.subr.mxu0 0.0
    %1993 = vmatpush1.xpose.msra.mxu0 0.0
    %1994 = vmatprep.subr.mxu0 0.0
    %1995 = vmatpush1.xpose.msra.mxu0 0.0
    %1996 = vmatprep.subr.mxu0 0.0
    %1997 = vmatpush1.xpose.msra.mxu0 0.0
    %1998 = vmatprep.subr.mxu0 0.0
    %1999 = vmatpush1.xpose.msra.mxu0 0.0
    %2000 = vmatprep.subr.mxu0 0.0
    %2001 = vmatpush1.xpose.msra.mxu0 0.0
    %2002 = vmatprep.subr.mxu0 0.0
    %2003 = vmatpush1.xpose.msra.mxu0 0.0
    %2004 = vmatprep.subr.mxu0 0.0
    %2005 = vmatpush1.xpose.msra.mxu0 0.0
    %2006 = vmatprep.subr.mxu0 0.0
    %2007 = vmatpush1.xpose.msra.mxu0 0.0
    %2008 = vmatprep.subr.mxu0 0.0
    %2009 = vmatpush1.xpose.msra.mxu0 0.0
    %2010 = vmatprep.subr.mxu0 0.0
    %2011 = vmatpush1.xpose.msra.mxu0 0.0
    %2012 = vmatprep.subr.mxu0 0.0
    %2013 = vmatpush1.xpose.msra.mxu0 0.0
    %2014 = vmatprep.subr.mxu0 0.0
    %2015 = vmatpush1.xpose.msra.mxu0 0.0
    %2016 = vmatprep.subr.mxu0 0.0
    %2017 = vmatpush1.xpose.msra.mxu0 0.0
    %2018 = vmatprep.subr.mxu0 0.0
    %2019 = vmatpush1.xpose.msra.mxu0 0.0
    %2020 = vmatprep.subr.mxu0 0.0
    %2021 = vmatpush1.xpose.msra.mxu0 0.0
    %2022 = vmatprep.subr.mxu0 0.0
    %2023 = vmatpush1.xpose.msra.mxu0 0.0
    %2024 = vmatprep.subr.mxu0 0.0
    %2025 = vmatpush1.xpose.msra.mxu0 0.0
    %2026 = vmatprep.subr.mxu0 0.0
    %2027 = vmatpush1.xpose.msra.mxu0 0.0
    %2028 = vmatprep.mubr.f32.mxu0 0.0
    %2029 = vmatmul.mubr.f32.gmra.mrb[0].mxu0 %v1960
    %v2030 = vpop.f32.mrb[0].mxu0
    %v2031 = vadd.f32 %v1953, %v2030
    %v2032 = vpop.f32.mrb[0].mxu0
    %2033 = vdwg.mxu0
    %v2034 = vmul.f32 %v2031, 0.35355338
    %2035 = vrot.lane.b32.xlu0 %v258, 112
    %v2036 = vpop.permute.xlu0 %2035
    %v2037 = vsel %vm745, %v2036, 0
    %2039 = vmatprep.subr.mxu0 0.0
    %2040 = vmatpush1.xpose.msra.mxu0 %v2037
    %2041 = vmatprep.subr.mxu0 0.0
    %2042 = vmatpush1.xpose.msra.mxu0 0.0
    %2043 = vmatprep.subr.mxu0 0.0
    %2044 = vmatpush1.xpose.msra.mxu0 0.0
    %2045 = vmatprep.subr.mxu0 0.0
    %2046 = vmatpush1.xpose.msra.mxu0 0.0
    %2047 = vmatprep.subr.mxu0 0.0
    %2048 = vmatpush1.xpose.msra.mxu0 0.0
    %2049 = vmatprep.subr.mxu0 0.0
    %2050 = vmatpush1.xpose.msra.mxu0 0.0
    %2051 = vmatprep.subr.mxu0 0.0
    %2052 = vmatpush1.xpose.msra.mxu0 0.0
    %2053 = vmatprep.subr.mxu0 0.0
    %2054 = vmatpush1.xpose.msra.mxu0 0.0
    %2055 = vmatprep.subr.mxu0 0.0
    %2056 = vmatpush1.xpose.msra.mxu0 0.0
    %2057 = vmatprep.subr.mxu0 0.0
    %2058 = vmatpush1.xpose.msra.mxu0 0.0
    %2059 = vmatprep.subr.mxu0 0.0
    %2060 = vmatpush1.xpose.msra.mxu0 0.0
    %2061 = vmatprep.subr.mxu0 0.0
    %2062 = vmatpush1.xpose.msra.mxu0 0.0
    %2063 = vmatprep.subr.mxu0 0.0
    %2064 = vmatpush1.xpose.msra.mxu0 0.0
    %2065 = vmatprep.subr.mxu0 0.0
    %2066 = vmatpush1.xpose.msra.mxu0 0.0
    %2067 = vmatprep.subr.mxu0 0.0
    %2068 = vmatpush1.xpose.msra.mxu0 0.0
    %2069 = vmatprep.subr.mxu0 0.0
    %2070 = vmatpush1.xpose.msra.mxu0 0.0
    %2071 = vmatprep.subr.mxu0 0.0
    %2072 = vmatpush1.xpose.msra.mxu0 0.0
    %2073 = vmatprep.subr.mxu0 0.0
    %2074 = vmatpush1.xpose.msra.mxu0 0.0
    %2075 = vmatprep.subr.mxu0 0.0
    %2076 = vmatpush1.xpose.msra.mxu0 0.0
    %2077 = vmatprep.subr.mxu0 0.0
    %2078 = vmatpush1.xpose.msra.mxu0 0.0
    %2079 = vmatprep.subr.mxu0 0.0
    %2080 = vmatpush1.xpose.msra.mxu0 0.0
    %2081 = vmatprep.subr.mxu0 0.0
    %2082 = vmatpush1.xpose.msra.mxu0 0.0
    %2083 = vmatprep.subr.mxu0 0.0
    %2084 = vmatpush1.xpose.msra.mxu0 0.0
    %2085 = vmatprep.subr.mxu0 0.0
    %2086 = vmatpush1.xpose.msra.mxu0 0.0
    %2087 = vmatprep.subr.mxu0 0.0
    %2088 = vmatpush1.xpose.msra.mxu0 0.0
    %2089 = vmatprep.subr.mxu0 0.0
    %2090 = vmatpush1.xpose.msra.mxu0 0.0
    %2091 = vmatprep.subr.mxu0 0.0
    %2092 = vmatpush1.xpose.msra.mxu0 0.0
    %2093 = vmatprep.subr.mxu0 0.0
    %2094 = vmatpush1.xpose.msra.mxu0 0.0
    %2095 = vmatprep.subr.mxu0 0.0
    %2096 = vmatpush1.xpose.msra.mxu0 0.0
    %2097 = vmatprep.subr.mxu0 0.0
    %2098 = vmatpush1.xpose.msra.mxu0 0.0
    %2099 = vmatprep.subr.mxu0 0.0
    %2100 = vmatpush1.xpose.msra.mxu0 0.0
    %2101 = vmatprep.subr.mxu0 0.0
    %2102 = vmatpush1.xpose.msra.mxu0 0.0
    %2103 = vmatprep.mubr.f32.mxu0 0.0
    %2104 = vmatmul.mubr.f32.gmra.mrb[0].mxu0 %v1882
    %v2105 = vpop.f32.mrb[0].mxu0
    %v2106 = vadd.f32 0.0, %v2105
    %v2107 = vpop.f32.mrb[0].mxu0
    %2108 = vdwg.mxu0
    %2109 = vrot.lane.b32.xlu0 %v571, 112
    %v2110 = vpop.permute.xlu0 %2109
    %v2111 = vsel %vm745, %v2110, 0
    %2113 = vmatprep.subr.mxu0 0.0
    %2114 = vmatpush1.xpose.msra.mxu0 %v2111
    %2115 = vmatprep.subr.mxu0 0.0
    %2116 = vmatpush1.xpose.msra.mxu0 0.0
    %2117 = vmatprep.subr.mxu0 0.0
    %2118 = vmatpush1.xpose.msra.mxu0 0.0
    %2119 = vmatprep.subr.mxu0 0.0
    %2120 = vmatpush1.xpose.msra.mxu0 0.0
    %2121 = vmatprep.subr.mxu0 0.0
    %2122 = vmatpush1.xpose.msra.mxu0 0.0
    %2123 = vmatprep.subr.mxu0 0.0
    %2124 = vmatpush1.xpose.msra.mxu0 0.0
    %2125 = vmatprep.subr.mxu0 0.0
    %2126 = vmatpush1.xpose.msra.mxu0 0.0
    %2127 = vmatprep.subr.mxu0 0.0
    %2128 = vmatpush1.xpose.msra.mxu0 0.0
    %2129 = vmatprep.subr.mxu0 0.0
    %2130 = vmatpush1.xpose.msra.mxu0 0.0
    %2131 = vmatprep.subr.mxu0 0.0
    %2132 = vmatpush1.xpose.msra.mxu0 0.0
    %2133 = vmatprep.subr.mxu0 0.0
    %2134 = vmatpush1.xpose.msra.mxu0 0.0
    %2135 = vmatprep.subr.mxu0 0.0
    %2136 = vmatpush1.xpose.msra.mxu0 0.0
    %2137 = vmatprep.subr.mxu0 0.0
    %2138 = vmatpush1.xpose.msra.mxu0 0.0
    %2139 = vmatprep.subr.mxu0 0.0
    %2140 = vmatpush1.xpose.msra.mxu0 0.0
    %2141 = vmatprep.subr.mxu0 0.0
    %2142 = vmatpush1.xpose.msra.mxu0 0.0
    %2143 = vmatprep.subr.mxu0 0.0
    %2144 = vmatpush1.xpose.msra.mxu0 0.0
    %2145 = vmatprep.subr.mxu0 0.0
    %2146 = vmatpush1.xpose.msra.mxu0 0.0
    %2147 = vmatprep.subr.mxu0 0.0
    %2148 = vmatpush1.xpose.msra.mxu0 0.0
    %2149 = vmatprep.subr.mxu0 0.0
    %2150 = vmatpush1.xpose.msra.mxu0 0.0
    %2151 = vmatprep.subr.mxu0 0.0
    %2152 = vmatpush1.xpose.msra.mxu0 0.0
    %2153 = vmatprep.subr.mxu0 0.0
    %2154 = vmatpush1.xpose.msra.mxu0 0.0
    %2155 = vmatprep.subr.mxu0 0.0
    %2156 = vmatpush1.xpose.msra.mxu0 0.0
    %2157 = vmatprep.subr.mxu0 0.0
    %2158 = vmatpush1.xpose.msra.mxu0 0.0
    %2159 = vmatprep.subr.mxu0 0.0
    %2160 = vmatpush1.xpose.msra.mxu0 0.0
    %2161 = vmatprep.subr.mxu0 0.0
    %2162 = vmatpush1.xpose.msra.mxu0 0.0
    %2163 = vmatprep.subr.mxu0 0.0
    %2164 = vmatpush1.xpose.msra.mxu0 0.0
    %2165 = vmatprep.subr.mxu0 0.0
    %2166 = vmatpush1.xpose.msra.mxu0 0.0
    %2167 = vmatprep.subr.mxu0 0.0
    %2168 = vmatpush1.xpose.msra.mxu0 0.0
    %2169 = vmatprep.subr.mxu0 0.0
    %2170 = vmatpush1.xpose.msra.mxu0 0.0
    %2171 = vmatprep.subr.mxu0 0.0
    %2172 = vmatpush1.xpose.msra.mxu0 0.0
    %2173 = vmatprep.subr.mxu0 0.0
    %2174 = vmatpush1.xpose.msra.mxu0 0.0
    %2175 = vmatprep.subr.mxu0 0.0
    %2176 = vmatpush1.xpose.msra.mxu0 0.0
    %2177 = vmatprep.mubr.f32.mxu0 0.0
    %2178 = vmatmul.mubr.f32.gmra.mrb[0].mxu0 %v1960
    %v2179 = vpop.f32.mrb[0].mxu0
    %v2180 = vadd.f32 %v2106, %v2179
    %v2181 = vpop.f32.mrb[0].mxu0
    %2182 = vdwg.mxu0
    %v2183 = vmul.f32 %v2180, 0.35355338
    %v2184 = vsel %vm745, %v2034, -inf
    %v2185 = vrot.slane %v2184, 4
    %v2186 = vmax.f32 %v2184, %v2185
    %v2187 = vrot.slane %v2186, 2
    %v2188 = vmax.f32 %v2186, %v2187
    %v2189 = vrot.slane %v2188, 1
    %v2190 = vmax.f32 %v2188, %v2189
    %v2191 = vsub.f32 %v2034, %v2190
    %v2192 = vmul.f32 %v2191, 1.442695
    %v2193 = vpow.pop %v2192
    %v2194 = vsel %vm745, %v2193, 0.0
    %v2195 = vrot.slane %v2194, 4
    %v2196 = vadd.f32 %v2194, %v2195
    %v2197 = vrot.slane %v2196, 2
    %v2198 = vadd.f32 %v2196, %v2197
    %v2199 = vrot.slane %v2198, 1
    %v2200 = vadd.f32 %v2198, %v2199
    %v2201 = vrcp.pop %v2200
    %v2202 = vmul.f32 %v2193, %v2201
    %v2203 = vsel %vm745, %v2183, -inf
    %v2204 = vrot.slane %v2203, 4
    %v2205 = vmax.f32 %v2203, %v2204
    %v2206 = vrot.slane %v2205, 2
    %v2207 = vmax.f32 %v2205, %v2206
    %v2208 = vrot.slane %v2207, 1
    %v2209 = vmax.f32 %v2207, %v2208
    %v2210 = vsub.f32 %v2183, %v2209
    %v2211 = vmul.f32 %v2210, 1.442695
    %v2212 = vpow.pop %v2211
    %v2213 = vsel %vm745, %v2212, 0.0
    %v2214 = vrot.slane %v2213, 4
    %v2215 = vadd.f32 %v2213, %v2214
    %v2216 = vrot.slane %v2215, 2
    %v2217 = vadd.f32 %v2215, %v2216
    %v2218 = vrot.slane %v2217, 1
    %v2219 = vadd.f32 %v2217, %v2218
    %v2220 = vrcp.pop %v2219
    %v2221 = vmul.f32 %v2212, %v2220
    %2222 = vrot.lane.b32.xlu0 %v571, 80
    %v2223 = vpop.permute.xlu0 %2222
    %v2226 = vsel %vm745, %v2221, 0
    %2228 = vmatprep.subr.mxu0 0.0
    %2229 = vmatpush1.msra.mxu0 %v2223
    %2230 = vmatprep.subr.mxu0 0.0
    %2231 = vmatpush1.msra.mxu0 0.0
    %2232 = vmatprep.subr.mxu0 0.0
    %2233 = vmatpush1.msra.mxu0 0.0
    %2234 = vmatprep.subr.mxu0 0.0
    %2235 = vmatpush1.msra.mxu0 0.0
    %2236 = vmatprep.subr.mxu0 0.0
    %2237 = vmatpush1.msra.mxu0 0.0
    %2238 = vmatprep.subr.mxu0 0.0
    %2239 = vmatpush1.msra.mxu0 0.0
    %2240 = vmatprep.subr.mxu0 0.0
    %2241 = vmatpush1.msra.mxu0 0.0
    %2242 = vmatprep.subr.mxu0 0.0
    %2243 = vmatpush1.msra.mxu0 0.0
    %2244 = vmatprep.subr.mxu0 0.0
    %2245 = vmatpush1.msra.mxu0 0.0
    %2246 = vmatprep.subr.mxu0 0.0
    %2247 = vmatpush1.msra.mxu0 0.0
    %2248 = vmatprep.subr.mxu0 0.0
    %2249 = vmatpush1.msra.mxu0 0.0
    %2250 = vmatprep.subr.mxu0 0.0
    %2251 = vmatpush1.msra.mxu0 0.0
    %2252 = vmatprep.subr.mxu0 0.0
    %2253 = vmatpush1.msra.mxu0 0.0
    %2254 = vmatprep.subr.mxu0 0.0
    %2255 = vmatpush1.msra.mxu0 0.0
    %2256 = vmatprep.subr.mxu0 0.0
    %2257 = vmatpush1.msra.mxu0 0.0
    %2258 = vmatprep.subr.mxu0 0.0
    %2259 = vmatpush1.msra.mxu0 0.0
    %2260 = vmatprep.subr.mxu0 0.0
    %2261 = vmatpush1.msra.mxu0 0.0
    %2262 = vmatprep.subr.mxu0 0.0
    %2263 = vmatpush1.msra.mxu0 0.0
    %2264 = vmatprep.subr.mxu0 0.0
    %2265 = vmatpush1.msra.mxu0 0.0
    %2266 = vmatprep.subr.mxu0 0.0
    %2267 = vmatpush1.msra.mxu0 0.0
    %2268 = vmatprep.subr.mxu0 0.0
    %2269 = vmatpush1.msra.mxu0 0.0
    %2270 = vmatprep.subr.mxu0 0.0
    %2271 = vmatpush1.msra.mxu0 0.0
    %2272 = vmatprep.subr.mxu0 0.0
    %2273 = vmatpush1.msra.mxu0 0.0
    %2274 = vmatprep.subr.mxu0 0.0
    %2275 = vmatpush1.msra.mxu0 0.0
    %2276 = vmatprep.subr.mxu0 0.0
    %2277 = vmatpush1.msra.mxu0 0.0
    %2278 = vmatprep.subr.mxu0 0.0
    %2279 = vmatpush1.msra.mxu0 0.0
    %2280 = vmatprep.subr.mxu0 0.0
    %2281 = vmatpush1.msra.mxu0 0.0
    %2282 = vmatprep.subr.mxu0 0.0
    %2283 = vmatpush1.msra.mxu0 0.0
    %2284 = vmatprep.subr.mxu0 0.0
    %2285 = vmatpush1.msra.mxu0 0.0
    %2286 = vmatprep.subr.mxu0 0.0
    %2287 = vmatpush1.msra.mxu0 0.0
    %2288 = vmatprep.subr.mxu0 0.0
    %2289 = vmatpush1.msra.mxu0 0.0
    %2290 = vmatprep.subr.mxu0 0.0
    %2291 = vmatpush1.msra.mxu0 0.0
    %2292 = vmatprep.mubr.f32.mxu0 0.0
    %2293 = vmatmul.mubr.f32.gmra.mrb[0].mxu0 %v2226
    %v2294 = vpop.f32.mrb[0].mxu0
    %v2295 = vadd.f32 0.0, %v2294
    %v2296 = vpop.f32.mrb[0].mxu0
    %2297 = vdwg.mxu0
    %2298 = vrot.lane.b32.xlu0 %v652, 80
    %v2299 = vpop.permute.xlu0 %2298
    %v2302 = vsel %vm745, %v2202, 0
    %2304 = vmatprep.subr.mxu0 0.0
    %2305 = vmatpush1.msra.mxu0 %v2299
    %2306 = vmatprep.subr.mxu0 0.0
    %2307 = vmatpush1.msra.mxu0 0.0
    %2308 = vmatprep.subr.mxu0 0.0
    %2309 = vmatpush1.msra.mxu0 0.0
    %2310 = vmatprep.subr.mxu0 0.0
    %2311 = vmatpush1.msra.mxu0 0.0
    %2312 = vmatprep.subr.mxu0 0.0
    %2313 = vmatpush1.msra.mxu0 0.0
    %2314 = vmatprep.subr.mxu0 0.0
    %2315 = vmatpush1.msra.mxu0 0.0
    %2316 = vmatprep.subr.mxu0 0.0
    %2317 = vmatpush1.msra.mxu0 0.0
    %2318 = vmatprep.subr.mxu0 0.0
    %2319 = vmatpush1.msra.mxu0 0.0
    %2320 = vmatprep.subr.mxu0 0.0
    %2321 = vmatpush1.msra.mxu0 0.0
    %2322 = vmatprep.subr.mxu0 0.0
    %2323 = vmatpush1.msra.mxu0 0.0
    %2324 = vmatprep.subr.mxu0 0.0
    %2325 = vmatpush1.msra.mxu0 0.0
    %2326 = vmatprep.subr.mxu0 0.0
    %2327 = vmatpush1.msra.mxu0 0.0
    %2328 = vmatprep.subr.mxu0 0.0
    %2329 = vmatpush1.msra.mxu0 0.0
    %2330 = vmatprep.subr.mxu0 0.0
    %2331 = vmatpush1.msra.mxu0 0.0
    %2332 = vmatprep.subr.mxu0 0.0
    %2333 = vmatpush1.msra.mxu0 0.0
    %2334 = vmatprep.subr.mxu0 0.0
    %2335 = vmatpush1.msra.mxu0 0.0
    %2336 = vmatprep.subr.mxu0 0.0
    %2337 = vmatpush1.msra.mxu0 0.0
    %2338 = vmatprep.subr.mxu0 0.0
    %2339 = vmatpush1.msra.mxu0 0.0
    %2340 = vmatprep.subr.mxu0 0.0
    %2341 = vmatpush1.msra.mxu0 0.0
    %2342 = vmatprep.subr.mxu0 0.0
    %2343 = vmatpush1.msra.mxu0 0.0
    %2344 = vmatprep.subr.mxu0 0.0
    %2345 = vmatpush1.msra.mxu0 0.0
    %2346 = vmatprep.subr.mxu0 0.0
    %2347 = vmatpush1.msra.mxu0 0.0
    %2348 = vmatprep.subr.mxu0 0.0
    %2349 = vmatpush1.msra.mxu0 0.0
    %2350 = vmatprep.subr.mxu0 0.0
    %2351 = vmatpush1.msra.mxu0 0.0
    %2352 = vmatprep.subr.mxu0 0.0
    %2353 = vmatpush1.msra.mxu0 0.0
    %2354 = vmatprep.subr.mxu0 0.0
    %2355 = vmatpush1.msra.mxu0 0.0
    %2356 = vmatprep.subr.mxu0 0.0
    %2357 = vmatpush1.msra.mxu0 0.0
    %2358 = vmatprep.subr.mxu0 0.0
    %2359 = vmatpush1.msra.mxu0 0.0
    %2360 = vmatprep.subr.mxu0 0.0
    %2361 = vmatpush1.msra.mxu0 0.0
    %2362 = vmatprep.subr.mxu0 0.0
    %2363 = vmatpush1.msra.mxu0 0.0
    %2364 = vmatprep.subr.mxu0 0.0
    %2365 = vmatpush1.msra.mxu0 0.0
    %2366 = vmatprep.subr.mxu0 0.0
    %2367 = vmatpush1.msra.mxu0 0.0
    %2368 = vmatprep.mubr.f32.mxu0 0.0
    %2369 = vmatmul.mubr.f32.gmra.mrb[0].mxu0 %v2302
    %v2370 = vpop.f32.mrb[0].mxu0
    %v2371 = vadd.f32 %v2295, %v2370
    %v2372 = vpop.f32.mrb[0].mxu0
    %2373 = vdwg.mxu0
    %v2375 = vsel %vm745, %v2371, 0
    %2377 = vmatprep.subr.mxu0 0.0
    %2378 = vmatpush1.msra.mxu0 %v261
    %2379 = vmatprep.subr.mxu0 0.0
    %2380 = vmatpush1.msra.mxu0 0.0
    %2381 = vmatprep.subr.mxu0 0.0
    %2382 = vmatpush1.msra.mxu0 0.0
    %2383 = vmatprep.subr.mxu0 0.0
    %2384 = vmatpush1.msra.mxu0 0.0
    %2385 = vmatprep.subr.mxu0 0.0
    %2386 = vmatpush1.msra.mxu0 0.0
    %2387 = vmatprep.subr.mxu0 0.0
    %2388 = vmatpush1.msra.mxu0 0.0
    %2389 = vmatprep.subr.mxu0 0.0
    %2390 = vmatpush1.msra.mxu0 0.0
    %2391 = vmatprep.subr.mxu0 0.0
    %2392 = vmatpush1.msra.mxu0 0.0
    %2393 = vmatprep.subr.mxu0 0.0
    %2394 = vmatpush1.msra.mxu0 0.0
    %2395 = vmatprep.subr.mxu0 0.0
    %2396 = vmatpush1.msra.mxu0 0.0
    %2397 = vmatprep.subr.mxu0 0.0
    %2398 = vmatpush1.msra.mxu0 0.0
    %2399 = vmatprep.subr.mxu0 0.0
    %2400 = vmatpush1.msra.mxu0 0.0
    %2401 = vmatprep.subr.mxu0 0.0
    %2402 = vmatpush1.msra.mxu0 0.0
    %2403 = vmatprep.subr.mxu0 0.0
    %2404 = vmatpush1.msra.mxu0 0.0
    %2405 = vmatprep.subr.mxu0 0.0
    %2406 = vmatpush1.msra.mxu0 0.0
    %2407 = vmatprep.subr.mxu0 0.0
    %2408 = vmatpush1.msra.mxu0 0.0
    %2409 = vmatprep.subr.mxu0 0.0
    %2410 = vmatpush1.msra.mxu0 0.0
    %2411 = vmatprep.subr.mxu0 0.0
    %2412 = vmatpush1.msra.mxu0 0.0
    %2413 = vmatprep.subr.mxu0 0.0
    %2414 = vmatpush1.msra.mxu0 0.0
    %2415 = vmatprep.subr.mxu0 0.0
    %2416 = vmatpush1.msra.mxu0 0.0
    %2417 = vmatprep.subr.mxu0 0.0
    %2418 = vmatpush1.msra.mxu0 0.0
    %2419 = vmatprep.subr.mxu0 0.0
    %2420 = vmatpush1.msra.mxu0 0.0
    %2421 = vmatprep.subr.mxu0 0.0
    %2422 = vmatpush1.msra.mxu0 0.0
    %2423 = vmatprep.subr.mxu0 0.0
    %2424 = vmatpush1.msra.mxu0 0.0
    %2425 = vmatprep.subr.mxu0 0.0
    %2426 = vmatpush1.msra.mxu0 0.0
    %2427 = vmatprep.subr.mxu0 0.0
    %2428 = vmatpush1.msra.mxu0 0.0
    %2429 = vmatprep.subr.mxu0 0.0
    %2430 = vmatpush1.msra.mxu0 0.0
    %2431 = vmatprep.subr.mxu0 0.0
    %2432 = vmatpush1.msra.mxu0 0.0
    %2433 = vmatprep.subr.mxu0 0.0
    %2434 = vmatpush1.msra.mxu0 0.0
    %2435 = vmatprep.subr.mxu0 0.0
    %2436 = vmatpush1.msra.mxu0 0.0
    %2437 = vmatprep.subr.mxu0 0.0
    %2438 = vmatpush1.msra.mxu0 0.0
    %2439 = vmatprep.subr.mxu0 0.0
    %2440 = vmatpush1.msra.mxu0 0.0
    %2441 = vmatprep.mubr.f32.mxu0 0.0
    %2442 = vmatmul.mubr.f32.gmra.mrb[0].mxu0 %v2375
    %v2443 = vpop.f32.mrb[0].mxu0
    %v2444 = vadd.f32 0.0, %v2443
    %v2445 = vpop.f32.mrb[0].mxu0
    %2446 = vdwg.mxu0
    %v2447 = vadd.f32 %v1875, %v2444
    %2448 = vrot.lane.b32.xlu0 %v492, 104
    %v2449 = vpop.permute.xlu0 %2448
    %2450 = vrot.lane.b32.xlu0 %v257, 104
    %v2451 = vpop.permute.xlu0 %2450
    %v2452 = vsel %vm745, %v2449, 0
    %v2454 = vsel %vm745, %v2451, 0
    %2456 = vmatprep.subr.mxu0 0.0
    %2457 = vmatpush1.xpose.msra.mxu0 %v2454
    %2458 = vmatprep.subr.mxu0 0.0
    %2459 = vmatpush1.xpose.msra.mxu0 0.0
    %2460 = vmatprep.subr.mxu0 0.0
    %2461 = vmatpush1.xpose.msra.mxu0 0.0
    %2462 = vmatprep.subr.mxu0 0.0
    %2463 = vmatpush1.xpose.msra.mxu0 0.0
    %2464 = vmatprep.subr.mxu0 0.0
    %2465 = vmatpush1.xpose.msra.mxu0 0.0
    %2466 = vmatprep.subr.mxu0 0.0
    %2467 = vmatpush1.xpose.msra.mxu0 0.0
    %2468 = vmatprep.subr.mxu0 0.0
    %2469 = vmatpush1.xpose.msra.mxu0 0.0
    %2470 = vmatprep.subr.mxu0 0.0
    %2471 = vmatpush1.xpose.msra.mxu0 0.0
    %2472 = vmatprep.subr.mxu0 0.0
    %2473 = vmatpush1.xpose.msra.mxu0 0.0
    %2474 = vmatprep.subr.mxu0 0.0
    %2475 = vmatpush1.xpose.msra.mxu0 0.0
    %2476 = vmatprep.subr.mxu0 0.0
    %2477 = vmatpush1.xpose.msra.mxu0 0.0
    %2478 = vmatprep.subr.mxu0 0.0
    %2479 = vmatpush1.xpose.msra.mxu0 0.0
    %2480 = vmatprep.subr.mxu0 0.0
    %2481 = vmatpush1.xpose.msra.mxu0 0.0
    %2482 = vmatprep.subr.mxu0 0.0
    %2483 = vmatpush1.xpose.msra.mxu0 0.0
    %2484 = vmatprep.subr.mxu0 0.0
    %2485 = vmatpush1.xpose.msra.mxu0 0.0
    %2486 = vmatprep.subr.mxu0 0.0
    %2487 = vmatpush1.xpose.msra.mxu0 0.0
    %2488 = vmatprep.subr.mxu0 0.0
    %2489 = vmatpush1.xpose.msra.mxu0 0.0
    %2490 = vmatprep.subr.mxu0 0.0
    %2491 = vmatpush1.xpose.msra.mxu0 0.0
    %2492 = vmatprep.subr.mxu0 0.0
    %2493 = vmatpush1.xpose.msra.mxu0 0.0
    %2494 = vmatprep.subr.mxu0 0.0
    %2495 = vmatpush1.xpose.msra.mxu0 0.0
    %2496 = vmatprep.subr.mxu0 0.0
    %2497 = vmatpush1.xpose.msra.mxu0 0.0
    %2498 = vmatprep.subr.mxu0 0.0
    %2499 = vmatpush1.xpose.msra.mxu0 0.0
    %2500 = vmatprep.subr.mxu0 0.0
    %2501 = vmatpush1.xpose.msra.mxu0 0.0
    %2502 = vmatprep.subr.mxu0 0.0
    %2503 = vmatpush1.xpose.msra.mxu0 0.0
    %2504 = vmatprep.subr.mxu0 0.0
    %2505 = vmatpush1.xpose.msra.mxu0 0.0
    %2506 = vmatprep.subr.mxu0 0.0
    %2507 = vmatpush1.xpose.msra.mxu0 0.0
    %2508 = vmatprep.subr.mxu0 0.0
    %2509 = vmatpush1.xpose.msra.mxu0 0.0
    %2510 = vmatprep.subr.mxu0 0.0
    %2511 = vmatpush1.xpose.msra.mxu0 0.0
    %2512 = vmatprep.subr.mxu0 0.0
    %2513 = vmatpush1.xpose.msra.mxu0 0.0
    %2514 = vmatprep.subr.mxu0 0.0
    %2515 = vmatpush1.xpose.msra.mxu0 0.0
    %2516 = vmatprep.subr.mxu0 0.0
    %2517 = vmatpush1.xpose.msra.mxu0 0.0
    %2518 = vmatprep.subr.mxu0 0.0
    %2519 = vmatpush1.xpose.msra.mxu0 0.0
    %2520 = vmatprep.mubr.f32.mxu0 0.0
    %2521 = vmatmul.mubr.f32.gmra.mrb[0].mxu0 %v2452
    %v2522 = vpop.f32.mrb[0].mxu0
    %v2523 = vadd.f32 0.0, %v2522
    %v2524 = vpop.f32.mrb[0].mxu0
    %2525 = vdwg.mxu0
    %2526 = vrot.lane.b32.xlu0 %v405, 104
    %v2527 = vpop.permute.xlu0 %2526
    %2528 = vrot.lane.b32.xlu0 %v652, 104
    %v2529 = vpop.permute.xlu0 %2528
    %v2530 = vsel %vm745, %v2527, 0
    %v2532 = vsel %vm745, %v2529, 0
    %2534 = vmatprep.subr.mxu0 0.0
    %2535 = vmatpush1.xpose.msra.mxu0 %v2532
    %2536 = vmatprep.subr.mxu0 0.0
    %2537 = vmatpush1.xpose.msra.mxu0 0.0
    %2538 = vmatprep.subr.mxu0 0.0
    %2539 = vmatpush1.xpose.msra.mxu0 0.0
    %2540 = vmatprep.subr.mxu0 0.0
    %2541 = vmatpush1.xpose.msra.mxu0 0.0
    %2542 = vmatprep.subr.mxu0 0.0
    %2543 = vmatpush1.xpose.msra.mxu0 0.0
    %2544 = vmatprep.subr.mxu0 0.0
    %2545 = vmatpush1.xpose.msra.mxu0 0.0
    %2546 = vmatprep.subr.mxu0 0.0
    %2547 = vmatpush1.xpose.msra.mxu0 0.0
    %2548 = vmatprep.subr.mxu0 0.0
    %2549 = vmatpush1.xpose.msra.mxu0 0.0
    %2550 = vmatprep.subr.mxu0 0.0
    %2551 = vmatpush1.xpose.msra.mxu0 0.0
    %2552 = vmatprep.subr.mxu0 0.0
    %2553 = vmatpush1.xpose.msra.mxu0 0.0
    %2554 = vmatprep.subr.mxu0 0.0
    %2555 = vmatpush1.xpose.msra.mxu0 0.0
    %2556 = vmatprep.subr.mxu0 0.0
    %2557 = vmatpush1.xpose.msra.mxu0 0.0
    %2558 = vmatprep.subr.mxu0 0.0
    %2559 = vmatpush1.xpose.msra.mxu0 0.0
    %2560 = vmatprep.subr.mxu0 0.0
    %2561 = vmatpush1.xpose.msra.mxu0 0.0
    %2562 = vmatprep.subr.mxu0 0.0
    %2563 = vmatpush1.xpose.msra.mxu0 0.0
    %2564 = vmatprep.subr.mxu0 0.0
    %2565 = vmatpush1.xpose.msra.mxu0 0.0
    %2566 = vmatprep.subr.mxu0 0.0
    %2567 = vmatpush1.xpose.msra.mxu0 0.0
    %2568 = vmatprep.subr.mxu0 0.0
    %2569 = vmatpush1.xpose.msra.mxu0 0.0
    %2570 = vmatprep.subr.mxu0 0.0
    %2571 = vmatpush1.xpose.msra.mxu0 0.0
    %2572 = vmatprep.subr.mxu0 0.0
    %2573 = vmatpush1.xpose.msra.mxu0 0.0
    %2574 = vmatprep.subr.mxu0 0.0
    %2575 = vmatpush1.xpose.msra.mxu0 0.0
    %2576 = vmatprep.subr.mxu0 0.0
    %2577 = vmatpush1.xpose.msra.mxu0 0.0
    %2578 = vmatprep.subr.mxu0 0.0
    %2579 = vmatpush1.xpose.msra.mxu0 0.0
    %2580 = vmatprep.subr.mxu0 0.0
    %2581 = vmatpush1.xpose.msra.mxu0 0.0
    %2582 = vmatprep.subr.mxu0 0.0
    %2583 = vmatpush1.xpose.msra.mxu0 0.0
    %2584 = vmatprep.subr.mxu0 0.0
    %2585 = vmatpush1.xpose.msra.mxu0 0.0
    %2586 = vmatprep.subr.mxu0 0.0
    %2587 = vmatpush1.xpose.msra.mxu0 0.0
    %2588 = vmatprep.subr.mxu0 0.0
    %2589 = vmatpush1.xpose.msra.mxu0 0.0
    %2590 = vmatprep.subr.mxu0 0.0
    %2591 = vmatpush1.xpose.msra.mxu0 0.0
    %2592 = vmatprep.subr.mxu0 0.0
    %2593 = vmatpush1.xpose.msra.mxu0 0.0
    %2594 = vmatprep.subr.mxu0 0.0
    %2595 = vmatpush1.xpose.msra.mxu0 0.0
    %2596 = vmatprep.subr.mxu0 0.0
    %2597 = vmatpush1.xpose.msra.mxu0 0.0
    %2598 = vmatprep.mubr.f32.mxu0 0.0
    %2599 = vmatmul.mubr.f32.gmra.mrb[0].mxu0 %v2530
    %v2600 = vpop.f32.mrb[0].mxu0
    %v2601 = vadd.f32 %v2523, %v2600
    %v2602 = vpop.f32.mrb[0].mxu0
    %2603 = vdwg.mxu0
    %v2604 = vmul.f32 %v2601, 0.35355338
    %2605 = vrot.lane.b32.xlu0 %v258, 104
    %v2606 = vpop.permute.xlu0 %2605
    %v2607 = vsel %vm745, %v2606, 0
    %2609 = vmatprep.subr.mxu0 0.0
    %2610 = vmatpush1.xpose.msra.mxu0 %v2607
    %2611 = vmatprep.subr.mxu0 0.0
    %2612 = vmatpush1.xpose.msra.mxu0 0.0
    %2613 = vmatprep.subr.mxu0 0.0
    %2614 = vmatpush1.xpose.msra.mxu0 0.0
    %2615 = vmatprep.subr.mxu0 0.0
    %2616 = vmatpush1.xpose.msra.mxu0 0.0
    %2617 = vmatprep.subr.mxu0 0.0
    %2618 = vmatpush1.xpose.msra.mxu0 0.0
    %2619 = vmatprep.subr.mxu0 0.0
    %2620 = vmatpush1.xpose.msra.mxu0 0.0
    %2621 = vmatprep.subr.mxu0 0.0
    %2622 = vmatpush1.xpose.msra.mxu0 0.0
    %2623 = vmatprep.subr.mxu0 0.0
    %2624 = vmatpush1.xpose.msra.mxu0 0.0
    %2625 = vmatprep.subr.mxu0 0.0
    %2626 = vmatpush1.xpose.msra.mxu0 0.0
    %2627 = vmatprep.subr.mxu0 0.0
    %2628 = vmatpush1.xpose.msra.mxu0 0.0
    %2629 = vmatprep.subr.mxu0 0.0
    %2630 = vmatpush1.xpose.msra.mxu0 0.0
    %2631 = vmatprep.subr.mxu0 0.0
    %2632 = vmatpush1.xpose.msra.mxu0 0.0
    %2633 = vmatprep.subr.mxu0 0.0
    %2634 = vmatpush1.xpose.msra.mxu0 0.0
    %2635 = vmatprep.subr.mxu0 0.0
    %2636 = vmatpush1.xpose.msra.mxu0 0.0
    %2637 = vmatprep.subr.mxu0 0.0
    %2638 = vmatpush1.xpose.msra.mxu0 0.0
    %2639 = vmatprep.subr.mxu0 0.0
    %2640 = vmatpush1.xpose.msra.mxu0 0.0
    %2641 = vmatprep.subr.mxu0 0.0
    %2642 = vmatpush1.xpose.msra.mxu0 0.0
    %2643 = vmatprep.subr.mxu0 0.0
    %2644 = vmatpush1.xpose.msra.mxu0 0.0
    %2645 = vmatprep.subr.mxu0 0.0
    %2646 = vmatpush1.xpose.msra.mxu0 0.0
    %2647 = vmatprep.subr.mxu0 0.0
    %2648 = vmatpush1.xpose.msra.mxu0 0.0
    %2649 = vmatprep.subr.mxu0 0.0
    %2650 = vmatpush1.xpose.msra.mxu0 0.0
    %2651 = vmatprep.subr.mxu0 0.0
    %2652 = vmatpush1.xpose.msra.mxu0 0.0
    %2653 = vmatprep.subr.mxu0 0.0
    %2654 = vmatpush1.xpose.msra.mxu0 0.0
    %2655 = vmatprep.subr.mxu0 0.0
    %2656 = vmatpush1.xpose.msra.mxu0 0.0
    %2657 = vmatprep.subr.mxu0 0.0
    %2658 = vmatpush1.xpose.msra.mxu0 0.0
    %2659 = vmatprep.subr.mxu0 0.0
    %2660 = vmatpush1.xpose.msra.mxu0 0.0
    %2661 = vmatprep.subr.mxu0 0.0
    %2662 = vmatpush1.xpose.msra.mxu0 0.0
    %2663 = vmatprep.subr.mxu0 0.0
    %2664 = vmatpush1.xpose.msra.mxu0 0.0
    %2665 = vmatprep.subr.mxu0 0.0
    %2666 = vmatpush1.xpose.msra.mxu0 0.0
    %2667 = vmatprep.subr.mxu0 0.0
    %2668 = vmatpush1.xpose.msra.mxu0 0.0
    %2669 = vmatprep.subr.mxu0 0.0
    %2670 = vmatpush1.xpose.msra.mxu0 0.0
    %2671 = vmatprep.subr.mxu0 0.0
    %2672 = vmatpush1.xpose.msra.mxu0 0.0
    %2673 = vmatprep.mubr.f32.mxu0 0.0
    %2674 = vmatmul.mubr.f32.gmra.mrb[0].mxu0 %v2452
    %v2675 = vpop.f32.mrb[0].mxu0
    %v2676 = vadd.f32 0.0, %v2675
    %v2677 = vpop.f32.mrb[0].mxu0
    %2678 = vdwg.mxu0
    %2679 = vrot.lane.b32.xlu0 %v571, 104
    %v2680 = vpop.permute.xlu0 %2679
    %v2681 = vsel %vm745, %v2680, 0
    %2683 = vmatprep.subr.mxu0 0.0
    %2684 = vmatpush1.xpose.msra.mxu0 %v2681
    %2685 = vmatprep.subr.mxu0 0.0
    %2686 = vmatpush1.xpose.msra.mxu0 0.0
    %2687 = vmatprep.subr.mxu0 0.0
    %2688 = vmatpush1.xpose.msra.mxu0 0.0
    %2689 = vmatprep.subr.mxu0 0.0
    %2690 = vmatpush1.xpose.msra.mxu0 0.0
    %2691 = vmatprep.subr.mxu0 0.0
    %2692 = vmatpush1.xpose.msra.mxu0 0.0
    %2693 = vmatprep.subr.mxu0 0.0
    %2694 = vmatpush1.xpose.msra.mxu0 0.0
    %2695 = vmatprep.subr.mxu0 0.0
    %2696 = vmatpush1.xpose.msra.mxu0 0.0
    %2697 = vmatprep.subr.mxu0 0.0
    %2698 = vmatpush1.xpose.msra.mxu0 0.0
    %2699 = vmatprep.subr.mxu0 0.0
    %2700 = vmatpush1.xpose.msra.mxu0 0.0
    %2701 = vmatprep.subr.mxu0 0.0
    %2702 = vmatpush1.xpose.msra.mxu0 0.0
    %2703 = vmatprep.subr.mxu0 0.0
    %2704 = vmatpush1.xpose.msra.mxu0 0.0
    %2705 = vmatprep.subr.mxu0 0.0
    %2706 = vmatpush1.xpose.msra.mxu0 0.0
    %2707 = vmatprep.subr.mxu0 0.0
    %2708 = vmatpush1.xpose.msra.mxu0 0.0
    %2709 = vmatprep.subr.mxu0 0.0
    %2710 = vmatpush1.xpose.msra.mxu0 0.0
    %2711 = vmatprep.subr.mxu0 0.0
    %2712 = vmatpush1.xpose.msra.mxu0 0.0
    %2713 = vmatprep.subr.mxu0 0.0
    %2714 = vmatpush1.xpose.msra.mxu0 0.0
    %2715 = vmatprep.subr.mxu0 0.0
    %2716 = vmatpush1.xpose.msra.mxu0 0.0
    %2717 = vmatprep.subr.mxu0 0.0
    %2718 = vmatpush1.xpose.msra.mxu0 0.0
    %2719 = vmatprep.subr.mxu0 0.0
    %2720 = vmatpush1.xpose.msra.mxu0 0.0
    %2721 = vmatprep.subr.mxu0 0.0
    %2722 = vmatpush1.xpose.msra.mxu0 0.0
    %2723 = vmatprep.subr.mxu0 0.0
    %2724 = vmatpush1.xpose.msra.mxu0 0.0
    %2725 = vmatprep.subr.mxu0 0.0
    %2726 = vmatpush1.xpose.msra.mxu0 0.0
    %2727 = vmatprep.subr.mxu0 0.0
    %2728 = vmatpush1.xpose.msra.mxu0 0.0
    %2729 = vmatprep.subr.mxu0 0.0
    %2730 = vmatpush1.xpose.msra.mxu0 0.0
    %2731 = vmatprep.subr.mxu0 0.0
    %2732 = vmatpush1.xpose.msra.mxu0 0.0
    %2733 = vmatprep.subr.mxu0 0.0
    %2734 = vmatpush1.xpose.msra.mxu0 0.0
    %2735 = vmatprep.subr.mxu0 0.0
    %2736 = vmatpush1.xpose.msra.mxu0 0.0
    %2737 = vmatprep.subr.mxu0 0.0
    %2738 = vmatpush1.xpose.msra.mxu0 0.0
    %2739 = vmatprep.subr.mxu0 0.0
    %2740 = vmatpush1.xpose.msra.mxu0 0.0
    %2741 = vmatprep.subr.mxu0 0.0
    %2742 = vmatpush1.xpose.msra.mxu0 0.0
    %2743 = vmatprep.subr.mxu0 0.0
    %2744 = vmatpush1.xpose.msra.mxu0 0.0
    %2745 = vmatprep.subr.mxu0 0.0
    %2746 = vmatpush1.xpose.msra.mxu0 0.0
    %2747 = vmatprep.mubr.f32.mxu0 0.0
    %2748 = vmatmul.mubr.f32.gmra.mrb[0].mxu0 %v2530
    %v2749 = vpop.f32.mrb[0].mxu0
    %v2750 = vadd.f32 %v2676, %v2749
    %v2751 = vpop.f32.mrb[0].mxu0
    %2752 = vdwg.mxu0
    %v2753 = vmul.f32 %v2750, 0.35355338
    %v2754 = vsel %vm745, %v2604, -inf
    %v2755 = vrot.slane %v2754, 4
    %v2756 = vmax.f32 %v2754, %v2755
    %v2757 = vrot.slane %v2756, 2
    %v2758 = vmax.f32 %v2756, %v2757
    %v2759 = vrot.slane %v2758, 1
    %v2760 = vmax.f32 %v2758, %v2759
    %v2761 = vsub.f32 %v2604, %v2760
    %v2762 = vmul.f32 %v2761, 1.442695
    %v2763 = vpow.pop %v2762
    %v2764 = vsel %vm745, %v2763, 0.0
    %v2765 = vrot.slane %v2764, 4
    %v2766 = vadd.f32 %v2764, %v2765
    %v2767 = vrot.slane %v2766, 2
    %v2768 = vadd.f32 %v2766, %v2767
    %v2769 = vrot.slane %v2768, 1
    %v2770 = vadd.f32 %v2768, %v2769
    %v2771 = vrcp.pop %v2770
    %v2772 = vmul.f32 %v2763, %v2771
    %v2773 = vsel %vm745, %v2753, -inf
    %v2774 = vrot.slane %v2773, 4
    %v2775 = vmax.f32 %v2773, %v2774
    %v2776 = vrot.slane %v2775, 2
    %v2777 = vmax.f32 %v2775, %v2776
    %v2778 = vrot.slane %v2777, 1
    %v2779 = vmax.f32 %v2777, %v2778
    %v2780 = vsub.f32 %v2753, %v2779
    %v2781 = vmul.f32 %v2780, 1.442695
    %v2782 = vpow.pop %v2781
    %v2783 = vsel %vm745, %v2782, 0.0
    %v2784 = vrot.slane %v2783, 4
    %v2785 = vadd.f32 %v2783, %v2784
    %v2786 = vrot.slane %v2785, 2
    %v2787 = vadd.f32 %v2785, %v2786
    %v2788 = vrot.slane %v2787, 1
    %v2789 = vadd.f32 %v2787, %v2788
    %v2790 = vrcp.pop %v2789
    %v2791 = vmul.f32 %v2782, %v2790
    %2792 = vrot.lane.b32.xlu0 %v571, 72
    %v2793 = vpop.permute.xlu0 %2792
    %v2796 = vsel %vm745, %v2791, 0
    %2798 = vmatprep.subr.mxu0 0.0
    %2799 = vmatpush1.msra.mxu0 %v2793
    %2800 = vmatprep.subr.mxu0 0.0
    %2801 = vmatpush1.msra.mxu0 0.0
    %2802 = vmatprep.subr.mxu0 0.0
    %2803 = vmatpush1.msra.mxu0 0.0
    %2804 = vmatprep.subr.mxu0 0.0
    %2805 = vmatpush1.msra.mxu0 0.0
    %2806 = vmatprep.subr.mxu0 0.0
    %2807 = vmatpush1.msra.mxu0 0.0
    %2808 = vmatprep.subr.mxu0 0.0
    %2809 = vmatpush1.msra.mxu0 0.0
    %2810 = vmatprep.subr.mxu0 0.0
    %2811 = vmatpush1.msra.mxu0 0.0
    %2812 = vmatprep.subr.mxu0 0.0
    %2813 = vmatpush1.msra.mxu0 0.0
    %2814 = vmatprep.subr.mxu0 0.0
    %2815 = vmatpush1.msra.mxu0 0.0
    %2816 = vmatprep.subr.mxu0 0.0
    %2817 = vmatpush1.msra.mxu0 0.0
    %2818 = vmatprep.subr.mxu0 0.0
    %2819 = vmatpush1.msra.mxu0 0.0
    %2820 = vmatprep.subr.mxu0 0.0
    %2821 = vmatpush1.msra.mxu0 0.0
    %2822 = vmatprep.subr.mxu0 0.0
    %2823 = vmatpush1.msra.mxu0 0.0
    %2824 = vmatprep.subr.mxu0 0.0
    %2825 = vmatpush1.msra.mxu0 0.0
    %2826 = vmatprep.subr.mxu0 0.0
    %2827 = vmatpush1.msra.mxu0 0.0
    %2828 = vmatprep.subr.mxu0 0.0
    %2829 = vmatpush1.msra.mxu0 0.0
    %2830 = vmatprep.subr.mxu0 0.0
    %2831 = vmatpush1.msra.mxu0 0.0
    %2832 = vmatprep.subr.mxu0 0.0
    %2833 = vmatpush1.msra.mxu0 0.0
    %2834 = vmatprep.subr.mxu0 0.0
    %2835 = vmatpush1.msra.mxu0 0.0
    %2836 = vmatprep.subr.mxu0 0.0
    %2837 = vmatpush1.msra.mxu0 0.0
    %2838 = vmatprep.subr.mxu0 0.0
    %2839 = vmatpush1.msra.mxu0 0.0
    %2840 = vmatprep.subr.mxu0 0.0
    %2841 = vmatpush1.msra.mxu0 0.0
    %2842 = vmatprep.subr.mxu0 0.0
    %2843 = vmatpush1.msra.mxu0 0.0
    %2844 = vmatprep.subr.mxu0 0.0
    %2845 = vmatpush1.msra.mxu0 0.0
    %2846 = vmatprep.subr.mxu0 0.0
    %2847 = vmatpush1.msra.mxu0 0.0
    %2848 = vmatprep.subr.mxu0 0.0
    %2849 = vmatpush1.msra.mxu0 0.0
    %2850 = vmatprep.subr.mxu0 0.0
    %2851 = vmatpush1.msra.mxu0 0.0
    %2852 = vmatprep.subr.mxu0 0.0
    %2853 = vmatpush1.msra.mxu0 0.0
    %2854 = vmatprep.subr.mxu0 0.0
    %2855 = vmatpush1.msra.mxu0 0.0
    %2856 = vmatprep.subr.mxu0 0.0
    %2857 = vmatpush1.msra.mxu0 0.0
    %2858 = vmatprep.subr.mxu0 0.0
    %2859 = vmatpush1.msra.mxu0 0.0
    %2860 = vmatprep.subr.mxu0 0.0
    %2861 = vmatpush1.msra.mxu0 0.0
    %2862 = vmatprep.mubr.f32.mxu0 0.0
    %2863 = vmatmul.mubr.f32.gmra.mrb[0].mxu0 %v2796
    %v2864 = vpop.f32.mrb[0].mxu0
    %v2865 = vadd.f32 0.0, %v2864
    %v2866 = vpop.f32.mrb[0].mxu0
    %2867 = vdwg.mxu0
    %2868 = vrot.lane.b32.xlu0 %v652, 72
    %v2869 = vpop.permute.xlu0 %2868
    %v2872 = vsel %vm745, %v2772, 0
    %2874 = vmatprep.subr.mxu0 0.0
    %2875 = vmatpush1.msra.mxu0 %v2869
    %2876 = vmatprep.subr.mxu0 0.0
    %2877 = vmatpush1.msra.mxu0 0.0
    %2878 = vmatprep.subr.mxu0 0.0
    %2879 = vmatpush1.msra.mxu0 0.0
    %2880 = vmatprep.subr.mxu0 0.0
    %2881 = vmatpush1.msra.mxu0 0.0
    %2882 = vmatprep.subr.mxu0 0.0
    %2883 = vmatpush1.msra.mxu0 0.0
    %2884 = vmatprep.subr.mxu0 0.0
    %2885 = vmatpush1.msra.mxu0 0.0
    %2886 = vmatprep.subr.mxu0 0.0
    %2887 = vmatpush1.msra.mxu0 0.0
    %2888 = vmatprep.subr.mxu0 0.0
    %2889 = vmatpush1.msra.mxu0 0.0
    %2890 = vmatprep.subr.mxu0 0.0
    %2891 = vmatpush1.msra.mxu0 0.0
    %2892 = vmatprep.subr.mxu0 0.0
    %2893 = vmatpush1.msra.mxu0 0.0
    %2894 = vmatprep.subr.mxu0 0.0
    %2895 = vmatpush1.msra.mxu0 0.0
    %2896 = vmatprep.subr.mxu0 0.0
    %2897 = vmatpush1.msra.mxu0 0.0
    %2898 = vmatprep.subr.mxu0 0.0
    %2899 = vmatpush1.msra.mxu0 0.0
    %2900 = vmatprep.subr.mxu0 0.0
    %2901 = vmatpush1.msra.mxu0 0.0
    %2902 = vmatprep.subr.mxu0 0.0
    %2903 = vmatpush1.msra.mxu0 0.0
    %2904 = vmatprep.subr.mxu0 0.0
    %2905 = vmatpush1.msra.mxu0 0.0
    %2906 = vmatprep.subr.mxu0 0.0
    %2907 = vmatpush1.msra.mxu0 0.0
    %2908 = vmatprep.subr.mxu0 0.0
    %2909 = vmatpush1.msra.mxu0 0.0
    %2910 = vmatprep.subr.mxu0 0.0
    %2911 = vmatpush1.msra.mxu0 0.0
    %2912 = vmatprep.subr.mxu0 0.0
    %2913 = vmatpush1.msra.mxu0 0.0
    %2914 = vmatprep.subr.mxu0 0.0
    %2915 = vmatpush1.msra.mxu0 0.0
    %2916 = vmatprep.subr.mxu0 0.0
    %2917 = vmatpush1.msra.mxu0 0.0
    %2918 = vmatprep.subr.mxu0 0.0
    %2919 = vmatpush1.msra.mxu0 0.0
    %2920 = vmatprep.subr.mxu0 0.0
    %2921 = vmatpush1.msra.mxu0 0.0
    %2922 = vmatprep.subr.mxu0 0.0
    %2923 = vmatpush1.msra.mxu0 0.0
    %2924 = vmatprep.subr.mxu0 0.0
    %2925 = vmatpush1.msra.mxu0 0.0
    %2926 = vmatprep.subr.mxu0 0.0
    %2927 = vmatpush1.msra.mxu0 0.0
    %2928 = vmatprep.subr.mxu0 0.0
    %2929 = vmatpush1.msra.mxu0 0.0
    %2930 = vmatprep.subr.mxu0 0.0
    %2931 = vmatpush1.msra.mxu0 0.0
    %2932 = vmatprep.subr.mxu0 0.0
    %2933 = vmatpush1.msra.mxu0 0.0
    %2934 = vmatprep.subr.mxu0 0.0
    %2935 = vmatpush1.msra.mxu0 0.0
    %2936 = vmatprep.subr.mxu0 0.0
    %2937 = vmatpush1.msra.mxu0 0.0
    %2938 = vmatprep.mubr.f32.mxu0 0.0
    %2939 = vmatmul.mubr.f32.gmra.mrb[0].mxu0 %v2872
    %v2940 = vpop.f32.mrb[0].mxu0
    %v2941 = vadd.f32 %v2865, %v2940
    %v2942 = vpop.f32.mrb[0].mxu0
    %2943 = vdwg.mxu0
    %v2945 = vsel %vm745, %v2941, 0
    %2947 = vmatprep.subr.mxu0 0.0
    %2948 = vmatpush1.msra.mxu0 %v262
    %2949 = vmatprep.subr.mxu0 0.0
    %2950 = vmatpush1.msra.mxu0 0.0
    %2951 = vmatprep.subr.mxu0 0.0
    %2952 = vmatpush1.msra.mxu0 0.0
    %2953 = vmatprep.subr.mxu0 0.0
    %2954 = vmatpush1.msra.mxu0 0.0
    %2955 = vmatprep.subr.mxu0 0.0
    %2956 = vmatpush1.msra.mxu0 0.0
    %2957 = vmatprep.subr.mxu0 0.0
    %2958 = vmatpush1.msra.mxu0 0.0
    %2959 = vmatprep.subr.mxu0 0.0
    %2960 = vmatpush1.msra.mxu0 0.0
    %2961 = vmatprep.subr.mxu0 0.0
    %2962 = vmatpush1.msra.mxu0 0.0
    %2963 = vmatprep.subr.mxu0 0.0
    %2964 = vmatpush1.msra.mxu0 0.0
    %2965 = vmatprep.subr.mxu0 0.0
    %2966 = vmatpush1.msra.mxu0 0.0
    %2967 = vmatprep.subr.mxu0 0.0
    %2968 = vmatpush1.msra.mxu0 0.0
    %2969 = vmatprep.subr.mxu0 0.0
    %2970 = vmatpush1.msra.mxu0 0.0
    %2971 = vmatprep.subr.mxu0 0.0
    %2972 = vmatpush1.msra.mxu0 0.0
    %2973 = vmatprep.subr.mxu0 0.0
    %2974 = vmatpush1.msra.mxu0 0.0
    %2975 = vmatprep.subr.mxu0 0.0
    %2976 = vmatpush1.msra.mxu0 0.0
    %2977 = vmatprep.subr.mxu0 0.0
    %2978 = vmatpush1.msra.mxu0 0.0
    %2979 = vmatprep.subr.mxu0 0.0
    %2980 = vmatpush1.msra.mxu0 0.0
    %2981 = vmatprep.subr.mxu0 0.0
    %2982 = vmatpush1.msra.mxu0 0.0
    %2983 = vmatprep.subr.mxu0 0.0
    %2984 = vmatpush1.msra.mxu0 0.0
    %2985 = vmatprep.subr.mxu0 0.0
    %2986 = vmatpush1.msra.mxu0 0.0
    %2987 = vmatprep.subr.mxu0 0.0
    %2988 = vmatpush1.msra.mxu0 0.0
    %2989 = vmatprep.subr.mxu0 0.0
    %2990 = vmatpush1.msra.mxu0 0.0
    %2991 = vmatprep.subr.mxu0 0.0
    %2992 = vmatpush1.msra.mxu0 0.0
    %2993 = vmatprep.subr.mxu0 0.0
    %2994 = vmatpush1.msra.mxu0 0.0
    %2995 = vmatprep.subr.mxu0 0.0
    %2996 = vmatpush1.msra.mxu0 0.0
    %2997 = vmatprep.subr.mxu0 0.0
    %2998 = vmatpush1.msra.mxu0 0.0
    %2999 = vmatprep.subr.mxu0 0.0
    %3000 = vmatpush1.msra.mxu0 0.0
    %3001 = vmatprep.subr.mxu0 0.0
    %3002 = vmatpush1.msra.mxu0 0.0
    %3003 = vmatprep.subr.mxu0 0.0
    %3004 = vmatpush1.msra.mxu0 0.0
    %3005 = vmatprep.subr.mxu0 0.0
    %3006 = vmatpush1.msra.mxu0 0.0
    %3007 = vmatprep.subr.mxu0 0.0
    %3008 = vmatpush1.msra.mxu0 0.0
    %3009 = vmatprep.subr.mxu0 0.0
    %3010 = vmatpush1.msra.mxu0 0.0
    %3011 = vmatprep.mubr.f32.mxu0 0.0
    %3012 = vmatmul.mubr.f32.gmra.mrb[0].mxu0 %v2945
    %v3013 = vpop.f32.mrb[0].mxu0
    %v3014 = vadd.f32 0.0, %v3013
    %v3015 = vpop.f32.mrb[0].mxu0
    %3016 = vdwg.mxu0
    %v3017 = vadd.f32 %v2447, %v3014
    %v3018 = vld [vmem:[%s25] sm:$0x1]
    %v3020 = vlaneseq
    %v3021 = vshrl.u32 %v3020, 7
    %v3022 = vsub.s32 0, %v3021
    %v3023 = vrot.slane %v3018, %v3022
    %v3025 = vadd.f32 %v3017, %v3023
    %v3026 = vadd.f32 %v311, %v3025
    %v3027 = vsel %vm267, %v3026, 0.0
    %3028 = vadd.xlane.f32.xlu0 %v3027
    %v3029 = vpop.xlane.xlu0 %3028
    %v3030 = vmul.f32 %v3029, %v274
    %v3031 = vsub.f32 %v3026, %v3030
    %v3032 = vmul.f32 %v3031, %v3031
    %v3033 = vsel %vm267, %v3032, 0.0
    %3034 = vadd.xlane.f32.xlu0 %v3033
    %v3035 = vpop.xlane.xlu0 %3034
    %v3036 = vmul.f32 %v3035, %v274
    %v3037 = vadd.f32 %v3036, 1e-05
    %v3038 = vrsqrt.pop %v3037
    %v3039 = vmul.f32 %v3031, %v3038
    %v3040 = vld [vmem:[%s27] sm:$0x1]
    %v3042 = vlaneseq
    %v3043 = vshrl.u32 %v3042, 7
    %v3044 = vsub.s32 0, %v3043
    %v3045 = vrot.slane %v3040, %v3044
    %v3047 = vmul.f32 %v3039, %v3045
    %v3048 = vld [vmem:[%s29] sm:$0x1]
    %v3050 = vlaneseq
    %v3051 = vshrl.u32 %v3050, 7
    %v3052 = vsub.s32 0, %v3051
    %v3053 = vrot.slane %v3048, %v3052
    %v3055 = vadd.f32 %v3047, %v3053
    %v3056 = vadd.f32 %v251, %v3055
    %v3057 = vsel %vm267, %v3056, 0.0
    %3058 = vadd.xlane.f32.xlu0 %v3057
    %v3059 = vpop.xlane.xlu0 %3058
    %v3060 = vmul.f32 %v3059, %v274
    %v3061 = vsub.f32 %v3056, %v3060
    %v3062 = vmul.f32 %v3061, %v3061
    %v3063 = vsel %vm267, %v3062, 0.0
    %3064 = vadd.xlane.f32.xlu0 %v3063
    %v3065 = vpop.xlane.xlu0 %3064
    %v3066 = vmul.f32 %v3065, %v274
    %v3067 = vadd.f32 %v3066, 1e-05
    %v3068 = vrsqrt.pop %v3067
    %v3069 = vmul.f32 %v3061, %v3068
    %v3070 = vld [vmem:[%s31] sm:$0x1]
    %v3072 = vlaneseq
    %v3073 = vshrl.u32 %v3072, 7
    %v3074 = vsub.s32 0, %v3073
    %v3075 = vrot.slane %v3070, %v3074
    %v3077 = vmul.f32 %v3069, %v3075
    %v3078 = vld [vmem:[%s33] sm:$0x1]
    %v3080 = vlaneseq
    %v3081 = vshrl.u32 %v3080, 7
    %v3082 = vsub.s32 0, %v3081
    %v3083 = vrot.slane %v3078, %v3082
    %v3085 = vadd.f32 %v3077, %v3083
    %v3086 = vld [vmem:[%s35] sm:$0xff]
    %v3087 = vld [vmem:[%s35 + $0x8] sm:$0xff]
    %v3088 = vld [vmem:[%s35 + $0x10] sm:$0xff]
    %v3089 = vld [vmem:[%s35 + $0x18] sm:$0xff]
    %v3091 = vsel %vm267, %v3085, 0
    %3093 = vmatprep.subr.mxu0 0.0
    %3094 = vmatpush1.msra.mxu0 %v3086
    %3095 = vmatprep.subr.mxu0 0.0
    %3096 = vmatpush1.msra.mxu0 %v3087
    %3097 = vmatprep.subr.mxu0 0.0
    %3098 = vmatpush1.msra.mxu0 %v3088
    %3099 = vmatprep.subr.mxu0 0.0
    %3100 = vmatpush1.msra.mxu0 %v3089
    %3101 = vmatprep.subr.mxu0 0.0
    %3102 = vmatpush1.msra.mxu0 0.0
    %3103 = vmatprep.subr.mxu0 0.0
    %3104 = vmatpush1.msra.mxu0 0.0
    %3105 = vmatprep.subr.mxu0 0.0
    %3106 = vmatpush1.msra.mxu0 0.0
    %3107 = vmatprep.subr.mxu0 0.0
    %3108 = vmatpush1.msra.mxu0 0.0
    %3109 = vmatprep.subr.mxu0 0.0
    %3110 = vmatpush1.msra.mxu0 0.0
    %3111 = vmatprep.subr.mxu0 0.0
    %3112 = vmatpush1.msra.mxu0 0.0
    %3113 = vmatprep.subr.mxu0 0.0
    %3114 = vmatpush1.msra.mxu0 0.0
    %3115 = vmatprep.subr.mxu0 0.0
    %3116 = vmatpush1.msra.mxu0 0.0
    %3117 = vmatprep.subr.mxu0 0.0
    %3118 = vmatpush1.msra.mxu0 0.0
    %3119 = vmatprep.subr.mxu0 0.0
    %3120 = vmatpush1.msra.mxu0 0.0
    %3121 = vmatprep.subr.mxu0 0.0
    %3122 = vmatpush1.msra.mxu0 0.0
    %3123 = vmatprep.subr.mxu0 0.0
    %3124 = vmatpush1.msra.mxu0 0.0
    %3125 = vmatprep.subr.mxu0 0.0
    %3126 = vmatpush1.msra.mxu0 0.0
    %3127 = vmatprep.subr.mxu0 0.0
    %3128 = vmatpush1.msra.mxu0 0.0
    %3129 = vmatprep.subr.mxu0 0.0
    %3130 = vmatpush1.msra.mxu0 0.0
    %3131 = vmatprep.subr.mxu0 0.0
    %3132 = vmatpush1.msra.mxu0 0.0
    %3133 = vmatprep.subr.mxu0 0.0
    %3134 = vmatpush1.msra.mxu0 0.0
    %3135 = vmatprep.subr.mxu0 0.0
    %3136 = vmatpush1.msra.mxu0 0.0
    %3137 = vmatprep.subr.mxu0 0.0
    %3138 = vmatpush1.msra.mxu0 0.0
    %3139 = vmatprep.subr.mxu0 0.0
    %3140 = vmatpush1.msra.mxu0 0.0
    %3141 = vmatprep.subr.mxu0 0.0
    %3142 = vmatpush1.msra.mxu0 0.0
    %3143 = vmatprep.subr.mxu0 0.0
    %3144 = vmatpush1.msra.mxu0 0.0
    %3145 = vmatprep.subr.mxu0 0.0
    %3146 = vmatpush1.msra.mxu0 0.0
    %3147 = vmatprep.subr.mxu0 0.0
    %3148 = vmatpush1.msra.mxu0 0.0
    %3149 = vmatprep.subr.mxu0 0.0
    %3150 = vmatpush1.msra.mxu0 0.0
    %3151 = vmatprep.subr.mxu0 0.0
    %3152 = vmatpush1.msra.mxu0 0.0
    %3153 = vmatprep.subr.mxu0 0.0
    %3154 = vmatpush1.msra.mxu0 0.0
    %3155 = vmatprep.subr.mxu0 0.0
    %3156 = vmatpush1.msra.mxu0 0.0
    %3157 = vmatprep.mubr.f32.mxu0 0.0
    %3158 = vmatmul.mubr.f32.gmra.mrb[0].mxu0 %v3091
    %v3159 = vpop.f32.mrb[0].mxu0
    %v3160 = vadd.f32 0.0, %v3159
    %v3161 = vpop.f32.mrb[0].mxu0
    %3162 = vdwg.mxu0
    %v3164 = vsel %vm745, %v3160, 0
    %v3167 = vsel %vm745, %v737, 0
    %3169 = vmatprep.subr.mxu0 0.0
    %3170 = vmatpush1.xpose.msra.mxu0 %v3167
    %3171 = vmatprep.subr.mxu0 0.0
    %3172 = vmatpush1.xpose.msra.mxu0 0.0
    %3173 = vmatprep.subr.mxu0 0.0
    %3174 = vmatpush1.xpose.msra.mxu0 0.0
    %3175 = vmatprep.subr.mxu0 0.0
    %3176 = vmatpush1.xpose.msra.mxu0 0.0
    %3177 = vmatprep.subr.mxu0 0.0
    %3178 = vmatpush1.xpose.msra.mxu0 0.0
    %3179 = vmatprep.subr.mxu0 0.0
    %3180 = vmatpush1.xpose.msra.mxu0 0.0
    %3181 = vmatprep.subr.mxu0 0.0
    %3182 = vmatpush1.xpose.msra.mxu0 0.0
    %3183 = vmatprep.subr.mxu0 0.0
    %3184 = vmatpush1.xpose.msra.mxu0 0.0
    %3185 = vmatprep.subr.mxu0 0.0
    %3186 = vmatpush1.xpose.msra.mxu0 0.0
    %3187 = vmatprep.subr.mxu0 0.0
    %3188 = vmatpush1.xpose.msra.mxu0 0.0
    %3189 = vmatprep.subr.mxu0 0.0
    %3190 = vmatpush1.xpose.msra.mxu0 0.0
    %3191 = vmatprep.subr.mxu0 0.0
    %3192 = vmatpush1.xpose.msra.mxu0 0.0
    %3193 = vmatprep.subr.mxu0 0.0
    %3194 = vmatpush1.xpose.msra.mxu0 0.0
    %3195 = vmatprep.subr.mxu0 0.0
    %3196 = vmatpush1.xpose.msra.mxu0 0.0
    %3197 = vmatprep.subr.mxu0 0.0
    %3198 = vmatpush1.xpose.msra.mxu0 0.0
    %3199 = vmatprep.subr.mxu0 0.0
    %3200 = vmatpush1.xpose.msra.mxu0 0.0
    %3201 = vmatprep.subr.mxu0 0.0
    %3202 = vmatpush1.xpose.msra.mxu0 0.0
    %3203 = vmatprep.subr.mxu0 0.0
    %3204 = vmatpush1.xpose.msra.mxu0 0.0
    %3205 = vmatprep.subr.mxu0 0.0
    %3206 = vmatpush1.xpose.msra.mxu0 0.0
    %3207 = vmatprep.subr.mxu0 0.0
    %3208 = vmatpush1.xpose.msra.mxu0 0.0
    %3209 = vmatprep.subr.mxu0 0.0
    %3210 = vmatpush1.xpose.msra.mxu0 0.0
    %3211 = vmatprep.subr.mxu0 0.0
    %3212 = vmatpush1.xpose.msra.mxu0 0.0
    %3213 = vmatprep.subr.mxu0 0.0
    %3214 = vmatpush1.xpose.msra.mxu0 0.0
    %3215 = vmatprep.subr.mxu0 0.0
    %3216 = vmatpush1.xpose.msra.mxu0 0.0
    %3217 = vmatprep.subr.mxu0 0.0
    %3218 = vmatpush1.xpose.msra.mxu0 0.0
    %3219 = vmatprep.subr.mxu0 0.0
    %3220 = vmatpush1.xpose.msra.mxu0 0.0
    %3221 = vmatprep.subr.mxu0 0.0
    %3222 = vmatpush1.xpose.msra.mxu0 0.0
    %3223 = vmatprep.subr.mxu0 0.0
    %3224 = vmatpush1.xpose.msra.mxu0 0.0
    %3225 = vmatprep.subr.mxu0 0.0
    %3226 = vmatpush1.xpose.msra.mxu0 0.0
    %3227 = vmatprep.subr.mxu0 0.0
    %3228 = vmatpush1.xpose.msra.mxu0 0.0
    %3229 = vmatprep.subr.mxu0 0.0
    %3230 = vmatpush1.xpose.msra.mxu0 0.0
    %3231 = vmatprep.subr.mxu0 0.0
    %3232 = vmatpush1.xpose.msra.mxu0 0.0
    %3233 = vmatprep.mubr.f32.mxu0 0.0
    %3234 = vmatmul.mubr.f32.gmra.mrb[0].mxu0 %v3164
    %v3235 = vpop.f32.mrb[0].mxu0
    %v3236 = vadd.f32 0.0, %v3235
    %v3237 = vpop.f32.mrb[0].mxu0
    %3238 = vdwg.mxu0
    %v3239 = vmul.f32 %v3236, 0.35355338
    %v3240 = vsel %vm745, %v3239, -inf
    %v3241 = vrot.slane %v3240, 4
    %v3242 = vmax.f32 %v3240, %v3241
    %v3243 = vrot.slane %v3242, 2
    %v3244 = vmax.f32 %v3242, %v3243
    %v3245 = vrot.slane %v3244, 1
    %v3246 = vmax.f32 %v3244, %v3245
    %v3247 = vsub.f32 %v3239, %v3246
    %v3248 = vmul.f32 %v3247, 1.442695
    %v3249 = vpow.pop %v3248
    %v3250 = vsel %vm745, %v3249, 0.0
    %v3251 = vrot.slane %v3250, 4
    %v3252 = vadd.f32 %v3250, %v3251
    %v3253 = vrot.slane %v3252, 2
    %v3254 = vadd.f32 %v3252, %v3253
    %v3255 = vrot.slane %v3254, 1
    %v3256 = vadd.f32 %v3254, %v3255
    %v3257 = vrcp.pop %v3256
    %v3258 = vmul.f32 %v3249, %v3257
    %3259 = vrot.lane.b32.xlu0 %v737, 96
    %v3260 = vpop.permute.xlu0 %3259
    %v3263 = vsel %vm745, %v3258, 0
    %3265 = vmatprep.subr.mxu0 0.0
    %3266 = vmatpush1.msra.mxu0 %v3260
    %3267 = vmatprep.subr.mxu0 0.0
    %3268 = vmatpush1.msra.mxu0 0.0
    %3269 = vmatprep.subr.mxu0 0.0
    %3270 = vmatpush1.msra.mxu0 0.0
    %3271 = vmatprep.subr.mxu0 0.0
    %3272 = vmatpush1.msra.mxu0 0.0
    %3273 = vmatprep.subr.mxu0 0.0
    %3274 = vmatpush1.msra.mxu0 0.0
    %3275 = vmatprep.subr.mxu0 0.0
    %3276 = vmatpush1.msra.mxu0 0.0
    %3277 = vmatprep.subr.mxu0 0.0
    %3278 = vmatpush1.msra.mxu0 0.0
    %3279 = vmatprep.subr.mxu0 0.0
    %3280 = vmatpush1.msra.mxu0 0.0
    %3281 = vmatprep.subr.mxu0 0.0
    %3282 = vmatpush1.msra.mxu0 0.0
    %3283 = vmatprep.subr.mxu0 0.0
    %3284 = vmatpush1.msra.mxu0 0.0
    %3285 = vmatprep.subr.mxu0 0.0
    %3286 = vmatpush1.msra.mxu0 0.0
    %3287 = vmatprep.subr.mxu0 0.0
    %3288 = vmatpush1.msra.mxu0 0.0
    %3289 = vmatprep.subr.mxu0 0.0
    %3290 = vmatpush1.msra.mxu0 0.0
    %3291 = vmatprep.subr.mxu0 0.0
    %3292 = vmatpush1.msra.mxu0 0.0
    %3293 = vmatprep.subr.mxu0 0.0
    %3294 = vmatpush1.msra.mxu0 0.0
    %3295 = vmatprep.subr.mxu0 0.0
    %3296 = vmatpush1.msra.mxu0 0.0
    %3297 = vmatprep.subr.mxu0 0.0
    %3298 = vmatpush1.msra.mxu0 0.0
    %3299 = vmatprep.subr.mxu0 0.0
    %3300 = vmatpush1.msra.mxu0 0.0
    %3301 = vmatprep.subr.mxu0 0.0
    %3302 = vmatpush1.msra.mxu0 0.0
    %3303 = vmatprep.subr.mxu0 0.0
    %3304 = vmatpush1.msra.mxu0 0.0
    %3305 = vmatprep.subr.mxu0 0.0
    %3306 = vmatpush1.msra.mxu0 0.0
    %3307 = vmatprep.subr.mxu0 0.0
    %3308 = vmatpush1.msra.mxu0 0.0
    %3309 = vmatprep.subr.mxu0 0.0
    %3310 = vmatpush1.msra.mxu0 0.0
    %3311 = vmatprep.subr.mxu0 0.0
    %3312 = vmatpush1.msra.mxu0 0.0
    %3313 = vmatprep.subr.mxu0 0.0
    %3314 = vmatpush1.msra.mxu0 0.0
    %3315 = vmatprep.subr.mxu0 0.0
    %3316 = vmatpush1.msra.mxu0 0.0
    %3317 = vmatprep.subr.mxu0 0.0
    %3318 = vmatpush1.msra.mxu0 0.0
    %3319 = vmatprep.subr.mxu0 0.0
    %3320 = vmatpush1.msra.mxu0 0.0
    %3321 = vmatprep.subr.mxu0 0.0
    %3322 = vmatpush1.msra.mxu0 0.0
    %3323 = vmatprep.subr.mxu0 0.0
    %3324 = vmatpush1.msra.mxu0 0.0
    %3325 = vmatprep.subr.mxu0 0.0
    %3326 = vmatpush1.msra.mxu0 0.0
    %3327 = vmatprep.subr.mxu0 0.0
    %3328 = vmatpush1.msra.mxu0 0.0
    %3329 = vmatprep.mubr.f32.mxu0 0.0
    %3330 = vmatmul.mubr.f32.gmra.mrb[0].mxu0 %v3263
    %v3331 = vpop.f32.mrb[0].mxu0
    %v3332 = vadd.f32 0.0, %v3331
    %v3333 = vpop.f32.mrb[0].mxu0
    %3334 = vdwg.mxu0
    %3335 = vrot.lane.b32.xlu0 %v3160, 120
    %v3336 = vpop.permute.xlu0 %3335
    %3337 = vrot.lane.b32.xlu0 %v737, 120
    %v3338 = vpop.permute.xlu0 %3337
    %v3339 = vsel %vm745, %v3336, 0
    %v3341 = vsel %vm745, %v3338, 0
    %3343 = vmatprep.subr.mxu0 0.0
    %3344 = vmatpush1.xpose.msra.mxu0 %v3341
    %3345 = vmatprep.subr.mxu0 0.0
    %3346 = vmatpush1.xpose.msra.mxu0 0.0
    %3347 = vmatprep.subr.mxu0 0.0
    %3348 = vmatpush1.xpose.msra.mxu0 0.0
    %3349 = vmatprep.subr.mxu0 0.0
    %3350 = vmatpush1.xpose.msra.mxu0 0.0
    %3351 = vmatprep.subr.mxu0 0.0
    %3352 = vmatpush1.xpose.msra.mxu0 0.0
    %3353 = vmatprep.subr.mxu0 0.0
    %3354 = vmatpush1.xpose.msra.mxu0 0.0
    %3355 = vmatprep.subr.mxu0 0.0
    %3356 = vmatpush1.xpose.msra.mxu0 0.0
    %3357 = vmatprep.subr.mxu0 0.0
    %3358 = vmatpush1.xpose.msra.mxu0 0.0
    %3359 = vmatprep.subr.mxu0 0.0
    %3360 = vmatpush1.xpose.msra.mxu0 0.0
    %3361 = vmatprep.subr.mxu0 0.0
    %3362 = vmatpush1.xpose.msra.mxu0 0.0
    %3363 = vmatprep.subr.mxu0 0.0
    %3364 = vmatpush1.xpose.msra.mxu0 0.0
    %3365 = vmatprep.subr.mxu0 0.0
    %3366 = vmatpush1.xpose.msra.mxu0 0.0
    %3367 = vmatprep.subr.mxu0 0.0
    %3368 = vmatpush1.xpose.msra.mxu0 0.0
    %3369 = vmatprep.subr.mxu0 0.0
    %3370 = vmatpush1.xpose.msra.mxu0 0.0
    %3371 = vmatprep.subr.mxu0 0.0
    %3372 = vmatpush1.xpose.msra.mxu0 0.0
    %3373 = vmatprep.subr.mxu0 0.0
    %3374 = vmatpush1.xpose.msra.mxu0 0.0
    %3375 = vmatprep.subr.mxu0 0.0
    %3376 = vmatpush1.xpose.msra.mxu0 0.0
    %3377 = vmatprep.subr.mxu0 0.0
    %3378 = vmatpush1.xpose.msra.mxu0 0.0
    %3379 = vmatprep.subr.mxu0 0.0
    %3380 = vmatpush1.xpose.msra.mxu0 0.0
    %3381 = vmatprep.subr.mxu0 0.0
    %3382 = vmatpush1.xpose.msra.mxu0 0.0
    %3383 = vmatprep.subr.mxu0 0.0
    %3384 = vmatpush1.xpose.msra.mxu0 0.0
    %3385 = vmatprep.subr.mxu0 0.0
    %3386 = vmatpush1.xpose.msra.mxu0 0.0
    %3387 = vmatprep.subr.mxu0 0.0
    %3388 = vmatpush1.xpose.msra.mxu0 0.0
    %3389 = vmatprep.subr.mxu0 0.0
    %3390 = vmatpush1.xpose.msra.mxu0 0.0
    %3391 = vmatprep.subr.mxu0 0.0
    %3392 = vmatpush1.xpose.msra.mxu0 0.0
    %3393 = vmatprep.subr.mxu0 0.0
    %3394 = vmatpush1.xpose.msra.mxu0 0.0
    %3395 = vmatprep.subr.mxu0 0.0
    %3396 = vmatpush1.xpose.msra.mxu0 0.0
    %3397 = vmatprep.subr.mxu0 0.0
    %3398 = vmatpush1.xpose.msra.mxu0 0.0
    %3399 = vmatprep.subr.mxu0 0.0
    %3400 = vmatpush1.xpose.msra.mxu0 0.0
    %3401 = vmatprep.subr.mxu0 0.0
    %3402 = vmatpush1.xpose.msra.mxu0 0.0
    %3403 = vmatprep.subr.mxu0 0.0
    %3404 = vmatpush1.xpose.msra.mxu0 0.0
    %3405 = vmatprep.subr.mxu0 0.0
    %3406 = vmatpush1.xpose.msra.mxu0 0.0
    %3407 = vmatprep.mubr.f32.mxu0 0.0
    %3408 = vmatmul.mubr.f32.gmra.mrb[0].mxu0 %v3339
    %v3409 = vpop.f32.mrb[0].mxu0
    %v3410 = vadd.f32 0.0, %v3409
    %v3411 = vpop.f32.mrb[0].mxu0
    %3412 = vdwg.mxu0
    %v3413 = vmul.f32 %v3410, 0.35355338
    %v3414 = vsel %vm745, %v3413, -inf
    %v3415 = vrot.slane %v3414, 4
    %v3416 = vmax.f32 %v3414, %v3415
    %v3417 = vrot.slane %v3416, 2
    %v3418 = vmax.f32 %v3416, %v3417
    %v3419 = vrot.slane %v3418, 1
    %v3420 = vmax.f32 %v3418, %v3419
    %v3421 = vsub.f32 %v3413, %v3420
    %v3422 = vmul.f32 %v3421, 1.442695
    %v3423 = vpow.pop %v3422
    %v3424 = vsel %vm745, %v3423, 0.0
    %v3425 = vrot.slane %v3424, 4
    %v3426 = vadd.f32 %v3424, %v3425
    %v3427 = vrot.slane %v3426, 2
    %v3428 = vadd.f32 %v3426, %v3427
    %v3429 = vrot.slane %v3428, 1
    %v3430 = vadd.f32 %v3428, %v3429
    %v3431 = vrcp.pop %v3430
    %v3432 = vmul.f32 %v3423, %v3431
    %3433 = vrot.lane.b32.xlu0 %v737, 88
    %v3434 = vpop.permute.xlu0 %3433
    %v3437 = vsel %vm745, %v3432, 0
    %3439 = vmatprep.subr.mxu0 0.0
    %3440 = vmatpush1.msra.mxu0 %v3434
    %3441 = vmatprep.subr.mxu0 0.0
    %3442 = vmatpush1.msra.mxu0 0.0
    %3443 = vmatprep.subr.mxu0 0.0
    %3444 = vmatpush1.msra.mxu0 0.0
    %3445 = vmatprep.subr.mxu0 0.0
    %3446 = vmatpush1.msra.mxu0 0.0
    %3447 = vmatprep.subr.mxu0 0.0
    %3448 = vmatpush1.msra.mxu0 0.0
    %3449 = vmatprep.subr.mxu0 0.0
    %3450 = vmatpush1.msra.mxu0 0.0
    %3451 = vmatprep.subr.mxu0 0.0
    %3452 = vmatpush1.msra.mxu0 0.0
    %3453 = vmatprep.subr.mxu0 0.0
    %3454 = vmatpush1.msra.mxu0 0.0
    %3455 = vmatprep.subr.mxu0 0.0
    %3456 = vmatpush1.msra.mxu0 0.0
    %3457 = vmatprep.subr.mxu0 0.0
    %3458 = vmatpush1.msra.mxu0 0.0
    %3459 = vmatprep.subr.mxu0 0.0
    %3460 = vmatpush1.msra.mxu0 0.0
    %3461 = vmatprep.subr.mxu0 0.0
    %3462 = vmatpush1.msra.mxu0 0.0
    %3463 = vmatprep.subr.mxu0 0.0
    %3464 = vmatpush1.msra.mxu0 0.0
    %3465 = vmatprep.subr.mxu0 0.0
    %3466 = vmatpush1.msra.mxu0 0.0
    %3467 = vmatprep.subr.mxu0 0.0
    %3468 = vmatpush1.msra.mxu0 0.0
    %3469 = vmatprep.subr.mxu0 0.0
    %3470 = vmatpush1.msra.mxu0 0.0
    %3471 = vmatprep.subr.mxu0 0.0
    %3472 = vmatpush1.msra.mxu0 0.0
    %3473 = vmatprep.subr.mxu0 0.0
    %3474 = vmatpush1.msra.mxu0 0.0
    %3475 = vmatprep.subr.mxu0 0.0
    %3476 = vmatpush1.msra.mxu0 0.0
    %3477 = vmatprep.subr.mxu0 0.0
    %3478 = vmatpush1.msra.mxu0 0.0
    %3479 = vmatprep.subr.mxu0 0.0
    %3480 = vmatpush1.msra.mxu0 0.0
    %3481 = vmatprep.subr.mxu0 0.0
    %3482 = vmatpush1.msra.mxu0 0.0
    %3483 = vmatprep.subr.mxu0 0.0
    %3484 = vmatpush1.msra.mxu0 0.0
    %3485 = vmatprep.subr.mxu0 0.0
    %3486 = vmatpush1.msra.mxu0 0.0
    %3487 = vmatprep.subr.mxu0 0.0
    %3488 = vmatpush1.msra.mxu0 0.0
    %3489 = vmatprep.subr.mxu0 0.0
    %3490 = vmatpush1.msra.mxu0 0.0
    %3491 = vmatprep.subr.mxu0 0.0
    %3492 = vmatpush1.msra.mxu0 0.0
    %3493 = vmatprep.subr.mxu0 0.0
    %3494 = vmatpush1.msra.mxu0 0.0
    %3495 = vmatprep.subr.mxu0 0.0
    %3496 = vmatpush1.msra.mxu0 0.0
    %3497 = vmatprep.subr.mxu0 0.0
    %3498 = vmatpush1.msra.mxu0 0.0
    %3499 = vmatprep.subr.mxu0 0.0
    %3500 = vmatpush1.msra.mxu0 0.0
    %3501 = vmatprep.subr.mxu0 0.0
    %3502 = vmatpush1.msra.mxu0 0.0
    %3503 = vmatprep.mubr.f32.mxu0 0.0
    %3504 = vmatmul.mubr.f32.gmra.mrb[0].mxu0 %v3437
    %v3505 = vpop.f32.mrb[0].mxu0
    %v3506 = vadd.f32 0.0, %v3505
    %v3507 = vpop.f32.mrb[0].mxu0
    %3508 = vdwg.mxu0
    %v3510 = vsel %vm745, %v3506, 0
    %3512 = vmatprep.subr.mxu0 0.0
    %3513 = vmatpush1.msra.mxu0 %v264
    %3514 = vmatprep.subr.mxu0 0.0
    %3515 = vmatpush1.msra.mxu0 0.0
    %3516 = vmatprep.subr.mxu0 0.0
    %3517 = vmatpush1.msra.mxu0 0.0
    %3518 = vmatprep.subr.mxu0 0.0
    %3519 = vmatpush1.msra.mxu0 0.0
    %3520 = vmatprep.subr.mxu0 0.0
    %3521 = vmatpush1.msra.mxu0 0.0
    %3522 = vmatprep.subr.mxu0 0.0
    %3523 = vmatpush1.msra.mxu0 0.0
    %3524 = vmatprep.subr.mxu0 0.0
    %3525 = vmatpush1.msra.mxu0 0.0
    %3526 = vmatprep.subr.mxu0 0.0
    %3527 = vmatpush1.msra.mxu0 0.0
    %3528 = vmatprep.subr.mxu0 0.0
    %3529 = vmatpush1.msra.mxu0 0.0
    %3530 = vmatprep.subr.mxu0 0.0
    %3531 = vmatpush1.msra.mxu0 0.0
    %3532 = vmatprep.subr.mxu0 0.0
    %3533 = vmatpush1.msra.mxu0 0.0
    %3534 = vmatprep.subr.mxu0 0.0
    %3535 = vmatpush1.msra.mxu0 0.0
    %3536 = vmatprep.subr.mxu0 0.0
    %3537 = vmatpush1.msra.mxu0 0.0
    %3538 = vmatprep.subr.mxu0 0.0
    %3539 = vmatpush1.msra.mxu0 0.0
    %3540 = vmatprep.subr.mxu0 0.0
    %3541 = vmatpush1.msra.mxu0 0.0
    %3542 = vmatprep.subr.mxu0 0.0
    %3543 = vmatpush1.msra.mxu0 0.0
    %3544 = vmatprep.subr.mxu0 0.0
    %3545 = vmatpush1.msra.mxu0 0.0
    %3546 = vmatprep.subr.mxu0 0.0
    %3547 = vmatpush1.msra.mxu0 0.0
    %3548 = vmatprep.subr.mxu0 0.0
    %3549 = vmatpush1.msra.mxu0 0.0
    %3550 = vmatprep.subr.mxu0 0.0
    %3551 = vmatpush1.msra.mxu0 0.0
    %3552 = vmatprep.subr.mxu0 0.0
    %3553 = vmatpush1.msra.mxu0 0.0
    %3554 = vmatprep.subr.mxu0 0.0
    %3555 = vmatpush1.msra.mxu0 0.0
    %3556 = vmatprep.subr.mxu0 0.0
    %3557 = vmatpush1.msra.mxu0 0.0
    %3558 = vmatprep.subr.mxu0 0.0
    %3559 = vmatpush1.msra.mxu0 0.0
    %3560 = vmatprep.subr.mxu0 0.0
    %3561 = vmatpush1.msra.mxu0 0.0
    %3562 = vmatprep.subr.mxu0 0.0
    %3563 = vmatpush1.msra.mxu0 0.0
    %3564 = vmatprep.subr.mxu0 0.0
    %3565 = vmatpush1.msra.mxu0 0.0
    %3566 = vmatprep.subr.mxu0 0.0
    %3567 = vmatpush1.msra.mxu0 0.0
    %3568 = vmatprep.subr.mxu0 0.0
    %3569 = vmatpush1.msra.mxu0 0.0
    %3570 = vmatprep.subr.mxu0 0.0
    %3571 = vmatpush1.msra.mxu0 0.0
    %3572 = vmatprep.subr.mxu0 0.0
    %3573 = vmatpush1.msra.mxu0 0.0
    %3574 = vmatprep.subr.mxu0 0.0
    %3575 = vmatpush1.msra.mxu0 0.0
    %3576 = vmatprep.mubr.f32.mxu0 0.0
    %3577 = vmatmul.mubr.f32.gmra.mrb[0].mxu0 %v3510
    %v3578 = vpop.f32.mrb[0].mxu0
    %v3579 = vadd.f32 0.0, %v3578
    %v3580 = vpop.f32.mrb[0].mxu0
    %3581 = vdwg.mxu0
    %v3583 = vsel %vm745, %v3332, 0
    %3585 = vmatprep.subr.mxu0 0.0
    %3586 = vmatpush1.msra.mxu0 %v263
    %3587 = vmatprep.subr.mxu0 0.0
    %3588 = vmatpush1.msra.mxu0 0.0
    %3589 = vmatprep.subr.mxu0 0.0
    %3590 = vmatpush1.msra.mxu0 0.0
    %3591 = vmatprep.subr.mxu0 0.0
    %3592 = vmatpush1.msra.mxu0 0.0
    %3593 = vmatprep.subr.mxu0 0.0
    %3594 = vmatpush1.msra.mxu0 0.0
    %3595 = vmatprep.subr.mxu0 0.0
    %3596 = vmatpush1.msra.mxu0 0.0
    %3597 = vmatprep.subr.mxu0 0.0
    %3598 = vmatpush1.msra.mxu0 0.0
    %3599 = vmatprep.subr.mxu0 0.0
    %3600 = vmatpush1.msra.mxu0 0.0
    %3601 = vmatprep.subr.mxu0 0.0
    %3602 = vmatpush1.msra.mxu0 0.0
    %3603 = vmatprep.subr.mxu0 0.0
    %3604 = vmatpush1.msra.mxu0 0.0
    %3605 = vmatprep.subr.mxu0 0.0
    %3606 = vmatpush1.msra.mxu0 0.0
    %3607 = vmatprep.subr.mxu0 0.0
    %3608 = vmatpush1.msra.mxu0 0.0
    %3609 = vmatprep.subr.mxu0 0.0
    %3610 = vmatpush1.msra.mxu0 0.0
    %3611 = vmatprep.subr.mxu0 0.0
    %3612 = vmatpush1.msra.mxu0 0.0
    %3613 = vmatprep.subr.mxu0 0.0
    %3614 = vmatpush1.msra.mxu0 0.0
    %3615 = vmatprep.subr.mxu0 0.0
    %3616 = vmatpush1.msra.mxu0 0.0
    %3617 = vmatprep.subr.mxu0 0.0
    %3618 = vmatpush1.msra.mxu0 0.0
    %3619 = vmatprep.subr.mxu0 0.0
    %3620 = vmatpush1.msra.mxu0 0.0
    %3621 = vmatprep.subr.mxu0 0.0
    %3622 = vmatpush1.msra.mxu0 0.0
    %3623 = vmatprep.subr.mxu0 0.0
    %3624 = vmatpush1.msra.mxu0 0.0
    %3625 = vmatprep.subr.mxu0 0.0
    %3626 = vmatpush1.msra.mxu0 0.0
    %3627 = vmatprep.subr.mxu0 0.0
    %3628 = vmatpush1.msra.mxu0 0.0
    %3629 = vmatprep.subr.mxu0 0.0
    %3630 = vmatpush1.msra.mxu0 0.0
    %3631 = vmatprep.subr.mxu0 0.0
    %3632 = vmatpush1.msra.mxu0 0.0
    %3633 = vmatprep.subr.mxu0 0.0
    %3634 = vmatpush1.msra.mxu0 0.0
    %3635 = vmatprep.subr.mxu0 0.0
    %3636 = vmatpush1.msra.mxu0 0.0
    %3637 = vmatprep.subr.mxu0 0.0
    %3638 = vmatpush1.msra.mxu0 0.0
    %3639 = vmatprep.subr.mxu0 0.0
    %3640 = vmatpush1.msra.mxu0 0.0
    %3641 = vmatprep.subr.mxu0 0.0
    %3642 = vmatpush1.msra.mxu0 0.0
    %3643 = vmatprep.subr.mxu0 0.0
    %3644 = vmatpush1.msra.mxu0 0.0
    %3645 = vmatprep.subr.mxu0 0.0
    %3646 = vmatpush1.msra.mxu0 0.0
    %3647 = vmatprep.subr.mxu0 0.0
    %3648 = vmatpush1.msra.mxu0 0.0
    %3649 = vmatprep.mubr.f32.mxu0 0.0
    %3650 = vmatmul.mubr.f32.gmra.mrb[0].mxu0 %v3583
    %v3651 = vpop.f32.mrb[0].mxu0
    %v3652 = vadd.f32 %v3579, %v3651
    %v3653 = vpop.f32.mrb[0].mxu0
    %3654 = vdwg.mxu0
    %3655 = vrot.lane.b32.xlu0 %v3160, 112
    %v3656 = vpop.permute.xlu0 %3655
    %3657 = vrot.lane.b32.xlu0 %v737, 112
    %v3658 = vpop.permute.xlu0 %3657
    %v3659 = vsel %vm745, %v3656, 0
    %v3661 = vsel %vm745, %v3658, 0
    %3663 = vmatprep.subr.mxu0 0.0
    %3664 = vmatpush1.xpose.msra.mxu0 %v3661
    %3665 = vmatprep.subr.mxu0 0.0
    %3666 = vmatpush1.xpose.msra.mxu0 0.0
    %3667 = vmatprep.subr.mxu0 0.0
    %3668 = vmatpush1.xpose.msra.mxu0 0.0
    %3669 = vmatprep.subr.mxu0 0.0
    %3670 = vmatpush1.xpose.msra.mxu0 0.0
    %3671 = vmatprep.subr.mxu0 0.0
    %3672 = vmatpush1.xpose.msra.mxu0 0.0
    %3673 = vmatprep.subr.mxu0 0.0
    %3674 = vmatpush1.xpose.msra.mxu0 0.0
    %3675 = vmatprep.subr.mxu0 0.0
    %3676 = vmatpush1.xpose.msra.mxu0 0.0
    %3677 = vmatprep.subr.mxu0 0.0
    %3678 = vmatpush1.xpose.msra.mxu0 0.0
    %3679 = vmatprep.subr.mxu0 0.0
    %3680 = vmatpush1.xpose.msra.mxu0 0.0
    %3681 = vmatprep.subr.mxu0 0.0
    %3682 = vmatpush1.xpose.msra.mxu0 0.0
    %3683 = vmatprep.subr.mxu0 0.0
    %3684 = vmatpush1.xpose.msra.mxu0 0.0
    %3685 = vmatprep.subr.mxu0 0.0
    %3686 = vmatpush1.xpose.msra.mxu0 0.0
    %3687 = vmatprep.subr.mxu0 0.0
    %3688 = vmatpush1.xpose.msra.mxu0 0.0
    %3689 = vmatprep.subr.mxu0 0.0
    %3690 = vmatpush1.xpose.msra.mxu0 0.0
    %3691 = vmatprep.subr.mxu0 0.0
    %3692 = vmatpush1.xpose.msra.mxu0 0.0
    %3693 = vmatprep.subr.mxu0 0.0
    %3694 = vmatpush1.xpose.msra.mxu0 0.0
    %3695 = vmatprep.subr.mxu0 0.0
    %3696 = vmatpush1.xpose.msra.mxu0 0.0
    %3697 = vmatprep.subr.mxu0 0.0
    %3698 = vmatpush1.xpose.msra.mxu0 0.0
    %3699 = vmatprep.subr.mxu0 0.0
    %3700 = vmatpush1.xpose.msra.mxu0 0.0
    %3701 = vmatprep.subr.mxu0 0.0
    %3702 = vmatpush1.xpose.msra.mxu0 0.0
    %3703 = vmatprep.subr.mxu0 0.0
    %3704 = vmatpush1.xpose.msra.mxu0 0.0
    %3705 = vmatprep.subr.mxu0 0.0
    %3706 = vmatpush1.xpose.msra.mxu0 0.0
    %3707 = vmatprep.subr.mxu0 0.0
    %3708 = vmatpush1.xpose.msra.mxu0 0.0
    %3709 = vmatprep.subr.mxu0 0.0
    %3710 = vmatpush1.xpose.msra.mxu0 0.0
    %3711 = vmatprep.subr.mxu0 0.0
    %3712 = vmatpush1.xpose.msra.mxu0 0.0
    %3713 = vmatprep.subr.mxu0 0.0
    %3714 = vmatpush1.xpose.msra.mxu0 0.0
    %3715 = vmatprep.subr.mxu0 0.0
    %3716 = vmatpush1.xpose.msra.mxu0 0.0
    %3717 = vmatprep.subr.mxu0 0.0
    %3718 = vmatpush1.xpose.msra.mxu0 0.0
    %3719 = vmatprep.subr.mxu0 0.0
    %3720 = vmatpush1.xpose.msra.mxu0 0.0
    %3721 = vmatprep.subr.mxu0 0.0
    %3722 = vmatpush1.xpose.msra.mxu0 0.0
    %3723 = vmatprep.subr.mxu0 0.0
    %3724 = vmatpush1.xpose.msra.mxu0 0.0
    %3725 = vmatprep.subr.mxu0 0.0
    %3726 = vmatpush1.xpose.msra.mxu0 0.0
    %3727 = vmatprep.mubr.f32.mxu0 0.0
    %3728 = vmatmul.mubr.f32.gmra.mrb[0].mxu0 %v3659
    %v3729 = vpop.f32.mrb[0].mxu0
    %v3730 = vadd.f32 0.0, %v3729
    %v3731 = vpop.f32.mrb[0].mxu0
    %3732 = vdwg.mxu0
    %v3733 = vmul.f32 %v3730, 0.35355338
    %v3734 = vsel %vm745, %v3733, -inf
    %v3735 = vrot.slane %v3734, 4
    %v3736 = vmax.f32 %v3734, %v3735
    %v3737 = vrot.slane %v3736, 2
    %v3738 = vmax.f32 %v3736, %v3737
    %v3739 = vrot.slane %v3738, 1
    %v3740 = vmax.f32 %v3738, %v3739
    %v3741 = vsub.f32 %v3733, %v3740
    %v3742 = vmul.f32 %v3741, 1.442695
    %v3743 = vpow.pop %v3742
    %v3744 = vsel %vm745, %v3743, 0.0
    %v3745 = vrot.slane %v3744, 4
    %v3746 = vadd.f32 %v3744, %v3745
    %v3747 = vrot.slane %v3746, 2
    %v3748 = vadd.f32 %v3746, %v3747
    %v3749 = vrot.slane %v3748, 1
    %v3750 = vadd.f32 %v3748, %v3749
    %v3751 = vrcp.pop %v3750
    %v3752 = vmul.f32 %v3743, %v3751
    %3753 = vrot.lane.b32.xlu0 %v737, 80
    %v3754 = vpop.permute.xlu0 %3753
    %v3757 = vsel %vm745, %v3752, 0
    %3759 = vmatprep.subr.mxu0 0.0
    %3760 = vmatpush1.msra.mxu0 %v3754
    %3761 = vmatprep.subr.mxu0 0.0
    %3762 = vmatpush1.msra.mxu0 0.0
    %3763 = vmatprep.subr.mxu0 0.0
    %3764 = vmatpush1.msra.mxu0 0.0
    %3765 = vmatprep.subr.mxu0 0.0
    %3766 = vmatpush1.msra.mxu0 0.0
    %3767 = vmatprep.subr.mxu0 0.0
    %3768 = vmatpush1.msra.mxu0 0.0
    %3769 = vmatprep.subr.mxu0 0.0
    %3770 = vmatpush1.msra.mxu0 0.0
    %3771 = vmatprep.subr.mxu0 0.0
    %3772 = vmatpush1.msra.mxu0 0.0
    %3773 = vmatprep.subr.mxu0 0.0
    %3774 = vmatpush1.msra.mxu0 0.0
    %3775 = vmatprep.subr.mxu0 0.0
    %3776 = vmatpush1.msra.mxu0 0.0
    %3777 = vmatprep.subr.mxu0 0.0
    %3778 = vmatpush1.msra.mxu0 0.0
    %3779 = vmatprep.subr.mxu0 0.0
    %3780 = vmatpush1.msra.mxu0 0.0
    %3781 = vmatprep.subr.mxu0 0.0
    %3782 = vmatpush1.msra.mxu0 0.0
    %3783 = vmatprep.subr.mxu0 0.0
    %3784 = vmatpush1.msra.mxu0 0.0
    %3785 = vmatprep.subr.mxu0 0.0
    %3786 = vmatpush1.msra.mxu0 0.0
    %3787 = vmatprep.subr.mxu0 0.0
    %3788 = vmatpush1.msra.mxu0 0.0
    %3789 = vmatprep.subr.mxu0 0.0
    %3790 = vmatpush1.msra.mxu0 0.0
    %3791 = vmatprep.subr.mxu0 0.0
    %3792 = vmatpush1.msra.mxu0 0.0
    %3793 = vmatprep.subr.mxu0 0.0
    %3794 = vmatpush1.msra.mxu0 0.0
    %3795 = vmatprep.subr.mxu0 0.0
    %3796 = vmatpush1.msra.mxu0 0.0
    %3797 = vmatprep.subr.mxu0 0.0
    %3798 = vmatpush1.msra.mxu0 0.0
    %3799 = vmatprep.subr.mxu0 0.0
    %3800 = vmatpush1.msra.mxu0 0.0
    %3801 = vmatprep.subr.mxu0 0.0
    %3802 = vmatpush1.msra.mxu0 0.0
    %3803 = vmatprep.subr.mxu0 0.0
    %3804 = vmatpush1.msra.mxu0 0.0
    %3805 = vmatprep.subr.mxu0 0.0
    %3806 = vmatpush1.msra.mxu0 0.0
    %3807 = vmatprep.subr.mxu0 0.0
    %3808 = vmatpush1.msra.mxu0 0.0
    %3809 = vmatprep.subr.mxu0 0.0
    %3810 = vmatpush1.msra.mxu0 0.0
    %3811 = vmatprep.subr.mxu0 0.0
    %3812 = vmatpush1.msra.mxu0 0.0
    %3813 = vmatprep.subr.mxu0 0.0
    %3814 = vmatpush1.msra.mxu0 0.0
    %3815 = vmatprep.subr.mxu0 0.0
    %3816 = vmatpush1.msra.mxu0 0.0
    %3817 = vmatprep.subr.mxu0 0.0
    %3818 = vmatpush1.msra.mxu0 0.0
    %3819 = vmatprep.subr.mxu0 0.0
    %3820 = vmatpush1.msra.mxu0 0.0
    %3821 = vmatprep.subr.mxu0 0.0
    %3822 = vmatpush1.msra.mxu0 0.0
    %3823 = vmatprep.mubr.f32.mxu0 0.0
    %3824 = vmatmul.mubr.f32.gmra.mrb[0].mxu0 %v3757
    %v3825 = vpop.f32.mrb[0].mxu0
    %v3826 = vadd.f32 0.0, %v3825
    %v3827 = vpop.f32.mrb[0].mxu0
    %3828 = vdwg.mxu0
    %v3830 = vsel %vm745, %v3826, 0
    %3832 = vmatprep.subr.mxu0 0.0
    %3833 = vmatpush1.msra.mxu0 %v265
    %3834 = vmatprep.subr.mxu0 0.0
    %3835 = vmatpush1.msra.mxu0 0.0
    %3836 = vmatprep.subr.mxu0 0.0
    %3837 = vmatpush1.msra.mxu0 0.0
    %3838 = vmatprep.subr.mxu0 0.0
    %3839 = vmatpush1.msra.mxu0 0.0
    %3840 = vmatprep.subr.mxu0 0.0
    %3841 = vmatpush1.msra.mxu0 0.0
    %3842 = vmatprep.subr.mxu0 0.0
    %3843 = vmatpush1.msra.mxu0 0.0
    %3844 = vmatprep.subr.mxu0 0.0
    %3845 = vmatpush1.msra.mxu0 0.0
    %3846 = vmatprep.subr.mxu0 0.0
    %3847 = vmatpush1.msra.mxu0 0.0
    %3848 = vmatprep.subr.mxu0 0.0
    %3849 = vmatpush1.msra.mxu0 0.0
    %3850 = vmatprep.subr.mxu0 0.0
    %3851 = vmatpush1.msra.mxu0 0.0
    %3852 = vmatprep.subr.mxu0 0.0
    %3853 = vmatpush1.msra.mxu0 0.0
    %3854 = vmatprep.subr.mxu0 0.0
    %3855 = vmatpush1.msra.mxu0 0.0
    %3856 = vmatprep.subr.mxu0 0.0
    %3857 = vmatpush1.msra.mxu0 0.0
    %3858 = vmatprep.subr.mxu0 0.0
    %3859 = vmatpush1.msra.mxu0 0.0
    %3860 = vmatprep.subr.mxu0 0.0
    %3861 = vmatpush1.msra.mxu0 0.0
    %3862 = vmatprep.subr.mxu0 0.0
    %3863 = vmatpush1.msra.mxu0 0.0
    %3864 = vmatprep.subr.mxu0 0.0
    %3865 = vmatpush1.msra.mxu0 0.0
    %3866 = vmatprep.subr.mxu0 0.0
    %3867 = vmatpush1.msra.mxu0 0.0
    %3868 = vmatprep.subr.mxu0 0.0
    %3869 = vmatpush1.msra.mxu0 0.0
    %3870 = vmatprep.subr.mxu0 0.0
    %3871 = vmatpush1.msra.mxu0 0.0
    %3872 = vmatprep.subr.mxu0 0.0
    %3873 = vmatpush1.msra.mxu0 0.0
    %3874 = vmatprep.subr.mxu0 0.0
    %3875 = vmatpush1.msra.mxu0 0.0
    %3876 = vmatprep.subr.mxu0 0.0
    %3877 = vmatpush1.msra.mxu0 0.0
    %3878 = vmatprep.subr.mxu0 0.0
    %3879 = vmatpush1.msra.mxu0 0.0
    %3880 = vmatprep.subr.mxu0 0.0
    %3881 = vmatpush1.msra.mxu0 0.0
    %3882 = vmatprep.subr.mxu0 0.0
    %3883 = vmatpush1.msra.mxu0 0.0
    %3884 = vmatprep.subr.mxu0 0.0
    %3885 = vmatpush1.msra.mxu0 0.0
    %3886 = vmatprep.subr.mxu0 0.0
    %3887 = vmatpush1.msra.mxu0 0.0
    %3888 = vmatprep.subr.mxu0 0.0
    %3889 = vmatpush1.msra.mxu0 0.0
    %3890 = vmatprep.subr.mxu0 0.0
    %3891 = vmatpush1.msra.mxu0 0.0
    %3892 = vmatprep.subr.mxu0 0.0
    %3893 = vmatpush1.msra.mxu0 0.0
    %3894 = vmatprep.subr.mxu0 0.0
    %3895 = vmatpush1.msra.mxu0 0.0
    %3896 = vmatprep.mubr.f32.mxu0 0.0
    %3897 = vmatmul.mubr.f32.gmra.mrb[0].mxu0 %v3830
    %v3898 = vpop.f32.mrb[0].mxu0
    %v3899 = vadd.f32 0.0, %v3898
    %v3900 = vpop.f32.mrb[0].mxu0
    %3901 = vdwg.mxu0
    %v3902 = vadd.f32 %v3652, %v3899
    %3903 = vrot.lane.b32.xlu0 %v3160, 104
    %v3904 = vpop.permute.xlu0 %3903
    %3905 = vrot.lane.b32.xlu0 %v737, 104
    %v3906 = vpop.permute.xlu0 %3905
    %v3907 = vsel %vm745, %v3904, 0
    %v3909 = vsel %vm745, %v3906, 0
    %3911 = vmatprep.subr.mxu0 0.0
    %3912 = vmatpush1.xpose.msra.mxu0 %v3909
    %3913 = vmatprep.subr.mxu0 0.0
    %3914 = vmatpush1.xpose.msra.mxu0 0.0
    %3915 = vmatprep.subr.mxu0 0.0
    %3916 = vmatpush1.xpose.msra.mxu0 0.0
    %3917 = vmatprep.subr.mxu0 0.0
    %3918 = vmatpush1.xpose.msra.mxu0 0.0
    %3919 = vmatprep.subr.mxu0 0.0
    %3920 = vmatpush1.xpose.msra.mxu0 0.0
    %3921 = vmatprep.subr.mxu0 0.0
    %3922 = vmatpush1.xpose.msra.mxu0 0.0
    %3923 = vmatprep.subr.mxu0 0.0
    %3924 = vmatpush1.xpose.msra.mxu0 0.0
    %3925 = vmatprep.subr.mxu0 0.0
    %3926 = vmatpush1.xpose.msra.mxu0 0.0
    %3927 = vmatprep.subr.mxu0 0.0
    %3928 = vmatpush1.xpose.msra.mxu0 0.0
    %3929 = vmatprep.subr.mxu0 0.0
    %3930 = vmatpush1.xpose.msra.mxu0 0.0
    %3931 = vmatprep.subr.mxu0 0.0
    %3932 = vmatpush1.xpose.msra.mxu0 0.0
    %3933 = vmatprep.subr.mxu0 0.0
    %3934 = vmatpush1.xpose.msra.mxu0 0.0
    %3935 = vmatprep.subr.mxu0 0.0
    %3936 = vmatpush1.xpose.msra.mxu0 0.0
    %3937 = vmatprep.subr.mxu0 0.0
    %3938 = vmatpush1.xpose.msra.mxu0 0.0
    %3939 = vmatprep.subr.mxu0 0.0
    %3940 = vmatpush1.xpose.msra.mxu0 0.0
    %3941 = vmatprep.subr.mxu0 0.0
    %3942 = vmatpush1.xpose.msra.mxu0 0.0
    %3943 = vmatprep.subr.mxu0 0.0
    %3944 = vmatpush1.xpose.msra.mxu0 0.0
    %3945 = vmatprep.subr.mxu0 0.0
    %3946 = vmatpush1.xpose.msra.mxu0 0.0
    %3947 = vmatprep.subr.mxu0 0.0
    %3948 = vmatpush1.xpose.msra.mxu0 0.0
    %3949 = vmatprep.subr.mxu0 0.0
    %3950 = vmatpush1.xpose.msra.mxu0 0.0
    %3951 = vmatprep.subr.mxu0 0.0
    %3952 = vmatpush1.xpose.msra.mxu0 0.0
    %3953 = vmatprep.subr.mxu0 0.0
    %3954 = vmatpush1.xpose.msra.mxu0 0.0
    %3955 = vmatprep.subr.mxu0 0.0
    %3956 = vmatpush1.xpose.msra.mxu0 0.0
    %3957 = vmatprep.subr.mxu0 0.0
    %3958 = vmatpush1.xpose.msra.mxu0 0.0
    %3959 = vmatprep.subr.mxu0 0.0
    %3960 = vmatpush1.xpose.msra.mxu0 0.0
    %3961 = vmatprep.subr.mxu0 0.0
    %3962 = vmatpush1.xpose.msra.mxu0 0.0
    %3963 = vmatprep.subr.mxu0 0.0
    %3964 = vmatpush1.xpose.msra.mxu0 0.0
    %3965 = vmatprep.subr.mxu0 0.0
    %3966 = vmatpush1.xpose.msra.mxu0 0.0
    %3967 = vmatprep.subr.mxu0 0.0
    %3968 = vmatpush1.xpose.msra.mxu0 0.0
    %3969 = vmatprep.subr.mxu0 0.0
    %3970 = vmatpush1.xpose.msra.mxu0 0.0
    %3971 = vmatprep.subr.mxu0 0.0
    %3972 = vmatpush1.xpose.msra.mxu0 0.0
    %3973 = vmatprep.subr.mxu0 0.0
    %3974 = vmatpush1.xpose.msra.mxu0 0.0
    %3975 = vmatprep.mubr.f32.mxu0 0.0
    %3976 = vmatmul.mubr.f32.gmra.mrb[0].mxu0 %v3907
    %v3977 = vpop.f32.mrb[0].mxu0
    %v3978 = vadd.f32 0.0, %v3977
    %v3979 = vpop.f32.mrb[0].mxu0
    %3980 = vdwg.mxu0
    %v3981 = vmul.f32 %v3978, 0.35355338
    %v3982 = vsel %vm745, %v3981, -inf
    %v3983 = vrot.slane %v3982, 4
    %v3984 = vmax.f32 %v3982, %v3983
    %v3985 = vrot.slane %v3984, 2
    %v3986 = vmax.f32 %v3984, %v3985
    %v3987 = vrot.slane %v3986, 1
    %v3988 = vmax.f32 %v3986, %v3987
    %v3989 = vsub.f32 %v3981, %v3988
    %v3990 = vmul.f32 %v3989, 1.442695
    %v3991 = vpow.pop %v3990
    %v3992 = vsel %vm745, %v3991, 0.0
    %v3993 = vrot.slane %v3992, 4
    %v3994 = vadd.f32 %v3992, %v3993
    %v3995 = vrot.slane %v3994, 2
    %v3996 = vadd.f32 %v3994, %v3995
    %v3997 = vrot.slane %v3996, 1
    %v3998 = vadd.f32 %v3996, %v3997
    %v3999 = vrcp.pop %v3998
    %v4000 = vmul.f32 %v3991, %v3999
    %4001 = vrot.lane.b32.xlu0 %v737, 72
    %v4002 = vpop.permute.xlu0 %4001
    %v4005 = vsel %vm745, %v4000, 0
    %4007 = vmatprep.subr.mxu0 0.0
    %4008 = vmatpush1.msra.mxu0 %v4002
    %4009 = vmatprep.subr.mxu0 0.0
    %4010 = vmatpush1.msra.mxu0 0.0
    %4011 = vmatprep.subr.mxu0 0.0
    %4012 = vmatpush1.msra.mxu0 0.0
    %4013 = vmatprep.subr.mxu0 0.0
    %4014 = vmatpush1.msra.mxu0 0.0
    %4015 = vmatprep.subr.mxu0 0.0
    %4016 = vmatpush1.msra.mxu0 0.0
    %4017 = vmatprep.subr.mxu0 0.0
    %4018 = vmatpush1.msra.mxu0 0.0
    %4019 = vmatprep.subr.mxu0 0.0
    %4020 = vmatpush1.msra.mxu0 0.0
    %4021 = vmatprep.subr.mxu0 0.0
    %4022 = vmatpush1.msra.mxu0 0.0
    %4023 = vmatprep.subr.mxu0 0.0
    %4024 = vmatpush1.msra.mxu0 0.0
    %4025 = vmatprep.subr.mxu0 0.0
    %4026 = vmatpush1.msra.mxu0 0.0
    %4027 = vmatprep.subr.mxu0 0.0
    %4028 = vmatpush1.msra.mxu0 0.0
    %4029 = vmatprep.subr.mxu0 0.0
    %4030 = vmatpush1.msra.mxu0 0.0
    %4031 = vmatprep.subr.mxu0 0.0
    %4032 = vmatpush1.msra.mxu0 0.0
    %4033 = vmatprep.subr.mxu0 0.0
    %4034 = vmatpush1.msra.mxu0 0.0
    %4035 = vmatprep.subr.mxu0 0.0
    %4036 = vmatpush1.msra.mxu0 0.0
    %4037 = vmatprep.subr.mxu0 0.0
    %4038 = vmatpush1.msra.mxu0 0.0
    %4039 = vmatprep.subr.mxu0 0.0
    %4040 = vmatpush1.msra.mxu0 0.0
    %4041 = vmatprep.subr.mxu0 0.0
    %4042 = vmatpush1.msra.mxu0 0.0
    %4043 = vmatprep.subr.mxu0 0.0
    %4044 = vmatpush1.msra.mxu0 0.0
    %4045 = vmatprep.subr.mxu0 0.0
    %4046 = vmatpush1.msra.mxu0 0.0
    %4047 = vmatprep.subr.mxu0 0.0
    %4048 = vmatpush1.msra.mxu0 0.0
    %4049 = vmatprep.subr.mxu0 0.0
    %4050 = vmatpush1.msra.mxu0 0.0
    %4051 = vmatprep.subr.mxu0 0.0
    %4052 = vmatpush1.msra.mxu0 0.0
    %4053 = vmatprep.subr.mxu0 0.0
    %4054 = vmatpush1.msra.mxu0 0.0
    %4055 = vmatprep.subr.mxu0 0.0
    %4056 = vmatpush1.msra.mxu0 0.0
    %4057 = vmatprep.subr.mxu0 0.0
    %4058 = vmatpush1.msra.mxu0 0.0
    %4059 = vmatprep.subr.mxu0 0.0
    %4060 = vmatpush1.msra.mxu0 0.0
    %4061 = vmatprep.subr.mxu0 0.0
    %4062 = vmatpush1.msra.mxu0 0.0
    %4063 = vmatprep.subr.mxu0 0.0
    %4064 = vmatpush1.msra.mxu0 0.0
    %4065 = vmatprep.subr.mxu0 0.0
    %4066 = vmatpush1.msra.mxu0 0.0
    %4067 = vmatprep.subr.mxu0 0.0
    %4068 = vmatpush1.msra.mxu0 0.0
    %4069 = vmatprep.subr.mxu0 0.0
    %4070 = vmatpush1.msra.mxu0 0.0
    %4071 = vmatprep.mubr.f32.mxu0 0.0
    %4072 = vmatmul.mubr.f32.gmra.mrb[0].mxu0 %v4005
    %v4073 = vpop.f32.mrb[0].mxu0
    %v4074 = vadd.f32 0.0, %v4073
    %v4075 = vpop.f32.mrb[0].mxu0
    %4076 = vdwg.mxu0
    %v4078 = vsel %vm745, %v4074, 0
    %4080 = vmatprep.subr.mxu0 0.0
    %4081 = vmatpush1.msra.mxu0 %v266
    %4082 = vmatprep.subr.mxu0 0.0
    %4083 = vmatpush1.msra.mxu0 0.0
    %4084 = vmatprep.subr.mxu0 0.0
    %4085 = vmatpush1.msra.mxu0 0.0
    %4086 = vmatprep.subr.mxu0 0.0
    %4087 = vmatpush1.msra.mxu0 0.0
    %4088 = vmatprep.subr.mxu0 0.0
    %4089 = vmatpush1.msra.mxu0 0.0
    %4090 = vmatprep.subr.mxu0 0.0
    %4091 = vmatpush1.msra.mxu0 0.0
    %4092 = vmatprep.subr.mxu0 0.0
    %4093 = vmatpush1.msra.mxu0 0.0
    %4094 = vmatprep.subr.mxu0 0.0
    %4095 = vmatpush1.msra.mxu0 0.0
    %4096 = vmatprep.subr.mxu0 0.0
    %4097 = vmatpush1.msra.mxu0 0.0
    %4098 = vmatprep.subr.mxu0 0.0
    %4099 = vmatpush1.msra.mxu0 0.0
    %4100 = vmatprep.subr.mxu0 0.0
    %4101 = vmatpush1.msra.mxu0 0.0
    %4102 = vmatprep.subr.mxu0 0.0
    %4103 = vmatpush1.msra.mxu0 0.0
    %4104 = vmatprep.subr.mxu0 0.0
    %4105 = vmatpush1.msra.mxu0 0.0
    %4106 = vmatprep.subr.mxu0 0.0
    %4107 = vmatpush1.msra.mxu0 0.0
    %4108 = vmatprep.subr.mxu0 0.0
    %4109 = vmatpush1.msra.mxu0 0.0
    %4110 = vmatprep.subr.mxu0 0.0
    %4111 = vmatpush1.msra.mxu0 0.0
    %4112 = vmatprep.subr.mxu0 0.0
    %4113 = vmatpush1.msra.mxu0 0.0
    %4114 = vmatprep.subr.mxu0 0.0
    %4115 = vmatpush1.msra.mxu0 0.0
    %4116 = vmatprep.subr.mxu0 0.0
    %4117 = vmatpush1.msra.mxu0 0.0
    %4118 = vmatprep.subr.mxu0 0.0
    %4119 = vmatpush1.msra.mxu0 0.0
    %4120 = vmatprep.subr.mxu0 0.0
    %4121 = vmatpush1.msra.mxu0 0.0
    %4122 = vmatprep.subr.mxu0 0.0
    %4123 = vmatpush1.msra.mxu0 0.0
    %4124 = vmatprep.subr.mxu0 0.0
    %4125 = vmatpush1.msra.mxu0 0.0
    %4126 = vmatprep.subr.mxu0 0.0
    %4127 = vmatpush1.msra.mxu0 0.0
    %4128 = vmatprep.subr.mxu0 0.0
    %4129 = vmatpush1.msra.mxu0 0.0
    %4130 = vmatprep.subr.mxu0 0.0
    %4131 = vmatpush1.msra.mxu0 0.0
    %4132 = vmatprep.subr.mxu0 0.0
    %4133 = vmatpush1.msra.mxu0 0.0
    %4134 = vmatprep.subr.mxu0 0.0
    %4135 = vmatpush1.msra.mxu0 0.0
    %4136 = vmatprep.subr.mxu0 0.0
    %4137 = vmatpush1.msra.mxu0 0.0
    %4138 = vmatprep.subr.mxu0 0.0
    %4139 = vmatpush1.msra.mxu0 0.0
    %4140 = vmatprep.subr.mxu0 0.0
    %4141 = vmatpush1.msra.mxu0 0.0
    %4142 = vmatprep.subr.mxu0 0.0
    %4143 = vmatpush1.msra.mxu0 0.0
    %4144 = vmatprep.mubr.f32.mxu0 0.0
    %4145 = vmatmul.mubr.f32.gmra.mrb[0].mxu0 %v4078
    %v4146 = vpop.f32.mrb[0].mxu0
    %v4147 = vadd.f32 0.0, %v4146
    %v4148 = vpop.f32.mrb[0].mxu0
    %4149 = vdwg.mxu0
    %v4150 = vadd.f32 %v3902, %v4147
    %v4151 = vld [vmem:[#allocation11] sm:$0x1]
    %v4153 = vlaneseq
    %v4154 = vshrl.u32 %v4153, 7
    %v4155 = vsub.s32 0, %v4154
    %v4156 = vrot.slane %v4151, %v4155
    %v4158 = vadd.f32 %v4150, %v4156
    %v4159 = vadd.f32 %v3085, %v4158
    %v4160 = vsel %vm267, %v4159, 0.0
    %4161 = vadd.xlane.f32.xlu0 %v4160
    %v4162 = vpop.xlane.xlu0 %4161
    %v4163 = vmul.f32 %v4162, %v274
    %v4164 = vsub.f32 %v4159, %v4163
    %v4165 = vmul.f32 %v4164, %v4164
    %v4166 = vsel %vm267, %v4165, 0.0
    %4167 = vadd.xlane.f32.xlu0 %v4166
    %v4168 = vpop.xlane.xlu0 %4167
    %v4169 = vmul.f32 %v4168, %v274
    %v4170 = vadd.f32 %v4169, 1e-05
    %v4171 = vrsqrt.pop %v4170
    %v4172 = vmul.f32 %v4164, %v4171
    %v4173 = vld [vmem:[#allocation13] sm:$0x1]
    %v4175 = vlaneseq
    %v4176 = vshrl.u32 %v4175, 7
    %v4177 = vsub.s32 0, %v4176
    %v4178 = vrot.slane %v4173, %v4177
    %v4180 = vmul.f32 %v4172, %v4178
    %v4181 = vld [vmem:[#allocation14] sm:$0x1]
    %v4183 = vlaneseq
    %v4184 = vshrl.u32 %v4183, 7
    %v4185 = vsub.s32 0, %v4184
    %v4186 = vrot.slane %v4181, %v4185
    %v4188 = vadd.f32 %v4180, %v4186
    %v4189 = vadd.f32 %v3056, %v4188
    %v4190 = vsel %vm267, %v4189, 0.0
    %4191 = vadd.xlane.f32.xlu0 %v4190
    %v4192 = vpop.xlane.xlu0 %4191
    %v4193 = vmul.f32 %v4192, %v274
    %v4194 = vsub.f32 %v4189, %v4193
    %v4195 = vmul.f32 %v4194, %v4194
    %v4196 = vsel %vm267, %v4195, 0.0
    %4197 = vadd.xlane.f32.xlu0 %v4196
    %v4198 = vpop.xlane.xlu0 %4197
    %v4199 = vmul.f32 %v4198, %v274
    %v4200 = vadd.f32 %v4199, 1e-05
    %v4201 = vrsqrt.pop %v4200
    %v4202 = vmul.f32 %v4194, %v4201
    %v4203 = vld [vmem:[%s47] sm:$0x1]
    %v4205 = vlaneseq
    %v4206 = vshrl.u32 %v4205, 7
    %v4207 = vsub.s32 0, %v4206
    %v4208 = vrot.slane %v4203, %v4207
    %v4210 = vmul.f32 %v4202, %v4208
    %v4211 = vld [vmem:[%s49] sm:$0x1]
    %v4213 = vlaneseq
    %v4214 = vshrl.u32 %v4213, 7
    %v4215 = vsub.s32 0, %v4214
    %v4216 = vrot.slane %v4211, %v4215
    %v4218 = vadd.f32 %v4210, %v4216
    %v4219 = vld [vmem:[#allocation16] sm:$0xff]
    %v4220 = vld [vmem:[#allocation16 + $0x8] sm:$0xff]
    %v4221 = vld [vmem:[#allocation16 + $0x10] sm:$0xff]
    %v4222 = vld [vmem:[#allocation16 + $0x18] sm:$0xff]
    %v4223 = vld [vmem:[#allocation17] sm:$0x1]
    %v4225 = vlaneseq
    %v4226 = vshrl.u32 %v4225, 7
    %v4227 = vsub.s32 0, %v4226
    %v4228 = vrot.slane %v4223, %v4227
    %v4231 = vsel %vm267, %v4218, 0
    %4233 = vmatprep.subr.mxu0 0.0
    %4234 = vmatpush1.msra.mxu0 %v4219
    %4235 = vmatprep.subr.mxu0 0.0
    %4236 = vmatpush1.msra.mxu0 %v4220
    %4237 = vmatprep.subr.mxu0 0.0
    %4238 = vmatpush1.msra.mxu0 %v4221
    %4239 = vmatprep.subr.mxu0 0.0
    %4240 = vmatpush1.msra.mxu0 %v4222
    %4241 = vmatprep.subr.mxu0 0.0
    %4242 = vmatpush1.msra.mxu0 0.0
    %4243 = vmatprep.subr.mxu0 0.0
    %4244 = vmatpush1.msra.mxu0 0.0
    %4245 = vmatprep.subr.mxu0 0.0
    %4246 = vmatpush1.msra.mxu0 0.0
    %4247 = vmatprep.subr.mxu0 0.0
    %4248 = vmatpush1.msra.mxu0 0.0
    %4249 = vmatprep.subr.mxu0 0.0
    %4250 = vmatpush1.msra.mxu0 0.0
    %4251 = vmatprep.subr.mxu0 0.0
    %4252 = vmatpush1.msra.mxu0 0.0
    %4253 = vmatprep.subr.mxu0 0.0
    %4254 = vmatpush1.msra.mxu0 0.0
    %4255 = vmatprep.subr.mxu0 0.0
    %4256 = vmatpush1.msra.mxu0 0.0
    %4257 = vmatprep.subr.mxu0 0.0
    %4258 = vmatpush1.msra.mxu0 0.0
    %4259 = vmatprep.subr.mxu0 0.0
    %4260 = vmatpush1.msra.mxu0 0.0
    %4261 = vmatprep.subr.mxu0 0.0
    %4262 = vmatpush1.msra.mxu0 0.0
    %4263 = vmatprep.subr.mxu0 0.0
    %4264 = vmatpush1.msra.mxu0 0.0
    %4265 = vmatprep.subr.mxu0 0.0
    %4266 = vmatpush1.msra.mxu0 0.0
    %4267 = vmatprep.subr.mxu0 0.0
    %4268 = vmatpush1.msra.mxu0 0.0
    %4269 = vmatprep.subr.mxu0 0.0
    %4270 = vmatpush1.msra.mxu0 0.0
    %4271 = vmatprep.subr.mxu0 0.0
    %4272 = vmatpush1.msra.mxu0 0.0
    %4273 = vmatprep.subr.mxu0 0.0
    %4274 = vmatpush1.msra.mxu0 0.0
    %4275 = vmatprep.subr.mxu0 0.0
    %4276 = vmatpush1.msra.mxu0 0.0
    %4277 = vmatprep.subr.mxu0 0.0
    %4278 = vmatpush1.msra.mxu0 0.0
    %4279 = vmatprep.subr.mxu0 0.0
    %4280 = vmatpush1.msra.mxu0 0.0
    %4281 = vmatprep.subr.mxu0 0.0
    %4282 = vmatpush1.msra.mxu0 0.0
    %4283 = vmatprep.subr.mxu0 0.0
    %4284 = vmatpush1.msra.mxu0 0.0
    %4285 = vmatprep.subr.mxu0 0.0
    %4286 = vmatpush1.msra.mxu0 0.0
    %4287 = vmatprep.subr.mxu0 0.0
    %4288 = vmatpush1.msra.mxu0 0.0
    %4289 = vmatprep.subr.mxu0 0.0
    %4290 = vmatpush1.msra.mxu0 0.0
    %4291 = vmatprep.subr.mxu0 0.0
    %4292 = vmatpush1.msra.mxu0 0.0
    %4293 = vmatprep.subr.mxu0 0.0
    %4294 = vmatpush1.msra.mxu0 0.0
    %4295 = vmatprep.subr.mxu0 0.0
    %4296 = vmatpush1.msra.mxu0 0.0
    %4297 = vmatprep.mubr.f32.mxu0 0.0
    %4298 = vmatmul.mubr.f32.gmra.mrb[0].mxu0 %v4231
    %v4299 = vpop.f32.mrb[0].mxu0
    %v4300 = vadd.f32 %v4228, %v4299
    %v4301 = vpop.f32.mrb[0].mxu0
    %4302 = vdwg.mxu0
    %v4303 = vmul.f32 %v4300, 0.5
    %v4304 = vmul.f32 %v4300, 0.70710677
    %vm4305 = vcmp.ge.f32.partialorder %v4304, 0.0
    %v4306 = vsel %vm4305, 1.0, -1.0
    %v4307 = vand.u32 2147483647, %v4304
    %v4308 = vmul.f32 %v4307, 0.3275911
    %v4309 = vadd.f32 %v4308, 1.0
    %v4310 = vrcp.pop %v4309
    %v4311 = vmul.f32 1.0, %v4310
    %v4312 = vmul.f32 %v4311, 1.0614054
    %v4313 = vadd.f32 %v4312, -1.4531521
    %v4314 = vmul.f32 %v4313, %v4311
    %v4315 = vadd.f32 %v4314, 1.4214138
    %v4316 = vmul.f32 %v4315, %v4311
    %v4317 = vadd.f32 %v4316, -0.28449672
    %v4318 = vmul.f32 %v4317, %v4311
    %v4319 = vadd.f32 %v4318, 0.2548296
    %v4320 = vmul.f32 %v4319, %v4311
    %v4321 = vsub.f32 0.0, %v4307
    %v4322 = vmul.f32 %v4321, %v4307
    %v4323 = vmul.f32 %v4322, 1.442695
    %v4324 = vpow.pop %v4323
    %v4325 = vmul.f32 %v4320, %v4324
    %v4326 = vsub.f32 1.0, %v4325
    %v4327 = vmul.f32 %v4306, %v4326
    %v4328 = vadd.f32 %v4327, 1.0
    %v4329 = vmul.f32 %v4303, %v4328
    %v4330 = vld [vmem:[%s55] sm:$0xff]
    %v4331 = vld [vmem:[%s55 + $0x8] sm:$0xff]
    %v4332 = vld [vmem:[%s55 + $0x10] sm:$0xff]
    %v4333 = vld [vmem:[%s55 + $0x18] sm:$0xff]
    %v4334 = vld [vmem:[%s55 + $0x20] sm:$0xff]
    %v4335 = vld [vmem:[%s55 + $0x28] sm:$0xff]
    %v4336 = vld [vmem:[%s55 + $0x30] sm:$0xff]
    %v4337 = vld [vmem:[%s55 + $0x38] sm:$0xff]
    %v4338 = vld [vmem:[%s57] sm:$0x1]
    %v4340 = vlaneseq
    %v4341 = vshrl.u32 %v4340, 7
    %v4342 = vsub.s32 0, %v4341
    %v4343 = vrot.slane %v4338, %v4342
    %vm4345 = vcmask 523264
    %v4347 = vsel %vm4345, %v4329, 0
    %4349 = vmatprep.subr.mxu0 0.0
    %4350 = vmatpush1.msra.mxu0 %v4330
    %4351 = vmatprep.subr.mxu0 0.0
    %4352 = vmatpush1.msra.mxu0 %v4331
    %4353 = vmatprep.subr.mxu0 0.0
    %4354 = vmatpush1.msra.mxu0 %v4332
    %4355 = vmatprep.subr.mxu0 0.0
    %4356 = vmatpush1.msra.mxu0 %v4333
    %4357 = vmatprep.subr.mxu0 0.0
    %4358 = vmatpush1.msra.mxu0 %v4334
    %4359 = vmatprep.subr.mxu0 0.0
    %4360 = vmatpush1.msra.mxu0 %v4335
    %4361 = vmatprep.subr.mxu0 0.0
    %4362 = vmatpush1.msra.mxu0 %v4336
    %4363 = vmatprep.subr.mxu0 0.0
    %4364 = vmatpush1.msra.mxu0 %v4337
    %4365 = vmatprep.subr.mxu0 0.0
    %4366 = vmatpush1.msra.mxu0 0.0
    %4367 = vmatprep.subr.mxu0 0.0
    %4368 = vmatpush1.msra.mxu0 0.0
    %4369 = vmatprep.subr.mxu0 0.0
    %4370 = vmatpush1.msra.mxu0 0.0
    %4371 = vmatprep.subr.mxu0 0.0
    %4372 = vmatpush1.msra.mxu0 0.0
    %4373 = vmatprep.subr.mxu0 0.0
    %4374 = vmatpush1.msra.mxu0 0.0
    %4375 = vmatprep.subr.mxu0 0.0
    %4376 = vmatpush1.msra.mxu0 0.0
    %4377 = vmatprep.subr.mxu0 0.0
    %4378 = vmatpush1.msra.mxu0 0.0
    %4379 = vmatprep.subr.mxu0 0.0
    %4380 = vmatpush1.msra.mxu0 0.0
    %4381 = vmatprep.subr.mxu0 0.0
    %4382 = vmatpush1.msra.mxu0 0.0
    %4383 = vmatprep.subr.mxu0 0.0
    %4384 = vmatpush1.msra.mxu0 0.0
    %4385 = vmatprep.subr.mxu0 0.0
    %4386 = vmatpush1.msra.mxu0 0.0
    %4387 = vmatprep.subr.mxu0 0.0
    %4388 = vmatpush1.msra.mxu0 0.0
    %4389 = vmatprep.subr.mxu0 0.0
    %4390 = vmatpush1.msra.mxu0 0.0
    %4391 = vmatprep.subr.mxu0 0.0
    %4392 = vmatpush1.msra.mxu0 0.0
    %4393 = vmatprep.subr.mxu0 0.0
    %4394 = vmatpush1.msra.mxu0 0.0
    %4395 = vmatprep.subr.mxu0 0.0
    %4396 = vmatpush1.msra.mxu0 0.0
    %4397 = vmatprep.subr.mxu0 0.0
    %4398 = vmatpush1.msra.mxu0 0.0
    %4399 = vmatprep.subr.mxu0 0.0
    %4400 = vmatpush1.msra.mxu0 0.0
    %4401 = vmatprep.subr.mxu0 0.0
    %4402 = vmatpush1.msra.mxu0 0.0
    %4403 = vmatprep.subr.mxu0 0.0
    %4404 = vmatpush1.msra.mxu0 0.0
    %4405 = vmatprep.subr.mxu0 0.0
    %4406 = vmatpush1.msra.mxu0 0.0
    %4407 = vmatprep.subr.mxu0 0.0
    %4408 = vmatpush1.msra.mxu0 0.0
    %4409 = vmatprep.subr.mxu0 0.0
    %4410 = vmatpush1.msra.mxu0 0.0
    %4411 = vmatprep.subr.mxu0 0.0
    %4412 = vmatpush1.msra.mxu0 0.0
    %4413 = vmatprep.mubr.f32.mxu0 0.0
    %4414 = vmatmul.mubr.f32.gmra.mrb[0].mxu0 %v4347
    %v4415 = vpop.f32.mrb[0].mxu0
    %v4416 = vadd.f32 %v4343, %v4415
    %v4417 = vpop.f32.mrb[0].mxu0
    %4418 = vdwg.mxu0
    %v4419 = vadd.f32 %v4189, %v4416
    %4420 = vst.msk [vmem:[#allocation19] sm:$0xff] %vm267, %v4419
    %v4422 = vsel %vm745, %v497, 0
    %4424 = vmatprep.subr.mxu0 0.0
    %4425 = vmatpush1.xpose.msra.mxu0 %v750
    %4426 = vmatprep.subr.mxu0 0.0
    %4427 = vmatpush1.xpose.msra.mxu0 0.0
    %4428 = vmatprep.subr.mxu0 0.0
    %4429 = vmatpush1.xpose.msra.mxu0 0.0
    %4430 = vmatprep.subr.mxu0 0.0
    %4431 = vmatpush1.xpose.msra.mxu0 0.0
    %4432 = vmatprep.subr.mxu0 0.0
    %4433 = vmatpush1.xpose.msra.mxu0 0.0
    %4434 = vmatprep.subr.mxu0 0.0
    %4435 = vmatpush1.xpose.msra.mxu0 0.0
    %4436 = vmatprep.subr.mxu0 0.0
    %4437 = vmatpush1.xpose.msra.mxu0 0.0
    %4438 = vmatprep.subr.mxu0 0.0
    %4439 = vmatpush1.xpose.msra.mxu0 0.0
    %4440 = vmatprep.subr.mxu0 0.0
    %4441 = vmatpush1.xpose.msra.mxu0 0.0
    %4442 = vmatprep.subr.mxu0 0.0
    %4443 = vmatpush1.xpose.msra.mxu0 0.0
    %4444 = vmatprep.subr.mxu0 0.0
    %4445 = vmatpush1.xpose.msra.mxu0 0.0
    %4446 = vmatprep.subr.mxu0 0.0
    %4447 = vmatpush1.xpose.msra.mxu0 0.0
    %4448 = vmatprep.subr.mxu0 0.0
    %4449 = vmatpush1.xpose.msra.mxu0 0.0
    %4450 = vmatprep.subr.mxu0 0.0
    %4451 = vmatpush1.xpose.msra.mxu0 0.0
    %4452 = vmatprep.subr.mxu0 0.0
    %4453 = vmatpush1.xpose.msra.mxu0 0.0
    %4454 = vmatprep.subr.mxu0 0.0
    %4455 = vmatpush1.xpose.msra.mxu0 0.0
    %4456 = vmatprep.subr.mxu0 0.0
    %4457 = vmatpush1.xpose.msra.mxu0 0.0
    %4458 = vmatprep.subr.mxu0 0.0
    %4459 = vmatpush1.xpose.msra.mxu0 0.0
    %4460 = vmatprep.subr.mxu0 0.0
    %4461 = vmatpush1.xpose.msra.mxu0 0.0
    %4462 = vmatprep.subr.mxu0 0.0
    %4463 = vmatpush1.xpose.msra.mxu0 0.0
    %4464 = vmatprep.subr.mxu0 0.0
    %4465 = vmatpush1.xpose.msra.mxu0 0.0
    %4466 = vmatprep.subr.mxu0 0.0
    %4467 = vmatpush1.xpose.msra.mxu0 0.0
    %4468 = vmatprep.subr.mxu0 0.0
    %4469 = vmatpush1.xpose.msra.mxu0 0.0
    %4470 = vmatprep.subr.mxu0 0.0
    %4471 = vmatpush1.xpose.msra.mxu0 0.0
    %4472 = vmatprep.subr.mxu0 0.0
    %4473 = vmatpush1.xpose.msra.mxu0 0.0
    %4474 = vmatprep.subr.mxu0 0.0
    %4475 = vmatpush1.xpose.msra.mxu0 0.0
    %4476 = vmatprep.subr.mxu0 0.0
    %4477 = vmatpush1.xpose.msra.mxu0 0.0
    %4478 = vmatprep.subr.mxu0 0.0
    %4479 = vmatpush1.xpose.msra.mxu0 0.0
    %4480 = vmatprep.subr.mxu0 0.0
    %4481 = vmatpush1.xpose.msra.mxu0 0.0
    %4482 = vmatprep.subr.mxu0 0.0
    %4483 = vmatpush1.xpose.msra.mxu0 0.0
    %4484 = vmatprep.subr.mxu0 0.0
    %4485 = vmatpush1.xpose.msra.mxu0 0.0
    %4486 = vmatprep.subr.mxu0 0.0
    %4487 = vmatpush1.xpose.msra.mxu0 0.0
    %4488 = vmatprep.mubr.f32.mxu0 0.0
    %4489 = vmatmul.mubr.f32.gmra.mrb[0].mxu0 %v4422
    %v4490 = vpop.f32.mrb[0].mxu0
    %v4491 = vadd.f32 0.0, %v4490
    %v4492 = vpop.f32.mrb[0].mxu0
    %4493 = vdwg.mxu0
    %v4495 = vsel %vm745, %v406, 0
    %v4498 = vsel %vm745, %v657, 0
    %4500 = vmatprep.subr.mxu0 0.0
    %4501 = vmatpush1.xpose.msra.mxu0 %v4498
    %4502 = vmatprep.subr.mxu0 0.0
    %4503 = vmatpush1.xpose.msra.mxu0 0.0
    %4504 = vmatprep.subr.mxu0 0.0
    %4505 = vmatpush1.xpose.msra.mxu0 0.0
    %4506 = vmatprep.subr.mxu0 0.0
    %4507 = vmatpush1.xpose.msra.mxu0 0.0
    %4508 = vmatprep.subr.mxu0 0.0
    %4509 = vmatpush1.xpose.msra.mxu0 0.0
    %4510 = vmatprep.subr.mxu0 0.0
    %4511 = vmatpush1.xpose.msra.mxu0 0.0
    %4512 = vmatprep.subr.mxu0 0.0
    %4513 = vmatpush1.xpose.msra.mxu0 0.0
    %4514 = vmatprep.subr.mxu0 0.0
    %4515 = vmatpush1.xpose.msra.mxu0 0.0
    %4516 = vmatprep.subr.mxu0 0.0
    %4517 = vmatpush1.xpose.msra.mxu0 0.0
    %4518 = vmatprep.subr.mxu0 0.0
    %4519 = vmatpush1.xpose.msra.mxu0 0.0
    %4520 = vmatprep.subr.mxu0 0.0
    %4521 = vmatpush1.xpose.msra.mxu0 0.0
    %4522 = vmatprep.subr.mxu0 0.0
    %4523 = vmatpush1.xpose.msra.mxu0 0.0
    %4524 = vmatprep.subr.mxu0 0.0
    %4525 = vmatpush1.xpose.msra.mxu0 0.0
    %4526 = vmatprep.subr.mxu0 0.0
    %4527 = vmatpush1.xpose.msra.mxu0 0.0
    %4528 = vmatprep.subr.mxu0 0.0
    %4529 = vmatpush1.xpose.msra.mxu0 0.0
    %4530 = vmatprep.subr.mxu0 0.0
    %4531 = vmatpush1.xpose.msra.mxu0 0.0
    %4532 = vmatprep.subr.mxu0 0.0
    %4533 = vmatpush1.xpose.msra.mxu0 0.0
    %4534 = vmatprep.subr.mxu0 0.0
    %4535 = vmatpush1.xpose.msra.mxu0 0.0
    %4536 = vmatprep.subr.mxu0 0.0
    %4537 = vmatpush1.xpose.msra.mxu0 0.0
    %4538 = vmatprep.subr.mxu0 0.0
    %4539 = vmatpush1.xpose.msra.mxu0 0.0
    %4540 = vmatprep.subr.mxu0 0.0
    %4541 = vmatpush1.xpose.msra.mxu0 0.0
    %4542 = vmatprep.subr.mxu0 0.0
    %4543 = vmatpush1.xpose.msra.mxu0 0.0
    %4544 = vmatprep.subr.mxu0 0.0
    %4545 = vmatpush1.xpose.msra.mxu0 0.0
    %4546 = vmatprep.subr.mxu0 0.0
    %4547 = vmatpush1.xpose.msra.mxu0 0.0
    %4548 = vmatprep.subr.mxu0 0.0
    %4549 = vmatpush1.xpose.msra.mxu0 0.0
    %4550 = vmatprep.subr.mxu0 0.0
    %4551 = vmatpush1.xpose.msra.mxu0 0.0
    %4552 = vmatprep.subr.mxu0 0.0
    %4553 = vmatpush1.xpose.msra.mxu0 0.0
    %4554 = vmatprep.subr.mxu0 0.0
    %4555 = vmatpush1.xpose.msra.mxu0 0.0
    %4556 = vmatprep.subr.mxu0 0.0
    %4557 = vmatpush1.xpose.msra.mxu0 0.0
    %4558 = vmatprep.subr.mxu0 0.0
    %4559 = vmatpush1.xpose.msra.mxu0 0.0
    %4560 = vmatprep.subr.mxu0 0.0
    %4561 = vmatpush1.xpose.msra.mxu0 0.0
    %4562 = vmatprep.subr.mxu0 0.0
    %4563 = vmatpush1.xpose.msra.mxu0 0.0
    %4564 = vmatprep.mubr.f32.mxu0 0.0
    %4565 = vmatmul.mubr.f32.gmra.mrb[0].mxu0 %v4495
    %v4566 = vpop.f32.mrb[0].mxu0
    %v4567 = vadd.f32 %v4491, %v4566
    %v4568 = vpop.f32.mrb[0].mxu0
    %4569 = vdwg.mxu0
    %v4570 = vmul.f32 %v4567, 0.35355338
    %4571 = vmatprep.subr.mxu0 0.0
    %4572 = vmatpush1.xpose.msra.mxu0 %v900
    %4573 = vmatprep.subr.mxu0 0.0
    %4574 = vmatpush1.xpose.msra.mxu0 0.0
    %4575 = vmatprep.subr.mxu0 0.0
    %4576 = vmatpush1.xpose.msra.mxu0 0.0
    %4577 = vmatprep.subr.mxu0 0.0
    %4578 = vmatpush1.xpose.msra.mxu0 0.0
    %4579 = vmatprep.subr.mxu0 0.0
    %4580 = vmatpush1.xpose.msra.mxu0 0.0
    %4581 = vmatprep.subr.mxu0 0.0
    %4582 = vmatpush1.xpose.msra.mxu0 0.0
    %4583 = vmatprep.subr.mxu0 0.0
    %4584 = vmatpush1.xpose.msra.mxu0 0.0
    %4585 = vmatprep.subr.mxu0 0.0
    %4586 = vmatpush1.xpose.msra.mxu0 0.0
    %4587 = vmatprep.subr.mxu0 0.0
    %4588 = vmatpush1.xpose.msra.mxu0 0.0
    %4589 = vmatprep.subr.mxu0 0.0
    %4590 = vmatpush1.xpose.msra.mxu0 0.0
    %4591 = vmatprep.subr.mxu0 0.0
    %4592 = vmatpush1.xpose.msra.mxu0 0.0
    %4593 = vmatprep.subr.mxu0 0.0
    %4594 = vmatpush1.xpose.msra.mxu0 0.0
    %4595 = vmatprep.subr.mxu0 0.0
    %4596 = vmatpush1.xpose.msra.mxu0 0.0
    %4597 = vmatprep.subr.mxu0 0.0
    %4598 = vmatpush1.xpose.msra.mxu0 0.0
    %4599 = vmatprep.subr.mxu0 0.0
    %4600 = vmatpush1.xpose.msra.mxu0 0.0
    %4601 = vmatprep.subr.mxu0 0.0
    %4602 = vmatpush1.xpose.msra.mxu0 0.0
    %4603 = vmatprep.subr.mxu0 0.0
    %4604 = vmatpush1.xpose.msra.mxu0 0.0
    %4605 = vmatprep.subr.mxu0 0.0
    %4606 = vmatpush1.xpose.msra.mxu0 0.0
    %4607 = vmatprep.subr.mxu0 0.0
    %4608 = vmatpush1.xpose.msra.mxu0 0.0
    %4609 = vmatprep.subr.mxu0 0.0
    %4610 = vmatpush1.xpose.msra.mxu0 0.0
    %4611 = vmatprep.subr.mxu0 0.0
    %4612 = vmatpush1.xpose.msra.mxu0 0.0
    %4613 = vmatprep.subr.mxu0 0.0
    %4614 = vmatpush1.xpose.msra.mxu0 0.0
    %4615 = vmatprep.subr.mxu0 0.0
    %4616 = vmatpush1.xpose.msra.mxu0 0.0
    %4617 = vmatprep.subr.mxu0 0.0
    %4618 = vmatpush1.xpose.msra.mxu0 0.0
    %4619 = vmatprep.subr.mxu0 0.0
    %4620 = vmatpush1.xpose.msra.mxu0 0.0
    %4621 = vmatprep.subr.mxu0 0.0
    %4622 = vmatpush1.xpose.msra.mxu0 0.0
    %4623 = vmatprep.subr.mxu0 0.0
    %4624 = vmatpush1.xpose.msra.mxu0 0.0
    %4625 = vmatprep.subr.mxu0 0.0
    %4626 = vmatpush1.xpose.msra.mxu0 0.0
    %4627 = vmatprep.subr.mxu0 0.0
    %4628 = vmatpush1.xpose.msra.mxu0 0.0
    %4629 = vmatprep.subr.mxu0 0.0
    %4630 = vmatpush1.xpose.msra.mxu0 0.0
    %4631 = vmatprep.subr.mxu0 0.0
    %4632 = vmatpush1.xpose.msra.mxu0 0.0
    %4633 = vmatprep.subr.mxu0 0.0
    %4634 = vmatpush1.xpose.msra.mxu0 0.0
    %4635 = vmatprep.mubr.f32.mxu0 0.0
    %4636 = vmatmul.mubr.f32.gmra.mrb[0].mxu0 %v4422
    %v4637 = vpop.f32.mrb[0].mxu0
    %v4638 = vadd.f32 0.0, %v4637
    %v4639 = vpop.f32.mrb[0].mxu0
    %4640 = vdwg.mxu0
    %v4642 = vsel %vm745, %v576, 0
    %4644 = vmatprep.subr.mxu0 0.0
    %4645 = vmatpush1.xpose.msra.mxu0 %v4642
    %4646 = vmatprep.subr.mxu0 0.0
    %4647 = vmatpush1.xpose.msra.mxu0 0.0
    %4648 = vmatprep.subr.mxu0 0.0
    %4649 = vmatpush1.xpose.msra.mxu0 0.0
    %4650 = vmatprep.subr.mxu0 0.0
    %4651 = vmatpush1.xpose.msra.mxu0 0.0
    %4652 = vmatprep.subr.mxu0 0.0
    %4653 = vmatpush1.xpose.msra.mxu0 0.0
    %4654 = vmatprep.subr.mxu0 0.0
    %4655 = vmatpush1.xpose.msra.mxu0 0.0
    %4656 = vmatprep.subr.mxu0 0.0
    %4657 = vmatpush1.xpose.msra.mxu0 0.0
    %4658 = vmatprep.subr.mxu0 0.0
    %4659 = vmatpush1.xpose.msra.mxu0 0.0
    %4660 = vmatprep.subr.mxu0 0.0
    %4661 = vmatpush1.xpose.msra.mxu0 0.0
    %4662 = vmatprep.subr.mxu0 0.0
    %4663 = vmatpush1.xpose.msra.mxu0 0.0
    %4664 = vmatprep.subr.mxu0 0.0
    %4665 = vmatpush1.xpose.msra.mxu0 0.0
    %4666 = vmatprep.subr.mxu0 0.0
    %4667 = vmatpush1.xpose.msra.mxu0 0.0
    %4668 = vmatprep.subr.mxu0 0.0
    %4669 = vmatpush1.xpose.msra.mxu0 0.0
    %4670 = vmatprep.subr.mxu0 0.0
    %4671 = vmatpush1.xpose.msra.mxu0 0.0
    %4672 = vmatprep.subr.mxu0 0.0
    %4673 = vmatpush1.xpose.msra.mxu0 0.0
    %4674 = vmatprep.subr.mxu0 0.0
    %4675 = vmatpush1.xpose.msra.mxu0 0.0
    %4676 = vmatprep.subr.mxu0 0.0
    %4677 = vmatpush1.xpose.msra.mxu0 0.0
    %4678 = vmatprep.subr.mxu0 0.0
    %4679 = vmatpush1.xpose.msra.mxu0 0.0
    %4680 = vmatprep.subr.mxu0 0.0
    %4681 = vmatpush1.xpose.msra.mxu0 0.0
    %4682 = vmatprep.subr.mxu0 0.0
    %4683 = vmatpush1.xpose.msra.mxu0 0.0
    %4684 = vmatprep.subr.mxu0 0.0
    %4685 = vmatpush1.xpose.msra.mxu0 0.0
    %4686 = vmatprep.subr.mxu0 0.0
    %4687 = vmatpush1.xpose.msra.mxu0 0.0
    %4688 = vmatprep.subr.mxu0 0.0
    %4689 = vmatpush1.xpose.msra.mxu0 0.0
    %4690 = vmatprep.subr.mxu0 0.0
    %4691 = vmatpush1.xpose.msra.mxu0 0.0
    %4692 = vmatprep.subr.mxu0 0.0
    %4693 = vmatpush1.xpose.msra.mxu0 0.0
    %4694 = vmatprep.subr.mxu0 0.0
    %4695 = vmatpush1.xpose.msra.mxu0 0.0
    %4696 = vmatprep.subr.mxu0 0.0
    %4697 = vmatpush1.xpose.msra.mxu0 0.0
    %4698 = vmatprep.subr.mxu0 0.0
    %4699 = vmatpush1.xpose.msra.mxu0 0.0
    %4700 = vmatprep.subr.mxu0 0.0
    %4701 = vmatpush1.xpose.msra.mxu0 0.0
    %4702 = vmatprep.subr.mxu0 0.0
    %4703 = vmatpush1.xpose.msra.mxu0 0.0
    %4704 = vmatprep.subr.mxu0 0.0
    %4705 = vmatpush1.xpose.msra.mxu0 0.0
    %4706 = vmatprep.subr.mxu0 0.0
    %4707 = vmatpush1.xpose.msra.mxu0 0.0
    %4708 = vmatprep.mubr.f32.mxu0 0.0
    %4709 = vmatmul.mubr.f32.gmra.mrb[0].mxu0 %v4495
    %v4710 = vpop.f32.mrb[0].mxu0
    %v4711 = vadd.f32 %v4638, %v4710
    %v4712 = vpop.f32.mrb[0].mxu0
    %4713 = vdwg.mxu0
    %v4714 = vmul.f32 %v4711, 0.35355338
    %v4715 = vsel %vm745, %v4570, -inf
    %v4716 = vrot.slane %v4715, 4
    %v4717 = vmax.f32 %v4715, %v4716
    %v4718 = vrot.slane %v4717, 2
    %v4719 = vmax.f32 %v4717, %v4718
    %v4720 = vrot.slane %v4719, 1
    %v4721 = vmax.f32 %v4719, %v4720
    %v4722 = vsub.f32 %v4570, %v4721
    %v4723 = vmul.f32 %v4722, 1.442695
    %v4724 = vpow.pop %v4723
    %v4725 = vsel %vm745, %v4724, 0.0
    %v4726 = vrot.slane %v4725, 4
    %v4727 = vadd.f32 %v4725, %v4726
    %v4728 = vrot.slane %v4727, 2
    %v4729 = vadd.f32 %v4727, %v4728
    %v4730 = vrot.slane %v4729, 1
    %v4731 = vadd.f32 %v4729, %v4730
    %v4732 = vrcp.pop %v4731
    %v4733 = vmul.f32 %v4724, %v4732
    %v4734 = vsel %vm745, %v4714, -inf
    %v4735 = vrot.slane %v4734, 4
    %v4736 = vmax.f32 %v4734, %v4735
    %v4737 = vrot.slane %v4736, 2
    %v4738 = vmax.f32 %v4736, %v4737
    %v4739 = vrot.slane %v4738, 1
    %v4740 = vmax.f32 %v4738, %v4739
    %v4741 = vsub.f32 %v4714, %v4740
    %v4742 = vmul.f32 %v4741, 1.442695
    %v4743 = vpow.pop %v4742
    %v4744 = vsel %vm745, %v4743, 0.0
    %v4745 = vrot.slane %v4744, 4
    %v4746 = vadd.f32 %v4744, %v4745
    %v4747 = vrot.slane %v4746, 2
    %v4748 = vadd.f32 %v4746, %v4747
    %v4749 = vrot.slane %v4748, 1
    %v4750 = vadd.f32 %v4748, %v4749
    %v4751 = vrcp.pop %v4750
    %v4752 = vmul.f32 %v4743, %v4751
    %4753 = vrot.lane.b32.xlu0 %v576, 96
    %v4754 = vpop.permute.xlu0 %4753
    %v4757 = vsel %vm745, %v4752, 0
    %4759 = vmatprep.subr.mxu0 0.0
    %4760 = vmatpush1.msra.mxu0 %v4754
    %4761 = vmatprep.subr.mxu0 0.0
    %4762 = vmatpush1.msra.mxu0 0.0
    %4763 = vmatprep.subr.mxu0 0.0
    %4764 = vmatpush1.msra.mxu0 0.0
    %4765 = vmatprep.subr.mxu0 0.0
    %4766 = vmatpush1.msra.mxu0 0.0
    %4767 = vmatprep.subr.mxu0 0.0
    %4768 = vmatpush1.msra.mxu0 0.0
    %4769 = vmatprep.subr.mxu0 0.0
    %4770 = vmatpush1.msra.mxu0 0.0
    %4771 = vmatprep.subr.mxu0 0.0
    %4772 = vmatpush1.msra.mxu0 0.0
    %4773 = vmatprep.subr.mxu0 0.0
    %4774 = vmatpush1.msra.mxu0 0.0
    %4775 = vmatprep.subr.mxu0 0.0
    %4776 = vmatpush1.msra.mxu0 0.0
    %4777 = vmatprep.subr.mxu0 0.0
    %4778 = vmatpush1.msra.mxu0 0.0
    %4779 = vmatprep.subr.mxu0 0.0
    %4780 = vmatpush1.msra.mxu0 0.0
    %4781 = vmatprep.subr.mxu0 0.0
    %4782 = vmatpush1.msra.mxu0 0.0
    %4783 = vmatprep.subr.mxu0 0.0
    %4784 = vmatpush1.msra.mxu0 0.0
    %4785 = vmatprep.subr.mxu0 0.0
    %4786 = vmatpush1.msra.mxu0 0.0
    %4787 = vmatprep.subr.mxu0 0.0
    %4788 = vmatpush1.msra.mxu0 0.0
    %4789 = vmatprep.subr.mxu0 0.0
    %4790 = vmatpush1.msra.mxu0 0.0
    %4791 = vmatprep.subr.mxu0 0.0
    %4792 = vmatpush1.msra.mxu0 0.0
    %4793 = vmatprep.subr.mxu0 0.0
    %4794 = vmatpush1.msra.mxu0 0.0
    %4795 = vmatprep.subr.mxu0 0.0
    %4796 = vmatpush1.msra.mxu0 0.0
    %4797 = vmatprep.subr.mxu0 0.0
    %4798 = vmatpush1.msra.mxu0 0.0
    %4799 = vmatprep.subr.mxu0 0.0
    %4800 = vmatpush1.msra.mxu0 0.0
    %4801 = vmatprep.subr.mxu0 0.0
    %4802 = vmatpush1.msra.mxu0 0.0
    %4803 = vmatprep.subr.mxu0 0.0
    %4804 = vmatpush1.msra.mxu0 0.0
    %4805 = vmatprep.subr.mxu0 0.0
    %4806 = vmatpush1.msra.mxu0 0.0
    %4807 = vmatprep.subr.mxu0 0.0
    %4808 = vmatpush1.msra.mxu0 0.0
    %4809 = vmatprep.subr.mxu0 0.0
    %4810 = vmatpush1.msra.mxu0 0.0
    %4811 = vmatprep.subr.mxu0 0.0
    %4812 = vmatpush1.msra.mxu0 0.0
    %4813 = vmatprep.subr.mxu0 0.0
    %4814 = vmatpush1.msra.mxu0 0.0
    %4815 = vmatprep.subr.mxu0 0.0
    %4816 = vmatpush1.msra.mxu0 0.0
    %4817 = vmatprep.subr.mxu0 0.0
    %4818 = vmatpush1.msra.mxu0 0.0
    %4819 = vmatprep.subr.mxu0 0.0
    %4820 = vmatpush1.msra.mxu0 0.0
    %4821 = vmatprep.subr.mxu0 0.0
    %4822 = vmatpush1.msra.mxu0 0.0
    %4823 = vmatprep.mubr.f32.mxu0 0.0
    %4824 = vmatmul.mubr.f32.gmra.mrb[0].mxu0 %v4757
    %v4825 = vpop.f32.mrb[0].mxu0
    %v4826 = vadd.f32 0.0, %v4825
    %v4827 = vpop.f32.mrb[0].mxu0
    %4828 = vdwg.mxu0
    %4829 = vrot.lane.b32.xlu0 %v657, 96
    %v4830 = vpop.permute.xlu0 %4829
    %v4833 = vsel %vm745, %v4733, 0
    %4835 = vmatprep.subr.mxu0 0.0
    %4836 = vmatpush1.msra.mxu0 %v4830
    %4837 = vmatprep.subr.mxu0 0.0
    %4838 = vmatpush1.msra.mxu0 0.0
    %4839 = vmatprep.subr.mxu0 0.0
    %4840 = vmatpush1.msra.mxu0 0.0
    %4841 = vmatprep.subr.mxu0 0.0
    %4842 = vmatpush1.msra.mxu0 0.0
    %4843 = vmatprep.subr.mxu0 0.0
    %4844 = vmatpush1.msra.mxu0 0.0
    %4845 = vmatprep.subr.mxu0 0.0
    %4846 = vmatpush1.msra.mxu0 0.0
    %4847 = vmatprep.subr.mxu0 0.0
    %4848 = vmatpush1.msra.mxu0 0.0
    %4849 = vmatprep.subr.mxu0 0.0
    %4850 = vmatpush1.msra.mxu0 0.0
    %4851 = vmatprep.subr.mxu0 0.0
    %4852 = vmatpush1.msra.mxu0 0.0
    %4853 = vmatprep.subr.mxu0 0.0
    %4854 = vmatpush1.msra.mxu0 0.0
    %4855 = vmatprep.subr.mxu0 0.0
    %4856 = vmatpush1.msra.mxu0 0.0
    %4857 = vmatprep.subr.mxu0 0.0
    %4858 = vmatpush1.msra.mxu0 0.0
    %4859 = vmatprep.subr.mxu0 0.0
    %4860 = vmatpush1.msra.mxu0 0.0
    %4861 = vmatprep.subr.mxu0 0.0
    %4862 = vmatpush1.msra.mxu0 0.0
    %4863 = vmatprep.subr.mxu0 0.0
    %4864 = vmatpush1.msra.mxu0 0.0
    %4865 = vmatprep.subr.mxu0 0.0
    %4866 = vmatpush1.msra.mxu0 0.0
    %4867 = vmatprep.subr.mxu0 0.0
    %4868 = vmatpush1.msra.mxu0 0.0
    %4869 = vmatprep.subr.mxu0 0.0
    %4870 = vmatpush1.msra.mxu0 0.0
    %4871 = vmatprep.subr.mxu0 0.0
    %4872 = vmatpush1.msra.mxu0 0.0
    %4873 = vmatprep.subr.mxu0 0.0
    %4874 = vmatpush1.msra.mxu0 0.0
    %4875 = vmatprep.subr.mxu0 0.0
    %4876 = vmatpush1.msra.mxu0 0.0
    %4877 = vmatprep.subr.mxu0 0.0
    %4878 = vmatpush1.msra.mxu0 0.0
    %4879 = vmatprep.subr.mxu0 0.0
    %4880 = vmatpush1.msra.mxu0 0.0
    %4881 = vmatprep.subr.mxu0 0.0
    %4882 = vmatpush1.msra.mxu0 0.0
    %4883 = vmatprep.subr.mxu0 0.0
    %4884 = vmatpush1.msra.mxu0 0.0
    %4885 = vmatprep.subr.mxu0 0.0
    %4886 = vmatpush1.msra.mxu0 0.0
    %4887 = vmatprep.subr.mxu0 0.0
    %4888 = vmatpush1.msra.mxu0 0.0
    %4889 = vmatprep.subr.mxu0 0.0
    %4890 = vmatpush1.msra.mxu0 0.0
    %4891 = vmatprep.subr.mxu0 0.0
    %4892 = vmatpush1.msra.mxu0 0.0
    %4893 = vmatprep.subr.mxu0 0.0
    %4894 = vmatpush1.msra.mxu0 0.0
    %4895 = vmatprep.subr.mxu0 0.0
    %4896 = vmatpush1.msra.mxu0 0.0
    %4897 = vmatprep.subr.mxu0 0.0
    %4898 = vmatpush1.msra.mxu0 0.0
    %4899 = vmatprep.mubr.f32.mxu0 0.0
    %4900 = vmatmul.mubr.f32.gmra.mrb[0].mxu0 %v4833
    %v4901 = vpop.f32.mrb[0].mxu0
    %v4902 = vadd.f32 %v4826, %v4901
    %v4903 = vpop.f32.mrb[0].mxu0
    %4904 = vdwg.mxu0
    %4905 = vrot.lane.b32.xlu0 %v497, 120
    %v4906 = vpop.permute.xlu0 %4905
    %v4907 = vsel %vm745, %v4906, 0
    %4909 = vmatprep.subr.mxu0 0.0
    %4910 = vmatpush1.xpose.msra.mxu0 %v1242
    %4911 = vmatprep.subr.mxu0 0.0
    %4912 = vmatpush1.xpose.msra.mxu0 0.0
    %4913 = vmatprep.subr.mxu0 0.0
    %4914 = vmatpush1.xpose.msra.mxu0 0.0
    %4915 = vmatprep.subr.mxu0 0.0
    %4916 = vmatpush1.xpose.msra.mxu0 0.0
    %4917 = vmatprep.subr.mxu0 0.0
    %4918 = vmatpush1.xpose.msra.mxu0 0.0
    %4919 = vmatprep.subr.mxu0 0.0
    %4920 = vmatpush1.xpose.msra.mxu0 0.0
    %4921 = vmatprep.subr.mxu0 0.0
    %4922 = vmatpush1.xpose.msra.mxu0 0.0
    %4923 = vmatprep.subr.mxu0 0.0
    %4924 = vmatpush1.xpose.msra.mxu0 0.0
    %4925 = vmatprep.subr.mxu0 0.0
    %4926 = vmatpush1.xpose.msra.mxu0 0.0
    %4927 = vmatprep.subr.mxu0 0.0
    %4928 = vmatpush1.xpose.msra.mxu0 0.0
    %4929 = vmatprep.subr.mxu0 0.0
    %4930 = vmatpush1.xpose.msra.mxu0 0.0
    %4931 = vmatprep.subr.mxu0 0.0
    %4932 = vmatpush1.xpose.msra.mxu0 0.0
    %4933 = vmatprep.subr.mxu0 0.0
    %4934 = vmatpush1.xpose.msra.mxu0 0.0
    %4935 = vmatprep.subr.mxu0 0.0
    %4936 = vmatpush1.xpose.msra.mxu0 0.0
    %4937 = vmatprep.subr.mxu0 0.0
    %4938 = vmatpush1.xpose.msra.mxu0 0.0
    %4939 = vmatprep.subr.mxu0 0.0
    %4940 = vmatpush1.xpose.msra.mxu0 0.0
    %4941 = vmatprep.subr.mxu0 0.0
    %4942 = vmatpush1.xpose.msra.mxu0 0.0
    %4943 = vmatprep.subr.mxu0 0.0
    %4944 = vmatpush1.xpose.msra.mxu0 0.0
    %4945 = vmatprep.subr.mxu0 0.0
    %4946 = vmatpush1.xpose.msra.mxu0 0.0
    %4947 = vmatprep.subr.mxu0 0.0
    %4948 = vmatpush1.xpose.msra.mxu0 0.0
    %4949 = vmatprep.subr.mxu0 0.0
    %4950 = vmatpush1.xpose.msra.mxu0 0.0
    %4951 = vmatprep.subr.mxu0 0.0
    %4952 = vmatpush1.xpose.msra.mxu0 0.0
    %4953 = vmatprep.subr.mxu0 0.0
    %4954 = vmatpush1.xpose.msra.mxu0 0.0
    %4955 = vmatprep.subr.mxu0 0.0
    %4956 = vmatpush1.xpose.msra.mxu0 0.0
    %4957 = vmatprep.subr.mxu0 0.0
    %4958 = vmatpush1.xpose.msra.mxu0 0.0
    %4959 = vmatprep.subr.mxu0 0.0
    %4960 = vmatpush1.xpose.msra.mxu0 0.0
    %4961 = vmatprep.subr.mxu0 0.0
    %4962 = vmatpush1.xpose.msra.mxu0 0.0
    %4963 = vmatprep.subr.mxu0 0.0
    %4964 = vmatpush1.xpose.msra.mxu0 0.0
    %4965 = vmatprep.subr.mxu0 0.0
    %4966 = vmatpush1.xpose.msra.mxu0 0.0
    %4967 = vmatprep.subr.mxu0 0.0
    %4968 = vmatpush1.xpose.msra.mxu0 0.0
    %4969 = vmatprep.subr.mxu0 0.0
    %4970 = vmatpush1.xpose.msra.mxu0 0.0
    %4971 = vmatprep.subr.mxu0 0.0
    %4972 = vmatpush1.xpose.msra.mxu0 0.0
    %4973 = vmatprep.mubr.f32.mxu0 0.0
    %4974 = vmatmul.mubr.f32.gmra.mrb[0].mxu0 %v4907
    %v4975 = vpop.f32.mrb[0].mxu0
    %v4976 = vadd.f32 0.0, %v4975
    %v4977 = vpop.f32.mrb[0].mxu0
    %4978 = vdwg.mxu0
    %4979 = vrot.lane.b32.xlu0 %v406, 120
    %v4980 = vpop.permute.xlu0 %4979
    %4981 = vrot.lane.b32.xlu0 %v657, 120
    %v4982 = vpop.permute.xlu0 %4981
    %v4983 = vsel %vm745, %v4980, 0
    %v4985 = vsel %vm745, %v4982, 0
    %4987 = vmatprep.subr.mxu0 0.0
    %4988 = vmatpush1.xpose.msra.mxu0 %v4985
    %4989 = vmatprep.subr.mxu0 0.0
    %4990 = vmatpush1.xpose.msra.mxu0 0.0
    %4991 = vmatprep.subr.mxu0 0.0
    %4992 = vmatpush1.xpose.msra.mxu0 0.0
    %4993 = vmatprep.subr.mxu0 0.0
    %4994 = vmatpush1.xpose.msra.mxu0 0.0
    %4995 = vmatprep.subr.mxu0 0.0
    %4996 = vmatpush1.xpose.msra.mxu0 0.0
    %4997 = vmatprep.subr.mxu0 0.0
    %4998 = vmatpush1.xpose.msra.mxu0 0.0
    %4999 = vmatprep.subr.mxu0 0.0
    %5000 = vmatpush1.xpose.msra.mxu0 0.0
    %5001 = vmatprep.subr.mxu0 0.0
    %5002 = vmatpush1.xpose.msra.mxu0 0.0
    %5003 = vmatprep.subr.mxu0 0.0
    %5004 = vmatpush1.xpose.msra.mxu0 0.0
    %5005 = vmatprep.subr.mxu0 0.0
    %5006 = vmatpush1.xpose.msra.mxu0 0.0
    %5007 = vmatprep.subr.mxu0 0.0
    %5008 = vmatpush1.xpose.msra.mxu0 0.0
    %5009 = vmatprep.subr.mxu0 0.0
    %5010 = vmatpush1.xpose.msra.mxu0 0.0
    %5011 = vmatprep.subr.mxu0 0.0
    %5012 = vmatpush1.xpose.msra.mxu0 0.0
    %5013 = vmatprep.subr.mxu0 0.0
    %5014 = vmatpush1.xpose.msra.mxu0 0.0
    %5015 = vmatprep.subr.mxu0 0.0
    %5016 = vmatpush1.xpose.msra.mxu0 0.0
    %5017 = vmatprep.subr.mxu0 0.0
    %5018 = vmatpush1.xpose.msra.mxu0 0.0
    %5019 = vmatprep.subr.mxu0 0.0
    %5020 = vmatpush1.xpose.msra.mxu0 0.0
    %5021 = vmatprep.subr.mxu0 0.0
    %5022 = vmatpush1.xpose.msra.mxu0 0.0
    %5023 = vmatprep.subr.mxu0 0.0
    %5024 = vmatpush1.xpose.msra.mxu0 0.0
    %5025 = vmatprep.subr.mxu0 0.0
    %5026 = vmatpush1.xpose.msra.mxu0 0.0
    %5027 = vmatprep.subr.mxu0 0.0
    %5028 = vmatpush1.xpose.msra.mxu0 0.0
    %5029 = vmatprep.subr.mxu0 0.0
    %5030 = vmatpush1.xpose.msra.mxu0 0.0
    %5031 = vmatprep.subr.mxu0 0.0
    %5032 = vmatpush1.xpose.msra.mxu0 0.0
    %5033 = vmatprep.subr.mxu0 0.0
    %5034 = vmatpush1.xpose.msra.mxu0 0.0
    %5035 = vmatprep.subr.mxu0 0.0
    %5036 = vmatpush1.xpose.msra.mxu0 0.0
    %5037 = vmatprep.subr.mxu0 0.0
    %5038 = vmatpush1.xpose.msra.mxu0 0.0
    %5039 = vmatprep.subr.mxu0 0.0
    %5040 = vmatpush1.xpose.msra.mxu0 0.0
    %5041 = vmatprep.subr.mxu0 0.0
    %5042 = vmatpush1.xpose.msra.mxu0 0.0
    %5043 = vmatprep.subr.mxu0 0.0
    %5044 = vmatpush1.xpose.msra.mxu0 0.0
    %5045 = vmatprep.subr.mxu0 0.0
    %5046 = vmatpush1.xpose.msra.mxu0 0.0
    %5047 = vmatprep.subr.mxu0 0.0
    %5048 = vmatpush1.xpose.msra.mxu0 0.0
    %5049 = vmatprep.subr.mxu0 0.0
    %5050 = vmatpush1.xpose.msra.mxu0 0.0
    %5051 = vmatprep.mubr.f32.mxu0 0.0
    %5052 = vmatmul.mubr.f32.gmra.mrb[0].mxu0 %v4983
    %v5053 = vpop.f32.mrb[0].mxu0
    %v5054 = vadd.f32 %v4976, %v5053
    %v5055 = vpop.f32.mrb[0].mxu0
    %5056 = vdwg.mxu0
    %v5057 = vmul.f32 %v5054, 0.35355338
    %5058 = vmatprep.subr.mxu0 0.0
    %5059 = vmatpush1.xpose.msra.mxu0 %v1395
    %5060 = vmatprep.subr.mxu0 0.0
    %5061 = vmatpush1.xpose.msra.mxu0 0.0
    %5062 = vmatprep.subr.mxu0 0.0
    %5063 = vmatpush1.xpose.msra.mxu0 0.0
    %5064 = vmatprep.subr.mxu0 0.0
    %5065 = vmatpush1.xpose.msra.mxu0 0.0
    %5066 = vmatprep.subr.mxu0 0.0
    %5067 = vmatpush1.xpose.msra.mxu0 0.0
    %5068 = vmatprep.subr.mxu0 0.0
    %5069 = vmatpush1.xpose.msra.mxu0 0.0
    %5070 = vmatprep.subr.mxu0 0.0
    %5071 = vmatpush1.xpose.msra.mxu0 0.0
    %5072 = vmatprep.subr.mxu0 0.0
    %5073 = vmatpush1.xpose.msra.mxu0 0.0
    %5074 = vmatprep.subr.mxu0 0.0
    %5075 = vmatpush1.xpose.msra.mxu0 0.0
    %5076 = vmatprep.subr.mxu0 0.0
    %5077 = vmatpush1.xpose.msra.mxu0 0.0
    %5078 = vmatprep.subr.mxu0 0.0
    %5079 = vmatpush1.xpose.msra.mxu0 0.0
    %5080 = vmatprep.subr.mxu0 0.0
    %5081 = vmatpush1.xpose.msra.mxu0 0.0
    %5082 = vmatprep.subr.mxu0 0.0
    %5083 = vmatpush1.xpose.msra.mxu0 0.0
    %5084 = vmatprep.subr.mxu0 0.0
    %5085 = vmatpush1.xpose.msra.mxu0 0.0
    %5086 = vmatprep.subr.mxu0 0.0
    %5087 = vmatpush1.xpose.msra.mxu0 0.0
    %5088 = vmatprep.subr.mxu0 0.0
    %5089 = vmatpush1.xpose.msra.mxu0 0.0
    %5090 = vmatprep.subr.mxu0 0.0
    %5091 = vmatpush1.xpose.msra.mxu0 0.0
    %5092 = vmatprep.subr.mxu0 0.0
    %5093 = vmatpush1.xpose.msra.mxu0 0.0
    %5094 = vmatprep.subr.mxu0 0.0
    %5095 = vmatpush1.xpose.msra.mxu0 0.0
    %5096 = vmatprep.subr.mxu0 0.0
    %5097 = vmatpush1.xpose.msra.mxu0 0.0
    %5098 = vmatprep.subr.mxu0 0.0
    %5099 = vmatpush1.xpose.msra.mxu0 0.0
    %5100 = vmatprep.subr.mxu0 0.0
    %5101 = vmatpush1.xpose.msra.mxu0 0.0
    %5102 = vmatprep.subr.mxu0 0.0
    %5103 = vmatpush1.xpose.msra.mxu0 0.0
    %5104 = vmatprep.subr.mxu0 0.0
    %5105 = vmatpush1.xpose.msra.mxu0 0.0
    %5106 = vmatprep.subr.mxu0 0.0
    %5107 = vmatpush1.xpose.msra.mxu0 0.0
    %5108 = vmatprep.subr.mxu0 0.0
    %5109 = vmatpush1.xpose.msra.mxu0 0.0
    %5110 = vmatprep.subr.mxu0 0.0
    %5111 = vmatpush1.xpose.msra.mxu0 0.0
    %5112 = vmatprep.subr.mxu0 0.0
    %5113 = vmatpush1.xpose.msra.mxu0 0.0
    %5114 = vmatprep.subr.mxu0 0.0
    %5115 = vmatpush1.xpose.msra.mxu0 0.0
    %5116 = vmatprep.subr.mxu0 0.0
    %5117 = vmatpush1.xpose.msra.mxu0 0.0
    %5118 = vmatprep.subr.mxu0 0.0
    %5119 = vmatpush1.xpose.msra.mxu0 0.0
    %5120 = vmatprep.subr.mxu0 0.0
    %5121 = vmatpush1.xpose.msra.mxu0 0.0
    %5122 = vmatprep.mubr.f32.mxu0 0.0
    %5123 = vmatmul.mubr.f32.gmra.mrb[0].mxu0 %v4907
    %v5124 = vpop.f32.mrb[0].mxu0
    %v5125 = vadd.f32 0.0, %v5124
    %v5126 = vpop.f32.mrb[0].mxu0
    %5127 = vdwg.mxu0
    %5128 = vrot.lane.b32.xlu0 %v576, 120
    %v5129 = vpop.permute.xlu0 %5128
    %v5130 = vsel %vm745, %v5129, 0
    %5132 = vmatprep.subr.mxu0 0.0
    %5133 = vmatpush1.xpose.msra.mxu0 %v5130
    %5134 = vmatprep.subr.mxu0 0.0
    %5135 = vmatpush1.xpose.msra.mxu0 0.0
    %5136 = vmatprep.subr.mxu0 0.0
    %5137 = vmatpush1.xpose.msra.mxu0 0.0
    %5138 = vmatprep.subr.mxu0 0.0
    %5139 = vmatpush1.xpose.msra.mxu0 0.0
    %5140 = vmatprep.subr.mxu0 0.0
    %5141 = vmatpush1.xpose.msra.mxu0 0.0
    %5142 = vmatprep.subr.mxu0 0.0
    %5143 = vmatpush1.xpose.msra.mxu0 0.0
    %5144 = vmatprep.subr.mxu0 0.0
    %5145 = vmatpush1.xpose.msra.mxu0 0.0
    %5146 = vmatprep.subr.mxu0 0.0
    %5147 = vmatpush1.xpose.msra.mxu0 0.0
    %5148 = vmatprep.subr.mxu0 0.0
    %5149 = vmatpush1.xpose.msra.mxu0 0.0
    %5150 = vmatprep.subr.mxu0 0.0
    %5151 = vmatpush1.xpose.msra.mxu0 0.0
    %5152 = vmatprep.subr.mxu0 0.0
    %5153 = vmatpush1.xpose.msra.mxu0 0.0
    %5154 = vmatprep.subr.mxu0 0.0
    %5155 = vmatpush1.xpose.msra.mxu0 0.0
    %5156 = vmatprep.subr.mxu0 0.0
    %5157 = vmatpush1.xpose.msra.mxu0 0.0
    %5158 = vmatprep.subr.mxu0 0.0
    %5159 = vmatpush1.xpose.msra.mxu0 0.0
    %5160 = vmatprep.subr.mxu0 0.0
    %5161 = vmatpush1.xpose.msra.mxu0 0.0
    %5162 = vmatprep.subr.mxu0 0.0
    %5163 = vmatpush1.xpose.msra.mxu0 0.0
    %5164 = vmatprep.subr.mxu0 0.0
    %5165 = vmatpush1.xpose.msra.mxu0 0.0
    %5166 = vmatprep.subr.mxu0 0.0
    %5167 = vmatpush1.xpose.msra.mxu0 0.0
    %5168 = vmatprep.subr.mxu0 0.0
    %5169 = vmatpush1.xpose.msra.mxu0 0.0
    %5170 = vmatprep.subr.mxu0 0.0
    %5171 = vmatpush1.xpose.msra.mxu0 0.0
    %5172 = vmatprep.subr.mxu0 0.0
    %5173 = vmatpush1.xpose.msra.mxu0 0.0
    %5174 = vmatprep.subr.mxu0 0.0
    %5175 = vmatpush1.xpose.msra.mxu0 0.0
    %5176 = vmatprep.subr.mxu0 0.0
    %5177 = vmatpush1.xpose.msra.mxu0 0.0
    %5178 = vmatprep.subr.mxu0 0.0
    %5179 = vmatpush1.xpose.msra.mxu0 0.0
    %5180 = vmatprep.subr.mxu0 0.0
    %5181 = vmatpush1.xpose.msra.mxu0 0.0
    %5182 = vmatprep.subr.mxu0 0.0
    %5183 = vmatpush1.xpose.msra.mxu0 0.0
    %5184 = vmatprep.subr.mxu0 0.0
    %5185 = vmatpush1.xpose.msra.mxu0 0.0
    %5186 = vmatprep.subr.mxu0 0.0
    %5187 = vmatpush1.xpose.msra.mxu0 0.0
    %5188 = vmatprep.subr.mxu0 0.0
    %5189 = vmatpush1.xpose.msra.mxu0 0.0
    %5190 = vmatprep.subr.mxu0 0.0
    %5191 = vmatpush1.xpose.msra.mxu0 0.0
    %5192 = vmatprep.subr.mxu0 0.0
    %5193 = vmatpush1.xpose.msra.mxu0 0.0
    %5194 = vmatprep.subr.mxu0 0.0
    %5195 = vmatpush1.xpose.msra.mxu0 0.0
    %5196 = vmatprep.mubr.f32.mxu0 0.0
    %5197 = vmatmul.mubr.f32.gmra.mrb[0].mxu0 %v4983
    %v5198 = vpop.f32.mrb[0].mxu0
    %v5199 = vadd.f32 %v5125, %v5198
    %v5200 = vpop.f32.mrb[0].mxu0
    %5201 = vdwg.mxu0
    %v5202 = vmul.f32 %v5199, 0.35355338
    %v5203 = vsel %vm745, %v5057, -inf
    %v5204 = vrot.slane %v5203, 4
    %v5205 = vmax.f32 %v5203, %v5204
    %v5206 = vrot.slane %v5205, 2
    %v5207 = vmax.f32 %v5205, %v5206
    %v5208 = vrot.slane %v5207, 1
    %v5209 = vmax.f32 %v5207, %v5208
    %v5210 = vsub.f32 %v5057, %v5209
    %v5211 = vmul.f32 %v5210, 1.442695
    %v5212 = vpow.pop %v5211
    %v5213 = vsel %vm745, %v5212, 0.0
    %v5214 = vrot.slane %v5213, 4
    %v5215 = vadd.f32 %v5213, %v5214
    %v5216 = vrot.slane %v5215, 2
    %v5217 = vadd.f32 %v5215, %v5216
    %v5218 = vrot.slane %v5217, 1
    %v5219 = vadd.f32 %v5217, %v5218
    %v5220 = vrcp.pop %v5219
    %v5221 = vmul.f32 %v5212, %v5220
    %v5222 = vsel %vm745, %v5202, -inf
    %v5223 = vrot.slane %v5222, 4
    %v5224 = vmax.f32 %v5222, %v5223
    %v5225 = vrot.slane %v5224, 2
    %v5226 = vmax.f32 %v5224, %v5225
    %v5227 = vrot.slane %v5226, 1
    %v5228 = vmax.f32 %v5226, %v5227
    %v5229 = vsub.f32 %v5202, %v5228
    %v5230 = vmul.f32 %v5229, 1.442695
    %v5231 = vpow.pop %v5230
    %v5232 = vsel %vm745, %v5231, 0.0
    %v5233 = vrot.slane %v5232, 4
    %v5234 = vadd.f32 %v5232, %v5233
    %v5235 = vrot.slane %v5234, 2
    %v5236 = vadd.f32 %v5234, %v5235
    %v5237 = vrot.slane %v5236, 1
    %v5238 = vadd.f32 %v5236, %v5237
    %v5239 = vrcp.pop %v5238
    %v5240 = vmul.f32 %v5231, %v5239
    %5241 = vrot.lane.b32.xlu0 %v576, 88
    %v5242 = vpop.permute.xlu0 %5241
    %v5245 = vsel %vm745, %v5240, 0
    %5247 = vmatprep.subr.mxu0 0.0
    %5248 = vmatpush1.msra.mxu0 %v5242
    %5249 = vmatprep.subr.mxu0 0.0
    %5250 = vmatpush1.msra.mxu0 0.0
    %5251 = vmatprep.subr.mxu0 0.0
    %5252 = vmatpush1.msra.mxu0 0.0
    %5253 = vmatprep.subr.mxu0 0.0
    %5254 = vmatpush1.msra.mxu0 0.0
    %5255 = vmatprep.subr.mxu0 0.0
    %5256 = vmatpush1.msra.mxu0 0.0
    %5257 = vmatprep.subr.mxu0 0.0
    %5258 = vmatpush1.msra.mxu0 0.0
    %5259 = vmatprep.subr.mxu0 0.0
    %5260 = vmatpush1.msra.mxu0 0.0
    %5261 = vmatprep.subr.mxu0 0.0
    %5262 = vmatpush1.msra.mxu0 0.0
    %5263 = vmatprep.subr.mxu0 0.0
    %5264 = vmatpush1.msra.mxu0 0.0
    %5265 = vmatprep.subr.mxu0 0.0
    %5266 = vmatpush1.msra.mxu0 0.0
    %5267 = vmatprep.subr.mxu0 0.0
    %5268 = vmatpush1.msra.mxu0 0.0
    %5269 = vmatprep.subr.mxu0 0.0
    %5270 = vmatpush1.msra.mxu0 0.0
    %5271 = vmatprep.subr.mxu0 0.0
    %5272 = vmatpush1.msra.mxu0 0.0
    %5273 = vmatprep.subr.mxu0 0.0
    %5274 = vmatpush1.msra.mxu0 0.0
    %5275 = vmatprep.subr.mxu0 0.0
    %5276 = vmatpush1.msra.mxu0 0.0
    %5277 = vmatprep.subr.mxu0 0.0
    %5278 = vmatpush1.msra.mxu0 0.0
    %5279 = vmatprep.subr.mxu0 0.0
    %5280 = vmatpush1.msra.mxu0 0.0
    %5281 = vmatprep.subr.mxu0 0.0
    %5282 = vmatpush1.msra.mxu0 0.0
    %5283 = vmatprep.subr.mxu0 0.0
    %5284 = vmatpush1.msra.mxu0 0.0
    %5285 = vmatprep.subr.mxu0 0.0
    %5286 = vmatpush1.msra.mxu0 0.0
    %5287 = vmatprep.subr.mxu0 0.0
    %5288 = vmatpush1.msra.mxu0 0.0
    %5289 = vmatprep.subr.mxu0 0.0
    %5290 = vmatpush1.msra.mxu0 0.0
    %5291 = vmatprep.subr.mxu0 0.0
    %5292 = vmatpush1.msra.mxu0 0.0
    %5293 = vmatprep.subr.mxu0 0.0
    %5294 = vmatpush1.msra.mxu0 0.0
    %5295 = vmatprep.subr.mxu0 0.0
    %5296 = vmatpush1.msra.mxu0 0.0
    %5297 = vmatprep.subr.mxu0 0.0
    %5298 = vmatpush1.msra.mxu0 0.0
    %5299 = vmatprep.subr.mxu0 0.0
    %5300 = vmatpush1.msra.mxu0 0.0
    %5301 = vmatprep.subr.mxu0 0.0
    %5302 = vmatpush1.msra.mxu0 0.0
    %5303 = vmatprep.subr.mxu0 0.0
    %5304 = vmatpush1.msra.mxu0 0.0
    %5305 = vmatprep.subr.mxu0 0.0
    %5306 = vmatpush1.msra.mxu0 0.0
    %5307 = vmatprep.subr.mxu0 0.0
    %5308 = vmatpush1.msra.mxu0 0.0
    %5309 = vmatprep.subr.mxu0 0.0
    %5310 = vmatpush1.msra.mxu0 0.0
    %5311 = vmatprep.mubr.f32.mxu0 0.0
    %5312 = vmatmul.mubr.f32.gmra.mrb[0].mxu0 %v5245
    %v5313 = vpop.f32.mrb[0].mxu0
    %v5314 = vadd.f32 0.0, %v5313
    %v5315 = vpop.f32.mrb[0].mxu0
    %5316 = vdwg.mxu0
    %5317 = vrot.lane.b32.xlu0 %v657, 88
    %v5318 = vpop.permute.xlu0 %5317
    %v5321 = vsel %vm745, %v5221, 0
    %5323 = vmatprep.subr.mxu0 0.0
    %5324 = vmatpush1.msra.mxu0 %v5318
    %5325 = vmatprep.subr.mxu0 0.0
    %5326 = vmatpush1.msra.mxu0 0.0
    %5327 = vmatprep.subr.mxu0 0.0
    %5328 = vmatpush1.msra.mxu0 0.0
    %5329 = vmatprep.subr.mxu0 0.0
    %5330 = vmatpush1.msra.mxu0 0.0
    %5331 = vmatprep.subr.mxu0 0.0
    %5332 = vmatpush1.msra.mxu0 0.0
    %5333 = vmatprep.subr.mxu0 0.0
    %5334 = vmatpush1.msra.mxu0 0.0
    %5335 = vmatprep.subr.mxu0 0.0
    %5336 = vmatpush1.msra.mxu0 0.0
    %5337 = vmatprep.subr.mxu0 0.0
    %5338 = vmatpush1.msra.mxu0 0.0
    %5339 = vmatprep.subr.mxu0 0.0
    %5340 = vmatpush1.msra.mxu0 0.0
    %5341 = vmatprep.subr.mxu0 0.0
    %5342 = vmatpush1.msra.mxu0 0.0
    %5343 = vmatprep.subr.mxu0 0.0
    %5344 = vmatpush1.msra.mxu0 0.0
    %5345 = vmatprep.subr.mxu0 0.0
    %5346 = vmatpush1.msra.mxu0 0.0
    %5347 = vmatprep.subr.mxu0 0.0
    %5348 = vmatpush1.msra.mxu0 0.0
    %5349 = vmatprep.subr.mxu0 0.0
    %5350 = vmatpush1.msra.mxu0 0.0
    %5351 = vmatprep.subr.mxu0 0.0
    %5352 = vmatpush1.msra.mxu0 0.0
    %5353 = vmatprep.subr.mxu0 0.0
    %5354 = vmatpush1.msra.mxu0 0.0
    %5355 = vmatprep.subr.mxu0 0.0
    %5356 = vmatpush1.msra.mxu0 0.0
    %5357 = vmatprep.subr.mxu0 0.0
    %5358 = vmatpush1.msra.mxu0 0.0
    %5359 = vmatprep.subr.mxu0 0.0
    %5360 = vmatpush1.msra.mxu0 0.0
    %5361 = vmatprep.subr.mxu0 0.0
    %5362 = vmatpush1.msra.mxu0 0.0
    %5363 = vmatprep.subr.mxu0 0.0
    %5364 = vmatpush1.msra.mxu0 0.0
    %5365 = vmatprep.subr.mxu0 0.0
    %5366 = vmatpush1.msra.mxu0 0.0
    %5367 = vmatprep.subr.mxu0 0.0
    %5368 = vmatpush1.msra.mxu0 0.0
    %5369 = vmatprep.subr.mxu0 0.0
    %5370 = vmatpush1.msra.mxu0 0.0
    %5371 = vmatprep.subr.mxu0 0.0
    %5372 = vmatpush1.msra.mxu0 0.0
    %5373 = vmatprep.subr.mxu0 0.0
    %5374 = vmatpush1.msra.mxu0 0.0
    %5375 = vmatprep.subr.mxu0 0.0
    %5376 = vmatpush1.msra.mxu0 0.0
    %5377 = vmatprep.subr.mxu0 0.0
    %5378 = vmatpush1.msra.mxu0 0.0
    %5379 = vmatprep.subr.mxu0 0.0
    %5380 = vmatpush1.msra.mxu0 0.0
    %5381 = vmatprep.subr.mxu0 0.0
    %5382 = vmatpush1.msra.mxu0 0.0
    %5383 = vmatprep.subr.mxu0 0.0
    %5384 = vmatpush1.msra.mxu0 0.0
    %5385 = vmatprep.subr.mxu0 0.0
    %5386 = vmatpush1.msra.mxu0 0.0
    %5387 = vmatprep.mubr.f32.mxu0 0.0
    %5388 = vmatmul.mubr.f32.gmra.mrb[0].mxu0 %v5321
    %v5389 = vpop.f32.mrb[0].mxu0
    %v5390 = vadd.f32 %v5314, %v5389
    %v5391 = vpop.f32.mrb[0].mxu0
    %5392 = vdwg.mxu0
    %v5394 = vsel %vm745, %v5390, 0
    %5396 = vmatprep.subr.mxu0 0.0
    %5397 = vmatpush1.msra.mxu0 %v260
    %5398 = vmatprep.subr.mxu0 0.0
    %5399 = vmatpush1.msra.mxu0 0.0
    %5400 = vmatprep.subr.mxu0 0.0
    %5401 = vmatpush1.msra.mxu0 0.0
    %5402 = vmatprep.subr.mxu0 0.0
    %5403 = vmatpush1.msra.mxu0 0.0
    %5404 = vmatprep.subr.mxu0 0.0
    %5405 = vmatpush1.msra.mxu0 0.0
    %5406 = vmatprep.subr.mxu0 0.0
    %5407 = vmatpush1.msra.mxu0 0.0
    %5408 = vmatprep.subr.mxu0 0.0
    %5409 = vmatpush1.msra.mxu0 0.0
    %5410 = vmatprep.subr.mxu0 0.0
    %5411 = vmatpush1.msra.mxu0 0.0
    %5412 = vmatprep.subr.mxu0 0.0
    %5413 = vmatpush1.msra.mxu0 0.0
    %5414 = vmatprep.subr.mxu0 0.0
    %5415 = vmatpush1.msra.mxu0 0.0
    %5416 = vmatprep.subr.mxu0 0.0
    %5417 = vmatpush1.msra.mxu0 0.0
    %5418 = vmatprep.subr.mxu0 0.0
    %5419 = vmatpush1.msra.mxu0 0.0
    %5420 = vmatprep.subr.mxu0 0.0
    %5421 = vmatpush1.msra.mxu0 0.0
    %5422 = vmatprep.subr.mxu0 0.0
    %5423 = vmatpush1.msra.mxu0 0.0
    %5424 = vmatprep.subr.mxu0 0.0
    %5425 = vmatpush1.msra.mxu0 0.0
    %5426 = vmatprep.subr.mxu0 0.0
    %5427 = vmatpush1.msra.mxu0 0.0
    %5428 = vmatprep.subr.mxu0 0.0
    %5429 = vmatpush1.msra.mxu0 0.0
    %5430 = vmatprep.subr.mxu0 0.0
    %5431 = vmatpush1.msra.mxu0 0.0
    %5432 = vmatprep.subr.mxu0 0.0
    %5433 = vmatpush1.msra.mxu0 0.0
    %5434 = vmatprep.subr.mxu0 0.0
    %5435 = vmatpush1.msra.mxu0 0.0
    %5436 = vmatprep.subr.mxu0 0.0
    %5437 = vmatpush1.msra.mxu0 0.0
    %5438 = vmatprep.subr.mxu0 0.0
    %5439 = vmatpush1.msra.mxu0 0.0
    %5440 = vmatprep.subr.mxu0 0.0
    %5441 = vmatpush1.msra.mxu0 0.0
    %5442 = vmatprep.subr.mxu0 0.0
    %5443 = vmatpush1.msra.mxu0 0.0
    %5444 = vmatprep.subr.mxu0 0.0
    %5445 = vmatpush1.msra.mxu0 0.0
    %5446 = vmatprep.subr.mxu0 0.0
    %5447 = vmatpush1.msra.mxu0 0.0
    %5448 = vmatprep.subr.mxu0 0.0
    %5449 = vmatpush1.msra.mxu0 0.0
    %5450 = vmatprep.subr.mxu0 0.0
    %5451 = vmatpush1.msra.mxu0 0.0
    %5452 = vmatprep.subr.mxu0 0.0
    %5453 = vmatpush1.msra.mxu0 0.0
    %5454 = vmatprep.subr.mxu0 0.0
    %5455 = vmatpush1.msra.mxu0 0.0
    %5456 = vmatprep.subr.mxu0 0.0
    %5457 = vmatpush1.msra.mxu0 0.0
    %5458 = vmatprep.subr.mxu0 0.0
    %5459 = vmatpush1.msra.mxu0 0.0
    %5460 = vmatprep.mubr.f32.mxu0 0.0
    %5461 = vmatmul.mubr.f32.gmra.mrb[0].mxu0 %v5394
    %v5462 = vpop.f32.mrb[0].mxu0
    %v5463 = vadd.f32 0.0, %v5462
    %v5464 = vpop.f32.mrb[0].mxu0
    %5465 = vdwg.mxu0
    %v5467 = vsel %vm745, %v4902, 0
    %5469 = vmatprep.subr.mxu0 0.0
    %5470 = vmatpush1.msra.mxu0 %v259
    %5471 = vmatprep.subr.mxu0 0.0
    %5472 = vmatpush1.msra.mxu0 0.0
    %5473 = vmatprep.subr.mxu0 0.0
    %5474 = vmatpush1.msra.mxu0 0.0
    %5475 = vmatprep.subr.mxu0 0.0
    %5476 = vmatpush1.msra.mxu0 0.0
    %5477 = vmatprep.subr.mxu0 0.0
    %5478 = vmatpush1.msra.mxu0 0.0
    %5479 = vmatprep.subr.mxu0 0.0
    %5480 = vmatpush1.msra.mxu0 0.0
    %5481 = vmatprep.subr.mxu0 0.0
    %5482 = vmatpush1.msra.mxu0 0.0
    %5483 = vmatprep.subr.mxu0 0.0
    %5484 = vmatpush1.msra.mxu0 0.0
    %5485 = vmatprep.subr.mxu0 0.0
    %5486 = vmatpush1.msra.mxu0 0.0
    %5487 = vmatprep.subr.mxu0 0.0
    %5488 = vmatpush1.msra.mxu0 0.0
    %5489 = vmatprep.subr.mxu0 0.0
    %5490 = vmatpush1.msra.mxu0 0.0
    %5491 = vmatprep.subr.mxu0 0.0
    %5492 = vmatpush1.msra.mxu0 0.0
    %5493 = vmatprep.subr.mxu0 0.0
    %5494 = vmatpush1.msra.mxu0 0.0
    %5495 = vmatprep.subr.mxu0 0.0
    %5496 = vmatpush1.msra.mxu0 0.0
    %5497 = vmatprep.subr.mxu0 0.0
    %5498 = vmatpush1.msra.mxu0 0.0
    %5499 = vmatprep.subr.mxu0 0.0
    %5500 = vmatpush1.msra.mxu0 0.0
    %5501 = vmatprep.subr.mxu0 0.0
    %5502 = vmatpush1.msra.mxu0 0.0
    %5503 = vmatprep.subr.mxu0 0.0
    %5504 = vmatpush1.msra.mxu0 0.0
    %5505 = vmatprep.subr.mxu0 0.0
    %5506 = vmatpush1.msra.mxu0 0.0
    %5507 = vmatprep.subr.mxu0 0.0
    %5508 = vmatpush1.msra.mxu0 0.0
    %5509 = vmatprep.subr.mxu0 0.0
    %5510 = vmatpush1.msra.mxu0 0.0
    %5511 = vmatprep.subr.mxu0 0.0
    %5512 = vmatpush1.msra.mxu0 0.0
    %5513 = vmatprep.subr.mxu0 0.0
    %5514 = vmatpush1.msra.mxu0 0.0
    %5515 = vmatprep.subr.mxu0 0.0
    %5516 = vmatpush1.msra.mxu0 0.0
    %5517 = vmatprep.subr.mxu0 0.0
    %5518 = vmatpush1.msra.mxu0 0.0
    %5519 = vmatprep.subr.mxu0 0.0
    %5520 = vmatpush1.msra.mxu0 0.0
    %5521 = vmatprep.subr.mxu0 0.0
    %5522 = vmatpush1.msra.mxu0 0.0
    %5523 = vmatprep.subr.mxu0 0.0
    %5524 = vmatpush1.msra.mxu0 0.0
    %5525 = vmatprep.subr.mxu0 0.0
    %5526 = vmatpush1.msra.mxu0 0.0
    %5527 = vmatprep.subr.mxu0 0.0
    %5528 = vmatpush1.msra.mxu0 0.0
    %5529 = vmatprep.subr.mxu0 0.0
    %5530 = vmatpush1.msra.mxu0 0.0
    %5531 = vmatprep.subr.mxu0 0.0
    %5532 = vmatpush1.msra.mxu0 0.0
    %5533 = vmatprep.mubr.f32.mxu0 0.0
    %5534 = vmatmul.mubr.f32.gmra.mrb[0].mxu0 %v5467
    %v5535 = vpop.f32.mrb[0].mxu0
    %v5536 = vadd.f32 %v5463, %v5535
    %v5537 = vpop.f32.mrb[0].mxu0
    %5538 = vdwg.mxu0
    %5539 = vrot.lane.b32.xlu0 %v497, 112
    %v5540 = vpop.permute.xlu0 %5539
    %v5541 = vsel %vm745, %v5540, 0
    %5543 = vmatprep.subr.mxu0 0.0
    %5544 = vmatpush1.xpose.msra.mxu0 %v1884
    %5545 = vmatprep.subr.mxu0 0.0
    %5546 = vmatpush1.xpose.msra.mxu0 0.0
    %5547 = vmatprep.subr.mxu0 0.0
    %5548 = vmatpush1.xpose.msra.mxu0 0.0
    %5549 = vmatprep.subr.mxu0 0.0
    %5550 = vmatpush1.xpose.msra.mxu0 0.0
    %5551 = vmatprep.subr.mxu0 0.0
    %5552 = vmatpush1.xpose.msra.mxu0 0.0
    %5553 = vmatprep.subr.mxu0 0.0
    %5554 = vmatpush1.xpose.msra.mxu0 0.0
    %5555 = vmatprep.subr.mxu0 0.0
    %5556 = vmatpush1.xpose.msra.mxu0 0.0
    %5557 = vmatprep.subr.mxu0 0.0
    %5558 = vmatpush1.xpose.msra.mxu0 0.0
    %5559 = vmatprep.subr.mxu0 0.0
    %5560 = vmatpush1.xpose.msra.mxu0 0.0
    %5561 = vmatprep.subr.mxu0 0.0
    %5562 = vmatpush1.xpose.msra.mxu0 0.0
    %5563 = vmatprep.subr.mxu0 0.0
    %5564 = vmatpush1.xpose.msra.mxu0 0.0
    %5565 = vmatprep.subr.mxu0 0.0
    %5566 = vmatpush1.xpose.msra.mxu0 0.0
    %5567 = vmatprep.subr.mxu0 0.0
    %5568 = vmatpush1.xpose.msra.mxu0 0.0
    %5569 = vmatprep.subr.mxu0 0.0
    %5570 = vmatpush1.xpose.msra.mxu0 0.0
    %5571 = vmatprep.subr.mxu0 0.0
    %5572 = vmatpush1.xpose.msra.mxu0 0.0
    %5573 = vmatprep.subr.mxu0 0.0
    %5574 = vmatpush1.xpose.msra.mxu0 0.0
    %5575 = vmatprep.subr.mxu0 0.0
    %5576 = vmatpush1.xpose.msra.mxu0 0.0
    %5577 = vmatprep.subr.mxu0 0.0
    %5578 = vmatpush1.xpose.msra.mxu0 0.0
    %5579 = vmatprep.subr.mxu0 0.0
    %5580 = vmatpush1.xpose.msra.mxu0 0.0
    %5581 = vmatprep.subr.mxu0 0.0
    %5582 = vmatpush1.xpose.msra.mxu0 0.0
    %5583 = vmatprep.subr.mxu0 0.0
    %5584 = vmatpush1.xpose.msra.mxu0 0.0
    %5585 = vmatprep.subr.mxu0 0.0
    %5586 = vmatpush1.xpose.msra.mxu0 0.0
    %5587 = vmatprep.subr.mxu0 0.0
    %5588 = vmatpush1.xpose.msra.mxu0 0.0
    %5589 = vmatprep.subr.mxu0 0.0
    %5590 = vmatpush1.xpose.msra.mxu0 0.0
    %5591 = vmatprep.subr.mxu0 0.0
    %5592 = vmatpush1.xpose.msra.mxu0 0.0
    %5593 = vmatprep.subr.mxu0 0.0
    %5594 = vmatpush1.xpose.msra.mxu0 0.0
    %5595 = vmatprep.subr.mxu0 0.0
    %5596 = vmatpush1.xpose.msra.mxu0 0.0
    %5597 = vmatprep.subr.mxu0 0.0
    %5598 = vmatpush1.xpose.msra.mxu0 0.0
    %5599 = vmatprep.subr.mxu0 0.0
    %5600 = vmatpush1.xpose.msra.mxu0 0.0
    %5601 = vmatprep.subr.mxu0 0.0
    %5602 = vmatpush1.xpose.msra.mxu0 0.0
    %5603 = vmatprep.subr.mxu0 0.0
    %5604 = vmatpush1.xpose.msra.mxu0 0.0
    %5605 = vmatprep.subr.mxu0 0.0
    %5606 = vmatpush1.xpose.msra.mxu0 0.0
    %5607 = vmatprep.mubr.f32.mxu0 0.0
    %5608 = vmatmul.mubr.f32.gmra.mrb[0].mxu0 %v5541
    %v5609 = vpop.f32.mrb[0].mxu0
    %v5610 = vadd.f32 0.0, %v5609
    %v5611 = vpop.f32.mrb[0].mxu0
    %5612 = vdwg.mxu0
    %5613 = vrot.lane.b32.xlu0 %v406, 112
    %v5614 = vpop.permute.xlu0 %5613
    %5615 = vrot.lane.b32.xlu0 %v657, 112
    %v5616 = vpop.permute.xlu0 %5615
    %v5617 = vsel %vm745, %v5614, 0
    %v5619 = vsel %vm745, %v5616, 0
    %5621 = vmatprep.subr.mxu0 0.0
    %5622 = vmatpush1.xpose.msra.mxu0 %v5619
    %5623 = vmatprep.subr.mxu0 0.0
    %5624 = vmatpush1.xpose.msra.mxu0 0.0
    %5625 = vmatprep.subr.mxu0 0.0
    %5626 = vmatpush1.xpose.msra.mxu0 0.0
    %5627 = vmatprep.subr.mxu0 0.0
    %5628 = vmatpush1.xpose.msra.mxu0 0.0
    %5629 = vmatprep.subr.mxu0 0.0
    %5630 = vmatpush1.xpose.msra.mxu0 0.0
    %5631 = vmatprep.subr.mxu0 0.0
    %5632 = vmatpush1.xpose.msra.mxu0 0.0
    %5633 = vmatprep.subr.mxu0 0.0
    %5634 = vmatpush1.xpose.msra.mxu0 0.0
    %5635 = vmatprep.subr.mxu0 0.0
    %5636 = vmatpush1.xpose.msra.mxu0 0.0
    %5637 = vmatprep.subr.mxu0 0.0
    %5638 = vmatpush1.xpose.msra.mxu0 0.0
    %5639 = vmatprep.subr.mxu0 0.0
    %5640 = vmatpush1.xpose.msra.mxu0 0.0
    %5641 = vmatprep.subr.mxu0 0.0
    %5642 = vmatpush1.xpose.msra.mxu0 0.0
    %5643 = vmatprep.subr.mxu0 0.0
    %5644 = vmatpush1.xpose.msra.mxu0 0.0
    %5645 = vmatprep.subr.mxu0 0.0
    %5646 = vmatpush1.xpose.msra.mxu0 0.0
    %5647 = vmatprep.subr.mxu0 0.0
    %5648 = vmatpush1.xpose.msra.mxu0 0.0
    %5649 = vmatprep.subr.mxu0 0.0
    %5650 = vmatpush1.xpose.msra.mxu0 0.0
    %5651 = vmatprep.subr.mxu0 0.0
    %5652 = vmatpush1.xpose.msra.mxu0 0.0
    %5653 = vmatprep.subr.mxu0 0.0
    %5654 = vmatpush1.xpose.msra.mxu0 0.0
    %5655 = vmatprep.subr.mxu0 0.0
    %5656 = vmatpush1.xpose.msra.mxu0 0.0
    %5657 = vmatprep.subr.mxu0 0.0
    %5658 = vmatpush1.xpose.msra.mxu0 0.0
    %5659 = vmatprep.subr.mxu0 0.0
    %5660 = vmatpush1.xpose.msra.mxu0 0.0
    %5661 = vmatprep.subr.mxu0 0.0
    %5662 = vmatpush1.xpose.msra.mxu0 0.0
    %5663 = vmatprep.subr.mxu0 0.0
    %5664 = vmatpush1.xpose.msra.mxu0 0.0
    %5665 = vmatprep.subr.mxu0 0.0
    %5666 = vmatpush1.xpose.msra.mxu0 0.0
    %5667 = vmatprep.subr.mxu0 0.0
    %5668 = vmatpush1.xpose.msra.mxu0 0.0
    %5669 = vmatprep.subr.mxu0 0.0
    %5670 = vmatpush1.xpose.msra.mxu0 0.0
    %5671 = vmatprep.subr.mxu0 0.0
    %5672 = vmatpush1.xpose.msra.mxu0 0.0
    %5673 = vmatprep.subr.mxu0 0.0
    %5674 = vmatpush1.xpose.msra.mxu0 0.0
    %5675 = vmatprep.subr.mxu0 0.0
    %5676 = vmatpush1.xpose.msra.mxu0 0.0
    %5677 = vmatprep.subr.mxu0 0.0
    %5678 = vmatpush1.xpose.msra.mxu0 0.0
    %5679 = vmatprep.subr.mxu0 0.0
    %5680 = vmatpush1.xpose.msra.mxu0 0.0
    %5681 = vmatprep.subr.mxu0 0.0
    %5682 = vmatpush1.xpose.msra.mxu0 0.0
    %5683 = vmatprep.subr.mxu0 0.0
    %5684 = vmatpush1.xpose.msra.mxu0 0.0
    %5685 = vmatprep.mubr.f32.mxu0 0.0
    %5686 = vmatmul.mubr.f32.gmra.mrb[0].mxu0 %v5617
    %v5687 = vpop.f32.mrb[0].mxu0
    %v5688 = vadd.f32 %v5610, %v5687
    %v5689 = vpop.f32.mrb[0].mxu0
    %5690 = vdwg.mxu0
    %v5691 = vmul.f32 %v5688, 0.35355338
    %5692 = vmatprep.subr.mxu0 0.0
    %5693 = vmatpush1.xpose.msra.mxu0 %v2037
    %5694 = vmatprep.subr.mxu0 0.0
    %5695 = vmatpush1.xpose.msra.mxu0 0.0
    %5696 = vmatprep.subr.mxu0 0.0
    %5697 = vmatpush1.xpose.msra.mxu0 0.0
    %5698 = vmatprep.subr.mxu0 0.0
    %5699 = vmatpush1.xpose.msra.mxu0 0.0
    %5700 = vmatprep.subr.mxu0 0.0
    %5701 = vmatpush1.xpose.msra.mxu0 0.0
    %5702 = vmatprep.subr.mxu0 0.0
    %5703 = vmatpush1.xpose.msra.mxu0 0.0
    %5704 = vmatprep.subr.mxu0 0.0
    %5705 = vmatpush1.xpose.msra.mxu0 0.0
    %5706 = vmatprep.subr.mxu0 0.0
    %5707 = vmatpush1.xpose.msra.mxu0 0.0
    %5708 = vmatprep.subr.mxu0 0.0
    %5709 = vmatpush1.xpose.msra.mxu0 0.0
    %5710 = vmatprep.subr.mxu0 0.0
    %5711 = vmatpush1.xpose.msra.mxu0 0.0
    %5712 = vmatprep.subr.mxu0 0.0
    %5713 = vmatpush1.xpose.msra.mxu0 0.0
    %5714 = vmatprep.subr.mxu0 0.0
    %5715 = vmatpush1.xpose.msra.mxu0 0.0
    %5716 = vmatprep.subr.mxu0 0.0
    %5717 = vmatpush1.xpose.msra.mxu0 0.0
    %5718 = vmatprep.subr.mxu0 0.0
    %5719 = vmatpush1.xpose.msra.mxu0 0.0
    %5720 = vmatprep.subr.mxu0 0.0
    %5721 = vmatpush1.xpose.msra.mxu0 0.0
    %5722 = vmatprep.subr.mxu0 0.0
    %5723 = vmatpush1.xpose.msra.mxu0 0.0
    %5724 = vmatprep.subr.mxu0 0.0
    %5725 = vmatpush1.xpose.msra.mxu0 0.0
    %5726 = vmatprep.subr.mxu0 0.0
    %5727 = vmatpush1.xpose.msra.mxu0 0.0
    %5728 = vmatprep.subr.mxu0 0.0
    %5729 = vmatpush1.xpose.msra.mxu0 0.0
    %5730 = vmatprep.subr.mxu0 0.0
    %5731 = vmatpush1.xpose.msra.mxu0 0.0
    %5732 = vmatprep.subr.mxu0 0.0
    %5733 = vmatpush1.xpose.msra.mxu0 0.0
    %5734 = vmatprep.subr.mxu0 0.0
    %5735 = vmatpush1.xpose.msra.mxu0 0.0
    %5736 = vmatprep.subr.mxu0 0.0
    %5737 = vmatpush1.xpose.msra.mxu0 0.0
    %5738 = vmatprep.subr.mxu0 0.0
    %5739 = vmatpush1.xpose.msra.mxu0 0.0
    %5740 = vmatprep.subr.mxu0 0.0
    %5741 = vmatpush1.xpose.msra.mxu0 0.0
    %5742 = vmatprep.subr.mxu0 0.0
    %5743 = vmatpush1.xpose.msra.mxu0 0.0
    %5744 = vmatprep.subr.mxu0 0.0
    %5745 = vmatpush1.xpose.msra.mxu0 0.0
    %5746 = vmatprep.subr.mxu0 0.0
    %5747 = vmatpush1.xpose.msra.mxu0 0.0
    %5748 = vmatprep.subr.mxu0 0.0
    %5749 = vmatpush1.xpose.msra.mxu0 0.0
    %5750 = vmatprep.subr.mxu0 0.0
    %5751 = vmatpush1.xpose.msra.mxu0 0.0
    %5752 = vmatprep.subr.mxu0 0.0
    %5753 = vmatpush1.xpose.msra.mxu0 0.0
    %5754 = vmatprep.subr.mxu0 0.0
    %5755 = vmatpush1.xpose.msra.mxu0 0.0
    %5756 = vmatprep.mubr.f32.mxu0 0.0
    %5757 = vmatmul.mubr.f32.gmra.mrb[0].mxu0 %v5541
    %v5758 = vpop.f32.mrb[0].mxu0
    %v5759 = vadd.f32 0.0, %v5758
    %v5760 = vpop.f32.mrb[0].mxu0
    %5761 = vdwg.mxu0
    %5762 = vrot.lane.b32.xlu0 %v576, 112
    %v5763 = vpop.permute.xlu0 %5762
    %v5764 = vsel %vm745, %v5763, 0
    %5766 = vmatprep.subr.mxu0 0.0
    %5767 = vmatpush1.xpose.msra.mxu0 %v5764
    %5768 = vmatprep.subr.mxu0 0.0
    %5769 = vmatpush1.xpose.msra.mxu0 0.0
    %5770 = vmatprep.subr.mxu0 0.0
    %5771 = vmatpush1.xpose.msra.mxu0 0.0
    %5772 = vmatprep.subr.mxu0 0.0
    %5773 = vmatpush1.xpose.msra.mxu0 0.0
    %5774 = vmatprep.subr.mxu0 0.0
    %5775 = vmatpush1.xpose.msra.mxu0 0.0
    %5776 = vmatprep.subr.mxu0 0.0
    %5777 = vmatpush1.xpose.msra.mxu0 0.0
    %5778 = vmatprep.subr.mxu0 0.0
    %5779 = vmatpush1.xpose.msra.mxu0 0.0
    %5780 = vmatprep.subr.mxu0 0.0
    %5781 = vmatpush1.xpose.msra.mxu0 0.0
    %5782 = vmatprep.subr.mxu0 0.0
    %5783 = vmatpush1.xpose.msra.mxu0 0.0
    %5784 = vmatprep.subr.mxu0 0.0
    %5785 = vmatpush1.xpose.msra.mxu0 0.0
    %5786 = vmatprep.subr.mxu0 0.0
    %5787 = vmatpush1.xpose.msra.mxu0 0.0
    %5788 = vmatprep.subr.mxu0 0.0
    %5789 = vmatpush1.xpose.msra.mxu0 0.0
    %5790 = vmatprep.subr.mxu0 0.0
    %5791 = vmatpush1.xpose.msra.mxu0 0.0
    %5792 = vmatprep.subr.mxu0 0.0
    %5793 = vmatpush1.xpose.msra.mxu0 0.0
    %5794 = vmatprep.subr.mxu0 0.0
    %5795 = vmatpush1.xpose.msra.mxu0 0.0
    %5796 = vmatprep.subr.mxu0 0.0
    %5797 = vmatpush1.xpose.msra.mxu0 0.0
    %5798 = vmatprep.subr.mxu0 0.0
    %5799 = vmatpush1.xpose.msra.mxu0 0.0
    %5800 = vmatprep.subr.mxu0 0.0
    %5801 = vmatpush1.xpose.msra.mxu0 0.0
    %5802 = vmatprep.subr.mxu0 0.0
    %5803 = vmatpush1.xpose.msra.mxu0 0.0
    %5804 = vmatprep.subr.mxu0 0.0
    %5805 = vmatpush1.xpose.msra.mxu0 0.0
    %5806 = vmatprep.subr.mxu0 0.0
    %5807 = vmatpush1.xpose.msra.mxu0 0.0
    %5808 = vmatprep.subr.mxu0 0.0
    %5809 = vmatpush1.xpose.msra.mxu0 0.0
    %5810 = vmatprep.subr.mxu0 0.0
    %5811 = vmatpush1.xpose.msra.mxu0 0.0
    %5812 = vmatprep.subr.mxu0 0.0
    %5813 = vmatpush1.xpose.msra.mxu0 0.0
    %5814 = vmatprep.subr.mxu0 0.0
    %5815 = vmatpush1.xpose.msra.mxu0 0.0
    %5816 = vmatprep.subr.mxu0 0.0
    %5817 = vmatpush1.xpose.msra.mxu0 0.0
    %5818 = vmatprep.subr.mxu0 0.0
    %5819 = vmatpush1.xpose.msra.mxu0 0.0
    %5820 = vmatprep.subr.mxu0 0.0
    %5821 = vmatpush1.xpose.msra.mxu0 0.0
    %5822 = vmatprep.subr.mxu0 0.0
    %5823 = vmatpush1.xpose.msra.mxu0 0.0
    %5824 = vmatprep.subr.mxu0 0.0
    %5825 = vmatpush1.xpose.msra.mxu0 0.0
    %5826 = vmatprep.subr.mxu0 0.0
    %5827 = vmatpush1.xpose.msra.mxu0 0.0
    %5828 = vmatprep.subr.mxu0 0.0
    %5829 = vmatpush1.xpose.msra.mxu0 0.0
    %5830 = vmatprep.mubr.f32.mxu0 0.0
    %5831 = vmatmul.mubr.f32.gmra.mrb[0].mxu0 %v5617
    %v5832 = vpop.f32.mrb[0].mxu0
    %v5833 = vadd.f32 %v5759, %v5832
    %v5834 = vpop.f32.mrb[0].mxu0
    %5835 = vdwg.mxu0
    %v5836 = vmul.f32 %v5833, 0.35355338
    %v5837 = vsel %vm745, %v5691, -inf
    %v5838 = vrot.slane %v5837, 4
    %v5839 = vmax.f32 %v5837, %v5838
    %v5840 = vrot.slane %v5839, 2
    %v5841 = vmax.f32 %v5839, %v5840
    %v5842 = vrot.slane %v5841, 1
    %v5843 = vmax.f32 %v5841, %v5842
    %v5844 = vsub.f32 %v5691, %v5843
    %v5845 = vmul.f32 %v5844, 1.442695
    %v5846 = vpow.pop %v5845
    %v5847 = vsel %vm745, %v5846, 0.0
    %v5848 = vrot.slane %v5847, 4
    %v5849 = vadd.f32 %v5847, %v5848
    %v5850 = vrot.slane %v5849, 2
    %v5851 = vadd.f32 %v5849, %v5850
    %v5852 = vrot.slane %v5851, 1
    %v5853 = vadd.f32 %v5851, %v5852
    %v5854 = vrcp.pop %v5853
    %v5855 = vmul.f32 %v5846, %v5854
    %v5856 = vsel %vm745, %v5836, -inf
    %v5857 = vrot.slane %v5856, 4
    %v5858 = vmax.f32 %v5856, %v5857
    %v5859 = vrot.slane %v5858, 2
    %v5860 = vmax.f32 %v5858, %v5859
    %v5861 = vrot.slane %v5860, 1
    %v5862 = vmax.f32 %v5860, %v5861
    %v5863 = vsub.f32 %v5836, %v5862
    %v5864 = vmul.f32 %v5863, 1.442695
    %v5865 = vpow.pop %v5864
    %v5866 = vsel %vm745, %v5865, 0.0
    %v5867 = vrot.slane %v5866, 4
    %v5868 = vadd.f32 %v5866, %v5867
    %v5869 = vrot.slane %v5868, 2
    %v5870 = vadd.f32 %v5868, %v5869
    %v5871 = vrot.slane %v5870, 1
    %v5872 = vadd.f32 %v5870, %v5871
    %v5873 = vrcp.pop %v5872
    %v5874 = vmul.f32 %v5865, %v5873
    %5875 = vrot.lane.b32.xlu0 %v576, 80
    %v5876 = vpop.permute.xlu0 %5875
    %v5879 = vsel %vm745, %v5874, 0
    %5881 = vmatprep.subr.mxu0 0.0
    %5882 = vmatpush1.msra.mxu0 %v5876
    %5883 = vmatprep.subr.mxu0 0.0
    %5884 = vmatpush1.msra.mxu0 0.0
    %5885 = vmatprep.subr.mxu0 0.0
    %5886 = vmatpush1.msra.mxu0 0.0
    %5887 = vmatprep.subr.mxu0 0.0
    %5888 = vmatpush1.msra.mxu0 0.0
    %5889 = vmatprep.subr.mxu0 0.0
    %5890 = vmatpush1.msra.mxu0 0.0
    %5891 = vmatprep.subr.mxu0 0.0
    %5892 = vmatpush1.msra.mxu0 0.0
    %5893 = vmatprep.subr.mxu0 0.0
    %5894 = vmatpush1.msra.mxu0 0.0
    %5895 = vmatprep.subr.mxu0 0.0
    %5896 = vmatpush1.msra.mxu0 0.0
    %5897 = vmatprep.subr.mxu0 0.0
    %5898 = vmatpush1.msra.mxu0 0.0
    %5899 = vmatprep.subr.mxu0 0.0
    %5900 = vmatpush1.msra.mxu0 0.0
    %5901 = vmatprep.subr.mxu0 0.0
    %5902 = vmatpush1.msra.mxu0 0.0
    %5903 = vmatprep.subr.mxu0 0.0
    %5904 = vmatpush1.msra.mxu0 0.0
    %5905 = vmatprep.subr.mxu0 0.0
    %5906 = vmatpush1.msra.mxu0 0.0
    %5907 = vmatprep.subr.mxu0 0.0
    %5908 = vmatpush1.msra.mxu0 0.0
    %5909 = vmatprep.subr.mxu0 0.0
    %5910 = vmatpush1.msra.mxu0 0.0
    %5911 = vmatprep.subr.mxu0 0.0
    %5912 = vmatpush1.msra.mxu0 0.0
    %5913 = vmatprep.subr.mxu0 0.0
    %5914 = vmatpush1.msra.mxu0 0.0
    %5915 = vmatprep.subr.mxu0 0.0
    %5916 = vmatpush1.msra.mxu0 0.0
    %5917 = vmatprep.subr.mxu0 0.0
    %5918 = vmatpush1.msra.mxu0 0.0
    %5919 = vmatprep.subr.mxu0 0.0
    %5920 = vmatpush1.msra.mxu0 0.0
    %5921 = vmatprep.subr.mxu0 0.0
    %5922 = vmatpush1.msra.mxu0 0.0
    %5923 = vmatprep.subr.mxu0 0.0
    %5924 = vmatpush1.msra.mxu0 0.0
    %5925 = vmatprep.subr.mxu0 0.0
    %5926 = vmatpush1.msra.mxu0 0.0
    %5927 = vmatprep.subr.mxu0 0.0
    %5928 = vmatpush1.msra.mxu0 0.0
    %5929 = vmatprep.subr.mxu0 0.0
    %5930 = vmatpush1.msra.mxu0 0.0
    %5931 = vmatprep.subr.mxu0 0.0
    %5932 = vmatpush1.msra.mxu0 0.0
    %5933 = vmatprep.subr.mxu0 0.0
    %5934 = vmatpush1.msra.mxu0 0.0
    %5935 = vmatprep.subr.mxu0 0.0
    %5936 = vmatpush1.msra.mxu0 0.0
    %5937 = vmatprep.subr.mxu0 0.0
    %5938 = vmatpush1.msra.mxu0 0.0
    %5939 = vmatprep.subr.mxu0 0.0
    %5940 = vmatpush1.msra.mxu0 0.0
    %5941 = vmatprep.subr.mxu0 0.0
    %5942 = vmatpush1.msra.mxu0 0.0
    %5943 = vmatprep.subr.mxu0 0.0
    %5944 = vmatpush1.msra.mxu0 0.0
    %5945 = vmatprep.mubr.f32.mxu0 0.0
    %5946 = vmatmul.mubr.f32.gmra.mrb[0].mxu0 %v5879
    %v5947 = vpop.f32.mrb[0].mxu0
    %v5948 = vadd.f32 0.0, %v5947
    %v5949 = vpop.f32.mrb[0].mxu0
    %5950 = vdwg.mxu0
    %5951 = vrot.lane.b32.xlu0 %v657, 80
    %v5952 = vpop.permute.xlu0 %5951
    %v5955 = vsel %vm745, %v5855, 0
    %5957 = vmatprep.subr.mxu0 0.0
    %5958 = vmatpush1.msra.mxu0 %v5952
    %5959 = vmatprep.subr.mxu0 0.0
    %5960 = vmatpush1.msra.mxu0 0.0
    %5961 = vmatprep.subr.mxu0 0.0
    %5962 = vmatpush1.msra.mxu0 0.0
    %5963 = vmatprep.subr.mxu0 0.0
    %5964 = vmatpush1.msra.mxu0 0.0
    %5965 = vmatprep.subr.mxu0 0.0
    %5966 = vmatpush1.msra.mxu0 0.0
    %5967 = vmatprep.subr.mxu0 0.0
    %5968 = vmatpush1.msra.mxu0 0.0
    %5969 = vmatprep.subr.mxu0 0.0
    %5970 = vmatpush1.msra.mxu0 0.0
    %5971 = vmatprep.subr.mxu0 0.0
    %5972 = vmatpush1.msra.mxu0 0.0
    %5973 = vmatprep.subr.mxu0 0.0
    %5974 = vmatpush1.msra.mxu0 0.0
    %5975 = vmatprep.subr.mxu0 0.0
    %5976 = vmatpush1.msra.mxu0 0.0
    %5977 = vmatprep.subr.mxu0 0.0
    %5978 = vmatpush1.msra.mxu0 0.0
    %5979 = vmatprep.subr.mxu0 0.0
    %5980 = vmatpush1.msra.mxu0 0.0
    %5981 = vmatprep.subr.mxu0 0.0
    %5982 = vmatpush1.msra.mxu0 0.0
    %5983 = vmatprep.subr.mxu0 0.0
    %5984 = vmatpush1.msra.mxu0 0.0
    %5985 = vmatprep.subr.mxu0 0.0
    %5986 = vmatpush1.msra.mxu0 0.0
    %5987 = vmatprep.subr.mxu0 0.0
    %5988 = vmatpush1.msra.mxu0 0.0
    %5989 = vmatprep.subr.mxu0 0.0
    %5990 = vmatpush1.msra.mxu0 0.0
    %5991 = vmatprep.subr.mxu0 0.0
    %5992 = vmatpush1.msra.mxu0 0.0
    %5993 = vmatprep.subr.mxu0 0.0
    %5994 = vmatpush1.msra.mxu0 0.0
    %5995 = vmatprep.subr.mxu0 0.0
    %5996 = vmatpush1.msra.mxu0 0.0
    %5997 = vmatprep.subr.mxu0 0.0
    %5998 = vmatpush1.msra.mxu0 0.0
    %5999 = vmatprep.subr.mxu0 0.0
    %6000 = vmatpush1.msra.mxu0 0.0
    %6001 = vmatprep.subr.mxu0 0.0
    %6002 = vmatpush1.msra.mxu0 0.0
    %6003 = vmatprep.subr.mxu0 0.0
    %6004 = vmatpush1.msra.mxu0 0.0
    %6005 = vmatprep.subr.mxu0 0.0
    %6006 = vmatpush1.msra.mxu0 0.0
    %6007 = vmatprep.subr.mxu0 0.0
    %6008 = vmatpush1.msra.mxu0 0.0
    %6009 = vmatprep.subr.mxu0 0.0
    %6010 = vmatpush1.msra.mxu0 0.0
    %6011 = vmatprep.subr.mxu0 0.0
    %6012 = vmatpush1.msra.mxu0 0.0
    %6013 = vmatprep.subr.mxu0 0.0
    %6014 = vmatpush1.msra.mxu0 0.0
    %6015 = vmatprep.subr.mxu0 0.0
    %6016 = vmatpush1.msra.mxu0 0.0
    %6017 = vmatprep.subr.mxu0 0.0
    %6018 = vmatpush1.msra.mxu0 0.0
    %6019 = vmatprep.subr.mxu0 0.0
    %6020 = vmatpush1.msra.mxu0 0.0
    %6021 = vmatprep.mubr.f32.mxu0 0.0
    %6022 = vmatmul.mubr.f32.gmra.mrb[0].mxu0 %v5955
    %v6023 = vpop.f32.mrb[0].mxu0
    %v6024 = vadd.f32 %v5948, %v6023
    %v6025 = vpop.f32.mrb[0].mxu0
    %6026 = vdwg.mxu0
    %v6028 = vsel %vm745, %v6024, 0
    %6030 = vmatprep.subr.mxu0 0.0
    %6031 = vmatpush1.msra.mxu0 %v261
    %6032 = vmatprep.subr.mxu0 0.0
    %6033 = vmatpush1.msra.mxu0 0.0
    %6034 = vmatprep.subr.mxu0 0.0
    %6035 = vmatpush1.msra.mxu0 0.0
    %6036 = vmatprep.subr.mxu0 0.0
    %6037 = vmatpush1.msra.mxu0 0.0
    %6038 = vmatprep.subr.mxu0 0.0
    %6039 = vmatpush1.msra.mxu0 0.0
    %6040 = vmatprep.subr.mxu0 0.0
    %6041 = vmatpush1.msra.mxu0 0.0
    %6042 = vmatprep.subr.mxu0 0.0
    %6043 = vmatpush1.msra.mxu0 0.0
    %6044 = vmatprep.subr.mxu0 0.0
    %6045 = vmatpush1.msra.mxu0 0.0
    %6046 = vmatprep.subr.mxu0 0.0
    %6047 = vmatpush1.msra.mxu0 0.0
    %6048 = vmatprep.subr.mxu0 0.0
    %6049 = vmatpush1.msra.mxu0 0.0
    %6050 = vmatprep.subr.mxu0 0.0
    %6051 = vmatpush1.msra.mxu0 0.0
    %6052 = vmatprep.subr.mxu0 0.0
    %6053 = vmatpush1.msra.mxu0 0.0
    %6054 = vmatprep.subr.mxu0 0.0
    %6055 = vmatpush1.msra.mxu0 0.0
    %6056 = vmatprep.subr.mxu0 0.0
    %6057 = vmatpush1.msra.mxu0 0.0
    %6058 = vmatprep.subr.mxu0 0.0
    %6059 = vmatpush1.msra.mxu0 0.0
    %6060 = vmatprep.subr.mxu0 0.0
    %6061 = vmatpush1.msra.mxu0 0.0
    %6062 = vmatprep.subr.mxu0 0.0
    %6063 = vmatpush1.msra.mxu0 0.0
    %6064 = vmatprep.subr.mxu0 0.0
    %6065 = vmatpush1.msra.mxu0 0.0
    %6066 = vmatprep.subr.mxu0 0.0
    %6067 = vmatpush1.msra.mxu0 0.0
    %6068 = vmatprep.subr.mxu0 0.0
    %6069 = vmatpush1.msra.mxu0 0.0
    %6070 = vmatprep.subr.mxu0 0.0
    %6071 = vmatpush1.msra.mxu0 0.0
    %6072 = vmatprep.subr.mxu0 0.0
    %6073 = vmatpush1.msra.mxu0 0.0
    %6074 = vmatprep.subr.mxu0 0.0
    %6075 = vmatpush1.msra.mxu0 0.0
    %6076 = vmatprep.subr.mxu0 0.0
    %6077 = vmatpush1.msra.mxu0 0.0
    %6078 = vmatprep.subr.mxu0 0.0
    %6079 = vmatpush1.msra.mxu0 0.0
    %6080 = vmatprep.subr.mxu0 0.0
    %6081 = vmatpush1.msra.mxu0 0.0
    %6082 = vmatprep.subr.mxu0 0.0
    %6083 = vmatpush1.msra.mxu0 0.0
    %6084 = vmatprep.subr.mxu0 0.0
    %6085 = vmatpush1.msra.mxu0 0.0
    %6086 = vmatprep.subr.mxu0 0.0
    %6087 = vmatpush1.msra.mxu0 0.0
    %6088 = vmatprep.subr.mxu0 0.0
    %6089 = vmatpush1.msra.mxu0 0.0
    %6090 = vmatprep.subr.mxu0 0.0
    %6091 = vmatpush1.msra.mxu0 0.0
    %6092 = vmatprep.subr.mxu0 0.0
    %6093 = vmatpush1.msra.mxu0 0.0
    %6094 = vmatprep.mubr.f32.mxu0 0.0
    %6095 = vmatmul.mubr.f32.gmra.mrb[0].mxu0 %v6028
    %v6096 = vpop.f32.mrb[0].mxu0
    %v6097 = vadd.f32 0.0, %v6096
    %v6098 = vpop.f32.mrb[0].mxu0
    %6099 = vdwg.mxu0
    %v6100 = vadd.f32 %v5536, %v6097
    %6101 = vrot.lane.b32.xlu0 %v497, 104
    %v6102 = vpop.permute.xlu0 %6101
    %v6103 = vsel %vm745, %v6102, 0
    %6105 = vmatprep.subr.mxu0 0.0
    %6106 = vmatpush1.xpose.msra.mxu0 %v2454
    %6107 = vmatprep.subr.mxu0 0.0
    %6108 = vmatpush1.xpose.msra.mxu0 0.0
    %6109 = vmatprep.subr.mxu0 0.0
    %6110 = vmatpush1.xpose.msra.mxu0 0.0
    %6111 = vmatprep.subr.mxu0 0.0
    %6112 = vmatpush1.xpose.msra.mxu0 0.0
    %6113 = vmatprep.subr.mxu0 0.0
    %6114 = vmatpush1.xpose.msra.mxu0 0.0
    %6115 = vmatprep.subr.mxu0 0.0
    %6116 = vmatpush1.xpose.msra.mxu0 0.0
    %6117 = vmatprep.subr.mxu0 0.0
    %6118 = vmatpush1.xpose.msra.mxu0 0.0
    %6119 = vmatprep.subr.mxu0 0.0
    %6120 = vmatpush1.xpose.msra.mxu0 0.0
    %6121 = vmatprep.subr.mxu0 0.0
    %6122 = vmatpush1.xpose.msra.mxu0 0.0
    %6123 = vmatprep.subr.mxu0 0.0
    %6124 = vmatpush1.xpose.msra.mxu0 0.0
    %6125 = vmatprep.subr.mxu0 0.0
    %6126 = vmatpush1.xpose.msra.mxu0 0.0
    %6127 = vmatprep.subr.mxu0 0.0
    %6128 = vmatpush1.xpose.msra.mxu0 0.0
    %6129 = vmatprep.subr.mxu0 0.0
    %6130 = vmatpush1.xpose.msra.mxu0 0.0
    %6131 = vmatprep.subr.mxu0 0.0
    %6132 = vmatpush1.xpose.msra.mxu0 0.0
    %6133 = vmatprep.subr.mxu0 0.0
    %6134 = vmatpush1.xpose.msra.mxu0 0.0
    %6135 = vmatprep.subr.mxu0 0.0
    %6136 = vmatpush1.xpose.msra.mxu0 0.0
    %6137 = vmatprep.subr.mxu0 0.0
    %6138 = vmatpush1.xpose.msra.mxu0 0.0
    %6139 = vmatprep.subr.mxu0 0.0
    %6140 = vmatpush1.xpose.msra.mxu0 0.0
    %6141 = vmatprep.subr.mxu0 0.0
    %6142 = vmatpush1.xpose.msra.mxu0 0.0
    %6143 = vmatprep.subr.mxu0 0.0
    %6144 = vmatpush1.xpose.msra.mxu0 0.0
    %6145 = vmatprep.subr.mxu0 0.0
    %6146 = vmatpush1.xpose.msra.mxu0 0.0
    %6147 = vmatprep.subr.mxu0 0.0
    %6148 = vmatpush1.xpose.msra.mxu0 0.0
    %6149 = vmatprep.subr.mxu0 0.0
    %6150 = vmatpush1.xpose.msra.mxu0 0.0
    %6151 = vmatprep.subr.mxu0 0.0
    %6152 = vmatpush1.xpose.msra.mxu0 0.0
    %6153 = vmatprep.subr.mxu0 0.0
    %6154 = vmatpush1.xpose.msra.mxu0 0.0
    %6155 = vmatprep.subr.mxu0 0.0
    %6156 = vmatpush1.xpose.msra.mxu0 0.0
    %6157 = vmatprep.subr.mxu0 0.0
    %6158 = vmatpush1.xpose.msra.mxu0 0.0
    %6159 = vmatprep.subr.mxu0 0.0
    %6160 = vmatpush1.xpose.msra.mxu0 0.0
    %6161 = vmatprep.subr.mxu0 0.0
    %6162 = vmatpush1.xpose.msra.mxu0 0.0
    %6163 = vmatprep.subr.mxu0 0.0
    %6164 = vmatpush1.xpose.msra.mxu0 0.0
    %6165 = vmatprep.subr.mxu0 0.0
    %6166 = vmatpush1.xpose.msra.mxu0 0.0
    %6167 = vmatprep.subr.mxu0 0.0
    %6168 = vmatpush1.xpose.msra.mxu0 0.0
    %6169 = vmatprep.mubr.f32.mxu0 0.0
    %6170 = vmatmul.mubr.f32.gmra.mrb[0].mxu0 %v6103
    %v6171 = vpop.f32.mrb[0].mxu0
    %v6172 = vadd.f32 0.0, %v6171
    %v6173 = vpop.f32.mrb[0].mxu0
    %6174 = vdwg.mxu0
    %6175 = vrot.lane.b32.xlu0 %v406, 104
    %v6176 = vpop.permute.xlu0 %6175
    %6177 = vrot.lane.b32.xlu0 %v657, 104
    %v6178 = vpop.permute.xlu0 %6177
    %v6179 = vsel %vm745, %v6176, 0
    %v6181 = vsel %vm745, %v6178, 0
    %6183 = vmatprep.subr.mxu0 0.0
    %6184 = vmatpush1.xpose.msra.mxu0 %v6181
    %6185 = vmatprep.subr.mxu0 0.0
    %6186 = vmatpush1.xpose.msra.mxu0 0.0
    %6187 = vmatprep.subr.mxu0 0.0
    %6188 = vmatpush1.xpose.msra.mxu0 0.0
    %6189 = vmatprep.subr.mxu0 0.0
    %6190 = vmatpush1.xpose.msra.mxu0 0.0
    %6191 = vmatprep.subr.mxu0 0.0
    %6192 = vmatpush1.xpose.msra.mxu0 0.0
    %6193 = vmatprep.subr.mxu0 0.0
    %6194 = vmatpush1.xpose.msra.mxu0 0.0
    %6195 = vmatprep.subr.mxu0 0.0
    %6196 = vmatpush1.xpose.msra.mxu0 0.0
    %6197 = vmatprep.subr.mxu0 0.0
    %6198 = vmatpush1.xpose.msra.mxu0 0.0
    %6199 = vmatprep.subr.mxu0 0.0
    %6200 = vmatpush1.xpose.msra.mxu0 0.0
    %6201 = vmatprep.subr.mxu0 0.0
    %6202 = vmatpush1.xpose.msra.mxu0 0.0
    %6203 = vmatprep.subr.mxu0 0.0
    %6204 = vmatpush1.xpose.msra.mxu0 0.0
    %6205 = vmatprep.subr.mxu0 0.0
    %6206 = vmatpush1.xpose.msra.mxu0 0.0
    %6207 = vmatprep.subr.mxu0 0.0
    %6208 = vmatpush1.xpose.msra.mxu0 0.0
    %6209 = vmatprep.subr.mxu0 0.0
    %6210 = vmatpush1.xpose.msra.mxu0 0.0
    %6211 = vmatprep.subr.mxu0 0.0
    %6212 = vmatpush1.xpose.msra.mxu0 0.0
    %6213 = vmatprep.subr.mxu0 0.0
    %6214 = vmatpush1.xpose.msra.mxu0 0.0
    %6215 = vmatprep.subr.mxu0 0.0
    %6216 = vmatpush1.xpose.msra.mxu0 0.0
    %6217 = vmatprep.subr.mxu0 0.0
    %6218 = vmatpush1.xpose.msra.mxu0 0.0
    %6219 = vmatprep.subr.mxu0 0.0
    %6220 = vmatpush1.xpose.msra.mxu0 0.0
    %6221 = vmatprep.subr.mxu0 0.0
    %6222 = vmatpush1.xpose.msra.mxu0 0.0
    %6223 = vmatprep.subr.mxu0 0.0
    %6224 = vmatpush1.xpose.msra.mxu0 0.0
    %6225 = vmatprep.subr.mxu0 0.0
    %6226 = vmatpush1.xpose.msra.mxu0 0.0
    %6227 = vmatprep.subr.mxu0 0.0
    %6228 = vmatpush1.xpose.msra.mxu0 0.0
    %6229 = vmatprep.subr.mxu0 0.0
    %6230 = vmatpush1.xpose.msra.mxu0 0.0
    %6231 = vmatprep.subr.mxu0 0.0
    %6232 = vmatpush1.xpose.msra.mxu0 0.0
    %6233 = vmatprep.subr.mxu0 0.0
    %6234 = vmatpush1.xpose.msra.mxu0 0.0
    %6235 = vmatprep.subr.mxu0 0.0
    %6236 = vmatpush1.xpose.msra.mxu0 0.0
    %6237 = vmatprep.subr.mxu0 0.0
    %6238 = vmatpush1.xpose.msra.mxu0 0.0
    %6239 = vmatprep.subr.mxu0 0.0
    %6240 = vmatpush1.xpose.msra.mxu0 0.0
    %6241 = vmatprep.subr.mxu0 0.0
    %6242 = vmatpush1.xpose.msra.mxu0 0.0
    %6243 = vmatprep.subr.mxu0 0.0
    %6244 = vmatpush1.xpose.msra.mxu0 0.0
    %6245 = vmatprep.subr.mxu0 0.0
    %6246 = vmatpush1.xpose.msra.mxu0 0.0
    %6247 = vmatprep.mubr.f32.mxu0 0.0
    %6248 = vmatmul.mubr.f32.gmra.mrb[0].mxu0 %v6179
    %v6249 = vpop.f32.mrb[0].mxu0
    %v6250 = vadd.f32 %v6172, %v6249
    %v6251 = vpop.f32.mrb[0].mxu0
    %6252 = vdwg.mxu0
    %v6253 = vmul.f32 %v6250, 0.35355338
    %6254 = vmatprep.subr.mxu0 0.0
    %6255 = vmatpush1.xpose.msra.mxu0 %v2607
    %6256 = vmatprep.subr.mxu0 0.0
    %6257 = vmatpush1.xpose.msra.mxu0 0.0
    %6258 = vmatprep.subr.mxu0 0.0
    %6259 = vmatpush1.xpose.msra.mxu0 0.0
    %6260 = vmatprep.subr.mxu0 0.0
    %6261 = vmatpush1.xpose.msra.mxu0 0.0
    %6262 = vmatprep.subr.mxu0 0.0
    %6263 = vmatpush1.xpose.msra.mxu0 0.0
    %6264 = vmatprep.subr.mxu0 0.0
    %6265 = vmatpush1.xpose.msra.mxu0 0.0
    %6266 = vmatprep.subr.mxu0 0.0
    %6267 = vmatpush1.xpose.msra.mxu0 0.0
    %6268 = vmatprep.subr.mxu0 0.0
    %6269 = vmatpush1.xpose.msra.mxu0 0.0
    %6270 = vmatprep.subr.mxu0 0.0
    %6271 = vmatpush1.xpose.msra.mxu0 0.0
    %6272 = vmatprep.subr.mxu0 0.0
    %6273 = vmatpush1.xpose.msra.mxu0 0.0
    %6274 = vmatprep.subr.mxu0 0.0
    %6275 = vmatpush1.xpose.msra.mxu0 0.0
    %6276 = vmatprep.subr.mxu0 0.0
    %6277 = vmatpush1.xpose.msra.mxu0 0.0
    %6278 = vmatprep.subr.mxu0 0.0
    %6279 = vmatpush1.xpose.msra.mxu0 0.0
    %6280 = vmatprep.subr.mxu0 0.0
    %6281 = vmatpush1.xpose.msra.mxu0 0.0
    %6282 = vmatprep.subr.mxu0 0.0
    %6283 = vmatpush1.xpose.msra.mxu0 0.0
    %6284 = vmatprep.subr.mxu0 0.0
    %6285 = vmatpush1.xpose.msra.mxu0 0.0
    %6286 = vmatprep.subr.mxu0 0.0
    %6287 = vmatpush1.xpose.msra.mxu0 0.0
    %6288 = vmatprep.subr.mxu0 0.0
    %6289 = vmatpush1.xpose.msra.mxu0 0.0
    %6290 = vmatprep.subr.mxu0 0.0
    %6291 = vmatpush1.xpose.msra.mxu0 0.0
    %6292 = vmatprep.subr.mxu0 0.0
    %6293 = vmatpush1.xpose.msra.mxu0 0.0
    %6294 = vmatprep.subr.mxu0 0.0
    %6295 = vmatpush1.xpose.msra.mxu0 0.0
    %6296 = vmatprep.subr.mxu0 0.0
    %6297 = vmatpush1.xpose.msra.mxu0 0.0
    %6298 = vmatprep.subr.mxu0 0.0
    %6299 = vmatpush1.xpose.msra.mxu0 0.0
    %6300 = vmatprep.subr.mxu0 0.0
    %6301 = vmatpush1.xpose.msra.mxu0 0.0
    %6302 = vmatprep.subr.mxu0 0.0
    %6303 = vmatpush1.xpose.msra.mxu0 0.0
    %6304 = vmatprep.subr.mxu0 0.0
    %6305 = vmatpush1.xpose.msra.mxu0 0.0
    %6306 = vmatprep.subr.mxu0 0.0
    %6307 = vmatpush1.xpose.msra.mxu0 0.0
    %6308 = vmatprep.subr.mxu0 0.0
    %6309 = vmatpush1.xpose.msra.mxu0 0.0
    %6310 = vmatprep.subr.mxu0 0.0
    %6311 = vmatpush1.xpose.msra.mxu0 0.0
    %6312 = vmatprep.subr.mxu0 0.0
    %6313 = vmatpush1.xpose.msra.mxu0 0.0
    %6314 = vmatprep.subr.mxu0 0.0
    %6315 = vmatpush1.xpose.msra.mxu0 0.0
    %6316 = vmatprep.subr.mxu0 0.0
    %6317 = vmatpush1.xpose.msra.mxu0 0.0
    %6318 = vmatprep.mubr.f32.mxu0 0.0
    %6319 = vmatmul.mubr.f32.gmra.mrb[0].mxu0 %v6103
    %v6320 = vpop.f32.mrb[0].mxu0
    %v6321 = vadd.f32 0.0, %v6320
    %v6322 = vpop.f32.mrb[0].mxu0
    %6323 = vdwg.mxu0
    %6324 = vrot.lane.b32.xlu0 %v576, 104
    %v6325 = vpop.permute.xlu0 %6324
    %v6326 = vsel %vm745, %v6325, 0
    %6328 = vmatprep.subr.mxu0 0.0
    %6329 = vmatpush1.xpose.msra.mxu0 %v6326
    %6330 = vmatprep.subr.mxu0 0.0
    %6331 = vmatpush1.xpose.msra.mxu0 0.0
    %6332 = vmatprep.subr.mxu0 0.0
    %6333 = vmatpush1.xpose.msra.mxu0 0.0
    %6334 = vmatprep.subr.mxu0 0.0
    %6335 = vmatpush1.xpose.msra.mxu0 0.0
    %6336 = vmatprep.subr.mxu0 0.0
    %6337 = vmatpush1.xpose.msra.mxu0 0.0
    %6338 = vmatprep.subr.mxu0 0.0
    %6339 = vmatpush1.xpose.msra.mxu0 0.0
    %6340 = vmatprep.subr.mxu0 0.0
    %6341 = vmatpush1.xpose.msra.mxu0 0.0
    %6342 = vmatprep.subr.mxu0 0.0
    %6343 = vmatpush1.xpose.msra.mxu0 0.0
    %6344 = vmatprep.subr.mxu0 0.0
    %6345 = vmatpush1.xpose.msra.mxu0 0.0
    %6346 = vmatprep.subr.mxu0 0.0
    %6347 = vmatpush1.xpose.msra.mxu0 0.0
    %6348 = vmatprep.subr.mxu0 0.0
    %6349 = vmatpush1.xpose.msra.mxu0 0.0
    %6350 = vmatprep.subr.mxu0 0.0
    %6351 = vmatpush1.xpose.msra.mxu0 0.0
    %6352 = vmatprep.subr.mxu0 0.0
    %6353 = vmatpush1.xpose.msra.mxu0 0.0
    %6354 = vmatprep.subr.mxu0 0.0
    %6355 = vmatpush1.xpose.msra.mxu0 0.0
    %6356 = vmatprep.subr.mxu0 0.0
    %6357 = vmatpush1.xpose.msra.mxu0 0.0
    %6358 = vmatprep.subr.mxu0 0.0
    %6359 = vmatpush1.xpose.msra.mxu0 0.0
    %6360 = vmatprep.subr.mxu0 0.0
    %6361 = vmatpush1.xpose.msra.mxu0 0.0
    %6362 = vmatprep.subr.mxu0 0.0
    %6363 = vmatpush1.xpose.msra.mxu0 0.0
    %6364 = vmatprep.subr.mxu0 0.0
    %6365 = vmatpush1.xpose.msra.mxu0 0.0
    %6366 = vmatprep.subr.mxu0 0.0
    %6367 = vmatpush1.xpose.msra.mxu0 0.0
    %6368 = vmatprep.subr.mxu0 0.0
    %6369 = vmatpush1.xpose.msra.mxu0 0.0
    %6370 = vmatprep.subr.mxu0 0.0
    %6371 = vmatpush1.xpose.msra.mxu0 0.0
    %6372 = vmatprep.subr.mxu0 0.0
    %6373 = vmatpush1.xpose.msra.mxu0 0.0
    %6374 = vmatprep.subr.mxu0 0.0
    %6375 = vmatpush1.xpose.msra.mxu0 0.0
    %6376 = vmatprep.subr.mxu0 0.0
    %6377 = vmatpush1.xpose.msra.mxu0 0.0
    %6378 = vmatprep.subr.mxu0 0.0
    %6379 = vmatpush1.xpose.msra.mxu0 0.0
    %6380 = vmatprep.subr.mxu0 0.0
    %6381 = vmatpush1.xpose.msra.mxu0 0.0
    %6382 = vmatprep.subr.mxu0 0.0
    %6383 = vmatpush1.xpose.msra.mxu0 0.0
    %6384 = vmatprep.subr.mxu0 0.0
    %6385 = vmatpush1.xpose.msra.mxu0 0.0
    %6386 = vmatprep.subr.mxu0 0.0
    %6387 = vmatpush1.xpose.msra.mxu0 0.0
    %6388 = vmatprep.subr.mxu0 0.0
    %6389 = vmatpush1.xpose.msra.mxu0 0.0
    %6390 = vmatprep.subr.mxu0 0.0
    %6391 = vmatpush1.xpose.msra.mxu0 0.0
    %6392 = vmatprep.mubr.f32.mxu0 0.0
    %6393 = vmatmul.mubr.f32.gmra.mrb[0].mxu0 %v6179
    %v6394 = vpop.f32.mrb[0].mxu0
    %v6395 = vadd.f32 %v6321, %v6394
    %v6396 = vpop.f32.mrb[0].mxu0
    %6397 = vdwg.mxu0
    %v6398 = vmul.f32 %v6395, 0.35355338
    %v6399 = vsel %vm745, %v6253, -inf
    %v6400 = vrot.slane %v6399, 4
    %v6401 = vmax.f32 %v6399, %v6400
    %v6402 = vrot.slane %v6401, 2
    %v6403 = vmax.f32 %v6401, %v6402
    %v6404 = vrot.slane %v6403, 1
    %v6405 = vmax.f32 %v6403, %v6404
    %v6406 = vsub.f32 %v6253, %v6405
    %v6407 = vmul.f32 %v6406, 1.442695
    %v6408 = vpow.pop %v6407
    %v6409 = vsel %vm745, %v6408, 0.0
    %v6410 = vrot.slane %v6409, 4
    %v6411 = vadd.f32 %v6409, %v6410
    %v6412 = vrot.slane %v6411, 2
    %v6413 = vadd.f32 %v6411, %v6412
    %v6414 = vrot.slane %v6413, 1
    %v6415 = vadd.f32 %v6413, %v6414
    %v6416 = vrcp.pop %v6415
    %v6417 = vmul.f32 %v6408, %v6416
    %v6418 = vsel %vm745, %v6398, -inf
    %v6419 = vrot.slane %v6418, 4
    %v6420 = vmax.f32 %v6418, %v6419
    %v6421 = vrot.slane %v6420, 2
    %v6422 = vmax.f32 %v6420, %v6421
    %v6423 = vrot.slane %v6422, 1
    %v6424 = vmax.f32 %v6422, %v6423
    %v6425 = vsub.f32 %v6398, %v6424
    %v6426 = vmul.f32 %v6425, 1.442695
    %v6427 = vpow.pop %v6426
    %v6428 = vsel %vm745, %v6427, 0.0
    %v6429 = vrot.slane %v6428, 4
    %v6430 = vadd.f32 %v6428, %v6429
    %v6431 = vrot.slane %v6430, 2
    %v6432 = vadd.f32 %v6430, %v6431
    %v6433 = vrot.slane %v6432, 1
    %v6434 = vadd.f32 %v6432, %v6433
    %v6435 = vrcp.pop %v6434
    %v6436 = vmul.f32 %v6427, %v6435
    %6437 = vrot.lane.b32.xlu0 %v576, 72
    %v6438 = vpop.permute.xlu0 %6437
    %v6441 = vsel %vm745, %v6436, 0
    %6443 = vmatprep.subr.mxu0 0.0
    %6444 = vmatpush1.msra.mxu0 %v6438
    %6445 = vmatprep.subr.mxu0 0.0
    %6446 = vmatpush1.msra.mxu0 0.0
    %6447 = vmatprep.subr.mxu0 0.0
    %6448 = vmatpush1.msra.mxu0 0.0
    %6449 = vmatprep.subr.mxu0 0.0
    %6450 = vmatpush1.msra.mxu0 0.0
    %6451 = vmatprep.subr.mxu0 0.0
    %6452 = vmatpush1.msra.mxu0 0.0
    %6453 = vmatprep.subr.mxu0 0.0
    %6454 = vmatpush1.msra.mxu0 0.0
    %6455 = vmatprep.subr.mxu0 0.0
    %6456 = vmatpush1.msra.mxu0 0.0
    %6457 = vmatprep.subr.mxu0 0.0
    %6458 = vmatpush1.msra.mxu0 0.0
    %6459 = vmatprep.subr.mxu0 0.0
    %6460 = vmatpush1.msra.mxu0 0.0
    %6461 = vmatprep.subr.mxu0 0.0
    %6462 = vmatpush1.msra.mxu0 0.0
    %6463 = vmatprep.subr.mxu0 0.0
    %6464 = vmatpush1.msra.mxu0 0.0
    %6465 = vmatprep.subr.mxu0 0.0
    %6466 = vmatpush1.msra.mxu0 0.0
    %6467 = vmatprep.subr.mxu0 0.0
    %6468 = vmatpush1.msra.mxu0 0.0
    %6469 = vmatprep.subr.mxu0 0.0
    %6470 = vmatpush1.msra.mxu0 0.0
    %6471 = vmatprep.subr.mxu0 0.0
    %6472 = vmatpush1.msra.mxu0 0.0
    %6473 = vmatprep.subr.mxu0 0.0
    %6474 = vmatpush1.msra.mxu0 0.0
    %6475 = vmatprep.subr.mxu0 0.0
    %6476 = vmatpush1.msra.mxu0 0.0
    %6477 = vmatprep.subr.mxu0 0.0
    %6478 = vmatpush1.msra.mxu0 0.0
    %6479 = vmatprep.subr.mxu0 0.0
    %6480 = vmatpush1.msra.mxu0 0.0
    %6481 = vmatprep.subr.mxu0 0.0
    %6482 = vmatpush1.msra.mxu0 0.0
    %6483 = vmatprep.subr.mxu0 0.0
    %6484 = vmatpush1.msra.mxu0 0.0
    %6485 = vmatprep.subr.mxu0 0.0
    %6486 = vmatpush1.msra.mxu0 0.0
    %6487 = vmatprep.subr.mxu0 0.0
    %6488 = vmatpush1.msra.mxu0 0.0
    %6489 = vmatprep.subr.mxu0 0.0
    %6490 = vmatpush1.msra.mxu0 0.0
    %6491 = vmatprep.subr.mxu0 0.0
    %6492 = vmatpush1.msra.mxu0 0.0
    %6493 = vmatprep.subr.mxu0 0.0
    %6494 = vmatpush1.msra.mxu0 0.0
    %6495 = vmatprep.subr.mxu0 0.0
    %6496 = vmatpush1.msra.mxu0 0.0
    %6497 = vmatprep.subr.mxu0 0.0
    %6498 = vmatpush1.msra.mxu0 0.0
    %6499 = vmatprep.subr.mxu0 0.0
    %6500 = vmatpush1.msra.mxu0 0.0
    %6501 = vmatprep.subr.mxu0 0.0
    %6502 = vmatpush1.msra.mxu0 0.0
    %6503 = vmatprep.subr.mxu0 0.0
    %6504 = vmatpush1.msra.mxu0 0.0
    %6505 = vmatprep.subr.mxu0 0.0
    %6506 = vmatpush1.msra.mxu0 0.0
    %6507 = vmatprep.mubr.f32.mxu0 0.0
    %6508 = vmatmul.mubr.f32.gmra.mrb[0].mxu0 %v6441
    %v6509 = vpop.f32.mrb[0].mxu0
    %v6510 = vadd.f32 0.0, %v6509
    %v6511 = vpop.f32.mrb[0].mxu0
    %6512 = vdwg.mxu0
    %6513 = vrot.lane.b32.xlu0 %v657, 72
    %v6514 = vpop.permute.xlu0 %6513
    %v6517 = vsel %vm745, %v6417, 0
    %6519 = vmatprep.subr.mxu0 0.0
    %6520 = vmatpush1.msra.mxu0 %v6514
    %6521 = vmatprep.subr.mxu0 0.0
    %6522 = vmatpush1.msra.mxu0 0.0
    %6523 = vmatprep.subr.mxu0 0.0
    %6524 = vmatpush1.msra.mxu0 0.0
    %6525 = vmatprep.subr.mxu0 0.0
    %6526 = vmatpush1.msra.mxu0 0.0
    %6527 = vmatprep.subr.mxu0 0.0
    %6528 = vmatpush1.msra.mxu0 0.0
    %6529 = vmatprep.subr.mxu0 0.0
    %6530 = vmatpush1.msra.mxu0 0.0
    %6531 = vmatprep.subr.mxu0 0.0
    %6532 = vmatpush1.msra.mxu0 0.0
    %6533 = vmatprep.subr.mxu0 0.0
    %6534 = vmatpush1.msra.mxu0 0.0
    %6535 = vmatprep.subr.mxu0 0.0
    %6536 = vmatpush1.msra.mxu0 0.0
    %6537 = vmatprep.subr.mxu0 0.0
    %6538 = vmatpush1.msra.mxu0 0.0
    %6539 = vmatprep.subr.mxu0 0.0
    %6540 = vmatpush1.msra.mxu0 0.0
    %6541 = vmatprep.subr.mxu0 0.0
    %6542 = vmatpush1.msra.mxu0 0.0
    %6543 = vmatprep.subr.mxu0 0.0
    %6544 = vmatpush1.msra.mxu0 0.0
    %6545 = vmatprep.subr.mxu0 0.0
    %6546 = vmatpush1.msra.mxu0 0.0
    %6547 = vmatprep.subr.mxu0 0.0
    %6548 = vmatpush1.msra.mxu0 0.0
    %6549 = vmatprep.subr.mxu0 0.0
    %6550 = vmatpush1.msra.mxu0 0.0
    %6551 = vmatprep.subr.mxu0 0.0
    %6552 = vmatpush1.msra.mxu0 0.0
    %6553 = vmatprep.subr.mxu0 0.0
    %6554 = vmatpush1.msra.mxu0 0.0
    %6555 = vmatprep.subr.mxu0 0.0
    %6556 = vmatpush1.msra.mxu0 0.0
    %6557 = vmatprep.subr.mxu0 0.0
    %6558 = vmatpush1.msra.mxu0 0.0
    %6559 = vmatprep.subr.mxu0 0.0
    %6560 = vmatpush1.msra.mxu0 0.0
    %6561 = vmatprep.subr.mxu0 0.0
    %6562 = vmatpush1.msra.mxu0 0.0
    %6563 = vmatprep.subr.mxu0 0.0
    %6564 = vmatpush1.msra.mxu0 0.0
    %6565 = vmatprep.subr.mxu0 0.0
    %6566 = vmatpush1.msra.mxu0 0.0
    %6567 = vmatprep.subr.mxu0 0.0
    %6568 = vmatpush1.msra.mxu0 0.0
    %6569 = vmatprep.subr.mxu0 0.0
    %6570 = vmatpush1.msra.mxu0 0.0
    %6571 = vmatprep.subr.mxu0 0.0
    %6572 = vmatpush1.msra.mxu0 0.0
    %6573 = vmatprep.subr.mxu0 0.0
    %6574 = vmatpush1.msra.mxu0 0.0
    %6575 = vmatprep.subr.mxu0 0.0
    %6576 = vmatpush1.msra.mxu0 0.0
    %6577 = vmatprep.subr.mxu0 0.0
    %6578 = vmatpush1.msra.mxu0 0.0
    %6579 = vmatprep.subr.mxu0 0.0
    %6580 = vmatpush1.msra.mxu0 0.0
    %6581 = vmatprep.subr.mxu0 0.0
    %6582 = vmatpush1.msra.mxu0 0.0
    %6583 = vmatprep.mubr.f32.mxu0 0.0
    %6584 = vmatmul.mubr.f32.gmra.mrb[0].mxu0 %v6517
    %v6585 = vpop.f32.mrb[0].mxu0
    %v6586 = vadd.f32 %v6510, %v6585
    %v6587 = vpop.f32.mrb[0].mxu0
    %6588 = vdwg.mxu0
    %v6590 = vsel %vm745, %v6586, 0
    %6592 = vmatprep.subr.mxu0 0.0
    %6593 = vmatpush1.msra.mxu0 %v262
    %6594 = vmatprep.subr.mxu0 0.0
    %6595 = vmatpush1.msra.mxu0 0.0
    %6596 = vmatprep.subr.mxu0 0.0
    %6597 = vmatpush1.msra.mxu0 0.0
    %6598 = vmatprep.subr.mxu0 0.0
    %6599 = vmatpush1.msra.mxu0 0.0
    %6600 = vmatprep.subr.mxu0 0.0
    %6601 = vmatpush1.msra.mxu0 0.0
    %6602 = vmatprep.subr.mxu0 0.0
    %6603 = vmatpush1.msra.mxu0 0.0
    %6604 = vmatprep.subr.mxu0 0.0
    %6605 = vmatpush1.msra.mxu0 0.0
    %6606 = vmatprep.subr.mxu0 0.0
    %6607 = vmatpush1.msra.mxu0 0.0
    %6608 = vmatprep.subr.mxu0 0.0
    %6609 = vmatpush1.msra.mxu0 0.0
    %6610 = vmatprep.subr.mxu0 0.0
    %6611 = vmatpush1.msra.mxu0 0.0
    %6612 = vmatprep.subr.mxu0 0.0
    %6613 = vmatpush1.msra.mxu0 0.0
    %6614 = vmatprep.subr.mxu0 0.0
    %6615 = vmatpush1.msra.mxu0 0.0
    %6616 = vmatprep.subr.mxu0 0.0
    %6617 = vmatpush1.msra.mxu0 0.0
    %6618 = vmatprep.subr.mxu0 0.0
    %6619 = vmatpush1.msra.mxu0 0.0
    %6620 = vmatprep.subr.mxu0 0.0
    %6621 = vmatpush1.msra.mxu0 0.0
    %6622 = vmatprep.subr.mxu0 0.0
    %6623 = vmatpush1.msra.mxu0 0.0
    %6624 = vmatprep.subr.mxu0 0.0
    %6625 = vmatpush1.msra.mxu0 0.0
    %6626 = vmatprep.subr.mxu0 0.0
    %6627 = vmatpush1.msra.mxu0 0.0
    %6628 = vmatprep.subr.mxu0 0.0
    %6629 = vmatpush1.msra.mxu0 0.0
    %6630 = vmatprep.subr.mxu0 0.0
    %6631 = vmatpush1.msra.mxu0 0.0
    %6632 = vmatprep.subr.mxu0 0.0
    %6633 = vmatpush1.msra.mxu0 0.0
    %6634 = vmatprep.subr.mxu0 0.0
    %6635 = vmatpush1.msra.mxu0 0.0
    %6636 = vmatprep.subr.mxu0 0.0
    %6637 = vmatpush1.msra.mxu0 0.0
    %6638 = vmatprep.subr.mxu0 0.0
    %6639 = vmatpush1.msra.mxu0 0.0
    %6640 = vmatprep.subr.mxu0 0.0
    %6641 = vmatpush1.msra.mxu0 0.0
    %6642 = vmatprep.subr.mxu0 0.0
    %6643 = vmatpush1.msra.mxu0 0.0
    %6644 = vmatprep.subr.mxu0 0.0
    %6645 = vmatpush1.msra.mxu0 0.0
    %6646 = vmatprep.subr.mxu0 0.0
    %6647 = vmatpush1.msra.mxu0 0.0
    %6648 = vmatprep.subr.mxu0 0.0
    %6649 = vmatpush1.msra.mxu0 0.0
    %6650 = vmatprep.subr.mxu0 0.0
    %6651 = vmatpush1.msra.mxu0 0.0
    %6652 = vmatprep.subr.mxu0 0.0
    %6653 = vmatpush1.msra.mxu0 0.0
    %6654 = vmatprep.subr.mxu0 0.0
    %6655 = vmatpush1.msra.mxu0 0.0
    %6656 = vmatprep.mubr.f32.mxu0 0.0
    %6657 = vmatmul.mubr.f32.gmra.mrb[0].mxu0 %v6590
    %v6658 = vpop.f32.mrb[0].mxu0
    %v6659 = vadd.f32 0.0, %v6658
    %v6660 = vpop.f32.mrb[0].mxu0
    %6661 = vdwg.mxu0
    %v6662 = vadd.f32 %v6100, %v6659
    %v6663 = vld [vmem:[%s25] sm:$0x1]
    %v6665 = vlaneseq
    %v6666 = vshrl.u32 %v6665, 7
    %v6667 = vsub.s32 0, %v6666
    %v6668 = vrot.slane %v6663, %v6667
    %v6670 = vadd.f32 %v6662, %v6668
    %v6671 = vadd.f32 %v312, %v6670
    %v6672 = vsel %vm267, %v6671, 0.0
    %6673 = vadd.xlane.f32.xlu0 %v6672
    %v6674 = vpop.xlane.xlu0 %6673
    %v6675 = vmul.f32 %v6674, %v274
    %v6676 = vsub.f32 %v6671, %v6675
    %v6677 = vmul.f32 %v6676, %v6676
    %v6678 = vsel %vm267, %v6677, 0.0
    %6679 = vadd.xlane.f32.xlu0 %v6678
    %v6680 = vpop.xlane.xlu0 %6679
    %v6681 = vmul.f32 %v6680, %v274
    %v6682 = vadd.f32 %v6681, 1e-05
    %v6683 = vrsqrt.pop %v6682
    %v6684 = vmul.f32 %v6676, %v6683
    %v6685 = vld [vmem:[%s27] sm:$0x1]
    %v6687 = vlaneseq
    %v6688 = vshrl.u32 %v6687, 7
    %v6689 = vsub.s32 0, %v6688
    %v6690 = vrot.slane %v6685, %v6689
    %v6692 = vmul.f32 %v6684, %v6690
    %v6693 = vld [vmem:[%s29] sm:$0x1]
    %v6695 = vlaneseq
    %v6696 = vshrl.u32 %v6695, 7
    %v6697 = vsub.s32 0, %v6696
    %v6698 = vrot.slane %v6693, %v6697
    %v6700 = vadd.f32 %v6692, %v6698
    %v6701 = vadd.f32 %v252, %v6700
    %v6702 = vsel %vm267, %v6701, 0.0
    %6703 = vadd.xlane.f32.xlu0 %v6702
    %v6704 = vpop.xlane.xlu0 %6703
    %v6705 = vmul.f32 %v6704, %v274
    %v6706 = vsub.f32 %v6701, %v6705
    %v6707 = vmul.f32 %v6706, %v6706
    %v6708 = vsel %vm267, %v6707, 0.0
    %6709 = vadd.xlane.f32.xlu0 %v6708
    %v6710 = vpop.xlane.xlu0 %6709
    %v6711 = vmul.f32 %v6710, %v274
    %v6712 = vadd.f32 %v6711, 1e-05
    %v6713 = vrsqrt.pop %v6712
    %v6714 = vmul.f32 %v6706, %v6713
    %v6715 = vld [vmem:[%s31] sm:$0x1]
    %v6717 = vlaneseq
    %v6718 = vshrl.u32 %v6717, 7
    %v6719 = vsub.s32 0, %v6718
    %v6720 = vrot.slane %v6715, %v6719
    %v6722 = vmul.f32 %v6714, %v6720
    %v6723 = vld [vmem:[%s33] sm:$0x1]
    %v6725 = vlaneseq
    %v6726 = vshrl.u32 %v6725, 7
    %v6727 = vsub.s32 0, %v6726
    %v6728 = vrot.slane %v6723, %v6727
    %v6730 = vadd.f32 %v6722, %v6728
    %v6731 = vld [vmem:[%s35] sm:$0xff]
    %v6732 = vld [vmem:[%s35 + $0x8] sm:$0xff]
    %v6733 = vld [vmem:[%s35 + $0x10] sm:$0xff]
    %v6734 = vld [vmem:[%s35 + $0x18] sm:$0xff]
    %v6736 = vsel %vm267, %v6730, 0
    %6738 = vmatprep.subr.mxu0 0.0
    %6739 = vmatpush1.msra.mxu0 %v6731
    %6740 = vmatprep.subr.mxu0 0.0
    %6741 = vmatpush1.msra.mxu0 %v6732
    %6742 = vmatprep.subr.mxu0 0.0
    %6743 = vmatpush1.msra.mxu0 %v6733
    %6744 = vmatprep.subr.mxu0 0.0
    %6745 = vmatpush1.msra.mxu0 %v6734
    %6746 = vmatprep.subr.mxu0 0.0
    %6747 = vmatpush1.msra.mxu0 0.0
    %6748 = vmatprep.subr.mxu0 0.0
    %6749 = vmatpush1.msra.mxu0 0.0
    %6750 = vmatprep.subr.mxu0 0.0
    %6751 = vmatpush1.msra.mxu0 0.0
    %6752 = vmatprep.subr.mxu0 0.0
    %6753 = vmatpush1.msra.mxu0 0.0
    %6754 = vmatprep.subr.mxu0 0.0
    %6755 = vmatpush1.msra.mxu0 0.0
    %6756 = vmatprep.subr.mxu0 0.0
    %6757 = vmatpush1.msra.mxu0 0.0
    %6758 = vmatprep.subr.mxu0 0.0
    %6759 = vmatpush1.msra.mxu0 0.0
    %6760 = vmatprep.subr.mxu0 0.0
    %6761 = vmatpush1.msra.mxu0 0.0
    %6762 = vmatprep.subr.mxu0 0.0
    %6763 = vmatpush1.msra.mxu0 0.0
    %6764 = vmatprep.subr.mxu0 0.0
    %6765 = vmatpush1.msra.mxu0 0.0
    %6766 = vmatprep.subr.mxu0 0.0
    %6767 = vmatpush1.msra.mxu0 0.0
    %6768 = vmatprep.subr.mxu0 0.0
    %6769 = vmatpush1.msra.mxu0 0.0
    %6770 = vmatprep.subr.mxu0 0.0
    %6771 = vmatpush1.msra.mxu0 0.0
    %6772 = vmatprep.subr.mxu0 0.0
    %6773 = vmatpush1.msra.mxu0 0.0
    %6774 = vmatprep.subr.mxu0 0.0
    %6775 = vmatpush1.msra.mxu0 0.0
    %6776 = vmatprep.subr.mxu0 0.0
    %6777 = vmatpush1.msra.mxu0 0.0
    %6778 = vmatprep.subr.mxu0 0.0
    %6779 = vmatpush1.msra.mxu0 0.0
    %6780 = vmatprep.subr.mxu0 0.0
    %6781 = vmatpush1.msra.mxu0 0.0
    %6782 = vmatprep.subr.mxu0 0.0
    %6783 = vmatpush1.msra.mxu0 0.0
    %6784 = vmatprep.subr.mxu0 0.0
    %6785 = vmatpush1.msra.mxu0 0.0
    %6786 = vmatprep.subr.mxu0 0.0
    %6787 = vmatpush1.msra.mxu0 0.0
    %6788 = vmatprep.subr.mxu0 0.0
    %6789 = vmatpush1.msra.mxu0 0.0
    %6790 = vmatprep.subr.mxu0 0.0
    %6791 = vmatpush1.msra.mxu0 0.0
    %6792 = vmatprep.subr.mxu0 0.0
    %6793 = vmatpush1.msra.mxu0 0.0
    %6794 = vmatprep.subr.mxu0 0.0
    %6795 = vmatpush1.msra.mxu0 0.0
    %6796 = vmatprep.subr.mxu0 0.0
    %6797 = vmatpush1.msra.mxu0 0.0
    %6798 = vmatprep.subr.mxu0 0.0
    %6799 = vmatpush1.msra.mxu0 0.0
    %6800 = vmatprep.subr.mxu0 0.0
    %6801 = vmatpush1.msra.mxu0 0.0
    %6802 = vmatprep.mubr.f32.mxu0 0.0
    %6803 = vmatmul.mubr.f32.gmra.mrb[0].mxu0 %v6736
    %v6804 = vpop.f32.mrb[0].mxu0
    %v6805 = vadd.f32 0.0, %v6804
    %v6806 = vpop.f32.mrb[0].mxu0
    %6807 = vdwg.mxu0
    %v6809 = vsel %vm745, %v6805, 0
    %v6812 = vsel %vm745, %v742, 0
    %6814 = vmatprep.subr.mxu0 0.0
    %6815 = vmatpush1.xpose.msra.mxu0 %v6812
    %6816 = vmatprep.subr.mxu0 0.0
    %6817 = vmatpush1.xpose.msra.mxu0 0.0
    %6818 = vmatprep.subr.mxu0 0.0
    %6819 = vmatpush1.xpose.msra.mxu0 0.0
    %6820 = vmatprep.subr.mxu0 0.0
    %6821 = vmatpush1.xpose.msra.mxu0 0.0
    %6822 = vmatprep.subr.mxu0 0.0
    %6823 = vmatpush1.xpose.msra.mxu0 0.0
    %6824 = vmatprep.subr.mxu0 0.0
    %6825 = vmatpush1.xpose.msra.mxu0 0.0
    %6826 = vmatprep.subr.mxu0 0.0
    %6827 = vmatpush1.xpose.msra.mxu0 0.0
    %6828 = vmatprep.subr.mxu0 0.0
    %6829 = vmatpush1.xpose.msra.mxu0 0.0
    %6830 = vmatprep.subr.mxu0 0.0
    %6831 = vmatpush1.xpose.msra.mxu0 0.0
    %6832 = vmatprep.subr.mxu0 0.0
    %6833 = vmatpush1.xpose.msra.mxu0 0.0
    %6834 = vmatprep.subr.mxu0 0.0
    %6835 = vmatpush1.xpose.msra.mxu0 0.0
    %6836 = vmatprep.subr.mxu0 0.0
    %6837 = vmatpush1.xpose.msra.mxu0 0.0
    %6838 = vmatprep.subr.mxu0 0.0
    %6839 = vmatpush1.xpose.msra.mxu0 0.0
    %6840 = vmatprep.subr.mxu0 0.0
    %6841 = vmatpush1.xpose.msra.mxu0 0.0
    %6842 = vmatprep.subr.mxu0 0.0
    %6843 = vmatpush1.xpose.msra.mxu0 0.0
    %6844 = vmatprep.subr.mxu0 0.0
    %6845 = vmatpush1.xpose.msra.mxu0 0.0
    %6846 = vmatprep.subr.mxu0 0.0
    %6847 = vmatpush1.xpose.msra.mxu0 0.0
    %6848 = vmatprep.subr.mxu0 0.0
    %6849 = vmatpush1.xpose.msra.mxu0 0.0
    %6850 = vmatprep.subr.mxu0 0.0
    %6851 = vmatpush1.xpose.msra.mxu0 0.0
    %6852 = vmatprep.subr.mxu0 0.0
    %6853 = vmatpush1.xpose.msra.mxu0 0.0
    %6854 = vmatprep.subr.mxu0 0.0
    %6855 = vmatpush1.xpose.msra.mxu0 0.0
    %6856 = vmatprep.subr.mxu0 0.0
    %6857 = vmatpush1.xpose.msra.mxu0 0.0
    %6858 = vmatprep.subr.mxu0 0.0
    %6859 = vmatpush1.xpose.msra.mxu0 0.0
    %6860 = vmatprep.subr.mxu0 0.0
    %6861 = vmatpush1.xpose.msra.mxu0 0.0
    %6862 = vmatprep.subr.mxu0 0.0
    %6863 = vmatpush1.xpose.msra.mxu0 0.0
    %6864 = vmatprep.subr.mxu0 0.0
    %6865 = vmatpush1.xpose.msra.mxu0 0.0
    %6866 = vmatprep.subr.mxu0 0.0
    %6867 = vmatpush1.xpose.msra.mxu0 0.0
    %6868 = vmatprep.subr.mxu0 0.0
    %6869 = vmatpush1.xpose.msra.mxu0 0.0
    %6870 = vmatprep.subr.mxu0 0.0
    %6871 = vmatpush1.xpose.msra.mxu0 0.0
    %6872 = vmatprep.subr.mxu0 0.0
    %6873 = vmatpush1.xpose.msra.mxu0 0.0
    %6874 = vmatprep.subr.mxu0 0.0
    %6875 = vmatpush1.xpose.msra.mxu0 0.0
    %6876 = vmatprep.subr.mxu0 0.0
    %6877 = vmatpush1.xpose.msra.mxu0 0.0
    %6878 = vmatprep.mubr.f32.mxu0 0.0
    %6879 = vmatmul.mubr.f32.gmra.mrb[0].mxu0 %v6809
    %v6880 = vpop.f32.mrb[0].mxu0
    %v6881 = vadd.f32 0.0, %v6880
    %v6882 = vpop.f32.mrb[0].mxu0
    %6883 = vdwg.mxu0
    %v6884 = vmul.f32 %v6881, 0.35355338
    %v6885 = vsel %vm745, %v6884, -inf
    %v6886 = vrot.slane %v6885, 4
    %v6887 = vmax.f32 %v6885, %v6886
    %v6888 = vrot.slane %v6887, 2
    %v6889 = vmax.f32 %v6887, %v6888
    %v6890 = vrot.slane %v6889, 1
    %v6891 = vmax.f32 %v6889, %v6890
    %v6892 = vsub.f32 %v6884, %v6891
    %v6893 = vmul.f32 %v6892, 1.442695
    %v6894 = vpow.pop %v6893
    %v6895 = vsel %vm745, %v6894, 0.0
    %v6896 = vrot.slane %v6895, 4
    %v6897 = vadd.f32 %v6895, %v6896
    %v6898 = vrot.slane %v6897, 2
    %v6899 = vadd.f32 %v6897, %v6898
    %v6900 = vrot.slane %v6899, 1
    %v6901 = vadd.f32 %v6899, %v6900
    %v6902 = vrcp.pop %v6901
    %v6903 = vmul.f32 %v6894, %v6902
    %6904 = vrot.lane.b32.xlu0 %v742, 96
    %v6905 = vpop.permute.xlu0 %6904
    %v6908 = vsel %vm745, %v6903, 0
    %6910 = vmatprep.subr.mxu0 0.0
    %6911 = vmatpush1.msra.mxu0 %v6905
    %6912 = vmatprep.subr.mxu0 0.0
    %6913 = vmatpush1.msra.mxu0 0.0
    %6914 = vmatprep.subr.mxu0 0.0
    %6915 = vmatpush1.msra.mxu0 0.0
    %6916 = vmatprep.subr.mxu0 0.0
    %6917 = vmatpush1.msra.mxu0 0.0
    %6918 = vmatprep.subr.mxu0 0.0
    %6919 = vmatpush1.msra.mxu0 0.0
    %6920 = vmatprep.subr.mxu0 0.0
    %6921 = vmatpush1.msra.mxu0 0.0
    %6922 = vmatprep.subr.mxu0 0.0
    %6923 = vmatpush1.msra.mxu0 0.0
    %6924 = vmatprep.subr.mxu0 0.0
    %6925 = vmatpush1.msra.mxu0 0.0
    %6926 = vmatprep.subr.mxu0 0.0
    %6927 = vmatpush1.msra.mxu0 0.0
    %6928 = vmatprep.subr.mxu0 0.0
    %6929 = vmatpush1.msra.mxu0 0.0
    %6930 = vmatprep.subr.mxu0 0.0
    %6931 = vmatpush1.msra.mxu0 0.0
    %6932 = vmatprep.subr.mxu0 0.0
    %6933 = vmatpush1.msra.mxu0 0.0
    %6934 = vmatprep.subr.mxu0 0.0
    %6935 = vmatpush1.msra.mxu0 0.0
    %6936 = vmatprep.subr.mxu0 0.0
    %6937 = vmatpush1.msra.mxu0 0.0
    %6938 = vmatprep.subr.mxu0 0.0
    %6939 = vmatpush1.msra.mxu0 0.0
    %6940 = vmatprep.subr.mxu0 0.0
    %6941 = vmatpush1.msra.mxu0 0.0
    %6942 = vmatprep.subr.mxu0 0.0
    %6943 = vmatpush1.msra.mxu0 0.0
    %6944 = vmatprep.subr.mxu0 0.0
    %6945 = vmatpush1.msra.mxu0 0.0
    %6946 = vmatprep.subr.mxu0 0.0
    %6947 = vmatpush1.msra.mxu0 0.0
    %6948 = vmatprep.subr.mxu0 0.0
    %6949 = vmatpush1.msra.mxu0 0.0
    %6950 = vmatprep.subr.mxu0 0.0
    %6951 = vmatpush1.msra.mxu0 0.0
    %6952 = vmatprep.subr.mxu0 0.0
    %6953 = vmatpush1.msra.mxu0 0.0
    %6954 = vmatprep.subr.mxu0 0.0
    %6955 = vmatpush1.msra.mxu0 0.0
    %6956 = vmatprep.subr.mxu0 0.0
    %6957 = vmatpush1.msra.mxu0 0.0
    %6958 = vmatprep.subr.mxu0 0.0
    %6959 = vmatpush1.msra.mxu0 0.0
    %6960 = vmatprep.subr.mxu0 0.0
    %6961 = vmatpush1.msra.mxu0 0.0
    %6962 = vmatprep.subr.mxu0 0.0
    %6963 = vmatpush1.msra.mxu0 0.0
    %6964 = vmatprep.subr.mxu0 0.0
    %6965 = vmatpush1.msra.mxu0 0.0
    %6966 = vmatprep.subr.mxu0 0.0
    %6967 = vmatpush1.msra.mxu0 0.0
    %6968 = vmatprep.subr.mxu0 0.0
    %6969 = vmatpush1.msra.mxu0 0.0
    %6970 = vmatprep.subr.mxu0 0.0
    %6971 = vmatpush1.msra.mxu0 0.0
    %6972 = vmatprep.subr.mxu0 0.0
    %6973 = vmatpush1.msra.mxu0 0.0
    %6974 = vmatprep.mubr.f32.mxu0 0.0
    %6975 = vmatmul.mubr.f32.gmra.mrb[0].mxu0 %v6908
    %v6976 = vpop.f32.mrb[0].mxu0
    %v6977 = vadd.f32 0.0, %v6976
    %v6978 = vpop.f32.mrb[0].mxu0
    %6979 = vdwg.mxu0
    %6980 = vrot.lane.b32.xlu0 %v6805, 120
    %v6981 = vpop.permute.xlu0 %6980
    %6982 = vrot.lane.b32.xlu0 %v742, 120
    %v6983 = vpop.permute.xlu0 %6982
    %v6984 = vsel %vm745, %v6981, 0
    %v6986 = vsel %vm745, %v6983, 0
    %6988 = vmatprep.subr.mxu0 0.0
    %6989 = vmatpush1.xpose.msra.mxu0 %v6986
    %6990 = vmatprep.subr.mxu0 0.0
    %6991 = vmatpush1.xpose.msra.mxu0 0.0
    %6992 = vmatprep.subr.mxu0 0.0
    %6993 = vmatpush1.xpose.msra.mxu0 0.0
    %6994 = vmatprep.subr.mxu0 0.0
    %6995 = vmatpush1.xpose.msra.mxu0 0.0
    %6996 = vmatprep.subr.mxu0 0.0
    %6997 = vmatpush1.xpose.msra.mxu0 0.0
    %6998 = vmatprep.subr.mxu0 0.0
    %6999 = vmatpush1.xpose.msra.mxu0 0.0
    %7000 = vmatprep.subr.mxu0 0.0
    %7001 = vmatpush1.xpose.msra.mxu0 0.0
    %7002 = vmatprep.subr.mxu0 0.0
    %7003 = vmatpush1.xpose.msra.mxu0 0.0
    %7004 = vmatprep.subr.mxu0 0.0
    %7005 = vmatpush1.xpose.msra.mxu0 0.0
    %7006 = vmatprep.subr.mxu0 0.0
    %7007 = vmatpush1.xpose.msra.mxu0 0.0
    %7008 = vmatprep.subr.mxu0 0.0
    %7009 = vmatpush1.xpose.msra.mxu0 0.0
    %7010 = vmatprep.subr.mxu0 0.0
    %7011 = vmatpush1.xpose.msra.mxu0 0.0
    %7012 = vmatprep.subr.mxu0 0.0
    %7013 = vmatpush1.xpose.msra.mxu0 0.0
    %7014 = vmatprep.subr.mxu0 0.0
    %7015 = vmatpush1.xpose.msra.mxu0 0.0
    %7016 = vmatprep.subr.mxu0 0.0
    %7017 = vmatpush1.xpose.msra.mxu0 0.0
    %7018 = vmatprep.subr.mxu0 0.0
    %7019 = vmatpush1.xpose.msra.mxu0 0.0
    %7020 = vmatprep.subr.mxu0 0.0
    %7021 = vmatpush1.xpose.msra.mxu0 0.0
    %7022 = vmatprep.subr.mxu0 0.0
    %7023 = vmatpush1.xpose.msra.mxu0 0.0
    %7024 = vmatprep.subr.mxu0 0.0
    %7025 = vmatpush1.xpose.msra.mxu0 0.0
    %7026 = vmatprep.subr.mxu0 0.0
    %7027 = vmatpush1.xpose.msra.mxu0 0.0
    %7028 = vmatprep.subr.mxu0 0.0
    %7029 = vmatpush1.xpose.msra.mxu0 0.0
    %7030 = vmatprep.subr.mxu0 0.0
    %7031 = vmatpush1.xpose.msra.mxu0 0.0
    %7032 = vmatprep.subr.mxu0 0.0
    %7033 = vmatpush1.xpose.msra.mxu0 0.0
    %7034 = vmatprep.subr.mxu0 0.0
    %7035 = vmatpush1.xpose.msra.mxu0 0.0
    %7036 = vmatprep.subr.mxu0 0.0
    %7037 = vmatpush1.xpose.msra.mxu0 0.0
    %7038 = vmatprep.subr.mxu0 0.0
    %7039 = vmatpush1.xpose.msra.mxu0 0.0
    %7040 = vmatprep.subr.mxu0 0.0
    %7041 = vmatpush1.xpose.msra.mxu0 0.0
    %7042 = vmatprep.subr.mxu0 0.0
    %7043 = vmatpush1.xpose.msra.mxu0 0.0
    %7044 = vmatprep.subr.mxu0 0.0
    %7045 = vmatpush1.xpose.msra.mxu0 0.0
    %7046 = vmatprep.subr.mxu0 0.0
    %7047 = vmatpush1.xpose.msra.mxu0 0.0
    %7048 = vmatprep.subr.mxu0 0.0
    %7049 = vmatpush1.xpose.msra.mxu0 0.0
    %7050 = vmatprep.subr.mxu0 0.0
    %7051 = vmatpush1.xpose.msra.mxu0 0.0
    %7052 = vmatprep.mubr.f32.mxu0 0.0
    %7053 = vmatmul.mubr.f32.gmra.mrb[0].mxu0 %v6984
    %v7054 = vpop.f32.mrb[0].mxu0
    %v7055 = vadd.f32 0.0, %v7054
    %v7056 = vpop.f32.mrb[0].mxu0
    %7057 = vdwg.mxu0
    %v7058 = vmul.f32 %v7055, 0.35355338
    %v7059 = vsel %vm745, %v7058, -inf
    %v7060 = vrot.slane %v7059, 4
    %v7061 = vmax.f32 %v7059, %v7060
    %v7062 = vrot.slane %v7061, 2
    %v7063 = vmax.f32 %v7061, %v7062
    %v7064 = vrot.slane %v7063, 1
    %v7065 = vmax.f32 %v7063, %v7064
    %v7066 = vsub.f32 %v7058, %v7065
    %v7067 = vmul.f32 %v7066, 1.442695
    %v7068 = vpow.pop %v7067
    %v7069 = vsel %vm745, %v7068, 0.0
    %v7070 = vrot.slane %v7069, 4
    %v7071 = vadd.f32 %v7069, %v7070
    %v7072 = vrot.slane %v7071, 2
    %v7073 = vadd.f32 %v7071, %v7072
    %v7074 = vrot.slane %v7073, 1
    %v7075 = vadd.f32 %v7073, %v7074
    %v7076 = vrcp.pop %v7075
    %v7077 = vmul.f32 %v7068, %v7076
    %7078 = vrot.lane.b32.xlu0 %v742, 88
    %v7079 = vpop.permute.xlu0 %7078
    %v7082 = vsel %vm745, %v7077, 0
    %7084 = vmatprep.subr.mxu0 0.0
    %7085 = vmatpush1.msra.mxu0 %v7079
    %7086 = vmatprep.subr.mxu0 0.0
    %7087 = vmatpush1.msra.mxu0 0.0
    %7088 = vmatprep.subr.mxu0 0.0
    %7089 = vmatpush1.msra.mxu0 0.0
    %7090 = vmatprep.subr.mxu0 0.0
    %7091 = vmatpush1.msra.mxu0 0.0
    %7092 = vmatprep.subr.mxu0 0.0
    %7093 = vmatpush1.msra.mxu0 0.0
    %7094 = vmatprep.subr.mxu0 0.0
    %7095 = vmatpush1.msra.mxu0 0.0
    %7096 = vmatprep.subr.mxu0 0.0
    %7097 = vmatpush1.msra.mxu0 0.0
    %7098 = vmatprep.subr.mxu0 0.0
    %7099 = vmatpush1.msra.mxu0 0.0
    %7100 = vmatprep.subr.mxu0 0.0
    %7101 = vmatpush1.msra.mxu0 0.0
    %7102 = vmatprep.subr.mxu0 0.0
    %7103 = vmatpush1.msra.mxu0 0.0
    %7104 = vmatprep.subr.mxu0 0.0
    %7105 = vmatpush1.msra.mxu0 0.0
    %7106 = vmatprep.subr.mxu0 0.0
    %7107 = vmatpush1.msra.mxu0 0.0
    %7108 = vmatprep.subr.mxu0 0.0
    %7109 = vmatpush1.msra.mxu0 0.0
    %7110 = vmatprep.subr.mxu0 0.0
    %7111 = vmatpush1.msra.mxu0 0.0
    %7112 = vmatprep.subr.mxu0 0.0
    %7113 = vmatpush1.msra.mxu0 0.0
    %7114 = vmatprep.subr.mxu0 0.0
    %7115 = vmatpush1.msra.mxu0 0.0
    %7116 = vmatprep.subr.mxu0 0.0
    %7117 = vmatpush1.msra.mxu0 0.0
    %7118 = vmatprep.subr.mxu0 0.0
    %7119 = vmatpush1.msra.mxu0 0.0
    %7120 = vmatprep.subr.mxu0 0.0
    %7121 = vmatpush1.msra.mxu0 0.0
    %7122 = vmatprep.subr.mxu0 0.0
    %7123 = vmatpush1.msra.mxu0 0.0
    %7124 = vmatprep.subr.mxu0 0.0
    %7125 = vmatpush1.msra.mxu0 0.0
    %7126 = vmatprep.subr.mxu0 0.0
    %7127 = vmatpush1.msra.mxu0 0.0
    %7128 = vmatprep.subr.mxu0 0.0
    %7129 = vmatpush1.msra.mxu0 0.0
    %7130 = vmatprep.subr.mxu0 0.0
    %7131 = vmatpush1.msra.mxu0 0.0
    %7132 = vmatprep.subr.mxu0 0.0
    %7133 = vmatpush1.msra.mxu0 0.0
    %7134 = vmatprep.subr.mxu0 0.0
    %7135 = vmatpush1.msra.mxu0 0.0
    %7136 = vmatprep.subr.mxu0 0.0
    %7137 = vmatpush1.msra.mxu0 0.0
    %7138 = vmatprep.subr.mxu0 0.0
    %7139 = vmatpush1.msra.mxu0 0.0
    %7140 = vmatprep.subr.mxu0 0.0
    %7141 = vmatpush1.msra.mxu0 0.0
    %7142 = vmatprep.subr.mxu0 0.0
    %7143 = vmatpush1.msra.mxu0 0.0
    %7144 = vmatprep.subr.mxu0 0.0
    %7145 = vmatpush1.msra.mxu0 0.0
    %7146 = vmatprep.subr.mxu0 0.0
    %7147 = vmatpush1.msra.mxu0 0.0
    %7148 = vmatprep.mubr.f32.mxu0 0.0
    %7149 = vmatmul.mubr.f32.gmra.mrb[0].mxu0 %v7082
    %v7150 = vpop.f32.mrb[0].mxu0
    %v7151 = vadd.f32 0.0, %v7150
    %v7152 = vpop.f32.mrb[0].mxu0
    %7153 = vdwg.mxu0
    %v7155 = vsel %vm745, %v7151, 0
    %7157 = vmatprep.subr.mxu0 0.0
    %7158 = vmatpush1.msra.mxu0 %v264
    %7159 = vmatprep.subr.mxu0 0.0
    %7160 = vmatpush1.msra.mxu0 0.0
    %7161 = vmatprep.subr.mxu0 0.0
    %7162 = vmatpush1.msra.mxu0 0.0
    %7163 = vmatprep.subr.mxu0 0.0
    %7164 = vmatpush1.msra.mxu0 0.0
    %7165 = vmatprep.subr.mxu0 0.0
    %7166 = vmatpush1.msra.mxu0 0.0
    %7167 = vmatprep.subr.mxu0 0.0
    %7168 = vmatpush1.msra.mxu0 0.0
    %7169 = vmatprep.subr.mxu0 0.0
    %7170 = vmatpush1.msra.mxu0 0.0
    %7171 = vmatprep.subr.mxu0 0.0
    %7172 = vmatpush1.msra.mxu0 0.0
    %7173 = vmatprep.subr.mxu0 0.0
    %7174 = vmatpush1.msra.mxu0 0.0
    %7175 = vmatprep.subr.mxu0 0.0
    %7176 = vmatpush1.msra.mxu0 0.0
    %7177 = vmatprep.subr.mxu0 0.0
    %7178 = vmatpush1.msra.mxu0 0.0
    %7179 = vmatprep.subr.mxu0 0.0
    %7180 = vmatpush1.msra.mxu0 0.0
    %7181 = vmatprep.subr.mxu0 0.0
    %7182 = vmatpush1.msra.mxu0 0.0
    %7183 = vmatprep.subr.mxu0 0.0
    %7184 = vmatpush1.msra.mxu0 0.0
    %7185 = vmatprep.subr.mxu0 0.0
    %7186 = vmatpush1.msra.mxu0 0.0
    %7187 = vmatprep.subr.mxu0 0.0
    %7188 = vmatpush1.msra.mxu0 0.0
    %7189 = vmatprep.subr.mxu0 0.0
    %7190 = vmatpush1.msra.mxu0 0.0
    %7191 = vmatprep.subr.mxu0 0.0
    %7192 = vmatpush1.msra.mxu0 0.0
    %7193 = vmatprep.subr.mxu0 0.0
    %7194 = vmatpush1.msra.mxu0 0.0
    %7195 = vmatprep.subr.mxu0 0.0
    %7196 = vmatpush1.msra.mxu0 0.0
    %7197 = vmatprep.subr.mxu0 0.0
    %7198 = vmatpush1.msra.mxu0 0.0
    %7199 = vmatprep.subr.mxu0 0.0
    %7200 = vmatpush1.msra.mxu0 0.0
    %7201 = vmatprep.subr.mxu0 0.0
    %7202 = vmatpush1.msra.mxu0 0.0
    %7203 = vmatprep.subr.mxu0 0.0
    %7204 = vmatpush1.msra.mxu0 0.0
    %7205 = vmatprep.subr.mxu0 0.0
    %7206 = vmatpush1.msra.mxu0 0.0
    %7207 = vmatprep.subr.mxu0 0.0
    %7208 = vmatpush1.msra.mxu0 0.0
    %7209 = vmatprep.subr.mxu0 0.0
    %7210 = vmatpush1.msra.mxu0 0.0
    %7211 = vmatprep.subr.mxu0 0.0
    %7212 = vmatpush1.msra.mxu0 0.0
    %7213 = vmatprep.subr.mxu0 0.0
    %7214 = vmatpush1.msra.mxu0 0.0
    %7215 = vmatprep.subr.mxu0 0.0
    %7216 = vmatpush1.msra.mxu0 0.0
    %7217 = vmatprep.subr.mxu0 0.0
    %7218 = vmatpush1.msra.mxu0 0.0
    %7219 = vmatprep.subr.mxu0 0.0
    %7220 = vmatpush1.msra.mxu0 0.0
    %7221 = vmatprep.mubr.f32.mxu0 0.0
    %7222 = vmatmul.mubr.f32.gmra.mrb[0].mxu0 %v7155
    %v7223 = vpop.f32.mrb[0].mxu0
    %v7224 = vadd.f32 0.0, %v7223
    %v7225 = vpop.f32.mrb[0].mxu0
    %7226 = vdwg.mxu0
    %v7228 = vsel %vm745, %v6977, 0
    %7230 = vmatprep.subr.mxu0 0.0
    %7231 = vmatpush1.msra.mxu0 %v263
    %7232 = vmatprep.subr.mxu0 0.0
    %7233 = vmatpush1.msra.mxu0 0.0
    %7234 = vmatprep.subr.mxu0 0.0
    %7235 = vmatpush1.msra.mxu0 0.0
    %7236 = vmatprep.subr.mxu0 0.0
    %7237 = vmatpush1.msra.mxu0 0.0
    %7238 = vmatprep.subr.mxu0 0.0
    %7239 = vmatpush1.msra.mxu0 0.0
    %7240 = vmatprep.subr.mxu0 0.0
    %7241 = vmatpush1.msra.mxu0 0.0
    %7242 = vmatprep.subr.mxu0 0.0
    %7243 = vmatpush1.msra.mxu0 0.0
    %7244 = vmatprep.subr.mxu0 0.0
    %7245 = vmatpush1.msra.mxu0 0.0
    %7246 = vmatprep.subr.mxu0 0.0
    %7247 = vmatpush1.msra.mxu0 0.0
    %7248 = vmatprep.subr.mxu0 0.0
    %7249 = vmatpush1.msra.mxu0 0.0
    %7250 = vmatprep.subr.mxu0 0.0
    %7251 = vmatpush1.msra.mxu0 0.0
    %7252 = vmatprep.subr.mxu0 0.0
    %7253 = vmatpush1.msra.mxu0 0.0
    %7254 = vmatprep.subr.mxu0 0.0
    %7255 = vmatpush1.msra.mxu0 0.0
    %7256 = vmatprep.subr.mxu0 0.0
    %7257 = vmatpush1.msra.mxu0 0.0
    %7258 = vmatprep.subr.mxu0 0.0
    %7259 = vmatpush1.msra.mxu0 0.0
    %7260 = vmatprep.subr.mxu0 0.0
    %7261 = vmatpush1.msra.mxu0 0.0
    %7262 = vmatprep.subr.mxu0 0.0
    %7263 = vmatpush1.msra.mxu0 0.0
    %7264 = vmatprep.subr.mxu0 0.0
    %7265 = vmatpush1.msra.mxu0 0.0
    %7266 = vmatprep.subr.mxu0 0.0
    %7267 = vmatpush1.msra.mxu0 0.0
    %7268 = vmatprep.subr.mxu0 0.0
    %7269 = vmatpush1.msra.mxu0 0.0
    %7270 = vmatprep.subr.mxu0 0.0
    %7271 = vmatpush1.msra.mxu0 0.0
    %7272 = vmatprep.subr.mxu0 0.0
    %7273 = vmatpush1.msra.mxu0 0.0
    %7274 = vmatprep.subr.mxu0 0.0
    %7275 = vmatpush1.msra.mxu0 0.0
    %7276 = vmatprep.subr.mxu0 0.0
    %7277 = vmatpush1.msra.mxu0 0.0
    %7278 = vmatprep.subr.mxu0 0.0
    %7279 = vmatpush1.msra.mxu0 0.0
    %7280 = vmatprep.subr.mxu0 0.0
    %7281 = vmatpush1.msra.mxu0 0.0
    %7282 = vmatprep.subr.mxu0 0.0
    %7283 = vmatpush1.msra.mxu0 0.0
    %7284 = vmatprep.subr.mxu0 0.0
    %7285 = vmatpush1.msra.mxu0 0.0
    %7286 = vmatprep.subr.mxu0 0.0
    %7287 = vmatpush1.msra.mxu0 0.0
    %7288 = vmatprep.subr.mxu0 0.0
    %7289 = vmatpush1.msra.mxu0 0.0
    %7290 = vmatprep.subr.mxu0 0.0
    %7291 = vmatpush1.msra.mxu0 0.0
    %7292 = vmatprep.subr.mxu0 0.0
    %7293 = vmatpush1.msra.mxu0 0.0
    %7294 = vmatprep.mubr.f32.mxu0 0.0
    %7295 = vmatmul.mubr.f32.gmra.mrb[0].mxu0 %v7228
    %v7296 = vpop.f32.mrb[0].mxu0
    %v7297 = vadd.f32 %v7224, %v7296
    %v7298 = vpop.f32.mrb[0].mxu0
    %7299 = vdwg.mxu0
    %7300 = vrot.lane.b32.xlu0 %v6805, 112
    %v7301 = vpop.permute.xlu0 %7300
    %7302 = vrot.lane.b32.xlu0 %v742, 112
    %v7303 = vpop.permute.xlu0 %7302
    %v7304 = vsel %vm745, %v7301, 0
    %v7306 = vsel %vm745, %v7303, 0
    %7308 = vmatprep.subr.mxu0 0.0
    %7309 = vmatpush1.xpose.msra.mxu0 %v7306
    %7310 = vmatprep.subr.mxu0 0.0
    %7311 = vmatpush1.xpose.msra.mxu0 0.0
    %7312 = vmatprep.subr.mxu0 0.0
    %7313 = vmatpush1.xpose.msra.mxu0 0.0
    %7314 = vmatprep.subr.mxu0 0.0
    %7315 = vmatpush1.xpose.msra.mxu0 0.0
    %7316 = vmatprep.subr.mxu0 0.0
    %7317 = vmatpush1.xpose.msra.mxu0 0.0
    %7318 = vmatprep.subr.mxu0 0.0
    %7319 = vmatpush1.xpose.msra.mxu0 0.0
    %7320 = vmatprep.subr.mxu0 0.0
    %7321 = vmatpush1.xpose.msra.mxu0 0.0
    %7322 = vmatprep.subr.mxu0 0.0
    %7323 = vmatpush1.xpose.msra.mxu0 0.0
    %7324 = vmatprep.subr.mxu0 0.0
    %7325 = vmatpush1.xpose.msra.mxu0 0.0
    %7326 = vmatprep.subr.mxu0 0.0
    %7327 = vmatpush1.xpose.msra.mxu0 0.0
    %7328 = vmatprep.subr.mxu0 0.0
    %7329 = vmatpush1.xpose.msra.mxu0 0.0
    %7330 = vmatprep.subr.mxu0 0.0
    %7331 = vmatpush1.xpose.msra.mxu0 0.0
    %7332 = vmatprep.subr.mxu0 0.0
    %7333 = vmatpush1.xpose.msra.mxu0 0.0
    %7334 = vmatprep.subr.mxu0 0.0
    %7335 = vmatpush1.xpose.msra.mxu0 0.0
    %7336 = vmatprep.subr.mxu0 0.0
    %7337 = vmatpush1.xpose.msra.mxu0 0.0
    %7338 = vmatprep.subr.mxu0 0.0
    %7339 = vmatpush1.xpose.msra.mxu0 0.0
    %7340 = vmatprep.subr.mxu0 0.0
    %7341 = vmatpush1.xpose.msra.mxu0 0.0
    %7342 = vmatprep.subr.mxu0 0.0
    %7343 = vmatpush1.xpose.msra.mxu0 0.0
    %7344 = vmatprep.subr.mxu0 0.0
    %7345 = vmatpush1.xpose.msra.mxu0 0.0
    %7346 = vmatprep.subr.mxu0 0.0
    %7347 = vmatpush1.xpose.msra.mxu0 0.0
    %7348 = vmatprep.subr.mxu0 0.0
    %7349 = vmatpush1.xpose.msra.mxu0 0.0
    %7350 = vmatprep.subr.mxu0 0.0
    %7351 = vmatpush1.xpose.msra.mxu0 0.0
    %7352 = vmatprep.subr.mxu0 0.0
    %7353 = vmatpush1.xpose.msra.mxu0 0.0
    %7354 = vmatprep.subr.mxu0 0.0
    %7355 = vmatpush1.xpose.msra.mxu0 0.0
    %7356 = vmatprep.subr.mxu0 0.0
    %7357 = vmatpush1.xpose.msra.mxu0 0.0
    %7358 = vmatprep.subr.mxu0 0.0
    %7359 = vmatpush1.xpose.msra.mxu0 0.0
    %7360 = vmatprep.subr.mxu0 0.0
    %7361 = vmatpush1.xpose.msra.mxu0 0.0
    %7362 = vmatprep.subr.mxu0 0.0
    %7363 = vmatpush1.xpose.msra.mxu0 0.0
    %7364 = vmatprep.subr.mxu0 0.0
    %7365 = vmatpush1.xpose.msra.mxu0 0.0
    %7366 = vmatprep.subr.mxu0 0.0
    %7367 = vmatpush1.xpose.msra.mxu0 0.0
    %7368 = vmatprep.subr.mxu0 0.0
    %7369 = vmatpush1.xpose.msra.mxu0 0.0
    %7370 = vmatprep.subr.mxu0 0.0
    %7371 = vmatpush1.xpose.msra.mxu0 0.0
    %7372 = vmatprep.mubr.f32.mxu0 0.0
    %7373 = vmatmul.mubr.f32.gmra.mrb[0].mxu0 %v7304
    %v7374 = vpop.f32.mrb[0].mxu0
    %v7375 = vadd.f32 0.0, %v7374
    %v7376 = vpop.f32.mrb[0].mxu0
    %7377 = vdwg.mxu0
    %v7378 = vmul.f32 %v7375, 0.35355338
    %v7379 = vsel %vm745, %v7378, -inf
    %v7380 = vrot.slane %v7379, 4
    %v7381 = vmax.f32 %v7379, %v7380
    %v7382 = vrot.slane %v7381, 2
    %v7383 = vmax.f32 %v7381, %v7382
    %v7384 = vrot.slane %v7383, 1
    %v7385 = vmax.f32 %v7383, %v7384
    %v7386 = vsub.f32 %v7378, %v7385
    %v7387 = vmul.f32 %v7386, 1.442695
    %v7388 = vpow.pop %v7387
    %v7389 = vsel %vm745, %v7388, 0.0
    %v7390 = vrot.slane %v7389, 4
    %v7391 = vadd.f32 %v7389, %v7390
    %v7392 = vrot.slane %v7391, 2
    %v7393 = vadd.f32 %v7391, %v7392
    %v7394 = vrot.slane %v7393, 1
    %v7395 = vadd.f32 %v7393, %v7394
    %v7396 = vrcp.pop %v7395
    %v7397 = vmul.f32 %v7388, %v7396
    %7398 = vrot.lane.b32.xlu0 %v742, 80
    %v7399 = vpop.permute.xlu0 %7398
    %v7402 = vsel %vm745, %v7397, 0
    %7404 = vmatprep.subr.mxu0 0.0
    %7405 = vmatpush1.msra.mxu0 %v7399
    %7406 = vmatprep.subr.mxu0 0.0
    %7407 = vmatpush1.msra.mxu0 0.0
    %7408 = vmatprep.subr.mxu0 0.0
    %7409 = vmatpush1.msra.mxu0 0.0
    %7410 = vmatprep.subr.mxu0 0.0
    %7411 = vmatpush1.msra.mxu0 0.0
    %7412 = vmatprep.subr.mxu0 0.0
    %7413 = vmatpush1.msra.mxu0 0.0
    %7414 = vmatprep.subr.mxu0 0.0
    %7415 = vmatpush1.msra.mxu0 0.0
    %7416 = vmatprep.subr.mxu0 0.0
    %7417 = vmatpush1.msra.mxu0 0.0
    %7418 = vmatprep.subr.mxu0 0.0
    %7419 = vmatpush1.msra.mxu0 0.0
    %7420 = vmatprep.subr.mxu0 0.0
    %7421 = vmatpush1.msra.mxu0 0.0
    %7422 = vmatprep.subr.mxu0 0.0
    %7423 = vmatpush1.msra.mxu0 0.0
    %7424 = vmatprep.subr.mxu0 0.0
    %7425 = vmatpush1.msra.mxu0 0.0
    %7426 = vmatprep.subr.mxu0 0.0
    %7427 = vmatpush1.msra.mxu0 0.0
    %7428 = vmatprep.subr.mxu0 0.0
    %7429 = vmatpush1.msra.mxu0 0.0
    %7430 = vmatprep.subr.mxu0 0.0
    %7431 = vmatpush1.msra.mxu0 0.0
    %7432 = vmatprep.subr.mxu0 0.0
    %7433 = vmatpush1.msra.mxu0 0.0
    %7434 = vmatprep.subr.mxu0 0.0
    %7435 = vmatpush1.msra.mxu0 0.0
    %7436 = vmatprep.subr.mxu0 0.0
    %7437 = vmatpush1.msra.mxu0 0.0
    %7438 = vmatprep.subr.mxu0 0.0
    %7439 = vmatpush1.msra.mxu0 0.0
    %7440 = vmatprep.subr.mxu0 0.0
    %7441 = vmatpush1.msra.mxu0 0.0
    %7442 = vmatprep.subr.mxu0 0.0
    %7443 = vmatpush1.msra.mxu0 0.0
    %7444 = vmatprep.subr.mxu0 0.0
    %7445 = vmatpush1.msra.mxu0 0.0
    %7446 = vmatprep.subr.mxu0 0.0
    %7447 = vmatpush1.msra.mxu0 0.0
    %7448 = vmatprep.subr.mxu0 0.0
    %7449 = vmatpush1.msra.mxu0 0.0
    %7450 = vmatprep.subr.mxu0 0.0
    %7451 = vmatpush1.msra.mxu0 0.0
    %7452 = vmatprep.subr.mxu0 0.0
    %7453 = vmatpush1.msra.mxu0 0.0
    %7454 = vmatprep.subr.mxu0 0.0
    %7455 = vmatpush1.msra.mxu0 0.0
    %7456 = vmatprep.subr.mxu0 0.0
    %7457 = vmatpush1.msra.mxu0 0.0
    %7458 = vmatprep.subr.mxu0 0.0
    %7459 = vmatpush1.msra.mxu0 0.0
    %7460 = vmatprep.subr.mxu0 0.0
    %7461 = vmatpush1.msra.mxu0 0.0
    %7462 = vmatprep.subr.mxu0 0.0
    %7463 = vmatpush1.msra.mxu0 0.0
    %7464 = vmatprep.subr.mxu0 0.0
    %7465 = vmatpush1.msra.mxu0 0.0
    %7466 = vmatprep.subr.mxu0 0.0
    %7467 = vmatpush1.msra.mxu0 0.0
    %7468 = vmatprep.mubr.f32.mxu0 0.0
    %7469 = vmatmul.mubr.f32.gmra.mrb[0].mxu0 %v7402
    %v7470 = vpop.f32.mrb[0].mxu0
    %v7471 = vadd.f32 0.0, %v7470
    %v7472 = vpop.f32.mrb[0].mxu0
    %7473 = vdwg.mxu0
    %v7475 = vsel %vm745, %v7471, 0
    %7477 = vmatprep.subr.mxu0 0.0
    %7478 = vmatpush1.msra.mxu0 %v265
    %7479 = vmatprep.subr.mxu0 0.0
    %7480 = vmatpush1.msra.mxu0 0.0
    %7481 = vmatprep.subr.mxu0 0.0
    %7482 = vmatpush1.msra.mxu0 0.0
    %7483 = vmatprep.subr.mxu0 0.0
    %7484 = vmatpush1.msra.mxu0 0.0
    %7485 = vmatprep.subr.mxu0 0.0
    %7486 = vmatpush1.msra.mxu0 0.0
    %7487 = vmatprep.subr.mxu0 0.0
    %7488 = vmatpush1.msra.mxu0 0.0
    %7489 = vmatprep.subr.mxu0 0.0
    %7490 = vmatpush1.msra.mxu0 0.0
    %7491 = vmatprep.subr.mxu0 0.0
    %7492 = vmatpush1.msra.mxu0 0.0
    %7493 = vmatprep.subr.mxu0 0.0
    %7494 = vmatpush1.msra.mxu0 0.0
    %7495 = vmatprep.subr.mxu0 0.0
    %7496 = vmatpush1.msra.mxu0 0.0
    %7497 = vmatprep.subr.mxu0 0.0
    %7498 = vmatpush1.msra.mxu0 0.0
    %7499 = vmatprep.subr.mxu0 0.0
    %7500 = vmatpush1.msra.mxu0 0.0
    %7501 = vmatprep.subr.mxu0 0.0
    %7502 = vmatpush1.msra.mxu0 0.0
    %7503 = vmatprep.subr.mxu0 0.0
    %7504 = vmatpush1.msra.mxu0 0.0
    %7505 = vmatprep.subr.mxu0 0.0
    %7506 = vmatpush1.msra.mxu0 0.0
    %7507 = vmatprep.subr.mxu0 0.0
    %7508 = vmatpush1.msra.mxu0 0.0
    %7509 = vmatprep.subr.mxu0 0.0
    %7510 = vmatpush1.msra.mxu0 0.0
    %7511 = vmatprep.subr.mxu0 0.0
    %7512 = vmatpush1.msra.mxu0 0.0
    %7513 = vmatprep.subr.mxu0 0.0
    %7514 = vmatpush1.msra.mxu0 0.0
    %7515 = vmatprep.subr.mxu0 0.0
    %7516 = vmatpush1.msra.mxu0 0.0
    %7517 = vmatprep.subr.mxu0 0.0
    %7518 = vmatpush1.msra.mxu0 0.0
    %7519 = vmatprep.subr.mxu0 0.0
    %7520 = vmatpush1.msra.mxu0 0.0
    %7521 = vmatprep.subr.mxu0 0.0
    %7522 = vmatpush1.msra.mxu0 0.0
    %7523 = vmatprep.subr.mxu0 0.0
    %7524 = vmatpush1.msra.mxu0 0.0
    %7525 = vmatprep.subr.mxu0 0.0
    %7526 = vmatpush1.msra.mxu0 0.0
    %7527 = vmatprep.subr.mxu0 0.0
    %7528 = vmatpush1.msra.mxu0 0.0
    %7529 = vmatprep.subr.mxu0 0.0
    %7530 = vmatpush1.msra.mxu0 0.0
    %7531 = vmatprep.subr.mxu0 0.0
    %7532 = vmatpush1.msra.mxu0 0.0
    %7533 = vmatprep.subr.mxu0 0.0
    %7534 = vmatpush1.msra.mxu0 0.0
    %7535 = vmatprep.subr.mxu0 0.0
    %7536 = vmatpush1.msra.mxu0 0.0
    %7537 = vmatprep.subr.mxu0 0.0
    %7538 = vmatpush1.msra.mxu0 0.0
    %7539 = vmatprep.subr.mxu0 0.0
    %7540 = vmatpush1.msra.mxu0 0.0
    %7541 = vmatprep.mubr.f32.mxu0 0.0
    %7542 = vmatmul.mubr.f32.gmra.mrb[0].mxu0 %v7475
    %v7543 = vpop.f32.mrb[0].mxu0
    %v7544 = vadd.f32 0.0, %v7543
    %v7545 = vpop.f32.mrb[0].mxu0
    %7546 = vdwg.mxu0
    %v7547 = vadd.f32 %v7297, %v7544
    %7548 = vrot.lane.b32.xlu0 %v6805, 104
    %v7549 = vpop.permute.xlu0 %7548
    %7550 = vrot.lane.b32.xlu0 %v742, 104
    %v7551 = vpop.permute.xlu0 %7550
    %v7552 = vsel %vm745, %v7549, 0
    %v7554 = vsel %vm745, %v7551, 0
    %7556 = vmatprep.subr.mxu0 0.0
    %7557 = vmatpush1.xpose.msra.mxu0 %v7554
    %7558 = vmatprep.subr.mxu0 0.0
    %7559 = vmatpush1.xpose.msra.mxu0 0.0
    %7560 = vmatprep.subr.mxu0 0.0
    %7561 = vmatpush1.xpose.msra.mxu0 0.0
    %7562 = vmatprep.subr.mxu0 0.0
    %7563 = vmatpush1.xpose.msra.mxu0 0.0
    %7564 = vmatprep.subr.mxu0 0.0
    %7565 = vmatpush1.xpose.msra.mxu0 0.0
    %7566 = vmatprep.subr.mxu0 0.0
    %7567 = vmatpush1.xpose.msra.mxu0 0.0
    %7568 = vmatprep.subr.mxu0 0.0
    %7569 = vmatpush1.xpose.msra.mxu0 0.0
    %7570 = vmatprep.subr.mxu0 0.0
    %7571 = vmatpush1.xpose.msra.mxu0 0.0
    %7572 = vmatprep.subr.mxu0 0.0
    %7573 = vmatpush1.xpose.msra.mxu0 0.0
    %7574 = vmatprep.subr.mxu0 0.0
    %7575 = vmatpush1.xpose.msra.mxu0 0.0
    %7576 = vmatprep.subr.mxu0 0.0
    %7577 = vmatpush1.xpose.msra.mxu0 0.0
    %7578 = vmatprep.subr.mxu0 0.0
    %7579 = vmatpush1.xpose.msra.mxu0 0.0
    %7580 = vmatprep.subr.mxu0 0.0
    %7581 = vmatpush1.xpose.msra.mxu0 0.0
    %7582 = vmatprep.subr.mxu0 0.0
    %7583 = vmatpush1.xpose.msra.mxu0 0.0
    %7584 = vmatprep.subr.mxu0 0.0
    %7585 = vmatpush1.xpose.msra.mxu0 0.0
    %7586 = vmatprep.subr.mxu0 0.0
    %7587 = vmatpush1.xpose.msra.mxu0 0.0
    %7588 = vmatprep.subr.mxu0 0.0
    %7589 = vmatpush1.xpose.msra.mxu0 0.0
    %7590 = vmatprep.subr.mxu0 0.0
    %7591 = vmatpush1.xpose.msra.mxu0 0.0
    %7592 = vmatprep.subr.mxu0 0.0
    %7593 = vmatpush1.xpose.msra.mxu0 0.0
    %7594 = vmatprep.subr.mxu0 0.0
    %7595 = vmatpush1.xpose.msra.mxu0 0.0
    %7596 = vmatprep.subr.mxu0 0.0
    %7597 = vmatpush1.xpose.msra.mxu0 0.0
    %7598 = vmatprep.subr.mxu0 0.0
    %7599 = vmatpush1.xpose.msra.mxu0 0.0
    %7600 = vmatprep.subr.mxu0 0.0
    %7601 = vmatpush1.xpose.msra.mxu0 0.0
    %7602 = vmatprep.subr.mxu0 0.0
    %7603 = vmatpush1.xpose.msra.mxu0 0.0
    %7604 = vmatprep.subr.mxu0 0.0
    %7605 = vmatpush1.xpose.msra.mxu0 0.0
    %7606 = vmatprep.subr.mxu0 0.0
    %7607 = vmatpush1.xpose.msra.mxu0 0.0
    %7608 = vmatprep.subr.mxu0 0.0
    %7609 = vmatpush1.xpose.msra.mxu0 0.0
    %7610 = vmatprep.subr.mxu0 0.0
    %7611 = vmatpush1.xpose.msra.mxu0 0.0
    %7612 = vmatprep.subr.mxu0 0.0
    %7613 = vmatpush1.xpose.msra.mxu0 0.0
    %7614 = vmatprep.subr.mxu0 0.0
    %7615 = vmatpush1.xpose.msra.mxu0 0.0
    %7616 = vmatprep.subr.mxu0 0.0
    %7617 = vmatpush1.xpose.msra.mxu0 0.0
    %7618 = vmatprep.subr.mxu0 0.0
    %7619 = vmatpush1.xpose.msra.mxu0 0.0
    %7620 = vmatprep.mubr.f32.mxu0 0.0
    %7621 = vmatmul.mubr.f32.gmra.mrb[0].mxu0 %v7552
    %v7622 = vpop.f32.mrb[0].mxu0
    %v7623 = vadd.f32 0.0, %v7622
    %v7624 = vpop.f32.mrb[0].mxu0
    %7625 = vdwg.mxu0
    %v7626 = vmul.f32 %v7623, 0.35355338
    %v7627 = vsel %vm745, %v7626, -inf
    %v7628 = vrot.slane %v7627, 4
    %v7629 = vmax.f32 %v7627, %v7628
    %v7630 = vrot.slane %v7629, 2
    %v7631 = vmax.f32 %v7629, %v7630
    %v7632 = vrot.slane %v7631, 1
    %v7633 = vmax.f32 %v7631, %v7632
    %v7634 = vsub.f32 %v7626, %v7633
    %v7635 = vmul.f32 %v7634, 1.442695
    %v7636 = vpow.pop %v7635
    %v7637 = vsel %vm745, %v7636, 0.0
    %v7638 = vrot.slane %v7637, 4
    %v7639 = vadd.f32 %v7637, %v7638
    %v7640 = vrot.slane %v7639, 2
    %v7641 = vadd.f32 %v7639, %v7640
    %v7642 = vrot.slane %v7641, 1
    %v7643 = vadd.f32 %v7641, %v7642
    %v7644 = vrcp.pop %v7643
    %v7645 = vmul.f32 %v7636, %v7644
    %7646 = vrot.lane.b32.xlu0 %v742, 72
    %v7647 = vpop.permute.xlu0 %7646
    %v7650 = vsel %vm745, %v7645, 0
    %7652 = vmatprep.subr.mxu0 0.0
    %7653 = vmatpush1.msra.mxu0 %v7647
    %7654 = vmatprep.subr.mxu0 0.0
    %7655 = vmatpush1.msra.mxu0 0.0
    %7656 = vmatprep.subr.mxu0 0.0
    %7657 = vmatpush1.msra.mxu0 0.0
    %7658 = vmatprep.subr.mxu0 0.0
    %7659 = vmatpush1.msra.mxu0 0.0
    %7660 = vmatprep.subr.mxu0 0.0
    %7661 = vmatpush1.msra.mxu0 0.0
    %7662 = vmatprep.subr.mxu0 0.0
    %7663 = vmatpush1.msra.mxu0 0.0
    %7664 = vmatprep.subr.mxu0 0.0
    %7665 = vmatpush1.msra.mxu0 0.0
    %7666 = vmatprep.subr.mxu0 0.0
    %7667 = vmatpush1.msra.mxu0 0.0
    %7668 = vmatprep.subr.mxu0 0.0
    %7669 = vmatpush1.msra.mxu0 0.0
    %7670 = vmatprep.subr.mxu0 0.0
    %7671 = vmatpush1.msra.mxu0 0.0
    %7672 = vmatprep.subr.mxu0 0.0
    %7673 = vmatpush1.msra.mxu0 0.0
    %7674 = vmatprep.subr.mxu0 0.0
    %7675 = vmatpush1.msra.mxu0 0.0
    %7676 = vmatprep.subr.mxu0 0.0
    %7677 = vmatpush1.msra.mxu0 0.0
    %7678 = vmatprep.subr.mxu0 0.0
    %7679 = vmatpush1.msra.mxu0 0.0
    %7680 = vmatprep.subr.mxu0 0.0
    %7681 = vmatpush1.msra.mxu0 0.0
    %7682 = vmatprep.subr.mxu0 0.0
    %7683 = vmatpush1.msra.mxu0 0.0
    %7684 = vmatprep.subr.mxu0 0.0
    %7685 = vmatpush1.msra.mxu0 0.0
    %7686 = vmatprep.subr.mxu0 0.0
    %7687 = vmatpush1.msra.mxu0 0.0
    %7688 = vmatprep.subr.mxu0 0.0
    %7689 = vmatpush1.msra.mxu0 0.0
    %7690 = vmatprep.subr.mxu0 0.0
    %7691 = vmatpush1.msra.mxu0 0.0
    %7692 = vmatprep.subr.mxu0 0.0
    %7693 = vmatpush1.msra.mxu0 0.0
    %7694 = vmatprep.subr.mxu0 0.0
    %7695 = vmatpush1.msra.mxu0 0.0
    %7696 = vmatprep.subr.mxu0 0.0
    %7697 = vmatpush1.msra.mxu0 0.0
    %7698 = vmatprep.subr.mxu0 0.0
    %7699 = vmatpush1.msra.mxu0 0.0
    %7700 = vmatprep.subr.mxu0 0.0
    %7701 = vmatpush1.msra.mxu0 0.0
    %7702 = vmatprep.subr.mxu0 0.0
    %7703 = vmatpush1.msra.mxu0 0.0
    %7704 = vmatprep.subr.mxu0 0.0
    %7705 = vmatpush1.msra.mxu0 0.0
    %7706 = vmatprep.subr.mxu0 0.0
    %7707 = vmatpush1.msra.mxu0 0.0
    %7708 = vmatprep.subr.mxu0 0.0
    %7709 = vmatpush1.msra.mxu0 0.0
    %7710 = vmatprep.subr.mxu0 0.0
    %7711 = vmatpush1.msra.mxu0 0.0
    %7712 = vmatprep.subr.mxu0 0.0
    %7713 = vmatpush1.msra.mxu0 0.0
    %7714 = vmatprep.subr.mxu0 0.0
    %7715 = vmatpush1.msra.mxu0 0.0
    %7716 = vmatprep.mubr.f32.mxu0 0.0
    %7717 = vmatmul.mubr.f32.gmra.mrb[0].mxu0 %v7650
    %v7718 = vpop.f32.mrb[0].mxu0
    %v7719 = vadd.f32 0.0, %v7718
    %v7720 = vpop.f32.mrb[0].mxu0
    %7721 = vdwg.mxu0
    %v7723 = vsel %vm745, %v7719, 0
    %7725 = vmatprep.subr.mxu0 0.0
    %7726 = vmatpush1.msra.mxu0 %v266
    %7727 = vmatprep.subr.mxu0 0.0
    %7728 = vmatpush1.msra.mxu0 0.0
    %7729 = vmatprep.subr.mxu0 0.0
    %7730 = vmatpush1.msra.mxu0 0.0
    %7731 = vmatprep.subr.mxu0 0.0
    %7732 = vmatpush1.msra.mxu0 0.0
    %7733 = vmatprep.subr.mxu0 0.0
    %7734 = vmatpush1.msra.mxu0 0.0
    %7735 = vmatprep.subr.mxu0 0.0
    %7736 = vmatpush1.msra.mxu0 0.0
    %7737 = vmatprep.subr.mxu0 0.0
    %7738 = vmatpush1.msra.mxu0 0.0
    %7739 = vmatprep.subr.mxu0 0.0
    %7740 = vmatpush1.msra.mxu0 0.0
    %7741 = vmatprep.subr.mxu0 0.0
    %7742 = vmatpush1.msra.mxu0 0.0
    %7743 = vmatprep.subr.mxu0 0.0
    %7744 = vmatpush1.msra.mxu0 0.0
    %7745 = vmatprep.subr.mxu0 0.0
    %7746 = vmatpush1.msra.mxu0 0.0
    %7747 = vmatprep.subr.mxu0 0.0
    %7748 = vmatpush1.msra.mxu0 0.0
    %7749 = vmatprep.subr.mxu0 0.0
    %7750 = vmatpush1.msra.mxu0 0.0
    %7751 = vmatprep.subr.mxu0 0.0
    %7752 = vmatpush1.msra.mxu0 0.0
    %7753 = vmatprep.subr.mxu0 0.0
    %7754 = vmatpush1.msra.mxu0 0.0
    %7755 = vmatprep.subr.mxu0 0.0
    %7756 = vmatpush1.msra.mxu0 0.0
    %7757 = vmatprep.subr.mxu0 0.0
    %7758 = vmatpush1.msra.mxu0 0.0
    %7759 = vmatprep.subr.mxu0 0.0
    %7760 = vmatpush1.msra.mxu0 0.0
    %7761 = vmatprep.subr.mxu0 0.0
    %7762 = vmatpush1.msra.mxu0 0.0
    %7763 = vmatprep.subr.mxu0 0.0
    %7764 = vmatpush1.msra.mxu0 0.0
    %7765 = vmatprep.subr.mxu0 0.0
    %7766 = vmatpush1.msra.mxu0 0.0
    %7767 = vmatprep.subr.mxu0 0.0
    %7768 = vmatpush1.msra.mxu0 0.0
    %7769 = vmatprep.subr.mxu0 0.0
    %7770 = vmatpush1.msra.mxu0 0.0
    %7771 = vmatprep.subr.mxu0 0.0
    %7772 = vmatpush1.msra.mxu0 0.0
    %7773 = vmatprep.subr.mxu0 0.0
    %7774 = vmatpush1.msra.mxu0 0.0
    %7775 = vmatprep.subr.mxu0 0.0
    %7776 = vmatpush1.msra.mxu0 0.0
    %7777 = vmatprep.subr.mxu0 0.0
    %7778 = vmatpush1.msra.mxu0 0.0
    %7779 = vmatprep.subr.mxu0 0.0
    %7780 = vmatpush1.msra.mxu0 0.0
    %7781 = vmatprep.subr.mxu0 0.0
    %7782 = vmatpush1.msra.mxu0 0.0
    %7783 = vmatprep.subr.mxu0 0.0
    %7784 = vmatpush1.msra.mxu0 0.0
    %7785 = vmatprep.subr.mxu0 0.0
    %7786 = vmatpush1.msra.mxu0 0.0
    %7787 = vmatprep.subr.mxu0 0.0
    %7788 = vmatpush1.msra.mxu0 0.0
    %7789 = vmatprep.mubr.f32.mxu0 0.0
    %7790 = vmatmul.mubr.f32.gmra.mrb[0].mxu0 %v7723
    %v7791 = vpop.f32.mrb[0].mxu0
    %v7792 = vadd.f32 0.0, %v7791
    %v7793 = vpop.f32.mrb[0].mxu0
    %7794 = vdwg.mxu0
    %v7795 = vadd.f32 %v7547, %v7792
    %v7796 = vld [vmem:[#allocation11] sm:$0x1]
    %v7798 = vlaneseq
    %v7799 = vshrl.u32 %v7798, 7
    %v7800 = vsub.s32 0, %v7799
    %v7801 = vrot.slane %v7796, %v7800
    %v7803 = vadd.f32 %v7795, %v7801
    %v7804 = vadd.f32 %v6730, %v7803
    %v7805 = vsel %vm267, %v7804, 0.0
    %7806 = vadd.xlane.f32.xlu0 %v7805
    %v7807 = vpop.xlane.xlu0 %7806
    %v7808 = vmul.f32 %v7807, %v274
    %v7809 = vsub.f32 %v7804, %v7808
    %v7810 = vmul.f32 %v7809, %v7809
    %v7811 = vsel %vm267, %v7810, 0.0
    %7812 = vadd.xlane.f32.xlu0 %v7811
    %v7813 = vpop.xlane.xlu0 %7812
    %v7814 = vmul.f32 %v7813, %v274
    %v7815 = vadd.f32 %v7814, 1e-05
    %v7816 = vrsqrt.pop %v7815
    %v7817 = vmul.f32 %v7809, %v7816
    %v7818 = vld [vmem:[#allocation13] sm:$0x1]
    %v7820 = vlaneseq
    %v7821 = vshrl.u32 %v7820, 7
    %v7822 = vsub.s32 0, %v7821
    %v7823 = vrot.slane %v7818, %v7822
    %v7825 = vmul.f32 %v7817, %v7823
    %v7826 = vld [vmem:[#allocation14] sm:$0x1]
    %v7828 = vlaneseq
    %v7829 = vshrl.u32 %v7828, 7
    %v7830 = vsub.s32 0, %v7829
    %v7831 = vrot.slane %v7826, %v7830
    %v7833 = vadd.f32 %v7825, %v7831
    %v7834 = vadd.f32 %v6701, %v7833
    %v7835 = vsel %vm267, %v7834, 0.0
    %7836 = vadd.xlane.f32.xlu0 %v7835
    %v7837 = vpop.xlane.xlu0 %7836
    %v7838 = vmul.f32 %v7837, %v274
    %v7839 = vsub.f32 %v7834, %v7838
    %v7840 = vmul.f32 %v7839, %v7839
    %v7841 = vsel %vm267, %v7840, 0.0
    %7842 = vadd.xlane.f32.xlu0 %v7841
    %v7843 = vpop.xlane.xlu0 %7842
    %v7844 = vmul.f32 %v7843, %v274
    %v7845 = vadd.f32 %v7844, 1e-05
    %v7846 = vrsqrt.pop %v7845
    %v7847 = vmul.f32 %v7839, %v7846
    %v7848 = vld [vmem:[%s47] sm:$0x1]
    %v7850 = vlaneseq
    %v7851 = vshrl.u32 %v7850, 7
    %v7852 = vsub.s32 0, %v7851
    %v7853 = vrot.slane %v7848, %v7852
    %v7855 = vmul.f32 %v7847, %v7853
    %v7856 = vld [vmem:[%s49] sm:$0x1]
    %v7858 = vlaneseq
    %v7859 = vshrl.u32 %v7858, 7
    %v7860 = vsub.s32 0, %v7859
    %v7861 = vrot.slane %v7856, %v7860
    %v7863 = vadd.f32 %v7855, %v7861
    %v7864 = vld [vmem:[#allocation16] sm:$0xff]
    %v7865 = vld [vmem:[#allocation16 + $0x8] sm:$0xff]
    %v7866 = vld [vmem:[#allocation16 + $0x10] sm:$0xff]
    %v7867 = vld [vmem:[#allocation16 + $0x18] sm:$0xff]
    %v7868 = vld [vmem:[#allocation17] sm:$0x1]
    %v7870 = vlaneseq
    %v7871 = vshrl.u32 %v7870, 7
    %v7872 = vsub.s32 0, %v7871
    %v7873 = vrot.slane %v7868, %v7872
    %v7876 = vsel %vm267, %v7863, 0
    %7878 = vmatprep.subr.mxu0 0.0
    %7879 = vmatpush1.msra.mxu0 %v7864
    %7880 = vmatprep.subr.mxu0 0.0
    %7881 = vmatpush1.msra.mxu0 %v7865
    %7882 = vmatprep.subr.mxu0 0.0
    %7883 = vmatpush1.msra.mxu0 %v7866
    %7884 = vmatprep.subr.mxu0 0.0
    %7885 = vmatpush1.msra.mxu0 %v7867
    %7886 = vmatprep.subr.mxu0 0.0
    %7887 = vmatpush1.msra.mxu0 0.0
    %7888 = vmatprep.subr.mxu0 0.0
    %7889 = vmatpush1.msra.mxu0 0.0
    %7890 = vmatprep.subr.mxu0 0.0
    %7891 = vmatpush1.msra.mxu0 0.0
    %7892 = vmatprep.subr.mxu0 0.0
    %7893 = vmatpush1.msra.mxu0 0.0
    %7894 = vmatprep.subr.mxu0 0.0
    %7895 = vmatpush1.msra.mxu0 0.0
    %7896 = vmatprep.subr.mxu0 0.0
    %7897 = vmatpush1.msra.mxu0 0.0
    %7898 = vmatprep.subr.mxu0 0.0
    %7899 = vmatpush1.msra.mxu0 0.0
    %7900 = vmatprep.subr.mxu0 0.0
    %7901 = vmatpush1.msra.mxu0 0.0
    %7902 = vmatprep.subr.mxu0 0.0
    %7903 = vmatpush1.msra.mxu0 0.0
    %7904 = vmatprep.subr.mxu0 0.0
    %7905 = vmatpush1.msra.mxu0 0.0
    %7906 = vmatprep.subr.mxu0 0.0
    %7907 = vmatpush1.msra.mxu0 0.0
    %7908 = vmatprep.subr.mxu0 0.0
    %7909 = vmatpush1.msra.mxu0 0.0
    %7910 = vmatprep.subr.mxu0 0.0
    %7911 = vmatpush1.msra.mxu0 0.0
    %7912 = vmatprep.subr.mxu0 0.0
    %7913 = vmatpush1.msra.mxu0 0.0
    %7914 = vmatprep.subr.mxu0 0.0
    %7915 = vmatpush1.msra.mxu0 0.0
    %7916 = vmatprep.subr.mxu0 0.0
    %7917 = vmatpush1.msra.mxu0 0.0
    %7918 = vmatprep.subr.mxu0 0.0
    %7919 = vmatpush1.msra.mxu0 0.0
    %7920 = vmatprep.subr.mxu0 0.0
    %7921 = vmatpush1.msra.mxu0 0.0
    %7922 = vmatprep.subr.mxu0 0.0
    %7923 = vmatpush1.msra.mxu0 0.0
    %7924 = vmatprep.subr.mxu0 0.0
    %7925 = vmatpush1.msra.mxu0 0.0
    %7926 = vmatprep.subr.mxu0 0.0
    %7927 = vmatpush1.msra.mxu0 0.0
    %7928 = vmatprep.subr.mxu0 0.0
    %7929 = vmatpush1.msra.mxu0 0.0
    %7930 = vmatprep.subr.mxu0 0.0
    %7931 = vmatpush1.msra.mxu0 0.0
    %7932 = vmatprep.subr.mxu0 0.0
    %7933 = vmatpush1.msra.mxu0 0.0
    %7934 = vmatprep.subr.mxu0 0.0
    %7935 = vmatpush1.msra.mxu0 0.0
    %7936 = vmatprep.subr.mxu0 0.0
    %7937 = vmatpush1.msra.mxu0 0.0
    %7938 = vmatprep.subr.mxu0 0.0
    %7939 = vmatpush1.msra.mxu0 0.0
    %7940 = vmatprep.subr.mxu0 0.0
    %7941 = vmatpush1.msra.mxu0 0.0
    %7942 = vmatprep.mubr.f32.mxu0 0.0
    %7943 = vmatmul.mubr.f32.gmra.mrb[0].mxu0 %v7876
    %v7944 = vpop.f32.mrb[0].mxu0
    %v7945 = vadd.f32 %v7873, %v7944
    %v7946 = vpop.f32.mrb[0].mxu0
    %7947 = vdwg.mxu0
    %v7948 = vmul.f32 %v7945, 0.5
    %v7949 = vmul.f32 %v7945, 0.70710677
    %vm7950 = vcmp.ge.f32.partialorder %v7949, 0.0
    %v7951 = vsel %vm7950, 1.0, -1.0
    %v7952 = vand.u32 2147483647, %v7949
    %v7953 = vmul.f32 %v7952, 0.3275911
    %v7954 = vadd.f32 %v7953, 1.0
    %v7955 = vrcp.pop %v7954
    %v7956 = vmul.f32 1.0, %v7955
    %v7957 = vmul.f32 %v7956, 1.0614054
    %v7958 = vadd.f32 %v7957, -1.4531521
    %v7959 = vmul.f32 %v7958, %v7956
    %v7960 = vadd.f32 %v7959, 1.4214138
    %v7961 = vmul.f32 %v7960, %v7956
    %v7962 = vadd.f32 %v7961, -0.28449672
    %v7963 = vmul.f32 %v7962, %v7956
    %v7964 = vadd.f32 %v7963, 0.2548296
    %v7965 = vmul.f32 %v7964, %v7956
    %v7966 = vsub.f32 0.0, %v7952
    %v7967 = vmul.f32 %v7966, %v7952
    %v7968 = vmul.f32 %v7967, 1.442695
    %v7969 = vpow.pop %v7968
    %v7970 = vmul.f32 %v7965, %v7969
    %v7971 = vsub.f32 1.0, %v7970
    %v7972 = vmul.f32 %v7951, %v7971
    %v7973 = vadd.f32 %v7972, 1.0
    %v7974 = vmul.f32 %v7948, %v7973
    %v7975 = vld [vmem:[%s55] sm:$0xff]
    %v7976 = vld [vmem:[%s55 + $0x8] sm:$0xff]
    %v7977 = vld [vmem:[%s55 + $0x10] sm:$0xff]
    %v7978 = vld [vmem:[%s55 + $0x18] sm:$0xff]
    %v7979 = vld [vmem:[%s55 + $0x20] sm:$0xff]
    %v7980 = vld [vmem:[%s55 + $0x28] sm:$0xff]
    %v7981 = vld [vmem:[%s55 + $0x30] sm:$0xff]
    %v7982 = vld [vmem:[%s55 + $0x38] sm:$0xff]
    %v7983 = vld [vmem:[%s57] sm:$0x1]
    %v7985 = vlaneseq
    %v7986 = vshrl.u32 %v7985, 7
    %v7987 = vsub.s32 0, %v7986
    %v7988 = vrot.slane %v7983, %v7987
    %v7991 = vsel %vm4345, %v7974, 0
    %7993 = vmatprep.subr.mxu0 0.0
    %7994 = vmatpush1.msra.mxu0 %v7975
    %7995 = vmatprep.subr.mxu0 0.0
    %7996 = vmatpush1.msra.mxu0 %v7976
    %7997 = vmatprep.subr.mxu0 0.0
    %7998 = vmatpush1.msra.mxu0 %v7977
    %7999 = vmatprep.subr.mxu0 0.0
    %8000 = vmatpush1.msra.mxu0 %v7978
    %8001 = vmatprep.subr.mxu0 0.0
    %8002 = vmatpush1.msra.mxu0 %v7979
    %8003 = vmatprep.subr.mxu0 0.0
    %8004 = vmatpush1.msra.mxu0 %v7980
    %8005 = vmatprep.subr.mxu0 0.0
    %8006 = vmatpush1.msra.mxu0 %v7981
    %8007 = vmatprep.subr.mxu0 0.0
    %8008 = vmatpush1.msra.mxu0 %v7982
    %8009 = vmatprep.subr.mxu0 0.0
    %8010 = vmatpush1.msra.mxu0 0.0
    %8011 = vmatprep.subr.mxu0 0.0
    %8012 = vmatpush1.msra.mxu0 0.0
    %8013 = vmatprep.subr.mxu0 0.0
    %8014 = vmatpush1.msra.mxu0 0.0
    %8015 = vmatprep.subr.mxu0 0.0
    %8016 = vmatpush1.msra.mxu0 0.0
    %8017 = vmatprep.subr.mxu0 0.0
    %8018 = vmatpush1.msra.mxu0 0.0
    %8019 = vmatprep.subr.mxu0 0.0
    %8020 = vmatpush1.msra.mxu0 0.0
    %8021 = vmatprep.subr.mxu0 0.0
    %8022 = vmatpush1.msra.mxu0 0.0
    %8023 = vmatprep.subr.mxu0 0.0
    %8024 = vmatpush1.msra.mxu0 0.0
    %8025 = vmatprep.subr.mxu0 0.0
    %8026 = vmatpush1.msra.mxu0 0.0
    %8027 = vmatprep.subr.mxu0 0.0
    %8028 = vmatpush1.msra.mxu0 0.0
    %8029 = vmatprep.subr.mxu0 0.0
    %8030 = vmatpush1.msra.mxu0 0.0
    %8031 = vmatprep.subr.mxu0 0.0
    %8032 = vmatpush1.msra.mxu0 0.0
    %8033 = vmatprep.subr.mxu0 0.0
    %8034 = vmatpush1.msra.mxu0 0.0
    %8035 = vmatprep.subr.mxu0 0.0
    %8036 = vmatpush1.msra.mxu0 0.0
    %8037 = vmatprep.subr.mxu0 0.0
    %8038 = vmatpush1.msra.mxu0 0.0
    %8039 = vmatprep.subr.mxu0 0.0
    %8040 = vmatpush1.msra.mxu0 0.0
    %8041 = vmatprep.subr.mxu0 0.0
    %8042 = vmatpush1.msra.mxu0 0.0
    %8043 = vmatprep.subr.mxu0 0.0
    %8044 = vmatpush1.msra.mxu0 0.0
    %8045 = vmatprep.subr.mxu0 0.0
    %8046 = vmatpush1.msra.mxu0 0.0
    %8047 = vmatprep.subr.mxu0 0.0
    %8048 = vmatpush1.msra.mxu0 0.0
    %8049 = vmatprep.subr.mxu0 0.0
    %8050 = vmatpush1.msra.mxu0 0.0
    %8051 = vmatprep.subr.mxu0 0.0
    %8052 = vmatpush1.msra.mxu0 0.0
    %8053 = vmatprep.subr.mxu0 0.0
    %8054 = vmatpush1.msra.mxu0 0.0
    %8055 = vmatprep.subr.mxu0 0.0
    %8056 = vmatpush1.msra.mxu0 0.0
    %8057 = vmatprep.mubr.f32.mxu0 0.0
    %8058 = vmatmul.mubr.f32.gmra.mrb[0].mxu0 %v7991
    %v8059 = vpop.f32.mrb[0].mxu0
    %v8060 = vadd.f32 %v7988, %v8059
    %v8061 = vpop.f32.mrb[0].mxu0
    %8062 = vdwg.mxu0
    %v8063 = vadd.f32 %v7834, %v8060
    %8064 = vst.msk [vmem:[#allocation19 + $0x8] sm:$0xff] %vm267, %v8063
    // Predicated region
    $region158: #{transformer_decoder_layer_relative.1} parent=1 // pred_check
      _
    $region159: #{transformer_decoder_layer_relative.1} parent=1 // pred_check_branch
      %8066 = sbr.rel (0) target = $region161
    $region160: #{transformer_decoder_layer_relative.1} parent=1 // pred_region
      %s8068 = ssub.s32 256, 256
      %8069 = vsyncadd [#allocation4], %s8068
      %s8070 = sshll.u32 [#allocation19], 4
      %s8071 = int_to_ptr.vmem [resolvable:$true] %s8070
      %8076 = dma.vmem_to_hbm [thread:$0]  %s8071, 256, %s59, [#allocation4], 128, 128, 8
    $region161: #{transformer_decoder_layer_relative.1} parent=1 // pred_fallthru
      _
    // Predicated region
    $region162: #{transformer_decoder_layer_relative.1} parent=1 // pred_check
      _
    $region163: #{transformer_decoder_layer_relative.1} parent=1 // pred_check_branch
      %8078 = sbr.rel (0) target = $region165
    $region164: #{transformer_decoder_layer_relative.1} parent=1 // pred_region
      %8079 = dma.done [#allocation4], 256
    $region165: #{transformer_decoder_layer_relative.1} parent=1 // pred_fallthru
      _
    %8080 = vsyncpa [#allocation3], 1
    %8081 = vsyncpa [#allocation6], 1
    %8082 = vsyncpa [#allocation9], 1
    %8083 = vsyncpa [#allocation12], 1
    %8084 = vsyncpa [#allocation15], 1
    %8085 = vsyncpa [#allocation18], 1
    %8086 = vsyncpa [#allocation4], 1

</llo_original>
